<compile_context>
chip_gen: v7x
topology: tpu7x:2x2x1
jax: 0.10.0
libtpu: 0.0.40
codegen_flags: <defaults>
</compile_context>

<pallas_src>
import functools

import jax
import jax.numpy as jnp
from jax import lax
from jax.experimental import pallas as pl
from jax.experimental.pallas import tpu as pltpu

EPS = 1e-5
C_PAD = 128     # padded channel width (lane-dense)
R_PAD = 128     # padded SE hidden width


def _vmem_spec():
    return pl.BlockSpec(memory_space=pltpu.MemorySpace.VMEM)


def _pad_last(a, size):
    cfg = [(0, 0)] * (a.ndim - 1) + [(0, size - a.shape[-1])]
    return jnp.pad(a, cfg)


# ------------------------------ Pallas kernel -------------------------------

def stem_fused_kernel(stride, n, ho, wo,
                      xp_ref,                              # (n, h+2, w+2, cin) bf16
                      w1_ref, b1_ref, g1_ref, be1_ref,     # conv1 + BN1
                      w2_ref, b2_ref,                      # conv2
                      w3_ref, b3_ref, g2_ref, be2_ref,     # conv 1x1 + BN2
                      wse1_ref, wse2_ref,                  # SE weights
                      o_ref,                               # (n, ho*wo, C_PAD) f32
                      ypad_ref):                           # scratch (n, ho+2, wo+2, C_PAD) f32
    cin = xp_ref.shape[-1]
    cpad = o_ref.shape[-1]
    hw = ho * wo
    m = n * hw
    inv_m = 1.0 / m

    xv = xp_ref[...]                                       # bf16, tiny

    def x_tap(ki, kj):
        # shifted / strided view of the spatially padded input (in-kernel im2col)
        v = lax.slice(
            xv,
            (0, ki, kj, 0),
            (n, ki + stride * (ho - 1) + 1, kj + stride * (wo - 1) + 1, cin),
            (1, stride, stride, 1))
        return v.reshape(m, cin)

    # ---- branch c1, conv #1: 3x3, stride, pad 1 (9 small matmuls) ----------
    acc = None
    for ki in range(3):
        for kj in range(3):
            d = jnp.dot(x_tap(ki, kj), w1_ref[ki, kj],
                        preferred_element_type=jnp.float32)
            acc = d if acc is None else acc + d
    y = acc + b1_ref[...]                                  # (m, cpad) f32

    # BatchNorm (batch stats), single pass: var = E[y^2] - mean^2
    mean = jnp.sum(y, axis=0, keepdims=True) * inv_m
    var = jnp.sum(y * y, axis=0, keepdims=True) * inv_m - mean * mean
    y = (y - mean) * lax.rsqrt(var + EPS) * g1_ref[...] + be1_ref[...]
    y = jnp.maximum(y, 0.0)                                # ReLU

    # ---- branch c1, conv #2: 3x3, stride 1, pad 1 -- y1 stays in VMEM ------
    ypad_ref[...] = jnp.zeros_like(ypad_ref)               # zero halo
    ypad_ref[:, 1:ho + 1, 1:wo + 1, :] = y.reshape(n, ho, wo, cpad)

    acc2 = None
    for ki in range(3):
        for kj in range(3):
            v = ypad_ref[:, ki:ki + ho, kj:kj + wo, :]
            v = v.reshape(m, cpad).astype(jnp.bfloat16)
            d = jnp.dot(v, w2_ref[ki, kj],
                        preferred_element_type=jnp.float32)
            acc2 = d if acc2 is None else acc2 + d
    x1 = acc2 + b2_ref[...]                                # (m, cpad) f32

    # ---- branch c2: 1x1 conv (stride) + BatchNorm ---------------------------
    s = jnp.dot(x_tap(1, 1), w3_ref[...],
                preferred_element_type=jnp.float32) + b3_ref[...]
    mean2 = jnp.sum(s, axis=0, keepdims=True) * inv_m
    var2 = jnp.sum(s * s, axis=0, keepdims=True) * inv_m - mean2 * mean2
    s = (s - mean2) * lax.rsqrt(var2 + EPS) * g2_ref[...] + be2_ref[...]

    # ---- residual add + Squeeze-Excitation ----------------------------------
    z = (x1 + s).reshape(n, hw, cpad)
    pooled = jnp.sum(z, axis=1) * (1.0 / hw)               # (n, cpad) global avg pool
    h = jnp.maximum(jnp.dot(pooled, wse1_ref[...],
                            preferred_element_type=jnp.float32), 0.0)
    gate = jax.nn.sigmoid(jnp.dot(h, wse2_ref[...],
                                  preferred_element_type=jnp.float32))
    o_ref[...] = z * gate[:, None, :]                      # lane-dense (cpad=128) store


# ------------------------------- glue (JAX) ---------------------------------

def init_params(key, in_c, out_c, r=8):
    ks = jax.random.split(key, 8)
    p = {}
    p["w1"] = 0.1 * jax.random.normal(ks[0], (out_c, in_c, 3, 3), jnp.float32)
    p["b1"] = 0.05 * jax.random.normal(ks[1], (out_c,), jnp.float32)
    p["g1"] = jnp.ones((out_c,), jnp.float32)
    p["be1"] = jnp.zeros((out_c,), jnp.float32)
    p["w2"] = 0.1 * jax.random.normal(ks[2], (out_c, out_c, 3, 3), jnp.float32)
    p["b2"] = 0.05 * jax.random.normal(ks[3], (out_c,), jnp.float32)
    p["w3"] = 0.1 * jax.random.normal(ks[4], (out_c, in_c, 1, 1), jnp.float32)
    p["b3"] = 0.05 * jax.random.normal(ks[5], (out_c,), jnp.float32)
    p["g2"] = jnp.ones((out_c,), jnp.float32)
    p["be2"] = jnp.zeros((out_c,), jnp.float32)
    p["wse1"] = 0.2 * jax.random.normal(ks[6], (out_c // r, out_c), jnp.float32)
    p["wse2"] = 0.2 * jax.random.normal(ks[7], (out_c, out_c // r), jnp.float32)
    return p


def prepare_params(p, cpad=C_PAD, rpad=R_PAD):
    """Channel-pad + re-layout parameters once (folds MXU/lane padding in)."""
    out_c, in_c = p["w1"].shape[0], p["w1"].shape[1]
    hid = p["wse1"].shape[0]
    q = {}
    # conv weights -> (kh, kw, cin, cout_pad), bf16
    w1 = jnp.transpose(p["w1"], (2, 3, 1, 0))                        # (3,3,in_c,out_c)
    q["w1"] = _pad_last(w1, cpad).astype(jnp.bfloat16)
    w2 = jnp.transpose(p["w2"], (2, 3, 1, 0))                        # (3,3,out_c,out_c)
    q["w2"] = jnp.pad(
        w2, ((0, 0), (0, 0), (0, cpad - out_c), (0, cpad - out_c))
    ).astype(jnp.bfloat16)
    w3 = p["w3"].reshape(out_c, in_c).T                              # (in_c,out_c)
    q["w3"] = _pad_last(w3, cpad).astype(jnp.bfloat16)
    # bias / BN params, f32, padded with zeros (padded lanes stay exactly 0)
    for k in ("b1", "g1", "be1", "b2", "b3", "g2", "be2"):
        q[k] = _pad_last(p[k].reshape(1, -1), cpad)
    # SE weights (kept f32; tiny matmuls)
    q["wse1"] = jnp.pad(p["wse1"].T, ((0, cpad - out_c), (0, rpad - hid)))
    q["wse2"] = jnp.pad(p["wse2"].T, ((0, rpad - hid), (0, cpad - out_c)))
    return q


def stem_block(x_nchw, params, stride):
    n, in_c, h, w = x_nchw.shape
    out_c = params["w1"].shape[0]
    ho = (h + 2 - 3) // stride + 1
    wo = (w + 2 - 3) // stride + 1
    hw = ho * wo

    q = prepare_params(params)

    # single boundary layout change: NCHW -> NHWC, spatial zero pad 1, bf16
    x_nhwc = jnp.transpose(x_nchw, (0, 2, 3, 1))
    xp = jnp.pad(x_nhwc, ((0, 0), (1, 1), (1, 1), (0, 0))).astype(jnp.bfloat16)

    kern = functools.partial(stem_fused_kernel, stride, n, ho, wo)
    out = pl.pallas_call(
        kern,
        out_shape=jax.ShapeDtypeStruct((n, hw, C_PAD), jnp.float32),
        in_specs=[_vmem_spec()] * 13,
        out_specs=_vmem_spec(),
        scratch_shapes=[pltpu.VMEM((n, ho + 2, wo + 2, C_PAD), jnp.float32)],
        compiler_params=pltpu.CompilerParams(
            vmem_limit_bytes=48 * 1024 * 1024),
    )(xp,
      q["w1"], q["b1"], q["g1"], q["be1"],
      q["w2"], q["b2"],
      q["w3"], q["b3"], q["g2"], q["be2"],
      q["wse1"], q["wse2"])

    # strip channel padding, back to NCHW at the module boundary
    out = out[:, :, :out_c].reshape(n, ho, wo, out_c)
    return jnp.transpose(out, (0, 3, 1, 2))


# ----------------------- pure-JAX reference (check) -------------------------

def stem_block_ref(x, p, stride):
    def conv(x, w, b, s, pad):
        y = jax.lax.conv_general_dilated(
            x, w, (s, s), [(pad, pad), (pad, pad)],
            dimension_numbers=("NCHW", "OIHW", "NCHW"))
        return y + b[None, :, None, None]

    def bn(x, g, be):
        mean = x.mean(axis=(0, 2, 3), keepdims=True)
        var = ((x - mean) ** 2).mean(axis=(0, 2, 3), keepdims=True)
        return ((x - mean) * jax.lax.rsqrt(var + EPS)
                * g[None, :, None, None] + be[None, :, None, None])

    x1 = conv(x, p["w1"], p["b1"], stride, 1)
    x1 = jnp.maximum(bn(x1, p["g1"], p["be1"]), 0.0)
    x1 = conv(x1, p["w2"], p["b2"], 1, 1)
    s2 = bn(conv(x, p["w3"], p["b3"], stride, 0), p["g2"], p["be2"])
    z = x1 + s2
    pooled = z.mean(axis=(2, 3))
    hdn = jnp.maximum(pooled @ p["wse1"].T, 0.0)
    gate = jax.nn.sigmoid(hdn @ p["wse2"].T)
    return z * gate[:, :, None, None]


# ----------------------------------- main -----------------------------------

if __name__ == "__main__":
    key = jax.random.PRNGKey(0)
    kx, kp = jax.random.split(key)

    N, IN_C, OUT_C, H, W, STRIDE = 2, 4, 16, 16, 16, 1
    x = jax.random.normal(kx, (N, IN_C, H, W), jnp.float32)
    params = init_params(kp, IN_C, OUT_C)

    out = jax.block_until_ready(stem_block(x, params, STRIDE))
    ref = jax.block_until_ready(stem_block_ref(x, params, STRIDE))

    assert out.shape == ref.shape == (N, OUT_C, H // STRIDE, W // STRIDE)
    err = float(jnp.max(jnp.abs(out - ref)))
    # bf16 matmul inputs -> loosened tolerance vs the f32 reference
    assert jnp.allclose(out, ref, atol=5e-2, rtol=5e-2), err

    print("KERNEL_OK")
</pallas_src>

<mosaic_0001>
module attributes {stable_mosaic.version = 11 : i64} {
  func.func @stem_fused_kernel(%arg0: memref<2x18x18x4xbf16, #tpu.memory_space<vmem>>, %arg1: memref<3x3x4x128xbf16, #tpu.memory_space<vmem>>, %arg2: memref<1x128xf32, #tpu.memory_space<vmem>>, %arg3: memref<1x128xf32, #tpu.memory_space<vmem>>, %arg4: memref<1x128xf32, #tpu.memory_space<vmem>>, %arg5: memref<3x3x128x128xbf16, #tpu.memory_space<vmem>>, %arg6: memref<1x128xf32, #tpu.memory_space<vmem>>, %arg7: memref<4x128xbf16, #tpu.memory_space<vmem>>, %arg8: memref<1x128xf32, #tpu.memory_space<vmem>>, %arg9: memref<1x128xf32, #tpu.memory_space<vmem>>, %arg10: memref<1x128xf32, #tpu.memory_space<vmem>>, %arg11: memref<128x128xf32, #tpu.memory_space<vmem>>, %arg12: memref<128x128xf32, #tpu.memory_space<vmem>>, %arg13: memref<2x256x128xf32, #tpu.memory_space<vmem>>, %arg14: memref<2x18x18x128xf32, #tpu.memory_space<vmem>>) attributes {dimension_semantics = [], scalar_prefetch = 0 : i64, scratch_operands = 1 : i64, tpu.core_type = #tpu.core_type<tc>} {
    %c0 = arith.constant 0 : index
    %c0_0 = arith.constant 0 : index
    %c0_1 = arith.constant 0 : index
    %c0_2 = arith.constant 0 : index
    %0 = vector.load %arg0[%c0, %c0_0, %c0_1, %c0_2] : memref<2x18x18x4xbf16, #tpu.memory_space<vmem>>, vector<2x18x18x4xbf16>
    %1 = vector.extract_strided_slice %0 {offsets = [0, 0, 0, 0], sizes = [2, 16, 16, 4], strides = [1, 1, 1, 1]} : vector<2x18x18x4xbf16> to vector<2x16x16x4xbf16>
    %2 = vector.shape_cast %1 : vector<2x16x16x4xbf16> to vector<512x4xbf16>
    %c0_3 = arith.constant 0 : index
    %c0_4 = arith.constant 0 : index
    %c0_5 = arith.constant 0 : index
    %c0_6 = arith.constant 0 : index
    %3 = vector.load %arg1[%c0_3, %c0_4, %c0_5, %c0_6] : memref<3x3x4x128xbf16, #tpu.memory_space<vmem>>, vector<1x1x4x128xbf16>
    %4 = vector.shape_cast %3 : vector<1x1x4x128xbf16> to vector<4x128xbf16>
    %cst = arith.constant dense<0.000000e+00> : vector<512x128xf32>
    %5 = tpu.matmul %2, %4, %cst {dimension_numbers = #tpu.dot_dimension_numbers<[1], [0], [0], [1], [0, 0, 1, 1], [], []>} : vector<512x4xbf16>, vector<4x128xbf16>, vector<512x128xf32> -> vector<512x128xf32>
    %6 = vector.extract_strided_slice %0 {offsets = [0, 0, 1, 0], sizes = [2, 16, 16, 4], strides = [1, 1, 1, 1]} : vector<2x18x18x4xbf16> to vector<2x16x16x4xbf16>
    %7 = vector.shape_cast %6 : vector<2x16x16x4xbf16> to vector<512x4xbf16>
    %c0_7 = arith.constant 0 : index
    %c1 = arith.constant 1 : index
    %c0_8 = arith.constant 0 : index
    %c0_9 = arith.constant 0 : index
    %8 = vector.load %arg1[%c0_7, %c1, %c0_8, %c0_9] : memref<3x3x4x128xbf16, #tpu.memory_space<vmem>>, vector<1x1x4x128xbf16>
    %9 = vector.shape_cast %8 : vector<1x1x4x128xbf16> to vector<4x128xbf16>
    %cst_10 = arith.constant dense<0.000000e+00> : vector<512x128xf32>
    %10 = tpu.matmul %7, %9, %cst_10 {dimension_numbers = #tpu.dot_dimension_numbers<[1], [0], [0], [1], [0, 0, 1, 1], [], []>} : vector<512x4xbf16>, vector<4x128xbf16>, vector<512x128xf32> -> vector<512x128xf32>
    %11 = arith.addf %5, %10 : vector<512x128xf32>
    %12 = vector.extract_strided_slice %0 {offsets = [0, 0, 2, 0], sizes = [2, 16, 16, 4], strides = [1, 1, 1, 1]} : vector<2x18x18x4xbf16> to vector<2x16x16x4xbf16>
    %13 = vector.shape_cast %12 : vector<2x16x16x4xbf16> to vector<512x4xbf16>
    %c0_11 = arith.constant 0 : index
    %c2 = arith.constant 2 : index
    %c0_12 = arith.constant 0 : index
    %c0_13 = arith.constant 0 : index
    %14 = vector.load %arg1[%c0_11, %c2, %c0_12, %c0_13] : memref<3x3x4x128xbf16, #tpu.memory_space<vmem>>, vector<1x1x4x128xbf16>
    %15 = vector.shape_cast %14 : vector<1x1x4x128xbf16> to vector<4x128xbf16>
    %cst_14 = arith.constant dense<0.000000e+00> : vector<512x128xf32>
    %16 = tpu.matmul %13, %15, %cst_14 {dimension_numbers = #tpu.dot_dimension_numbers<[1], [0], [0], [1], [0, 0, 1, 1], [], []>} : vector<512x4xbf16>, vector<4x128xbf16>, vector<512x128xf32> -> vector<512x128xf32>
    %17 = arith.addf %11, %16 : vector<512x128xf32>
    %18 = vector.extract_strided_slice %0 {offsets = [0, 1, 0, 0], sizes = [2, 16, 16, 4], strides = [1, 1, 1, 1]} : vector<2x18x18x4xbf16> to vector<2x16x16x4xbf16>
    %19 = vector.shape_cast %18 : vector<2x16x16x4xbf16> to vector<512x4xbf16>
    %c1_15 = arith.constant 1 : index
    %c0_16 = arith.constant 0 : index
    %c0_17 = arith.constant 0 : index
    %c0_18 = arith.constant 0 : index
    %20 = vector.load %arg1[%c1_15, %c0_16, %c0_17, %c0_18] : memref<3x3x4x128xbf16, #tpu.memory_space<vmem>>, vector<1x1x4x128xbf16>
    %21 = vector.shape_cast %20 : vector<1x1x4x128xbf16> to vector<4x128xbf16>
    %cst_19 = arith.constant dense<0.000000e+00> : vector<512x128xf32>
    %22 = tpu.matmul %19, %21, %cst_19 {dimension_numbers = #tpu.dot_dimension_numbers<[1], [0], [0], [1], [0, 0, 1, 1], [], []>} : vector<512x4xbf16>, vector<4x128xbf16>, vector<512x128xf32> -> vector<512x128xf32>
    %23 = arith.addf %17, %22 : vector<512x128xf32>
    %24 = vector.extract_strided_slice %0 {offsets = [0, 1, 1, 0], sizes = [2, 16, 16, 4], strides = [1, 1, 1, 1]} : vector<2x18x18x4xbf16> to vector<2x16x16x4xbf16>
    %25 = vector.shape_cast %24 : vector<2x16x16x4xbf16> to vector<512x4xbf16>
    %c1_20 = arith.constant 1 : index
    %c1_21 = arith.constant 1 : index
    %c0_22 = arith.constant 0 : index
    %c0_23 = arith.constant 0 : index
    %26 = vector.load %arg1[%c1_20, %c1_21, %c0_22, %c0_23] : memref<3x3x4x128xbf16, #tpu.memory_space<vmem>>, vector<1x1x4x128xbf16>
    %27 = vector.shape_cast %26 : vector<1x1x4x128xbf16> to vector<4x128xbf16>
    %cst_24 = arith.constant dense<0.000000e+00> : vector<512x128xf32>
    %28 = tpu.matmul %25, %27, %cst_24 {dimension_numbers = #tpu.dot_dimension_numbers<[1], [0], [0], [1], [0, 0, 1, 1], [], []>} : vector<512x4xbf16>, vector<4x128xbf16>, vector<512x128xf32> -> vector<512x128xf32>
    %29 = arith.addf %23, %28 : vector<512x128xf32>
    %30 = vector.extract_strided_slice %0 {offsets = [0, 1, 2, 0], sizes = [2, 16, 16, 4], strides = [1, 1, 1, 1]} : vector<2x18x18x4xbf16> to vector<2x16x16x4xbf16>
    %31 = vector.shape_cast %30 : vector<2x16x16x4xbf16> to vector<512x4xbf16>
    %c1_25 = arith.constant 1 : index
    %c2_26 = arith.constant 2 : index
    %c0_27 = arith.constant 0 : index
    %c0_28 = arith.constant 0 : index
    %32 = vector.load %arg1[%c1_25, %c2_26, %c0_27, %c0_28] : memref<3x3x4x128xbf16, #tpu.memory_space<vmem>>, vector<1x1x4x128xbf16>
    %33 = vector.shape_cast %32 : vector<1x1x4x128xbf16> to vector<4x128xbf16>
    %cst_29 = arith.constant dense<0.000000e+00> : vector<512x128xf32>
    %34 = tpu.matmul %31, %33, %cst_29 {dimension_numbers = #tpu.dot_dimension_numbers<[1], [0], [0], [1], [0, 0, 1, 1], [], []>} : vector<512x4xbf16>, vector<4x128xbf16>, vector<512x128xf32> -> vector<512x128xf32>
    %35 = arith.addf %29, %34 : vector<512x128xf32>
    %36 = vector.extract_strided_slice %0 {offsets = [0, 2, 0, 0], sizes = [2, 16, 16, 4], strides = [1, 1, 1, 1]} : vector<2x18x18x4xbf16> to vector<2x16x16x4xbf16>
    %37 = vector.shape_cast %36 : vector<2x16x16x4xbf16> to vector<512x4xbf16>
    %c2_30 = arith.constant 2 : index
    %c0_31 = arith.constant 0 : index
    %c0_32 = arith.constant 0 : index
    %c0_33 = arith.constant 0 : index
    %38 = vector.load %arg1[%c2_30, %c0_31, %c0_32, %c0_33] : memref<3x3x4x128xbf16, #tpu.memory_space<vmem>>, vector<1x1x4x128xbf16>
    %39 = vector.shape_cast %38 : vector<1x1x4x128xbf16> to vector<4x128xbf16>
    %cst_34 = arith.constant dense<0.000000e+00> : vector<512x128xf32>
    %40 = tpu.matmul %37, %39, %cst_34 {dimension_numbers = #tpu.dot_dimension_numbers<[1], [0], [0], [1], [0, 0, 1, 1], [], []>} : vector<512x4xbf16>, vector<4x128xbf16>, vector<512x128xf32> -> vector<512x128xf32>
    %41 = arith.addf %35, %40 : vector<512x128xf32>
    %42 = vector.extract_strided_slice %0 {offsets = [0, 2, 1, 0], sizes = [2, 16, 16, 4], strides = [1, 1, 1, 1]} : vector<2x18x18x4xbf16> to vector<2x16x16x4xbf16>
    %43 = vector.shape_cast %42 : vector<2x16x16x4xbf16> to vector<512x4xbf16>
    %c2_35 = arith.constant 2 : index
    %c1_36 = arith.constant 1 : index
    %c0_37 = arith.constant 0 : index
    %c0_38 = arith.constant 0 : index
    %44 = vector.load %arg1[%c2_35, %c1_36, %c0_37, %c0_38] : memref<3x3x4x128xbf16, #tpu.memory_space<vmem>>, vector<1x1x4x128xbf16>
    %45 = vector.shape_cast %44 : vector<1x1x4x128xbf16> to vector<4x128xbf16>
    %cst_39 = arith.constant dense<0.000000e+00> : vector<512x128xf32>
    %46 = tpu.matmul %43, %45, %cst_39 {dimension_numbers = #tpu.dot_dimension_numbers<[1], [0], [0], [1], [0, 0, 1, 1], [], []>} : vector<512x4xbf16>, vector<4x128xbf16>, vector<512x128xf32> -> vector<512x128xf32>
    %47 = arith.addf %41, %46 : vector<512x128xf32>
    %48 = vector.extract_strided_slice %0 {offsets = [0, 2, 2, 0], sizes = [2, 16, 16, 4], strides = [1, 1, 1, 1]} : vector<2x18x18x4xbf16> to vector<2x16x16x4xbf16>
    %49 = vector.shape_cast %48 : vector<2x16x16x4xbf16> to vector<512x4xbf16>
    %c2_40 = arith.constant 2 : index
    %c2_41 = arith.constant 2 : index
    %c0_42 = arith.constant 0 : index
    %c0_43 = arith.constant 0 : index
    %50 = vector.load %arg1[%c2_40, %c2_41, %c0_42, %c0_43] : memref<3x3x4x128xbf16, #tpu.memory_space<vmem>>, vector<1x1x4x128xbf16>
    %51 = vector.shape_cast %50 : vector<1x1x4x128xbf16> to vector<4x128xbf16>
    %cst_44 = arith.constant dense<0.000000e+00> : vector<512x128xf32>
    %52 = tpu.matmul %49, %51, %cst_44 {dimension_numbers = #tpu.dot_dimension_numbers<[1], [0], [0], [1], [0, 0, 1, 1], [], []>} : vector<512x4xbf16>, vector<4x128xbf16>, vector<512x128xf32> -> vector<512x128xf32>
    %53 = arith.addf %47, %52 : vector<512x128xf32>
    %c0_45 = arith.constant 0 : index
    %c0_46 = arith.constant 0 : index
    %54 = vector.load %arg2[%c0_45, %c0_46] : memref<1x128xf32, #tpu.memory_space<vmem>>, vector<1x128xf32>
    %55 = vector.broadcast %54 : vector<1x128xf32> to vector<512x128xf32>
    %56 = arith.addf %53, %55 : vector<512x128xf32>
    %cst_47 = arith.constant dense<0.000000e+00> : vector<128xf32>
    %57 = vector.multi_reduction <add>, %56, %cst_47 [0] : vector<512x128xf32> to vector<128xf32>
    %58 = vector.shape_cast %57 : vector<128xf32> to vector<1x128xf32>
    %cst_48 = arith.constant 0.001953125 : f32
    %59 = vector.broadcast %cst_48 : f32 to vector<1x128xf32>
    %60 = arith.mulf %58, %59 : vector<1x128xf32>
    %61 = arith.mulf %56, %56 : vector<512x128xf32>
    %cst_49 = arith.constant dense<0.000000e+00> : vector<128xf32>
    %62 = vector.multi_reduction <add>, %61, %cst_49 [0] : vector<512x128xf32> to vector<128xf32>
    %63 = vector.shape_cast %62 : vector<128xf32> to vector<1x128xf32>
    %cst_50 = arith.constant 0.001953125 : f32
    %64 = vector.broadcast %cst_50 : f32 to vector<1x128xf32>
    %65 = arith.mulf %63, %64 : vector<1x128xf32>
    %66 = arith.mulf %60, %60 : vector<1x128xf32>
    %67 = arith.subf %65, %66 : vector<1x128xf32>
    %68 = vector.broadcast %60 : vector<1x128xf32> to vector<512x128xf32>
    %69 = arith.subf %56, %68 : vector<512x128xf32>
    %cst_51 = arith.constant 9.99999974E-6 : f32
    %70 = vector.broadcast %cst_51 : f32 to vector<1x128xf32>
    %71 = arith.addf %67, %70 : vector<1x128xf32>
    %72 = math.rsqrt %71 : vector<1x128xf32>
    %73 = vector.broadcast %72 : vector<1x128xf32> to vector<512x128xf32>
    %74 = arith.mulf %69, %73 : vector<512x128xf32>
    %c0_52 = arith.constant 0 : index
    %c0_53 = arith.constant 0 : index
    %75 = vector.load %arg3[%c0_52, %c0_53] : memref<1x128xf32, #tpu.memory_space<vmem>>, vector<1x128xf32>
    %76 = vector.broadcast %75 : vector<1x128xf32> to vector<512x128xf32>
    %77 = arith.mulf %74, %76 : vector<512x128xf32>
    %c0_54 = arith.constant 0 : index
    %c0_55 = arith.constant 0 : index
    %78 = vector.load %arg4[%c0_54, %c0_55] : memref<1x128xf32, #tpu.memory_space<vmem>>, vector<1x128xf32>
    %79 = vector.broadcast %78 : vector<1x128xf32> to vector<512x128xf32>
    %80 = arith.addf %77, %79 : vector<512x128xf32>
    %cst_56 = arith.constant 0.000000e+00 : f32
    %81 = vector.broadcast %cst_56 : f32 to vector<512x128xf32>
    %82 = arith.maximumf %80, %81 : vector<512x128xf32>
    %cst_57 = arith.constant 0.000000e+00 : f32
    %83 = vector.broadcast %cst_57 : f32 to vector<2x18x18x128xf32>
    %c0_58 = arith.constant 0 : index
    %c0_59 = arith.constant 0 : index
    %c0_60 = arith.constant 0 : index
    %c0_61 = arith.constant 0 : index
    %84 = vector.load %arg14[%c0_58, %c0_59, %c0_60, %c0_61] : memref<2x18x18x128xf32, #tpu.memory_space<vmem>>, vector<2x18x18x128xf32>
    tpu.vector_store %arg14[%c0_58, %c0_59, %c0_60, %c0_61], %83 {strides = array<i32>} : memref<2x18x18x128xf32, #tpu.memory_space<vmem>>, vector<2x18x18x128xf32>,
    %85 = vector.shape_cast %82 : vector<512x128xf32> to vector<2x16x16x128xf32>
    %c0_62 = arith.constant 0 : index
    %c1_63 = arith.constant 1 : index
    %c1_64 = arith.constant 1 : index
    %c0_65 = arith.constant 0 : index
    %86 = vector.load %arg14[%c0_62, %c1_63, %c1_64, %c0_65] : memref<2x18x18x128xf32, #tpu.memory_space<vmem>>, vector<2x16x16x128xf32>
    tpu.vector_store %arg14[%c0_62, %c1_63, %c1_64, %c0_65], %85 {strides = array<i32>} : memref<2x18x18x128xf32, #tpu.memory_space<vmem>>, vector<2x16x16x128xf32>,
    %c0_66 = arith.constant 0 : index
    %c0_67 = arith.constant 0 : index
    %c0_68 = arith.constant 0 : index
    %c0_69 = arith.constant 0 : index
    %87 = vector.load %arg14[%c0_66, %c0_67, %c0_68, %c0_69] : memref<2x18x18x128xf32, #tpu.memory_space<vmem>>, vector<2x16x16x128xf32>
    %88 = vector.shape_cast %87 : vector<2x16x16x128xf32> to vector<512x128xf32>
    %89 = arith.truncf %88 : vector<512x128xf32> to vector<512x128xbf16>
    %c0_70 = arith.constant 0 : index
    %c0_71 = arith.constant 0 : index
    %c0_72 = arith.constant 0 : index
    %c0_73 = arith.constant 0 : index
    %90 = vector.load %arg5[%c0_70, %c0_71, %c0_72, %c0_73] : memref<3x3x128x128xbf16, #tpu.memory_space<vmem>>, vector<1x1x128x128xbf16>
    %91 = vector.shape_cast %90 : vector<1x1x128x128xbf16> to vector<128x128xbf16>
    %cst_74 = arith.constant dense<0.000000e+00> : vector<512x128xf32>
    %92 = tpu.matmul %89, %91, %cst_74 {dimension_numbers = #tpu.dot_dimension_numbers<[1], [0], [0], [1], [0, 0, 1, 1], [], []>} : vector<512x128xbf16>, vector<128x128xbf16>, vector<512x128xf32> -> vector<512x128xf32>
    %c0_75 = arith.constant 0 : index
    %c0_76 = arith.constant 0 : index
    %c1_77 = arith.constant 1 : index
    %c0_78 = arith.constant 0 : index
    %93 = vector.load %arg14[%c0_75, %c0_76, %c1_77, %c0_78] : memref<2x18x18x128xf32, #tpu.memory_space<vmem>>, vector<2x16x16x128xf32>
    %94 = vector.shape_cast %93 : vector<2x16x16x128xf32> to vector<512x128xf32>
    %95 = arith.truncf %94 : vector<512x128xf32> to vector<512x128xbf16>
    %c0_79 = arith.constant 0 : index
    %c1_80 = arith.constant 1 : index
    %c0_81 = arith.constant 0 : index
    %c0_82 = arith.constant 0 : index
    %96 = vector.load %arg5[%c0_79, %c1_80, %c0_81, %c0_82] : memref<3x3x128x128xbf16, #tpu.memory_space<vmem>>, vector<1x1x128x128xbf16>
    %97 = vector.shape_cast %96 : vector<1x1x128x128xbf16> to vector<128x128xbf16>
    %cst_83 = arith.constant dense<0.000000e+00> : vector<512x128xf32>
    %98 = tpu.matmul %95, %97, %cst_83 {dimension_numbers = #tpu.dot_dimension_numbers<[1], [0], [0], [1], [0, 0, 1, 1], [], []>} : vector<512x128xbf16>, vector<128x128xbf16>, vector<512x128xf32> -> vector<512x128xf32>
    %99 = arith.addf %92, %98 : vector<512x128xf32>
    %c0_84 = arith.constant 0 : index
    %c0_85 = arith.constant 0 : index
    %c2_86 = arith.constant 2 : index
    %c0_87 = arith.constant 0 : index
    %100 = vector.load %arg14[%c0_84, %c0_85, %c2_86, %c0_87] : memref<2x18x18x128xf32, #tpu.memory_space<vmem>>, vector<2x16x16x128xf32>
    %101 = vector.shape_cast %100 : vector<2x16x16x128xf32> to vector<512x128xf32>
    %102 = arith.truncf %101 : vector<512x128xf32> to vector<512x128xbf16>
    %c0_88 = arith.constant 0 : index
    %c2_89 = arith.constant 2 : index
    %c0_90 = arith.constant 0 : index
    %c0_91 = arith.constant 0 : index
    %103 = vector.load %arg5[%c0_88, %c2_89, %c0_90, %c0_91] : memref<3x3x128x128xbf16, #tpu.memory_space<vmem>>, vector<1x1x128x128xbf16>
    %104 = vector.shape_cast %103 : vector<1x1x128x128xbf16> to vector<128x128xbf16>
    %cst_92 = arith.constant dense<0.000000e+00> : vector<512x128xf32>
    %105 = tpu.matmul %102, %104, %cst_92 {dimension_numbers = #tpu.dot_dimension_numbers<[1], [0], [0], [1], [0, 0, 1, 1], [], []>} : vector<512x128xbf16>, vector<128x128xbf16>, vector<512x128xf32> -> vector<512x128xf32>
    %106 = arith.addf %99, %105 : vector<512x128xf32>
    %c0_93 = arith.constant 0 : index
    %c1_94 = arith.constant 1 : index
    %c0_95 = arith.constant 0 : index
    %c0_96 = arith.constant 0 : index
    %107 = vector.load %arg14[%c0_93, %c1_94, %c0_95, %c0_96] : memref<2x18x18x128xf32, #tpu.memory_space<vmem>>, vector<2x16x16x128xf32>
    %108 = vector.shape_cast %107 : vector<2x16x16x128xf32> to vector<512x128xf32>
    %109 = arith.truncf %108 : vector<512x128xf32> to vector<512x128xbf16>
    %c1_97 = arith.constant 1 : index
    %c0_98 = arith.constant 0 : index
    %c0_99 = arith.constant 0 : index
    %c0_100 = arith.constant 0 : index
    %110 = vector.load %arg5[%c1_97, %c0_98, %c0_99, %c0_100] : memref<3x3x128x128xbf16, #tpu.memory_space<vmem>>, vector<1x1x128x128xbf16>
    %111 = vector.shape_cast %110 : vector<1x1x128x128xbf16> to vector<128x128xbf16>
    %cst_101 = arith.constant dense<0.000000e+00> : vector<512x128xf32>
    %112 = tpu.matmul %109, %111, %cst_101 {dimension_numbers = #tpu.dot_dimension_numbers<[1], [0], [0], [1], [0, 0, 1, 1], [], []>} : vector<512x128xbf16>, vector<128x128xbf16>, vector<512x128xf32> -> vector<512x128xf32>
    %113 = arith.addf %106, %112 : vector<512x128xf32>
    %c0_102 = arith.constant 0 : index
    %c1_103 = arith.constant 1 : index
    %c1_104 = arith.constant 1 : index
    %c0_105 = arith.constant 0 : index
    %114 = vector.load %arg14[%c0_102, %c1_103, %c1_104, %c0_105] : memref<2x18x18x128xf32, #tpu.memory_space<vmem>>, vector<2x16x16x128xf32>
    %115 = vector.shape_cast %114 : vector<2x16x16x128xf32> to vector<512x128xf32>
    %116 = arith.truncf %115 : vector<512x128xf32> to vector<512x128xbf16>
    %c1_106 = arith.constant 1 : index
    %c1_107 = arith.constant 1 : index
    %c0_108 = arith.constant 0 : index
    %c0_109 = arith.constant 0 : index
    %117 = vector.load %arg5[%c1_106, %c1_107, %c0_108, %c0_109] : memref<3x3x128x128xbf16, #tpu.memory_space<vmem>>, vector<1x1x128x128xbf16>
    %118 = vector.shape_cast %117 : vector<1x1x128x128xbf16> to vector<128x128xbf16>
    %cst_110 = arith.constant dense<0.000000e+00> : vector<512x128xf32>
    %119 = tpu.matmul %116, %118, %cst_110 {dimension_numbers = #tpu.dot_dimension_numbers<[1], [0], [0], [1], [0, 0, 1, 1], [], []>} : vector<512x128xbf16>, vector<128x128xbf16>, vector<512x128xf32> -> vector<512x128xf32>
    %120 = arith.addf %113, %119 : vector<512x128xf32>
    %c0_111 = arith.constant 0 : index
    %c1_112 = arith.constant 1 : index
    %c2_113 = arith.constant 2 : index
    %c0_114 = arith.constant 0 : index
    %121 = vector.load %arg14[%c0_111, %c1_112, %c2_113, %c0_114] : memref<2x18x18x128xf32, #tpu.memory_space<vmem>>, vector<2x16x16x128xf32>
    %122 = vector.shape_cast %121 : vector<2x16x16x128xf32> to vector<512x128xf32>
    %123 = arith.truncf %122 : vector<512x128xf32> to vector<512x128xbf16>
    %c1_115 = arith.constant 1 : index
    %c2_116 = arith.constant 2 : index
    %c0_117 = arith.constant 0 : index
    %c0_118 = arith.constant 0 : index
    %124 = vector.load %arg5[%c1_115, %c2_116, %c0_117, %c0_118] : memref<3x3x128x128xbf16, #tpu.memory_space<vmem>>, vector<1x1x128x128xbf16>
    %125 = vector.shape_cast %124 : vector<1x1x128x128xbf16> to vector<128x128xbf16>
    %cst_119 = arith.constant dense<0.000000e+00> : vector<512x128xf32>
    %126 = tpu.matmul %123, %125, %cst_119 {dimension_numbers = #tpu.dot_dimension_numbers<[1], [0], [0], [1], [0, 0, 1, 1], [], []>} : vector<512x128xbf16>, vector<128x128xbf16>, vector<512x128xf32> -> vector<512x128xf32>
    %127 = arith.addf %120, %126 : vector<512x128xf32>
    %c0_120 = arith.constant 0 : index
    %c2_121 = arith.constant 2 : index
    %c0_122 = arith.constant 0 : index
    %c0_123 = arith.constant 0 : index
    %128 = vector.load %arg14[%c0_120, %c2_121, %c0_122, %c0_123] : memref<2x18x18x128xf32, #tpu.memory_space<vmem>>, vector<2x16x16x128xf32>
    %129 = vector.shape_cast %128 : vector<2x16x16x128xf32> to vector<512x128xf32>
    %130 = arith.truncf %129 : vector<512x128xf32> to vector<512x128xbf16>
    %c2_124 = arith.constant 2 : index
    %c0_125 = arith.constant 0 : index
    %c0_126 = arith.constant 0 : index
    %c0_127 = arith.constant 0 : index
    %131 = vector.load %arg5[%c2_124, %c0_125, %c0_126, %c0_127] : memref<3x3x128x128xbf16, #tpu.memory_space<vmem>>, vector<1x1x128x128xbf16>
    %132 = vector.shape_cast %131 : vector<1x1x128x128xbf16> to vector<128x128xbf16>
    %cst_128 = arith.constant dense<0.000000e+00> : vector<512x128xf32>
    %133 = tpu.matmul %130, %132, %cst_128 {dimension_numbers = #tpu.dot_dimension_numbers<[1], [0], [0], [1], [0, 0, 1, 1], [], []>} : vector<512x128xbf16>, vector<128x128xbf16>, vector<512x128xf32> -> vector<512x128xf32>
    %134 = arith.addf %127, %133 : vector<512x128xf32>
    %c0_129 = arith.constant 0 : index
    %c2_130 = arith.constant 2 : index
    %c1_131 = arith.constant 1 : index
    %c0_132 = arith.constant 0 : index
    %135 = vector.load %arg14[%c0_129, %c2_130, %c1_131, %c0_132] : memref<2x18x18x128xf32, #tpu.memory_space<vmem>>, vector<2x16x16x128xf32>
    %136 = vector.shape_cast %135 : vector<2x16x16x128xf32> to vector<512x128xf32>
    %137 = arith.truncf %136 : vector<512x128xf32> to vector<512x128xbf16>
    %c2_133 = arith.constant 2 : index
    %c1_134 = arith.constant 1 : index
    %c0_135 = arith.constant 0 : index
    %c0_136 = arith.constant 0 : index
    %138 = vector.load %arg5[%c2_133, %c1_134, %c0_135, %c0_136] : memref<3x3x128x128xbf16, #tpu.memory_space<vmem>>, vector<1x1x128x128xbf16>
    %139 = vector.shape_cast %138 : vector<1x1x128x128xbf16> to vector<128x128xbf16>
    %cst_137 = arith.constant dense<0.000000e+00> : vector<512x128xf32>
    %140 = tpu.matmul %137, %139, %cst_137 {dimension_numbers = #tpu.dot_dimension_numbers<[1], [0], [0], [1], [0, 0, 1, 1], [], []>} : vector<512x128xbf16>, vector<128x128xbf16>, vector<512x128xf32> -> vector<512x128xf32>
    %141 = arith.addf %134, %140 : vector<512x128xf32>
    %c0_138 = arith.constant 0 : index
    %c2_139 = arith.constant 2 : index
    %c2_140 = arith.constant 2 : index
    %c0_141 = arith.constant 0 : index
    %142 = vector.load %arg14[%c0_138, %c2_139, %c2_140, %c0_141] : memref<2x18x18x128xf32, #tpu.memory_space<vmem>>, vector<2x16x16x128xf32>
    %143 = vector.shape_cast %142 : vector<2x16x16x128xf32> to vector<512x128xf32>
    %144 = arith.truncf %143 : vector<512x128xf32> to vector<512x128xbf16>
    %c2_142 = arith.constant 2 : index
    %c2_143 = arith.constant 2 : index
    %c0_144 = arith.constant 0 : index
    %c0_145 = arith.constant 0 : index
    %145 = vector.load %arg5[%c2_142, %c2_143, %c0_144, %c0_145] : memref<3x3x128x128xbf16, #tpu.memory_space<vmem>>, vector<1x1x128x128xbf16>
    %146 = vector.shape_cast %145 : vector<1x1x128x128xbf16> to vector<128x128xbf16>
    %cst_146 = arith.constant dense<0.000000e+00> : vector<512x128xf32>
    %147 = tpu.matmul %144, %146, %cst_146 {dimension_numbers = #tpu.dot_dimension_numbers<[1], [0], [0], [1], [0, 0, 1, 1], [], []>} : vector<512x128xbf16>, vector<128x128xbf16>, vector<512x128xf32> -> vector<512x128xf32>
    %148 = arith.addf %141, %147 : vector<512x128xf32>
    %c0_147 = arith.constant 0 : index
    %c0_148 = arith.constant 0 : index
    %149 = vector.load %arg6[%c0_147, %c0_148] : memref<1x128xf32, #tpu.memory_space<vmem>>, vector<1x128xf32>
    %150 = vector.broadcast %149 : vector<1x128xf32> to vector<512x128xf32>
    %151 = arith.addf %148, %150 : vector<512x128xf32>
    %152 = vector.extract_strided_slice %0 {offsets = [0, 1, 1, 0], sizes = [2, 16, 16, 4], strides = [1, 1, 1, 1]} : vector<2x18x18x4xbf16> to vector<2x16x16x4xbf16>
    %153 = vector.shape_cast %152 : vector<2x16x16x4xbf16> to vector<512x4xbf16>
    %c0_149 = arith.constant 0 : index
    %c0_150 = arith.constant 0 : index
    %154 = vector.load %arg7[%c0_149, %c0_150] : memref<4x128xbf16, #tpu.memory_space<vmem>>, vector<4x128xbf16>
    %cst_151 = arith.constant dense<0.000000e+00> : vector<512x128xf32>
    %155 = tpu.matmul %153, %154, %cst_151 {dimension_numbers = #tpu.dot_dimension_numbers<[1], [0], [0], [1], [0, 0, 1, 1], [], []>} : vector<512x4xbf16>, vector<4x128xbf16>, vector<512x128xf32> -> vector<512x128xf32>
    %c0_152 = arith.constant 0 : index
    %c0_153 = arith.constant 0 : index
    %156 = vector.load %arg8[%c0_152, %c0_153] : memref<1x128xf32, #tpu.memory_space<vmem>>, vector<1x128xf32>
    %157 = vector.broadcast %156 : vector<1x128xf32> to vector<512x128xf32>
    %158 = arith.addf %155, %157 : vector<512x128xf32>
    %cst_154 = arith.constant dense<0.000000e+00> : vector<128xf32>
    %159 = vector.multi_reduction <add>, %158, %cst_154 [0] : vector<512x128xf32> to vector<128xf32>
    %160 = vector.shape_cast %159 : vector<128xf32> to vector<1x128xf32>
    %cst_155 = arith.constant 0.001953125 : f32
    %161 = vector.broadcast %cst_155 : f32 to vector<1x128xf32>
    %162 = arith.mulf %160, %161 : vector<1x128xf32>
    %163 = arith.mulf %158, %158 : vector<512x128xf32>
    %cst_156 = arith.constant dense<0.000000e+00> : vector<128xf32>
    %164 = vector.multi_reduction <add>, %163, %cst_156 [0] : vector<512x128xf32> to vector<128xf32>
    %165 = vector.shape_cast %164 : vector<128xf32> to vector<1x128xf32>
    %cst_157 = arith.constant 0.001953125 : f32
    %166 = vector.broadcast %cst_157 : f32 to vector<1x128xf32>
    %167 = arith.mulf %165, %166 : vector<1x128xf32>
    %168 = arith.mulf %162, %162 : vector<1x128xf32>
    %169 = arith.subf %167, %168 : vector<1x128xf32>
    %170 = vector.broadcast %162 : vector<1x128xf32> to vector<512x128xf32>
    %171 = arith.subf %158, %170 : vector<512x128xf32>
    %cst_158 = arith.constant 9.99999974E-6 : f32
    %172 = vector.broadcast %cst_158 : f32 to vector<1x128xf32>
    %173 = arith.addf %169, %172 : vector<1x128xf32>
    %174 = math.rsqrt %173 : vector<1x128xf32>
    %175 = vector.broadcast %174 : vector<1x128xf32> to vector<512x128xf32>
    %176 = arith.mulf %171, %175 : vector<512x128xf32>
    %c0_159 = arith.constant 0 : index
    %c0_160 = arith.constant 0 : index
    %177 = vector.load %arg9[%c0_159, %c0_160] : memref<1x128xf32, #tpu.memory_space<vmem>>, vector<1x128xf32>
    %178 = vector.broadcast %177 : vector<1x128xf32> to vector<512x128xf32>
    %179 = arith.mulf %176, %178 : vector<512x128xf32>
    %c0_161 = arith.constant 0 : index
    %c0_162 = arith.constant 0 : index
    %180 = vector.load %arg10[%c0_161, %c0_162] : memref<1x128xf32, #tpu.memory_space<vmem>>, vector<1x128xf32>
    %181 = vector.broadcast %180 : vector<1x128xf32> to vector<512x128xf32>
    %182 = arith.addf %179, %181 : vector<512x128xf32>
    %183 = arith.addf %151, %182 : vector<512x128xf32>
    %184 = vector.shape_cast %183 : vector<512x128xf32> to vector<2x256x128xf32>
    %cst_163 = arith.constant dense<0.000000e+00> : vector<2x128xf32>
    %185 = vector.multi_reduction <add>, %184, %cst_163 [1] : vector<2x256x128xf32> to vector<2x128xf32>
    %cst_164 = arith.constant 3.906250e-03 : f32
    %186 = vector.broadcast %cst_164 : f32 to vector<2x128xf32>
    %187 = arith.mulf %185, %186 : vector<2x128xf32>
    %c0_165 = arith.constant 0 : index
    %c0_166 = arith.constant 0 : index
    %188 = vector.load %arg11[%c0_165, %c0_166] : memref<128x128xf32, #tpu.memory_space<vmem>>, vector<128x128xf32>
    %cst_167 = arith.constant dense<0.000000e+00> : vector<2x128xf32>
    %189 = tpu.matmul %187, %188, %cst_167 {dimension_numbers = #tpu.dot_dimension_numbers<[1], [0], [0], [1], [0, 0, 1, 1], [], []>} : vector<2x128xf32>, vector<128x128xf32>, vector<2x128xf32> -> vector<2x128xf32>
    %cst_168 = arith.constant 0.000000e+00 : f32
    %190 = vector.broadcast %cst_168 : f32 to vector<2x128xf32>
    %191 = arith.maximumf %189, %190 : vector<2x128xf32>
    %c0_169 = arith.constant 0 : index
    %c0_170 = arith.constant 0 : index
    %192 = vector.load %arg12[%c0_169, %c0_170] : memref<128x128xf32, #tpu.memory_space<vmem>>, vector<128x128xf32>
    %cst_171 = arith.constant dense<0.000000e+00> : vector<2x128xf32>
    %193 = tpu.matmul %191, %192, %cst_171 {dimension_numbers = #tpu.dot_dimension_numbers<[1], [0], [0], [1], [0, 0, 1, 1], [], []>} : vector<2x128xf32>, vector<128x128xf32>, vector<2x128xf32> -> vector<2x128xf32>
    %194 = arith.negf %193 : vector<2x128xf32>
    %195 = math.exp %194 : vector<2x128xf32>
    %cst_172 = arith.constant 1.000000e+00 : f32
    %196 = vector.broadcast %cst_172 : f32 to vector<2x128xf32>
    %197 = arith.addf %196, %195 : vector<2x128xf32>
    %198 = arith.divf %196, %197 : vector<2x128xf32>
    %199 = vector.shape_cast %198 : vector<2x128xf32> to vector<2x1x128xf32>
    %200 = vector.broadcast %199 : vector<2x1x128xf32> to vector<2x256x128xf32>
    %201 = arith.mulf %184, %200 : vector<2x256x128xf32>
    %c0_173 = arith.constant 0 : index
    %c0_174 = arith.constant 0 : index
    %c0_175 = arith.constant 0 : index
    %202 = vector.load %arg13[%c0_173, %c0_174, %c0_175] : memref<2x256x128xf32, #tpu.memory_space<vmem>>, vector<2x256x128xf32>
    tpu.vector_store %arg13[%c0_173, %c0_174, %c0_175], %201 {strides = array<i32>} : memref<2x256x128xf32, #tpu.memory_space<vmem>>, vector<2x256x128xf32>,
    return
  }
}

</mosaic_0001>

<llo_original>
// kernel: tpu_custom_call.1
$region0: #{tpu_custom_call.1}
  #allocation0 [shape = 'u32[]', space=smem, size = 0x4, offset = 0x4, fixed_abs, tag = 'smem constant byte address 0x4 - core index']
  #allocation1 [shape = 'u32[144,128]{1,0:T(1,128)}', space=vmem, size = 0x12000, scoped, tag = 'internal scratch']
  #allocation2 [shape = 'f32[2,18,18,128]{3,2,1,0:T(8,128)}', space=vmem, size = 0x6c000, scoped, tag = 'scratch operand']
  %s0 = inlined_call_operand.vmem [shape: bf16[2,18,18,4], index: 0, kind: input, shape index: {}]
  %s1 = inlined_call_operand.vmem [shape: bf16[3,3,4,128], index: 1, kind: input, shape index: {}]
  %s2 = inlined_call_operand.vmem [shape: f32[1,128], index: 2, kind: input, shape index: {}]
  %s3 = inlined_call_operand.vmem [shape: f32[1,128], index: 3, kind: input, shape index: {}]
  %s4 = inlined_call_operand.vmem [shape: f32[1,128], index: 4, kind: input, shape index: {}]
  %s5 = inlined_call_operand.hbm [shape: bf16[3,3,128,128], index: 5, kind: input, shape index: {}]
  %s6 = inlined_call_operand.vmem [shape: f32[1,128], index: 6, kind: input, shape index: {}]
  %s7 = inlined_call_operand.vmem [shape: bf16[4,128], index: 7, kind: input, shape index: {}]
  %s8 = inlined_call_operand.vmem [shape: f32[1,128], index: 8, kind: input, shape index: {}]
  %s9 = inlined_call_operand.vmem [shape: f32[1,128], index: 9, kind: input, shape index: {}]
  %s10 = inlined_call_operand.vmem [shape: f32[1,128], index: 10, kind: input, shape index: {}]
  %s11 = inlined_call_operand.vmem [shape: f32[128,128], index: 11, kind: input, shape index: {}]
  %s12 = inlined_call_operand.vmem [shape: f32[128,128], index: 12, kind: input, shape index: {}]
  %s13 = inlined_call_operand.hbm [shape: f32[2,256,128], index: 13, kind: output, shape index: {}]
  %s14 = sld [smem:[#allocation0]]
  $region66: #{tpu_custom_call.1} parent=0
    _
  %s16 = ssub.s32 1, %s14
  %s17 = scalar_select 0, %s16, %s14
  $region1: #{tpu_custom_call.1} parent=0
    #allocation3 [shape = 'u8[294912]{0}', space=vmem, size = 0x48000, scoped, tag = 'input window, operand 5, single buffered']
    #allocation4 [shape = 's32[1]{0}', space=sflag, size = 0x4, scoped, tag = 'scoped memory for tpu_custom_call.1']
    #allocation5 [shape = 's32[1]{0}', space=sflag, size = 0x4, scoped, tag = 'scoped memory for tpu_custom_call.1']
    #allocation6 [shape = 'u8[262144]{0}', space=vmem, size = 0x40000, scoped, tag = 'output window, operand 0, single buffered']
    %18 = vsyncpa [#allocation4], 0
    %19 = vsyncpa [#allocation5], 0
    // Predicated region
    $region2: #{tpu_custom_call.1} parent=1 // pred_check
      _
    $region3: #{tpu_custom_call.1} parent=1 // pred_check_branch
      %21 = sbr.rel (0) target = $region5
    $region4: #{tpu_custom_call.1} parent=1 // pred_region
      _
    $region5: #{tpu_custom_call.1} parent=1 // pred_fallthru
      _
    // Predicated region
    $region6: #{tpu_custom_call.1} parent=1 // pred_check
      _
    $region7: #{tpu_custom_call.1} parent=1 // pred_check_branch
      %23 = sbr.rel (0) target = $region9
    $region8: #{tpu_custom_call.1} parent=1 // pred_region
      _
    $region9: #{tpu_custom_call.1} parent=1 // pred_fallthru
      _
    // Predicated region
    $region10: #{tpu_custom_call.1} parent=1 // pred_check
      _
    $region11: #{tpu_custom_call.1} parent=1 // pred_check_branch
      %25 = sbr.rel (0) target = $region13
    $region12: #{tpu_custom_call.1} parent=1 // pred_region
      _
    $region13: #{tpu_custom_call.1} parent=1 // pred_fallthru
      _
    // Predicated region
    $region14: #{tpu_custom_call.1} parent=1 // pred_check
      _
    $region15: #{tpu_custom_call.1} parent=1 // pred_check_branch
      %27 = sbr.rel (0) target = $region17
    $region16: #{tpu_custom_call.1} parent=1 // pred_region
      _
    $region17: #{tpu_custom_call.1} parent=1 // pred_fallthru
      _
    // Predicated region
    $region18: #{tpu_custom_call.1} parent=1 // pred_check
      _
    $region19: #{tpu_custom_call.1} parent=1 // pred_check_branch
      %29 = sbr.rel (0) target = $region21
    $region20: #{tpu_custom_call.1} parent=1 // pred_region
      _
    $region21: #{tpu_custom_call.1} parent=1 // pred_fallthru
      _
    // Predicated region
    $region22: #{tpu_custom_call.1} parent=1 // pred_check
      _
    $region23: #{tpu_custom_call.1} parent=1 // pred_check_branch
      %31 = sbr.rel (0) target = $region25
    $region24: #{tpu_custom_call.1} parent=1 // pred_region
      %s33 = ssub.s32 9216, 9216
      %34 = vsyncadd [#allocation4], %s33
      %s35 = sshll.u32 [#allocation3], 4
      %s36 = int_to_ptr.vmem [resolvable:$true] %s35
      %41 = dma.hbm_to_vmem [thread:$0]  %s5, 9216, %s36, [#allocation4], 64, 64, 4
    $region25: #{tpu_custom_call.1} parent=1 // pred_fallthru
      _
    // Predicated region
    $region26: #{tpu_custom_call.1} parent=1 // pred_check
      _
    $region27: #{tpu_custom_call.1} parent=1 // pred_check_branch
      %43 = sbr.rel (0) target = $region29
    $region28: #{tpu_custom_call.1} parent=1 // pred_region
      _
    $region29: #{tpu_custom_call.1} parent=1 // pred_fallthru
      _
    // Predicated region
    $region30: #{tpu_custom_call.1} parent=1 // pred_check
      _
    $region31: #{tpu_custom_call.1} parent=1 // pred_check_branch
      %45 = sbr.rel (0) target = $region33
    $region32: #{tpu_custom_call.1} parent=1 // pred_region
      _
    $region33: #{tpu_custom_call.1} parent=1 // pred_fallthru
      _
    // Predicated region
    $region34: #{tpu_custom_call.1} parent=1 // pred_check
      _
    $region35: #{tpu_custom_call.1} parent=1 // pred_check_branch
      %47 = sbr.rel (0) target = $region37
    $region36: #{tpu_custom_call.1} parent=1 // pred_region
      _
    $region37: #{tpu_custom_call.1} parent=1 // pred_fallthru
      _
    // Predicated region
    $region38: #{tpu_custom_call.1} parent=1 // pred_check
      _
    $region39: #{tpu_custom_call.1} parent=1 // pred_check_branch
      %49 = sbr.rel (0) target = $region41
    $region40: #{tpu_custom_call.1} parent=1 // pred_region
      _
    $region41: #{tpu_custom_call.1} parent=1 // pred_fallthru
      _
    // Predicated region
    $region42: #{tpu_custom_call.1} parent=1 // pred_check
      _
    $region43: #{tpu_custom_call.1} parent=1 // pred_check_branch
      %51 = sbr.rel (0) target = $region45
    $region44: #{tpu_custom_call.1} parent=1 // pred_region
      _
    $region45: #{tpu_custom_call.1} parent=1 // pred_fallthru
      _
    // Predicated region
    $region46: #{tpu_custom_call.1} parent=1 // pred_check
      _
    $region47: #{tpu_custom_call.1} parent=1 // pred_check_branch
      %53 = sbr.rel (0) target = $region49
    $region48: #{tpu_custom_call.1} parent=1 // pred_region
      _
    $region49: #{tpu_custom_call.1} parent=1 // pred_fallthru
      _
    // Predicated region
    $region50: #{tpu_custom_call.1} parent=1 // pred_check
      _
    $region51: #{tpu_custom_call.1} parent=1 // pred_check_branch
      %55 = sbr.rel (0) target = $region53
    $region52: #{tpu_custom_call.1} parent=1 // pred_region
      _
    $region53: #{tpu_custom_call.1} parent=1 // pred_fallthru
      _
    // Predicated region
    $region54: #{tpu_custom_call.1} parent=1 // pred_check
      _
    $region55: #{tpu_custom_call.1} parent=1 // pred_check_branch
      %57 = sbr.rel (0) target = $region57
    $region56: #{tpu_custom_call.1} parent=1 // pred_region
      %58 = dma.done [#allocation4], 9216
    $region57: #{tpu_custom_call.1} parent=1 // pred_fallthru
      _
    %v60 = vld [vmem:[%s0] sm:$0xf]
    %v61 = vld [vmem:[%s0 + $0x4] sm:$0xf]
    %v62 = vld [vmem:[%s0 + $0x8] sm:$0x1]
    %v63 = vld [vmem:[%s0 + $0xc] sm:$0xf]
    %v64 = vld [vmem:[%s0 + $0x10] sm:$0xf]
    %v65 = vld [vmem:[%s0 + $0x14] sm:$0x1]
    %v66 = vld [vmem:[%s0 + $0x18] sm:$0xf]
    %v67 = vld [vmem:[%s0 + $0x1c] sm:$0xf]
    %v68 = vld [vmem:[%s0 + $0x20] sm:$0x1]
    %v69 = vld [vmem:[%s0 + $0x24] sm:$0xf]
    %v70 = vld [vmem:[%s0 + $0x28] sm:$0xf]
    %v71 = vld [vmem:[%s0 + $0x2c] sm:$0x1]
    %v72 = vld [vmem:[%s0 + $0x30] sm:$0xf]
    %v73 = vld [vmem:[%s0 + $0x34] sm:$0xf]
    %v74 = vld [vmem:[%s0 + $0x38] sm:$0x1]
    %v75 = vld [vmem:[%s0 + $0x3c] sm:$0xf]
    %v76 = vld [vmem:[%s0 + $0x40] sm:$0xf]
    %v77 = vld [vmem:[%s0 + $0x44] sm:$0x1]
    %v78 = vld [vmem:[%s0 + $0x48] sm:$0xf]
    %v79 = vld [vmem:[%s0 + $0x4c] sm:$0xf]
    %v80 = vld [vmem:[%s0 + $0x50] sm:$0x1]
    %v81 = vld [vmem:[%s0 + $0x54] sm:$0xf]
    %v82 = vld [vmem:[%s0 + $0x58] sm:$0xf]
    %v83 = vld [vmem:[%s0 + $0x5c] sm:$0x1]
    %v84 = vld [vmem:[%s0 + $0x60] sm:$0xf]
    %v85 = vld [vmem:[%s0 + $0x64] sm:$0xf]
    %v86 = vld [vmem:[%s0 + $0x68] sm:$0x1]
    %v87 = vld [vmem:[%s0 + $0x6c] sm:$0xf]
    %v88 = vld [vmem:[%s0 + $0x70] sm:$0xf]
    %v89 = vld [vmem:[%s0 + $0x74] sm:$0x1]
    %v90 = vld [vmem:[%s0 + $0x78] sm:$0xf]
    %v91 = vld [vmem:[%s0 + $0x7c] sm:$0xf]
    %v92 = vld [vmem:[%s0 + $0x80] sm:$0x1]
    %v93 = vld [vmem:[%s0 + $0x84] sm:$0xf]
    %v94 = vld [vmem:[%s0 + $0x88] sm:$0xf]
    %v95 = vld [vmem:[%s0 + $0x8c] sm:$0x1]
    %v96 = vld [vmem:[%s0 + $0x90] sm:$0xf]
    %v97 = vld [vmem:[%s0 + $0x94] sm:$0xf]
    %v98 = vld [vmem:[%s0 + $0x98] sm:$0x1]
    %v99 = vld [vmem:[%s0 + $0x9c] sm:$0xf]
    %v100 = vld [vmem:[%s0 + $0xa0] sm:$0xf]
    %v101 = vld [vmem:[%s0 + $0xa4] sm:$0x1]
    %v102 = vld [vmem:[%s0 + $0xa8] sm:$0xf]
    %v103 = vld [vmem:[%s0 + $0xac] sm:$0xf]
    %v104 = vld [vmem:[%s0 + $0xb0] sm:$0x1]
    %v105 = vld [vmem:[%s0 + $0xb4] sm:$0xf]
    %v106 = vld [vmem:[%s0 + $0xb8] sm:$0xf]
    %v107 = vld [vmem:[%s0 + $0xbc] sm:$0x1]
    %v108 = vld [vmem:[%s0 + $0xc0] sm:$0xf]
    %v109 = vld [vmem:[%s0 + $0xc4] sm:$0xf]
    %v110 = vld [vmem:[%s0 + $0xc8] sm:$0x1]
    %v111 = vld [vmem:[%s0 + $0xcc] sm:$0xf]
    %v112 = vld [vmem:[%s0 + $0xd0] sm:$0xf]
    %v113 = vld [vmem:[%s0 + $0xd4] sm:$0x1]
    %v114 = vld [vmem:[%s0 + $0xd8] sm:$0xf]
    %v115 = vld [vmem:[%s0 + $0xdc] sm:$0xf]
    %v116 = vld [vmem:[%s0 + $0xe0] sm:$0x1]
    %v117 = vld [vmem:[%s0 + $0xe4] sm:$0xf]
    %v118 = vld [vmem:[%s0 + $0xe8] sm:$0xf]
    %v119 = vld [vmem:[%s0 + $0xec] sm:$0x1]
    %v120 = vld [vmem:[%s0 + $0xf0] sm:$0xf]
    %v121 = vld [vmem:[%s0 + $0xf4] sm:$0xf]
    %v122 = vld [vmem:[%s0 + $0xf8] sm:$0x1]
    %v123 = vld [vmem:[%s0 + $0xfc] sm:$0xf]
    %v124 = vld [vmem:[%s0 + $0x100] sm:$0xf]
    %v125 = vld [vmem:[%s0 + $0x104] sm:$0x1]
    %v126 = vld [vmem:[%s0 + $0x108] sm:$0xf]
    %v127 = vld [vmem:[%s0 + $0x10c] sm:$0xf]
    %v128 = vld [vmem:[%s0 + $0x110] sm:$0x1]
    %v129 = vld [vmem:[%s0 + $0x114] sm:$0xf]
    %v130 = vld [vmem:[%s0 + $0x118] sm:$0xf]
    %v131 = vld [vmem:[%s0 + $0x11c] sm:$0x1]
    %v132 = vld [vmem:[%s0 + $0x120] sm:$0xf]
    %v133 = vld [vmem:[%s0 + $0x124] sm:$0xf]
    %v134 = vld [vmem:[%s0 + $0x128] sm:$0x1]
    %v135 = vld [vmem:[%s0 + $0x12c] sm:$0xf]
    %v136 = vld [vmem:[%s0 + $0x130] sm:$0xf]
    %v137 = vld [vmem:[%s0 + $0x134] sm:$0x1]
    %v138 = vld [vmem:[%s0 + $0x138] sm:$0xf]
    %v139 = vld [vmem:[%s0 + $0x13c] sm:$0xf]
    %v140 = vld [vmem:[%s0 + $0x140] sm:$0x1]
    %v141 = vld [vmem:[%s0 + $0x144] sm:$0xf]
    %v142 = vld [vmem:[%s0 + $0x148] sm:$0xf]
    %v143 = vld [vmem:[%s0 + $0x14c] sm:$0x1]
    %v144 = vld [vmem:[%s0 + $0x150] sm:$0xf]
    %v145 = vld [vmem:[%s0 + $0x154] sm:$0xf]
    %v146 = vld [vmem:[%s0 + $0x158] sm:$0x1]
    %v147 = vld [vmem:[%s0 + $0x15c] sm:$0xf]
    %v148 = vld [vmem:[%s0 + $0x160] sm:$0xf]
    %v149 = vld [vmem:[%s0 + $0x164] sm:$0x1]
    %v150 = vld [vmem:[%s0 + $0x168] sm:$0xf]
    %v151 = vld [vmem:[%s0 + $0x16c] sm:$0xf]
    %v152 = vld [vmem:[%s0 + $0x170] sm:$0x1]
    %v153 = vld [vmem:[%s0 + $0x174] sm:$0xf]
    %v154 = vld [vmem:[%s0 + $0x178] sm:$0xf]
    %v155 = vld [vmem:[%s0 + $0x17c] sm:$0x1]
    %v156 = vld [vmem:[%s0 + $0x180] sm:$0xf]
    %v157 = vld [vmem:[%s0 + $0x184] sm:$0xf]
    %v158 = vld [vmem:[%s0 + $0x188] sm:$0x1]
    %v159 = vld [vmem:[%s0 + $0x18c] sm:$0xf]
    %v160 = vld [vmem:[%s0 + $0x190] sm:$0xf]
    %v161 = vld [vmem:[%s0 + $0x194] sm:$0x1]
    %v162 = vld [vmem:[%s0 + $0x198] sm:$0xf]
    %v163 = vld [vmem:[%s0 + $0x19c] sm:$0xf]
    %v164 = vld [vmem:[%s0 + $0x1a0] sm:$0x1]
    %v165 = vld [vmem:[%s0 + $0x1a4] sm:$0xf]
    %v166 = vld [vmem:[%s0 + $0x1a8] sm:$0xf]
    %v167 = vld [vmem:[%s0 + $0x1ac] sm:$0x1]
    %v168 = vld [vmem:[%s1] sm:$0x3]
    %vm169 = vsmask.f32 3328
    %vm170 = vsmask.f32 7440
    %vm171 = vmor %vm169, %vm170
    %v173 = vshrl.u32 %v60, 16
    %v175 = vrot.slane %v173, 4
    %v176 = vshll.u32 %v60, 16
    %v178 = vrot.slane %v176, 5
    %v179 = vor.u32 %v175, %v178
    %v180 = vrot.slane %v179, 4
    %v182 = vshll.u32 %v61, 16
    %v184 = vrot.slane %v182, 5
    %v185 = vsel %vm171, %v180, %v184
    %v186 = vshrl.u32 %v61, 16
    %v188 = vrot.slane %v186, 4
    %v189 = vor.u32 %v188, %v184
    %v190 = vrot.slane %v189, 4
    %v192 = vshll.u32 %v62, 16
    %v194 = vrot.slane %v192, 5
    %v195 = vsel %vm171, %v190, %v194
    %v197 = vshrl.u32 %v63, 16
    %v199 = vrot.slane %v197, 4
    %v200 = vshll.u32 %v63, 16
    %v202 = vrot.slane %v200, 5
    %v203 = vor.u32 %v199, %v202
    %v204 = vrot.slane %v203, 4
    %v206 = vshll.u32 %v64, 16
    %v208 = vrot.slane %v206, 5
    %v209 = vsel %vm171, %v204, %v208
    %v210 = vshrl.u32 %v64, 16
    %v212 = vrot.slane %v210, 4
    %v213 = vor.u32 %v212, %v208
    %v214 = vrot.slane %v213, 4
    %v216 = vshll.u32 %v65, 16
    %v218 = vrot.slane %v216, 5
    %v219 = vsel %vm171, %v214, %v218
    %v221 = vshrl.u32 %v66, 16
    %v223 = vrot.slane %v221, 4
    %v224 = vshll.u32 %v66, 16
    %v226 = vrot.slane %v224, 5
    %v227 = vor.u32 %v223, %v226
    %v228 = vrot.slane %v227, 4
    %v230 = vshll.u32 %v67, 16
    %v232 = vrot.slane %v230, 5
    %v233 = vsel %vm171, %v228, %v232
    %v234 = vshrl.u32 %v67, 16
    %v236 = vrot.slane %v234, 4
    %v237 = vor.u32 %v236, %v232
    %v238 = vrot.slane %v237, 4
    %v240 = vshll.u32 %v68, 16
    %v242 = vrot.slane %v240, 5
    %v243 = vsel %vm171, %v238, %v242
    %v245 = vshrl.u32 %v69, 16
    %v247 = vrot.slane %v245, 4
    %v248 = vshll.u32 %v69, 16
    %v250 = vrot.slane %v248, 5
    %v251 = vor.u32 %v247, %v250
    %v252 = vrot.slane %v251, 4
    %v254 = vshll.u32 %v70, 16
    %v256 = vrot.slane %v254, 5
    %v257 = vsel %vm171, %v252, %v256
    %v258 = vshrl.u32 %v70, 16
    %v260 = vrot.slane %v258, 4
    %v261 = vor.u32 %v260, %v256
    %v262 = vrot.slane %v261, 4
    %v264 = vshll.u32 %v71, 16
    %v266 = vrot.slane %v264, 5
    %v267 = vsel %vm171, %v262, %v266
    %v269 = vshrl.u32 %v72, 16
    %v271 = vrot.slane %v269, 4
    %v272 = vshll.u32 %v72, 16
    %v274 = vrot.slane %v272, 5
    %v275 = vor.u32 %v271, %v274
    %v276 = vrot.slane %v275, 4
    %v278 = vshll.u32 %v73, 16
    %v280 = vrot.slane %v278, 5
    %v281 = vsel %vm171, %v276, %v280
    %v282 = vshrl.u32 %v73, 16
    %v284 = vrot.slane %v282, 4
    %v285 = vor.u32 %v284, %v280
    %v286 = vrot.slane %v285, 4
    %v288 = vshll.u32 %v74, 16
    %v290 = vrot.slane %v288, 5
    %v291 = vsel %vm171, %v286, %v290
    %v293 = vshrl.u32 %v75, 16
    %v295 = vrot.slane %v293, 4
    %v296 = vshll.u32 %v75, 16
    %v298 = vrot.slane %v296, 5
    %v299 = vor.u32 %v295, %v298
    %v300 = vrot.slane %v299, 4
    %v302 = vshll.u32 %v76, 16
    %v304 = vrot.slane %v302, 5
    %v305 = vsel %vm171, %v300, %v304
    %v306 = vshrl.u32 %v76, 16
    %v308 = vrot.slane %v306, 4
    %v309 = vor.u32 %v308, %v304
    %v310 = vrot.slane %v309, 4
    %v312 = vshll.u32 %v77, 16
    %v314 = vrot.slane %v312, 5
    %v315 = vsel %vm171, %v310, %v314
    %v317 = vshrl.u32 %v78, 16
    %v319 = vrot.slane %v317, 4
    %v320 = vshll.u32 %v78, 16
    %v322 = vrot.slane %v320, 5
    %v323 = vor.u32 %v319, %v322
    %v324 = vrot.slane %v323, 4
    %v326 = vshll.u32 %v79, 16
    %v328 = vrot.slane %v326, 5
    %v329 = vsel %vm171, %v324, %v328
    %v330 = vshrl.u32 %v79, 16
    %v332 = vrot.slane %v330, 4
    %v333 = vor.u32 %v332, %v328
    %v334 = vrot.slane %v333, 4
    %v336 = vshll.u32 %v80, 16
    %v338 = vrot.slane %v336, 5
    %v339 = vsel %vm171, %v334, %v338
    %v341 = vshrl.u32 %v81, 16
    %v343 = vrot.slane %v341, 4
    %v344 = vshll.u32 %v81, 16
    %v346 = vrot.slane %v344, 5
    %v347 = vor.u32 %v343, %v346
    %v348 = vrot.slane %v347, 4
    %v350 = vshll.u32 %v82, 16
    %v352 = vrot.slane %v350, 5
    %v353 = vsel %vm171, %v348, %v352
    %v354 = vshrl.u32 %v82, 16
    %v356 = vrot.slane %v354, 4
    %v357 = vor.u32 %v356, %v352
    %v358 = vrot.slane %v357, 4
    %v360 = vshll.u32 %v83, 16
    %v362 = vrot.slane %v360, 5
    %v363 = vsel %vm171, %v358, %v362
    %v365 = vshrl.u32 %v84, 16
    %v367 = vrot.slane %v365, 4
    %v368 = vshll.u32 %v84, 16
    %v370 = vrot.slane %v368, 5
    %v371 = vor.u32 %v367, %v370
    %v372 = vrot.slane %v371, 4
    %v374 = vshll.u32 %v85, 16
    %v376 = vrot.slane %v374, 5
    %v377 = vsel %vm171, %v372, %v376
    %v378 = vshrl.u32 %v85, 16
    %v380 = vrot.slane %v378, 4
    %v381 = vor.u32 %v380, %v376
    %v382 = vrot.slane %v381, 4
    %v384 = vshll.u32 %v86, 16
    %v386 = vrot.slane %v384, 5
    %v387 = vsel %vm171, %v382, %v386
    %v389 = vshrl.u32 %v87, 16
    %v391 = vrot.slane %v389, 4
    %v392 = vshll.u32 %v87, 16
    %v394 = vrot.slane %v392, 5
    %v395 = vor.u32 %v391, %v394
    %v396 = vrot.slane %v395, 4
    %v398 = vshll.u32 %v88, 16
    %v400 = vrot.slane %v398, 5
    %v401 = vsel %vm171, %v396, %v400
    %v402 = vshrl.u32 %v88, 16
    %v404 = vrot.slane %v402, 4
    %v405 = vor.u32 %v404, %v400
    %v406 = vrot.slane %v405, 4
    %v408 = vshll.u32 %v89, 16
    %v410 = vrot.slane %v408, 5
    %v411 = vsel %vm171, %v406, %v410
    %v413 = vshrl.u32 %v90, 16
    %v415 = vrot.slane %v413, 4
    %v416 = vshll.u32 %v90, 16
    %v418 = vrot.slane %v416, 5
    %v419 = vor.u32 %v415, %v418
    %v420 = vrot.slane %v419, 4
    %v422 = vshll.u32 %v91, 16
    %v424 = vrot.slane %v422, 5
    %v425 = vsel %vm171, %v420, %v424
    %v426 = vshrl.u32 %v91, 16
    %v428 = vrot.slane %v426, 4
    %v429 = vor.u32 %v428, %v424
    %v430 = vrot.slane %v429, 4
    %v432 = vshll.u32 %v92, 16
    %v434 = vrot.slane %v432, 5
    %v435 = vsel %vm171, %v430, %v434
    %v437 = vshrl.u32 %v93, 16
    %v439 = vrot.slane %v437, 4
    %v440 = vshll.u32 %v93, 16
    %v442 = vrot.slane %v440, 5
    %v443 = vor.u32 %v439, %v442
    %v444 = vrot.slane %v443, 4
    %v446 = vshll.u32 %v94, 16
    %v448 = vrot.slane %v446, 5
    %v449 = vsel %vm171, %v444, %v448
    %v450 = vshrl.u32 %v94, 16
    %v452 = vrot.slane %v450, 4
    %v453 = vor.u32 %v452, %v448
    %v454 = vrot.slane %v453, 4
    %v456 = vshll.u32 %v95, 16
    %v458 = vrot.slane %v456, 5
    %v459 = vsel %vm171, %v454, %v458
    %v461 = vshrl.u32 %v96, 16
    %v463 = vrot.slane %v461, 4
    %v464 = vshll.u32 %v96, 16
    %v466 = vrot.slane %v464, 5
    %v467 = vor.u32 %v463, %v466
    %v468 = vrot.slane %v467, 4
    %v470 = vshll.u32 %v97, 16
    %v472 = vrot.slane %v470, 5
    %v473 = vsel %vm171, %v468, %v472
    %v474 = vshrl.u32 %v97, 16
    %v476 = vrot.slane %v474, 4
    %v477 = vor.u32 %v476, %v472
    %v478 = vrot.slane %v477, 4
    %v480 = vshll.u32 %v98, 16
    %v482 = vrot.slane %v480, 5
    %v483 = vsel %vm171, %v478, %v482
    %v485 = vshrl.u32 %v99, 16
    %v487 = vrot.slane %v485, 4
    %v488 = vshll.u32 %v99, 16
    %v490 = vrot.slane %v488, 5
    %v491 = vor.u32 %v487, %v490
    %v492 = vrot.slane %v491, 4
    %v494 = vshll.u32 %v100, 16
    %v496 = vrot.slane %v494, 5
    %v497 = vsel %vm171, %v492, %v496
    %v498 = vshrl.u32 %v100, 16
    %v500 = vrot.slane %v498, 4
    %v501 = vor.u32 %v500, %v496
    %v502 = vrot.slane %v501, 4
    %v504 = vshll.u32 %v101, 16
    %v506 = vrot.slane %v504, 5
    %v507 = vsel %vm171, %v502, %v506
    %v509 = vshrl.u32 %v102, 16
    %v511 = vrot.slane %v509, 4
    %v512 = vshll.u32 %v102, 16
    %v514 = vrot.slane %v512, 5
    %v515 = vor.u32 %v511, %v514
    %v516 = vrot.slane %v515, 4
    %v518 = vshll.u32 %v103, 16
    %v520 = vrot.slane %v518, 5
    %v521 = vsel %vm171, %v516, %v520
    %v522 = vshrl.u32 %v103, 16
    %v524 = vrot.slane %v522, 4
    %v525 = vor.u32 %v524, %v520
    %v526 = vrot.slane %v525, 4
    %v528 = vshll.u32 %v104, 16
    %v530 = vrot.slane %v528, 5
    %v531 = vsel %vm171, %v526, %v530
    %v533 = vshrl.u32 %v105, 16
    %v535 = vrot.slane %v533, 4
    %v536 = vshll.u32 %v105, 16
    %v538 = vrot.slane %v536, 5
    %v539 = vor.u32 %v535, %v538
    %v540 = vrot.slane %v539, 4
    %v542 = vshll.u32 %v106, 16
    %v544 = vrot.slane %v542, 5
    %v545 = vsel %vm171, %v540, %v544
    %v546 = vshrl.u32 %v106, 16
    %v548 = vrot.slane %v546, 4
    %v549 = vor.u32 %v548, %v544
    %v550 = vrot.slane %v549, 4
    %v552 = vshll.u32 %v107, 16
    %v554 = vrot.slane %v552, 5
    %v555 = vsel %vm171, %v550, %v554
    %v557 = vshrl.u32 %v114, 16
    %v559 = vrot.slane %v557, 4
    %v560 = vshll.u32 %v114, 16
    %v562 = vrot.slane %v560, 5
    %v563 = vor.u32 %v559, %v562
    %v564 = vrot.slane %v563, 4
    %v566 = vshll.u32 %v115, 16
    %v568 = vrot.slane %v566, 5
    %v569 = vsel %vm171, %v564, %v568
    %v570 = vshrl.u32 %v115, 16
    %v572 = vrot.slane %v570, 4
    %v573 = vor.u32 %v572, %v568
    %v574 = vrot.slane %v573, 4
    %v576 = vshll.u32 %v116, 16
    %v578 = vrot.slane %v576, 5
    %v579 = vsel %vm171, %v574, %v578
    %v581 = vshrl.u32 %v117, 16
    %v583 = vrot.slane %v581, 4
    %v584 = vshll.u32 %v117, 16
    %v586 = vrot.slane %v584, 5
    %v587 = vor.u32 %v583, %v586
    %v588 = vrot.slane %v587, 4
    %v590 = vshll.u32 %v118, 16
    %v592 = vrot.slane %v590, 5
    %v593 = vsel %vm171, %v588, %v592
    %v594 = vshrl.u32 %v118, 16
    %v596 = vrot.slane %v594, 4
    %v597 = vor.u32 %v596, %v592
    %v598 = vrot.slane %v597, 4
    %v600 = vshll.u32 %v119, 16
    %v602 = vrot.slane %v600, 5
    %v603 = vsel %vm171, %v598, %v602
    %v605 = vshrl.u32 %v120, 16
    %v607 = vrot.slane %v605, 4
    %v608 = vshll.u32 %v120, 16
    %v610 = vrot.slane %v608, 5
    %v611 = vor.u32 %v607, %v610
    %v612 = vrot.slane %v611, 4
    %v614 = vshll.u32 %v121, 16
    %v616 = vrot.slane %v614, 5
    %v617 = vsel %vm171, %v612, %v616
    %v618 = vshrl.u32 %v121, 16
    %v620 = vrot.slane %v618, 4
    %v621 = vor.u32 %v620, %v616
    %v622 = vrot.slane %v621, 4
    %v624 = vshll.u32 %v122, 16
    %v626 = vrot.slane %v624, 5
    %v627 = vsel %vm171, %v622, %v626
    %v629 = vshrl.u32 %v123, 16
    %v631 = vrot.slane %v629, 4
    %v632 = vshll.u32 %v123, 16
    %v634 = vrot.slane %v632, 5
    %v635 = vor.u32 %v631, %v634
    %v636 = vrot.slane %v635, 4
    %v638 = vshll.u32 %v124, 16
    %v640 = vrot.slane %v638, 5
    %v641 = vsel %vm171, %v636, %v640
    %v642 = vshrl.u32 %v124, 16
    %v644 = vrot.slane %v642, 4
    %v645 = vor.u32 %v644, %v640
    %v646 = vrot.slane %v645, 4
    %v648 = vshll.u32 %v125, 16
    %v650 = vrot.slane %v648, 5
    %v651 = vsel %vm171, %v646, %v650
    %v653 = vshrl.u32 %v126, 16
    %v655 = vrot.slane %v653, 4
    %v656 = vshll.u32 %v126, 16
    %v658 = vrot.slane %v656, 5
    %v659 = vor.u32 %v655, %v658
    %v660 = vrot.slane %v659, 4
    %v662 = vshll.u32 %v127, 16
    %v664 = vrot.slane %v662, 5
    %v665 = vsel %vm171, %v660, %v664
    %v666 = vshrl.u32 %v127, 16
    %v668 = vrot.slane %v666, 4
    %v669 = vor.u32 %v668, %v664
    %v670 = vrot.slane %v669, 4
    %v672 = vshll.u32 %v128, 16
    %v674 = vrot.slane %v672, 5
    %v675 = vsel %vm171, %v670, %v674
    %v677 = vshrl.u32 %v129, 16
    %v679 = vrot.slane %v677, 4
    %v680 = vshll.u32 %v129, 16
    %v682 = vrot.slane %v680, 5
    %v683 = vor.u32 %v679, %v682
    %v684 = vrot.slane %v683, 4
    %v686 = vshll.u32 %v130, 16
    %v688 = vrot.slane %v686, 5
    %v689 = vsel %vm171, %v684, %v688
    %v690 = vshrl.u32 %v130, 16
    %v692 = vrot.slane %v690, 4
    %v693 = vor.u32 %v692, %v688
    %v694 = vrot.slane %v693, 4
    %v696 = vshll.u32 %v131, 16
    %v698 = vrot.slane %v696, 5
    %v699 = vsel %vm171, %v694, %v698
    %v701 = vshrl.u32 %v132, 16
    %v703 = vrot.slane %v701, 4
    %v704 = vshll.u32 %v132, 16
    %v706 = vrot.slane %v704, 5
    %v707 = vor.u32 %v703, %v706
    %v708 = vrot.slane %v707, 4
    %v710 = vshll.u32 %v133, 16
    %v712 = vrot.slane %v710, 5
    %v713 = vsel %vm171, %v708, %v712
    %v714 = vshrl.u32 %v133, 16
    %v716 = vrot.slane %v714, 4
    %v717 = vor.u32 %v716, %v712
    %v718 = vrot.slane %v717, 4
    %v720 = vshll.u32 %v134, 16
    %v722 = vrot.slane %v720, 5
    %v723 = vsel %vm171, %v718, %v722
    %v725 = vshrl.u32 %v135, 16
    %v727 = vrot.slane %v725, 4
    %v728 = vshll.u32 %v135, 16
    %v730 = vrot.slane %v728, 5
    %v731 = vor.u32 %v727, %v730
    %v732 = vrot.slane %v731, 4
    %v734 = vshll.u32 %v136, 16
    %v736 = vrot.slane %v734, 5
    %v737 = vsel %vm171, %v732, %v736
    %v738 = vshrl.u32 %v136, 16
    %v740 = vrot.slane %v738, 4
    %v741 = vor.u32 %v740, %v736
    %v742 = vrot.slane %v741, 4
    %v744 = vshll.u32 %v137, 16
    %v746 = vrot.slane %v744, 5
    %v747 = vsel %vm171, %v742, %v746
    %v749 = vshrl.u32 %v138, 16
    %v751 = vrot.slane %v749, 4
    %v752 = vshll.u32 %v138, 16
    %v754 = vrot.slane %v752, 5
    %v755 = vor.u32 %v751, %v754
    %v756 = vrot.slane %v755, 4
    %v758 = vshll.u32 %v139, 16
    %v760 = vrot.slane %v758, 5
    %v761 = vsel %vm171, %v756, %v760
    %v762 = vshrl.u32 %v139, 16
    %v764 = vrot.slane %v762, 4
    %v765 = vor.u32 %v764, %v760
    %v766 = vrot.slane %v765, 4
    %v768 = vshll.u32 %v140, 16
    %v770 = vrot.slane %v768, 5
    %v771 = vsel %vm171, %v766, %v770
    %v773 = vshrl.u32 %v141, 16
    %v775 = vrot.slane %v773, 4
    %v776 = vshll.u32 %v141, 16
    %v778 = vrot.slane %v776, 5
    %v779 = vor.u32 %v775, %v778
    %v780 = vrot.slane %v779, 4
    %v782 = vshll.u32 %v142, 16
    %v784 = vrot.slane %v782, 5
    %v785 = vsel %vm171, %v780, %v784
    %v786 = vshrl.u32 %v142, 16
    %v788 = vrot.slane %v786, 4
    %v789 = vor.u32 %v788, %v784
    %v790 = vrot.slane %v789, 4
    %v792 = vshll.u32 %v143, 16
    %v794 = vrot.slane %v792, 5
    %v795 = vsel %vm171, %v790, %v794
    %v797 = vshrl.u32 %v144, 16
    %v799 = vrot.slane %v797, 4
    %v800 = vshll.u32 %v144, 16
    %v802 = vrot.slane %v800, 5
    %v803 = vor.u32 %v799, %v802
    %v804 = vrot.slane %v803, 4
    %v806 = vshll.u32 %v145, 16
    %v808 = vrot.slane %v806, 5
    %v809 = vsel %vm171, %v804, %v808
    %v810 = vshrl.u32 %v145, 16
    %v812 = vrot.slane %v810, 4
    %v813 = vor.u32 %v812, %v808
    %v814 = vrot.slane %v813, 4
    %v816 = vshll.u32 %v146, 16
    %v818 = vrot.slane %v816, 5
    %v819 = vsel %vm171, %v814, %v818
    %v821 = vshrl.u32 %v147, 16
    %v823 = vrot.slane %v821, 4
    %v824 = vshll.u32 %v147, 16
    %v826 = vrot.slane %v824, 5
    %v827 = vor.u32 %v823, %v826
    %v828 = vrot.slane %v827, 4
    %v830 = vshll.u32 %v148, 16
    %v832 = vrot.slane %v830, 5
    %v833 = vsel %vm171, %v828, %v832
    %v834 = vshrl.u32 %v148, 16
    %v836 = vrot.slane %v834, 4
    %v837 = vor.u32 %v836, %v832
    %v838 = vrot.slane %v837, 4
    %v840 = vshll.u32 %v149, 16
    %v842 = vrot.slane %v840, 5
    %v843 = vsel %vm171, %v838, %v842
    %v845 = vshrl.u32 %v150, 16
    %v847 = vrot.slane %v845, 4
    %v848 = vshll.u32 %v150, 16
    %v850 = vrot.slane %v848, 5
    %v851 = vor.u32 %v847, %v850
    %v852 = vrot.slane %v851, 4
    %v854 = vshll.u32 %v151, 16
    %v856 = vrot.slane %v854, 5
    %v857 = vsel %vm171, %v852, %v856
    %v858 = vshrl.u32 %v151, 16
    %v860 = vrot.slane %v858, 4
    %v861 = vor.u32 %v860, %v856
    %v862 = vrot.slane %v861, 4
    %v864 = vshll.u32 %v152, 16
    %v866 = vrot.slane %v864, 5
    %v867 = vsel %vm171, %v862, %v866
    %v869 = vshrl.u32 %v153, 16
    %v871 = vrot.slane %v869, 4
    %v872 = vshll.u32 %v153, 16
    %v874 = vrot.slane %v872, 5
    %v875 = vor.u32 %v871, %v874
    %v876 = vrot.slane %v875, 4
    %v878 = vshll.u32 %v154, 16
    %v880 = vrot.slane %v878, 5
    %v881 = vsel %vm171, %v876, %v880
    %v882 = vshrl.u32 %v154, 16
    %v884 = vrot.slane %v882, 4
    %v885 = vor.u32 %v884, %v880
    %v886 = vrot.slane %v885, 4
    %v888 = vshll.u32 %v155, 16
    %v890 = vrot.slane %v888, 5
    %v891 = vsel %vm171, %v886, %v890
    %v893 = vshrl.u32 %v156, 16
    %v895 = vrot.slane %v893, 4
    %v896 = vshll.u32 %v156, 16
    %v898 = vrot.slane %v896, 5
    %v899 = vor.u32 %v895, %v898
    %v900 = vrot.slane %v899, 4
    %v902 = vshll.u32 %v157, 16
    %v904 = vrot.slane %v902, 5
    %v905 = vsel %vm171, %v900, %v904
    %v906 = vshrl.u32 %v157, 16
    %v908 = vrot.slane %v906, 4
    %v909 = vor.u32 %v908, %v904
    %v910 = vrot.slane %v909, 4
    %v912 = vshll.u32 %v158, 16
    %v914 = vrot.slane %v912, 5
    %v915 = vsel %vm171, %v910, %v914
    %v917 = vshrl.u32 %v159, 16
    %v919 = vrot.slane %v917, 4
    %v920 = vshll.u32 %v159, 16
    %v922 = vrot.slane %v920, 5
    %v923 = vor.u32 %v919, %v922
    %v924 = vrot.slane %v923, 4
    %v926 = vshll.u32 %v160, 16
    %v928 = vrot.slane %v926, 5
    %v929 = vsel %vm171, %v924, %v928
    %v930 = vshrl.u32 %v160, 16
    %v932 = vrot.slane %v930, 4
    %v933 = vor.u32 %v932, %v928
    %v934 = vrot.slane %v933, 4
    %v936 = vshll.u32 %v161, 16
    %v938 = vrot.slane %v936, 5
    %v939 = vsel %vm171, %v934, %v938
    %s940 = scalar_lea.vmem %s1, 2
    %v941 = vld [vmem:[%s940] sm:$0x3]
    %v942 = vunpack.c.l.b16 %v185
    %v943 = vunpack.c.l.b16 %v195
    %v944 = vunpack.c.l.b16 %v209
    %v945 = vunpack.c.l.b16 %v219
    %v946 = vunpack.c.l.b16 %v233
    %v947 = vunpack.c.l.b16 %v243
    %v948 = vunpack.c.l.b16 %v257
    %v949 = vunpack.c.l.b16 %v267
    %v950 = vunpack.c.l.b16 %v281
    %v951 = vunpack.c.l.b16 %v291
    %v952 = vunpack.c.l.b16 %v305
    %v953 = vunpack.c.l.b16 %v315
    %v954 = vunpack.c.l.b16 %v329
    %v955 = vunpack.c.l.b16 %v339
    %v956 = vunpack.c.l.b16 %v353
    %v957 = vunpack.c.l.b16 %v363
    %v958 = vunpack.c.l.b16 %v377
    %v959 = vunpack.c.l.b16 %v387
    %v960 = vunpack.c.l.b16 %v401
    %v961 = vunpack.c.l.b16 %v411
    %v962 = vunpack.c.l.b16 %v425
    %v963 = vunpack.c.l.b16 %v435
    %v964 = vunpack.c.l.b16 %v449
    %v965 = vunpack.c.l.b16 %v459
    %v966 = vunpack.c.l.b16 %v473
    %v967 = vunpack.c.l.b16 %v483
    %v968 = vunpack.c.l.b16 %v497
    %v969 = vunpack.c.l.b16 %v507
    %v970 = vunpack.c.l.b16 %v521
    %v971 = vunpack.c.l.b16 %v531
    %v972 = vunpack.c.l.b16 %v545
    %v973 = vunpack.c.l.b16 %v555
    %v974 = vunpack.c.l.b16 %v569
    %v975 = vunpack.c.l.b16 %v579
    %v976 = vunpack.c.l.b16 %v593
    %v977 = vunpack.c.l.b16 %v603
    %v978 = vunpack.c.l.b16 %v617
    %v979 = vunpack.c.l.b16 %v627
    %v980 = vunpack.c.l.b16 %v641
    %v981 = vunpack.c.l.b16 %v651
    %v982 = vunpack.c.l.b16 %v665
    %v983 = vunpack.c.l.b16 %v675
    %v984 = vunpack.c.l.b16 %v689
    %v985 = vunpack.c.l.b16 %v699
    %v986 = vunpack.c.l.b16 %v713
    %v987 = vunpack.c.l.b16 %v723
    %v988 = vunpack.c.l.b16 %v737
    %v989 = vunpack.c.l.b16 %v747
    %v990 = vunpack.c.l.b16 %v761
    %v991 = vunpack.c.l.b16 %v771
    %v992 = vunpack.c.l.b16 %v785
    %v993 = vunpack.c.l.b16 %v795
    %v994 = vunpack.c.l.b16 %v809
    %v995 = vunpack.c.l.b16 %v819
    %v996 = vunpack.c.l.b16 %v833
    %v997 = vunpack.c.l.b16 %v843
    %v998 = vunpack.c.l.b16 %v857
    %v999 = vunpack.c.l.b16 %v867
    %v1000 = vunpack.c.l.b16 %v881
    %v1001 = vunpack.c.l.b16 %v891
    %v1002 = vunpack.c.l.b16 %v905
    %v1003 = vunpack.c.l.b16 %v915
    %v1004 = vunpack.c.l.b16 %v929
    %v1005 = vunpack.c.l.b16 %v939
    %v1006 = vpack.c.b16 %v943, %v942
    %v1007 = vpack.c.b16 %v945, %v944
    %v1008 = vpack.c.b16 %v947, %v946
    %v1009 = vpack.c.b16 %v949, %v948
    %v1010 = vpack.c.b16 %v951, %v950
    %v1011 = vpack.c.b16 %v953, %v952
    %v1012 = vpack.c.b16 %v955, %v954
    %v1013 = vpack.c.b16 %v957, %v956
    %v1014 = vpack.c.b16 %v959, %v958
    %v1015 = vpack.c.b16 %v961, %v960
    %v1016 = vpack.c.b16 %v963, %v962
    %v1017 = vpack.c.b16 %v965, %v964
    %v1018 = vpack.c.b16 %v967, %v966
    %v1019 = vpack.c.b16 %v969, %v968
    %v1020 = vpack.c.b16 %v971, %v970
    %v1021 = vpack.c.b16 %v973, %v972
    %v1022 = vpack.c.b16 %v975, %v974
    %v1023 = vpack.c.b16 %v977, %v976
    %v1024 = vpack.c.b16 %v979, %v978
    %v1025 = vpack.c.b16 %v981, %v980
    %v1026 = vpack.c.b16 %v983, %v982
    %v1027 = vpack.c.b16 %v985, %v984
    %v1028 = vpack.c.b16 %v987, %v986
    %v1029 = vpack.c.b16 %v989, %v988
    %v1030 = vpack.c.b16 %v991, %v990
    %v1031 = vpack.c.b16 %v993, %v992
    %v1032 = vpack.c.b16 %v995, %v994
    %v1033 = vpack.c.b16 %v997, %v996
    %v1034 = vpack.c.b16 %v999, %v998
    %v1035 = vpack.c.b16 %v1001, %v1000
    %v1036 = vpack.c.b16 %v1003, %v1002
    %v1037 = vpack.c.b16 %v1005, %v1004
    %vm1038 = vcmask 31744
    %v1040 = vsel %vm1038, %v1006, 0
    %v1043 = vsel %vm1038, %v1007, 0
    %v1046 = vsel %vm1038, %v1008, 0
    %v1049 = vsel %vm1038, %v1009, 0
    %v1052 = vsel %vm1038, %v1010, 0
    %v1055 = vsel %vm1038, %v1011, 0
    %v1058 = vsel %vm1038, %v1012, 0
    %v1061 = vsel %vm1038, %v1013, 0
    %v1064 = vsel %vm1038, %v1014, 0
    %v1067 = vsel %vm1038, %v1015, 0
    %v1070 = vsel %vm1038, %v1016, 0
    %v1073 = vsel %vm1038, %v1017, 0
    %v1076 = vsel %vm1038, %v1018, 0
    %v1079 = vsel %vm1038, %v1019, 0
    %v1082 = vsel %vm1038, %v1020, 0
    %v1085 = vsel %vm1038, %v1021, 0
    %v1088 = vsel %vm1038, %v1022, 0
    %v1091 = vsel %vm1038, %v1023, 0
    %v1094 = vsel %vm1038, %v1024, 0
    %v1097 = vsel %vm1038, %v1025, 0
    %v1100 = vsel %vm1038, %v1026, 0
    %v1103 = vsel %vm1038, %v1027, 0
    %v1106 = vsel %vm1038, %v1028, 0
    %v1109 = vsel %vm1038, %v1029, 0
    %v1112 = vsel %vm1038, %v1030, 0
    %v1115 = vsel %vm1038, %v1031, 0
    %v1118 = vsel %vm1038, %v1032, 0
    %v1121 = vsel %vm1038, %v1033, 0
    %v1124 = vsel %vm1038, %v1034, 0
    %v1127 = vsel %vm1038, %v1035, 0
    %v1130 = vsel %vm1038, %v1036, 0
    %v1133 = vsel %vm1038, %v1037, 0
    %vm1135 = vcmask 1041408
    %v1137 = vsel %vm1135, %v941, 0
    %1139 = vmatprep.subr.bf16.mxu0 0
    %1140 = vmatpush1.bf16.msra.mxu0 %v1137
    %1141 = vmatprep.subr.bf16.mxu0 0
    %1142 = vmatpush1.bf16.msra.mxu0 0
    %1143 = vmatprep.subr.bf16.mxu0 0
    %1144 = vmatpush1.bf16.msra.mxu0 0
    %1145 = vmatprep.subr.bf16.mxu0 0
    %1146 = vmatpush1.bf16.msra.mxu0 0
    %1147 = vmatprep.subr.bf16.mxu0 0
    %1148 = vmatpush1.bf16.msra.mxu0 0
    %1149 = vmatprep.subr.bf16.mxu0 0
    %1150 = vmatpush1.bf16.msra.mxu0 0
    %1151 = vmatprep.subr.bf16.mxu0 0
    %1152 = vmatpush1.bf16.msra.mxu0 0
    %1153 = vmatprep.subr.bf16.mxu0 0
    %1154 = vmatpush1.bf16.msra.mxu0 0
    %1155 = vmatprep.subr.bf16.mxu0 0
    %1156 = vmatpush1.bf16.msra.mxu0 0
    %1157 = vmatprep.subr.bf16.mxu0 0
    %1158 = vmatpush1.bf16.msra.mxu0 0
    %1159 = vmatprep.subr.bf16.mxu0 0
    %1160 = vmatpush1.bf16.msra.mxu0 0
    %1161 = vmatprep.subr.bf16.mxu0 0
    %1162 = vmatpush1.bf16.msra.mxu0 0
    %1163 = vmatprep.subr.bf16.mxu0 0
    %1164 = vmatpush1.bf16.msra.mxu0 0
    %1165 = vmatprep.subr.bf16.mxu0 0
    %1166 = vmatpush1.bf16.msra.mxu0 0
    %1167 = vmatprep.subr.bf16.mxu0 0
    %1168 = vmatpush1.bf16.msra.mxu0 0
    %1169 = vmatprep.subr.bf16.mxu0 0
    %1170 = vmatpush1.bf16.msra.mxu0 0
    %1171 = vmatprep.mubr.bf16.mxu0 0
    %1172 = vmatmul.mubr.bf16.gmra.mrb[0].mxu0 %v1040
    %v1173 = vpop.f32.mrb[0].mxu0
    %v1174 = vadd.f32 0.0, %v1173
    %v1175 = vpop.f32.mrb[0].mxu0
    %v1176 = vpop.f32.mrb[0].mxu0
    %v1177 = vadd.f32 0.0, %v1176
    %v1178 = vpop.f32.mrb[0].mxu0
    %1179 = vmatprep.mubr.bf16.mxu0 0
    %1180 = vmatmul.mubr.bf16.gmra.mrb[0].mxu0 %v1043
    %v1181 = vpop.f32.mrb[0].mxu0
    %v1182 = vadd.f32 0.0, %v1181
    %v1183 = vpop.f32.mrb[0].mxu0
    %v1184 = vpop.f32.mrb[0].mxu0
    %v1185 = vadd.f32 0.0, %v1184
    %v1186 = vpop.f32.mrb[0].mxu0
    %1187 = vmatprep.mubr.bf16.mxu0 0
    %1188 = vmatmul.mubr.bf16.gmra.mrb[0].mxu0 %v1046
    %v1189 = vpop.f32.mrb[0].mxu0
    %v1190 = vadd.f32 0.0, %v1189
    %v1191 = vpop.f32.mrb[0].mxu0
    %v1192 = vpop.f32.mrb[0].mxu0
    %v1193 = vadd.f32 0.0, %v1192
    %v1194 = vpop.f32.mrb[0].mxu0
    %1195 = vmatprep.mubr.bf16.mxu0 0
    %1196 = vmatmul.mubr.bf16.gmra.mrb[0].mxu0 %v1049
    %v1197 = vpop.f32.mrb[0].mxu0
    %v1198 = vadd.f32 0.0, %v1197
    %v1199 = vpop.f32.mrb[0].mxu0
    %v1200 = vpop.f32.mrb[0].mxu0
    %v1201 = vadd.f32 0.0, %v1200
    %v1202 = vpop.f32.mrb[0].mxu0
    %1203 = vmatprep.mubr.bf16.mxu0 0
    %1204 = vmatmul.mubr.bf16.gmra.mrb[0].mxu0 %v1052
    %v1205 = vpop.f32.mrb[0].mxu0
    %v1206 = vadd.f32 0.0, %v1205
    %v1207 = vpop.f32.mrb[0].mxu0
    %v1208 = vpop.f32.mrb[0].mxu0
    %v1209 = vadd.f32 0.0, %v1208
    %v1210 = vpop.f32.mrb[0].mxu0
    %1211 = vmatprep.mubr.bf16.mxu0 0
    %1212 = vmatmul.mubr.bf16.gmra.mrb[0].mxu0 %v1055
    %v1213 = vpop.f32.mrb[0].mxu0
    %v1214 = vadd.f32 0.0, %v1213
    %v1215 = vpop.f32.mrb[0].mxu0
    %v1216 = vpop.f32.mrb[0].mxu0
    %v1217 = vadd.f32 0.0, %v1216
    %v1218 = vpop.f32.mrb[0].mxu0
    %1219 = vmatprep.mubr.bf16.mxu0 0
    %1220 = vmatmul.mubr.bf16.gmra.mrb[0].mxu0 %v1058
    %v1221 = vpop.f32.mrb[0].mxu0
    %v1222 = vadd.f32 0.0, %v1221
    %v1223 = vpop.f32.mrb[0].mxu0
    %v1224 = vpop.f32.mrb[0].mxu0
    %v1225 = vadd.f32 0.0, %v1224
    %v1226 = vpop.f32.mrb[0].mxu0
    %1227 = vmatprep.mubr.bf16.mxu0 0
    %1228 = vmatmul.mubr.bf16.gmra.mrb[0].mxu0 %v1061
    %v1229 = vpop.f32.mrb[0].mxu0
    %v1230 = vadd.f32 0.0, %v1229
    %v1231 = vpop.f32.mrb[0].mxu0
    %v1232 = vpop.f32.mrb[0].mxu0
    %v1233 = vadd.f32 0.0, %v1232
    %v1234 = vpop.f32.mrb[0].mxu0
    %1235 = vmatprep.mubr.bf16.mxu0 0
    %1236 = vmatmul.mubr.bf16.gmra.mrb[0].mxu0 %v1064
    %v1237 = vpop.f32.mrb[0].mxu0
    %v1238 = vadd.f32 0.0, %v1237
    %v1239 = vpop.f32.mrb[0].mxu0
    %v1240 = vpop.f32.mrb[0].mxu0
    %v1241 = vadd.f32 0.0, %v1240
    %v1242 = vpop.f32.mrb[0].mxu0
    %1243 = vmatprep.mubr.bf16.mxu0 0
    %1244 = vmatmul.mubr.bf16.gmra.mrb[0].mxu0 %v1067
    %v1245 = vpop.f32.mrb[0].mxu0
    %v1246 = vadd.f32 0.0, %v1245
    %v1247 = vpop.f32.mrb[0].mxu0
    %v1248 = vpop.f32.mrb[0].mxu0
    %v1249 = vadd.f32 0.0, %v1248
    %v1250 = vpop.f32.mrb[0].mxu0
    %1251 = vmatprep.mubr.bf16.mxu0 0
    %1252 = vmatmul.mubr.bf16.gmra.mrb[0].mxu0 %v1070
    %v1253 = vpop.f32.mrb[0].mxu0
    %v1254 = vadd.f32 0.0, %v1253
    %v1255 = vpop.f32.mrb[0].mxu0
    %v1256 = vpop.f32.mrb[0].mxu0
    %v1257 = vadd.f32 0.0, %v1256
    %v1258 = vpop.f32.mrb[0].mxu0
    %1259 = vmatprep.mubr.bf16.mxu0 0
    %1260 = vmatmul.mubr.bf16.gmra.mrb[0].mxu0 %v1073
    %v1261 = vpop.f32.mrb[0].mxu0
    %v1262 = vadd.f32 0.0, %v1261
    %v1263 = vpop.f32.mrb[0].mxu0
    %v1264 = vpop.f32.mrb[0].mxu0
    %v1265 = vadd.f32 0.0, %v1264
    %v1266 = vpop.f32.mrb[0].mxu0
    %1267 = vmatprep.mubr.bf16.mxu0 0
    %1268 = vmatmul.mubr.bf16.gmra.mrb[0].mxu0 %v1076
    %v1269 = vpop.f32.mrb[0].mxu0
    %v1270 = vadd.f32 0.0, %v1269
    %v1271 = vpop.f32.mrb[0].mxu0
    %v1272 = vpop.f32.mrb[0].mxu0
    %v1273 = vadd.f32 0.0, %v1272
    %v1274 = vpop.f32.mrb[0].mxu0
    %1275 = vmatprep.mubr.bf16.mxu0 0
    %1276 = vmatmul.mubr.bf16.gmra.mrb[0].mxu0 %v1079
    %v1277 = vpop.f32.mrb[0].mxu0
    %v1278 = vadd.f32 0.0, %v1277
    %v1279 = vpop.f32.mrb[0].mxu0
    %v1280 = vpop.f32.mrb[0].mxu0
    %v1281 = vadd.f32 0.0, %v1280
    %v1282 = vpop.f32.mrb[0].mxu0
    %1283 = vmatprep.mubr.bf16.mxu0 0
    %1284 = vmatmul.mubr.bf16.gmra.mrb[0].mxu0 %v1082
    %v1285 = vpop.f32.mrb[0].mxu0
    %v1286 = vadd.f32 0.0, %v1285
    %v1287 = vpop.f32.mrb[0].mxu0
    %v1288 = vpop.f32.mrb[0].mxu0
    %v1289 = vadd.f32 0.0, %v1288
    %v1290 = vpop.f32.mrb[0].mxu0
    %1291 = vmatprep.mubr.bf16.mxu0 0
    %1292 = vmatmul.mubr.bf16.gmra.mrb[0].mxu0 %v1085
    %v1293 = vpop.f32.mrb[0].mxu0
    %v1294 = vadd.f32 0.0, %v1293
    %v1295 = vpop.f32.mrb[0].mxu0
    %v1296 = vpop.f32.mrb[0].mxu0
    %v1297 = vadd.f32 0.0, %v1296
    %v1298 = vpop.f32.mrb[0].mxu0
    %1299 = vmatprep.mubr.bf16.mxu0 0
    %1300 = vmatmul.mubr.bf16.gmra.mrb[0].mxu0 %v1088
    %v1301 = vpop.f32.mrb[0].mxu0
    %v1302 = vadd.f32 0.0, %v1301
    %v1303 = vpop.f32.mrb[0].mxu0
    %v1304 = vpop.f32.mrb[0].mxu0
    %v1305 = vadd.f32 0.0, %v1304
    %v1306 = vpop.f32.mrb[0].mxu0
    %1307 = vmatprep.mubr.bf16.mxu0 0
    %1308 = vmatmul.mubr.bf16.gmra.mrb[0].mxu0 %v1091
    %v1309 = vpop.f32.mrb[0].mxu0
    %v1310 = vadd.f32 0.0, %v1309
    %v1311 = vpop.f32.mrb[0].mxu0
    %v1312 = vpop.f32.mrb[0].mxu0
    %v1313 = vadd.f32 0.0, %v1312
    %v1314 = vpop.f32.mrb[0].mxu0
    %1315 = vmatprep.mubr.bf16.mxu0 0
    %1316 = vmatmul.mubr.bf16.gmra.mrb[0].mxu0 %v1094
    %v1317 = vpop.f32.mrb[0].mxu0
    %v1318 = vadd.f32 0.0, %v1317
    %v1319 = vpop.f32.mrb[0].mxu0
    %v1320 = vpop.f32.mrb[0].mxu0
    %v1321 = vadd.f32 0.0, %v1320
    %v1322 = vpop.f32.mrb[0].mxu0
    %1323 = vmatprep.mubr.bf16.mxu0 0
    %1324 = vmatmul.mubr.bf16.gmra.mrb[0].mxu0 %v1097
    %v1325 = vpop.f32.mrb[0].mxu0
    %v1326 = vadd.f32 0.0, %v1325
    %v1327 = vpop.f32.mrb[0].mxu0
    %v1328 = vpop.f32.mrb[0].mxu0
    %v1329 = vadd.f32 0.0, %v1328
    %v1330 = vpop.f32.mrb[0].mxu0
    %1331 = vmatprep.mubr.bf16.mxu0 0
    %1332 = vmatmul.mubr.bf16.gmra.mrb[0].mxu0 %v1100
    %v1333 = vpop.f32.mrb[0].mxu0
    %v1334 = vadd.f32 0.0, %v1333
    %v1335 = vpop.f32.mrb[0].mxu0
    %v1336 = vpop.f32.mrb[0].mxu0
    %v1337 = vadd.f32 0.0, %v1336
    %v1338 = vpop.f32.mrb[0].mxu0
    %1339 = vmatprep.mubr.bf16.mxu0 0
    %1340 = vmatmul.mubr.bf16.gmra.mrb[0].mxu0 %v1103
    %v1341 = vpop.f32.mrb[0].mxu0
    %v1342 = vadd.f32 0.0, %v1341
    %v1343 = vpop.f32.mrb[0].mxu0
    %v1344 = vpop.f32.mrb[0].mxu0
    %v1345 = vadd.f32 0.0, %v1344
    %v1346 = vpop.f32.mrb[0].mxu0
    %1347 = vmatprep.mubr.bf16.mxu0 0
    %1348 = vmatmul.mubr.bf16.gmra.mrb[0].mxu0 %v1106
    %v1349 = vpop.f32.mrb[0].mxu0
    %v1350 = vadd.f32 0.0, %v1349
    %v1351 = vpop.f32.mrb[0].mxu0
    %v1352 = vpop.f32.mrb[0].mxu0
    %v1353 = vadd.f32 0.0, %v1352
    %v1354 = vpop.f32.mrb[0].mxu0
    %1355 = vmatprep.mubr.bf16.mxu0 0
    %1356 = vmatmul.mubr.bf16.gmra.mrb[0].mxu0 %v1109
    %v1357 = vpop.f32.mrb[0].mxu0
    %v1358 = vadd.f32 0.0, %v1357
    %v1359 = vpop.f32.mrb[0].mxu0
    %v1360 = vpop.f32.mrb[0].mxu0
    %v1361 = vadd.f32 0.0, %v1360
    %v1362 = vpop.f32.mrb[0].mxu0
    %1363 = vmatprep.mubr.bf16.mxu0 0
    %1364 = vmatmul.mubr.bf16.gmra.mrb[0].mxu0 %v1112
    %v1365 = vpop.f32.mrb[0].mxu0
    %v1366 = vadd.f32 0.0, %v1365
    %v1367 = vpop.f32.mrb[0].mxu0
    %v1368 = vpop.f32.mrb[0].mxu0
    %v1369 = vadd.f32 0.0, %v1368
    %v1370 = vpop.f32.mrb[0].mxu0
    %1371 = vmatprep.mubr.bf16.mxu0 0
    %1372 = vmatmul.mubr.bf16.gmra.mrb[0].mxu0 %v1115
    %v1373 = vpop.f32.mrb[0].mxu0
    %v1374 = vadd.f32 0.0, %v1373
    %v1375 = vpop.f32.mrb[0].mxu0
    %v1376 = vpop.f32.mrb[0].mxu0
    %v1377 = vadd.f32 0.0, %v1376
    %v1378 = vpop.f32.mrb[0].mxu0
    %1379 = vmatprep.mubr.bf16.mxu0 0
    %1380 = vmatmul.mubr.bf16.gmra.mrb[0].mxu0 %v1118
    %v1381 = vpop.f32.mrb[0].mxu0
    %v1382 = vadd.f32 0.0, %v1381
    %v1383 = vpop.f32.mrb[0].mxu0
    %v1384 = vpop.f32.mrb[0].mxu0
    %v1385 = vadd.f32 0.0, %v1384
    %v1386 = vpop.f32.mrb[0].mxu0
    %1387 = vmatprep.mubr.bf16.mxu0 0
    %1388 = vmatmul.mubr.bf16.gmra.mrb[0].mxu0 %v1121
    %v1389 = vpop.f32.mrb[0].mxu0
    %v1390 = vadd.f32 0.0, %v1389
    %v1391 = vpop.f32.mrb[0].mxu0
    %v1392 = vpop.f32.mrb[0].mxu0
    %v1393 = vadd.f32 0.0, %v1392
    %v1394 = vpop.f32.mrb[0].mxu0
    %1395 = vmatprep.mubr.bf16.mxu0 0
    %1396 = vmatmul.mubr.bf16.gmra.mrb[0].mxu0 %v1124
    %v1397 = vpop.f32.mrb[0].mxu0
    %v1398 = vadd.f32 0.0, %v1397
    %v1399 = vpop.f32.mrb[0].mxu0
    %v1400 = vpop.f32.mrb[0].mxu0
    %v1401 = vadd.f32 0.0, %v1400
    %v1402 = vpop.f32.mrb[0].mxu0
    %1403 = vmatprep.mubr.bf16.mxu0 0
    %1404 = vmatmul.mubr.bf16.gmra.mrb[0].mxu0 %v1127
    %v1405 = vpop.f32.mrb[0].mxu0
    %v1406 = vadd.f32 0.0, %v1405
    %v1407 = vpop.f32.mrb[0].mxu0
    %v1408 = vpop.f32.mrb[0].mxu0
    %v1409 = vadd.f32 0.0, %v1408
    %v1410 = vpop.f32.mrb[0].mxu0
    %1411 = vmatprep.mubr.bf16.mxu0 0
    %1412 = vmatmul.mubr.bf16.gmra.mrb[0].mxu0 %v1130
    %v1413 = vpop.f32.mrb[0].mxu0
    %v1414 = vadd.f32 0.0, %v1413
    %v1415 = vpop.f32.mrb[0].mxu0
    %v1416 = vpop.f32.mrb[0].mxu0
    %v1417 = vadd.f32 0.0, %v1416
    %v1418 = vpop.f32.mrb[0].mxu0
    %1419 = vmatprep.mubr.bf16.mxu0 0
    %1420 = vmatmul.mubr.bf16.gmra.mrb[0].mxu0 %v1133
    %v1421 = vpop.f32.mrb[0].mxu0
    %v1422 = vadd.f32 0.0, %v1421
    %v1423 = vpop.f32.mrb[0].mxu0
    %v1424 = vpop.f32.mrb[0].mxu0
    %v1425 = vadd.f32 0.0, %v1424
    %v1426 = vpop.f32.mrb[0].mxu0
    %1427 = vdwg.mxu0
    %v1492 = vunpack.c.l.b16 %v60
    %v1493 = vunpack.c.l.b16 %v61
    %v1494 = vunpack.c.l.b16 %v63
    %v1495 = vunpack.c.l.b16 %v64
    %v1496 = vunpack.c.l.b16 %v66
    %v1497 = vunpack.c.l.b16 %v67
    %v1498 = vunpack.c.l.b16 %v69
    %v1499 = vunpack.c.l.b16 %v70
    %v1500 = vunpack.c.l.b16 %v72
    %v1501 = vunpack.c.l.b16 %v73
    %v1502 = vunpack.c.l.b16 %v75
    %v1503 = vunpack.c.l.b16 %v76
    %v1504 = vunpack.c.l.b16 %v78
    %v1505 = vunpack.c.l.b16 %v79
    %v1506 = vunpack.c.l.b16 %v81
    %v1507 = vunpack.c.l.b16 %v82
    %v1508 = vunpack.c.l.b16 %v84
    %v1509 = vunpack.c.l.b16 %v85
    %v1510 = vunpack.c.l.b16 %v87
    %v1511 = vunpack.c.l.b16 %v88
    %v1512 = vunpack.c.l.b16 %v90
    %v1513 = vunpack.c.l.b16 %v91
    %v1514 = vunpack.c.l.b16 %v93
    %v1515 = vunpack.c.l.b16 %v94
    %v1516 = vunpack.c.l.b16 %v96
    %v1517 = vunpack.c.l.b16 %v97
    %v1518 = vunpack.c.l.b16 %v99
    %v1519 = vunpack.c.l.b16 %v100
    %v1520 = vunpack.c.l.b16 %v102
    %v1521 = vunpack.c.l.b16 %v103
    %v1522 = vunpack.c.l.b16 %v105
    %v1523 = vunpack.c.l.b16 %v106
    %v1524 = vunpack.c.l.b16 %v114
    %v1525 = vunpack.c.l.b16 %v115
    %v1526 = vunpack.c.l.b16 %v117
    %v1527 = vunpack.c.l.b16 %v118
    %v1528 = vunpack.c.l.b16 %v120
    %v1529 = vunpack.c.l.b16 %v121
    %v1530 = vunpack.c.l.b16 %v123
    %v1531 = vunpack.c.l.b16 %v124
    %v1532 = vunpack.c.l.b16 %v126
    %v1533 = vunpack.c.l.b16 %v127
    %v1534 = vunpack.c.l.b16 %v129
    %v1535 = vunpack.c.l.b16 %v130
    %v1536 = vunpack.c.l.b16 %v132
    %v1537 = vunpack.c.l.b16 %v133
    %v1538 = vunpack.c.l.b16 %v135
    %v1539 = vunpack.c.l.b16 %v136
    %v1540 = vunpack.c.l.b16 %v138
    %v1541 = vunpack.c.l.b16 %v139
    %v1542 = vunpack.c.l.b16 %v141
    %v1543 = vunpack.c.l.b16 %v142
    %v1544 = vunpack.c.l.b16 %v144
    %v1545 = vunpack.c.l.b16 %v145
    %v1546 = vunpack.c.l.b16 %v147
    %v1547 = vunpack.c.l.b16 %v148
    %v1548 = vunpack.c.l.b16 %v150
    %v1549 = vunpack.c.l.b16 %v151
    %v1550 = vunpack.c.l.b16 %v153
    %v1551 = vunpack.c.l.b16 %v154
    %v1552 = vunpack.c.l.b16 %v156
    %v1553 = vunpack.c.l.b16 %v157
    %v1554 = vunpack.c.l.b16 %v159
    %v1555 = vunpack.c.l.b16 %v160
    %v1556 = vpack.c.b16 %v1493, %v1492
    %v1557 = vpack.c.b16 %v1495, %v1494
    %v1558 = vpack.c.b16 %v1497, %v1496
    %v1559 = vpack.c.b16 %v1499, %v1498
    %v1560 = vpack.c.b16 %v1501, %v1500
    %v1561 = vpack.c.b16 %v1503, %v1502
    %v1562 = vpack.c.b16 %v1505, %v1504
    %v1563 = vpack.c.b16 %v1507, %v1506
    %v1564 = vpack.c.b16 %v1509, %v1508
    %v1565 = vpack.c.b16 %v1511, %v1510
    %v1566 = vpack.c.b16 %v1513, %v1512
    %v1567 = vpack.c.b16 %v1515, %v1514
    %v1568 = vpack.c.b16 %v1517, %v1516
    %v1569 = vpack.c.b16 %v1519, %v1518
    %v1570 = vpack.c.b16 %v1521, %v1520
    %v1571 = vpack.c.b16 %v1523, %v1522
    %v1572 = vpack.c.b16 %v1525, %v1524
    %v1573 = vpack.c.b16 %v1527, %v1526
    %v1574 = vpack.c.b16 %v1529, %v1528
    %v1575 = vpack.c.b16 %v1531, %v1530
    %v1576 = vpack.c.b16 %v1533, %v1532
    %v1577 = vpack.c.b16 %v1535, %v1534
    %v1578 = vpack.c.b16 %v1537, %v1536
    %v1579 = vpack.c.b16 %v1539, %v1538
    %v1580 = vpack.c.b16 %v1541, %v1540
    %v1581 = vpack.c.b16 %v1543, %v1542
    %v1582 = vpack.c.b16 %v1545, %v1544
    %v1583 = vpack.c.b16 %v1547, %v1546
    %v1584 = vpack.c.b16 %v1549, %v1548
    %v1585 = vpack.c.b16 %v1551, %v1550
    %v1586 = vpack.c.b16 %v1553, %v1552
    %v1587 = vpack.c.b16 %v1555, %v1554
    %v1589 = vsel %vm1038, %v1556, 0
    %v1592 = vsel %vm1038, %v1557, 0
    %v1595 = vsel %vm1038, %v1558, 0
    %v1598 = vsel %vm1038, %v1559, 0
    %v1601 = vsel %vm1038, %v1560, 0
    %v1604 = vsel %vm1038, %v1561, 0
    %v1607 = vsel %vm1038, %v1562, 0
    %v1610 = vsel %vm1038, %v1563, 0
    %v1613 = vsel %vm1038, %v1564, 0
    %v1616 = vsel %vm1038, %v1565, 0
    %v1619 = vsel %vm1038, %v1566, 0
    %v1622 = vsel %vm1038, %v1567, 0
    %v1625 = vsel %vm1038, %v1568, 0
    %v1628 = vsel %vm1038, %v1569, 0
    %v1631 = vsel %vm1038, %v1570, 0
    %v1634 = vsel %vm1038, %v1571, 0
    %v1637 = vsel %vm1038, %v1572, 0
    %v1640 = vsel %vm1038, %v1573, 0
    %v1643 = vsel %vm1038, %v1574, 0
    %v1646 = vsel %vm1038, %v1575, 0
    %v1649 = vsel %vm1038, %v1576, 0
    %v1652 = vsel %vm1038, %v1577, 0
    %v1655 = vsel %vm1038, %v1578, 0
    %v1658 = vsel %vm1038, %v1579, 0
    %v1661 = vsel %vm1038, %v1580, 0
    %v1664 = vsel %vm1038, %v1581, 0
    %v1667 = vsel %vm1038, %v1582, 0
    %v1670 = vsel %vm1038, %v1583, 0
    %v1673 = vsel %vm1038, %v1584, 0
    %v1676 = vsel %vm1038, %v1585, 0
    %v1679 = vsel %vm1038, %v1586, 0
    %v1682 = vsel %vm1038, %v1587, 0
    %v1685 = vsel %vm1135, %v168, 0
    %1687 = vmatprep.subr.bf16.mxu0 0
    %1688 = vmatpush1.bf16.msra.mxu0 %v1685
    %1689 = vmatprep.subr.bf16.mxu0 0
    %1690 = vmatpush1.bf16.msra.mxu0 0
    %1691 = vmatprep.subr.bf16.mxu0 0
    %1692 = vmatpush1.bf16.msra.mxu0 0
    %1693 = vmatprep.subr.bf16.mxu0 0
    %1694 = vmatpush1.bf16.msra.mxu0 0
    %1695 = vmatprep.subr.bf16.mxu0 0
    %1696 = vmatpush1.bf16.msra.mxu0 0
    %1697 = vmatprep.subr.bf16.mxu0 0
    %1698 = vmatpush1.bf16.msra.mxu0 0
    %1699 = vmatprep.subr.bf16.mxu0 0
    %1700 = vmatpush1.bf16.msra.mxu0 0
    %1701 = vmatprep.subr.bf16.mxu0 0
    %1702 = vmatpush1.bf16.msra.mxu0 0
    %1703 = vmatprep.subr.bf16.mxu0 0
    %1704 = vmatpush1.bf16.msra.mxu0 0
    %1705 = vmatprep.subr.bf16.mxu0 0
    %1706 = vmatpush1.bf16.msra.mxu0 0
    %1707 = vmatprep.subr.bf16.mxu0 0
    %1708 = vmatpush1.bf16.msra.mxu0 0
    %1709 = vmatprep.subr.bf16.mxu0 0
    %1710 = vmatpush1.bf16.msra.mxu0 0
    %1711 = vmatprep.subr.bf16.mxu0 0
    %1712 = vmatpush1.bf16.msra.mxu0 0
    %1713 = vmatprep.subr.bf16.mxu0 0
    %1714 = vmatpush1.bf16.msra.mxu0 0
    %1715 = vmatprep.subr.bf16.mxu0 0
    %1716 = vmatpush1.bf16.msra.mxu0 0
    %1717 = vmatprep.subr.bf16.mxu0 0
    %1718 = vmatpush1.bf16.msra.mxu0 0
    %1719 = vmatprep.mubr.bf16.mxu0 0
    %1720 = vmatmul.mubr.bf16.gmra.mrb[0].mxu0 %v1589
    %v1721 = vpop.f32.mrb[0].mxu0
    %v1722 = vadd.f32 %v1174, %v1721
    %v1723 = vpop.f32.mrb[0].mxu0
    %v1724 = vpop.f32.mrb[0].mxu0
    %v1725 = vadd.f32 %v1177, %v1724
    %v1726 = vpop.f32.mrb[0].mxu0
    %1727 = vmatprep.mubr.bf16.mxu0 0
    %1728 = vmatmul.mubr.bf16.gmra.mrb[0].mxu0 %v1592
    %v1729 = vpop.f32.mrb[0].mxu0
    %v1730 = vadd.f32 %v1182, %v1729
    %v1731 = vpop.f32.mrb[0].mxu0
    %v1732 = vpop.f32.mrb[0].mxu0
    %v1733 = vadd.f32 %v1185, %v1732
    %v1734 = vpop.f32.mrb[0].mxu0
    %1735 = vmatprep.mubr.bf16.mxu0 0
    %1736 = vmatmul.mubr.bf16.gmra.mrb[0].mxu0 %v1595
    %v1737 = vpop.f32.mrb[0].mxu0
    %v1738 = vadd.f32 %v1190, %v1737
    %v1739 = vpop.f32.mrb[0].mxu0
    %v1740 = vpop.f32.mrb[0].mxu0
    %v1741 = vadd.f32 %v1193, %v1740
    %v1742 = vpop.f32.mrb[0].mxu0
    %1743 = vmatprep.mubr.bf16.mxu0 0
    %1744 = vmatmul.mubr.bf16.gmra.mrb[0].mxu0 %v1598
    %v1745 = vpop.f32.mrb[0].mxu0
    %v1746 = vadd.f32 %v1198, %v1745
    %v1747 = vpop.f32.mrb[0].mxu0
    %v1748 = vpop.f32.mrb[0].mxu0
    %v1749 = vadd.f32 %v1201, %v1748
    %v1750 = vpop.f32.mrb[0].mxu0
    %1751 = vmatprep.mubr.bf16.mxu0 0
    %1752 = vmatmul.mubr.bf16.gmra.mrb[0].mxu0 %v1601
    %v1753 = vpop.f32.mrb[0].mxu0
    %v1754 = vadd.f32 %v1206, %v1753
    %v1755 = vpop.f32.mrb[0].mxu0
    %v1756 = vpop.f32.mrb[0].mxu0
    %v1757 = vadd.f32 %v1209, %v1756
    %v1758 = vpop.f32.mrb[0].mxu0
    %1759 = vmatprep.mubr.bf16.mxu0 0
    %1760 = vmatmul.mubr.bf16.gmra.mrb[0].mxu0 %v1604
    %v1761 = vpop.f32.mrb[0].mxu0
    %v1762 = vadd.f32 %v1214, %v1761
    %v1763 = vpop.f32.mrb[0].mxu0
    %v1764 = vpop.f32.mrb[0].mxu0
    %v1765 = vadd.f32 %v1217, %v1764
    %v1766 = vpop.f32.mrb[0].mxu0
    %1767 = vmatprep.mubr.bf16.mxu0 0
    %1768 = vmatmul.mubr.bf16.gmra.mrb[0].mxu0 %v1607
    %v1769 = vpop.f32.mrb[0].mxu0
    %v1770 = vadd.f32 %v1222, %v1769
    %v1771 = vpop.f32.mrb[0].mxu0
    %v1772 = vpop.f32.mrb[0].mxu0
    %v1773 = vadd.f32 %v1225, %v1772
    %v1774 = vpop.f32.mrb[0].mxu0
    %1775 = vmatprep.mubr.bf16.mxu0 0
    %1776 = vmatmul.mubr.bf16.gmra.mrb[0].mxu0 %v1610
    %v1777 = vpop.f32.mrb[0].mxu0
    %v1778 = vadd.f32 %v1230, %v1777
    %v1779 = vpop.f32.mrb[0].mxu0
    %v1780 = vpop.f32.mrb[0].mxu0
    %v1781 = vadd.f32 %v1233, %v1780
    %v1782 = vpop.f32.mrb[0].mxu0
    %1783 = vmatprep.mubr.bf16.mxu0 0
    %1784 = vmatmul.mubr.bf16.gmra.mrb[0].mxu0 %v1613
    %v1785 = vpop.f32.mrb[0].mxu0
    %v1786 = vadd.f32 %v1238, %v1785
    %v1787 = vpop.f32.mrb[0].mxu0
    %v1788 = vpop.f32.mrb[0].mxu0
    %v1789 = vadd.f32 %v1241, %v1788
    %v1790 = vpop.f32.mrb[0].mxu0
    %1791 = vmatprep.mubr.bf16.mxu0 0
    %1792 = vmatmul.mubr.bf16.gmra.mrb[0].mxu0 %v1616
    %v1793 = vpop.f32.mrb[0].mxu0
    %v1794 = vadd.f32 %v1246, %v1793
    %v1795 = vpop.f32.mrb[0].mxu0
    %v1796 = vpop.f32.mrb[0].mxu0
    %v1797 = vadd.f32 %v1249, %v1796
    %v1798 = vpop.f32.mrb[0].mxu0
    %1799 = vmatprep.mubr.bf16.mxu0 0
    %1800 = vmatmul.mubr.bf16.gmra.mrb[0].mxu0 %v1619
    %v1801 = vpop.f32.mrb[0].mxu0
    %v1802 = vadd.f32 %v1254, %v1801
    %v1803 = vpop.f32.mrb[0].mxu0
    %v1804 = vpop.f32.mrb[0].mxu0
    %v1805 = vadd.f32 %v1257, %v1804
    %v1806 = vpop.f32.mrb[0].mxu0
    %1807 = vmatprep.mubr.bf16.mxu0 0
    %1808 = vmatmul.mubr.bf16.gmra.mrb[0].mxu0 %v1622
    %v1809 = vpop.f32.mrb[0].mxu0
    %v1810 = vadd.f32 %v1262, %v1809
    %v1811 = vpop.f32.mrb[0].mxu0
    %v1812 = vpop.f32.mrb[0].mxu0
    %v1813 = vadd.f32 %v1265, %v1812
    %v1814 = vpop.f32.mrb[0].mxu0
    %1815 = vmatprep.mubr.bf16.mxu0 0
    %1816 = vmatmul.mubr.bf16.gmra.mrb[0].mxu0 %v1625
    %v1817 = vpop.f32.mrb[0].mxu0
    %v1818 = vadd.f32 %v1270, %v1817
    %v1819 = vpop.f32.mrb[0].mxu0
    %v1820 = vpop.f32.mrb[0].mxu0
    %v1821 = vadd.f32 %v1273, %v1820
    %v1822 = vpop.f32.mrb[0].mxu0
    %1823 = vmatprep.mubr.bf16.mxu0 0
    %1824 = vmatmul.mubr.bf16.gmra.mrb[0].mxu0 %v1628
    %v1825 = vpop.f32.mrb[0].mxu0
    %v1826 = vadd.f32 %v1278, %v1825
    %v1827 = vpop.f32.mrb[0].mxu0
    %v1828 = vpop.f32.mrb[0].mxu0
    %v1829 = vadd.f32 %v1281, %v1828
    %v1830 = vpop.f32.mrb[0].mxu0
    %1831 = vmatprep.mubr.bf16.mxu0 0
    %1832 = vmatmul.mubr.bf16.gmra.mrb[0].mxu0 %v1631
    %v1833 = vpop.f32.mrb[0].mxu0
    %v1834 = vadd.f32 %v1286, %v1833
    %v1835 = vpop.f32.mrb[0].mxu0
    %v1836 = vpop.f32.mrb[0].mxu0
    %v1837 = vadd.f32 %v1289, %v1836
    %v1838 = vpop.f32.mrb[0].mxu0
    %1839 = vmatprep.mubr.bf16.mxu0 0
    %1840 = vmatmul.mubr.bf16.gmra.mrb[0].mxu0 %v1634
    %v1841 = vpop.f32.mrb[0].mxu0
    %v1842 = vadd.f32 %v1294, %v1841
    %v1843 = vpop.f32.mrb[0].mxu0
    %v1844 = vpop.f32.mrb[0].mxu0
    %v1845 = vadd.f32 %v1297, %v1844
    %v1846 = vpop.f32.mrb[0].mxu0
    %1847 = vmatprep.mubr.bf16.mxu0 0
    %1848 = vmatmul.mubr.bf16.gmra.mrb[0].mxu0 %v1637
    %v1849 = vpop.f32.mrb[0].mxu0
    %v1850 = vadd.f32 %v1302, %v1849
    %v1851 = vpop.f32.mrb[0].mxu0
    %v1852 = vpop.f32.mrb[0].mxu0
    %v1853 = vadd.f32 %v1305, %v1852
    %v1854 = vpop.f32.mrb[0].mxu0
    %1855 = vmatprep.mubr.bf16.mxu0 0
    %1856 = vmatmul.mubr.bf16.gmra.mrb[0].mxu0 %v1640
    %v1857 = vpop.f32.mrb[0].mxu0
    %v1858 = vadd.f32 %v1310, %v1857
    %v1859 = vpop.f32.mrb[0].mxu0
    %v1860 = vpop.f32.mrb[0].mxu0
    %v1861 = vadd.f32 %v1313, %v1860
    %v1862 = vpop.f32.mrb[0].mxu0
    %1863 = vmatprep.mubr.bf16.mxu0 0
    %1864 = vmatmul.mubr.bf16.gmra.mrb[0].mxu0 %v1643
    %v1865 = vpop.f32.mrb[0].mxu0
    %v1866 = vadd.f32 %v1318, %v1865
    %v1867 = vpop.f32.mrb[0].mxu0
    %v1868 = vpop.f32.mrb[0].mxu0
    %v1869 = vadd.f32 %v1321, %v1868
    %v1870 = vpop.f32.mrb[0].mxu0
    %1871 = vmatprep.mubr.bf16.mxu0 0
    %1872 = vmatmul.mubr.bf16.gmra.mrb[0].mxu0 %v1646
    %v1873 = vpop.f32.mrb[0].mxu0
    %v1874 = vadd.f32 %v1326, %v1873
    %v1875 = vpop.f32.mrb[0].mxu0
    %v1876 = vpop.f32.mrb[0].mxu0
    %v1877 = vadd.f32 %v1329, %v1876
    %v1878 = vpop.f32.mrb[0].mxu0
    %1879 = vmatprep.mubr.bf16.mxu0 0
    %1880 = vmatmul.mubr.bf16.gmra.mrb[0].mxu0 %v1649
    %v1881 = vpop.f32.mrb[0].mxu0
    %v1882 = vadd.f32 %v1334, %v1881
    %v1883 = vpop.f32.mrb[0].mxu0
    %v1884 = vpop.f32.mrb[0].mxu0
    %v1885 = vadd.f32 %v1337, %v1884
    %v1886 = vpop.f32.mrb[0].mxu0
    %1887 = vmatprep.mubr.bf16.mxu0 0
    %1888 = vmatmul.mubr.bf16.gmra.mrb[0].mxu0 %v1652
    %v1889 = vpop.f32.mrb[0].mxu0
    %v1890 = vadd.f32 %v1342, %v1889
    %v1891 = vpop.f32.mrb[0].mxu0
    %v1892 = vpop.f32.mrb[0].mxu0
    %v1893 = vadd.f32 %v1345, %v1892
    %v1894 = vpop.f32.mrb[0].mxu0
    %1895 = vmatprep.mubr.bf16.mxu0 0
    %1896 = vmatmul.mubr.bf16.gmra.mrb[0].mxu0 %v1655
    %v1897 = vpop.f32.mrb[0].mxu0
    %v1898 = vadd.f32 %v1350, %v1897
    %v1899 = vpop.f32.mrb[0].mxu0
    %v1900 = vpop.f32.mrb[0].mxu0
    %v1901 = vadd.f32 %v1353, %v1900
    %v1902 = vpop.f32.mrb[0].mxu0
    %1903 = vmatprep.mubr.bf16.mxu0 0
    %1904 = vmatmul.mubr.bf16.gmra.mrb[0].mxu0 %v1658
    %v1905 = vpop.f32.mrb[0].mxu0
    %v1906 = vadd.f32 %v1358, %v1905
    %v1907 = vpop.f32.mrb[0].mxu0
    %v1908 = vpop.f32.mrb[0].mxu0
    %v1909 = vadd.f32 %v1361, %v1908
    %v1910 = vpop.f32.mrb[0].mxu0
    %1911 = vmatprep.mubr.bf16.mxu0 0
    %1912 = vmatmul.mubr.bf16.gmra.mrb[0].mxu0 %v1661
    %v1913 = vpop.f32.mrb[0].mxu0
    %v1914 = vadd.f32 %v1366, %v1913
    %v1915 = vpop.f32.mrb[0].mxu0
    %v1916 = vpop.f32.mrb[0].mxu0
    %v1917 = vadd.f32 %v1369, %v1916
    %v1918 = vpop.f32.mrb[0].mxu0
    %1919 = vmatprep.mubr.bf16.mxu0 0
    %1920 = vmatmul.mubr.bf16.gmra.mrb[0].mxu0 %v1664
    %v1921 = vpop.f32.mrb[0].mxu0
    %v1922 = vadd.f32 %v1374, %v1921
    %v1923 = vpop.f32.mrb[0].mxu0
    %v1924 = vpop.f32.mrb[0].mxu0
    %v1925 = vadd.f32 %v1377, %v1924
    %v1926 = vpop.f32.mrb[0].mxu0
    %1927 = vmatprep.mubr.bf16.mxu0 0
    %1928 = vmatmul.mubr.bf16.gmra.mrb[0].mxu0 %v1667
    %v1929 = vpop.f32.mrb[0].mxu0
    %v1930 = vadd.f32 %v1382, %v1929
    %v1931 = vpop.f32.mrb[0].mxu0
    %v1932 = vpop.f32.mrb[0].mxu0
    %v1933 = vadd.f32 %v1385, %v1932
    %v1934 = vpop.f32.mrb[0].mxu0
    %1935 = vmatprep.mubr.bf16.mxu0 0
    %1936 = vmatmul.mubr.bf16.gmra.mrb[0].mxu0 %v1670
    %v1937 = vpop.f32.mrb[0].mxu0
    %v1938 = vadd.f32 %v1390, %v1937
    %v1939 = vpop.f32.mrb[0].mxu0
    %v1940 = vpop.f32.mrb[0].mxu0
    %v1941 = vadd.f32 %v1393, %v1940
    %v1942 = vpop.f32.mrb[0].mxu0
    %1943 = vmatprep.mubr.bf16.mxu0 0
    %1944 = vmatmul.mubr.bf16.gmra.mrb[0].mxu0 %v1673
    %v1945 = vpop.f32.mrb[0].mxu0
    %v1946 = vadd.f32 %v1398, %v1945
    %v1947 = vpop.f32.mrb[0].mxu0
    %v1948 = vpop.f32.mrb[0].mxu0
    %v1949 = vadd.f32 %v1401, %v1948
    %v1950 = vpop.f32.mrb[0].mxu0
    %1951 = vmatprep.mubr.bf16.mxu0 0
    %1952 = vmatmul.mubr.bf16.gmra.mrb[0].mxu0 %v1676
    %v1953 = vpop.f32.mrb[0].mxu0
    %v1954 = vadd.f32 %v1406, %v1953
    %v1955 = vpop.f32.mrb[0].mxu0
    %v1956 = vpop.f32.mrb[0].mxu0
    %v1957 = vadd.f32 %v1409, %v1956
    %v1958 = vpop.f32.mrb[0].mxu0
    %1959 = vmatprep.mubr.bf16.mxu0 0
    %1960 = vmatmul.mubr.bf16.gmra.mrb[0].mxu0 %v1679
    %v1961 = vpop.f32.mrb[0].mxu0
    %v1962 = vadd.f32 %v1414, %v1961
    %v1963 = vpop.f32.mrb[0].mxu0
    %v1964 = vpop.f32.mrb[0].mxu0
    %v1965 = vadd.f32 %v1417, %v1964
    %v1966 = vpop.f32.mrb[0].mxu0
    %1967 = vmatprep.mubr.bf16.mxu0 0
    %1968 = vmatmul.mubr.bf16.gmra.mrb[0].mxu0 %v1682
    %v1969 = vpop.f32.mrb[0].mxu0
    %v1970 = vadd.f32 %v1422, %v1969
    %v1971 = vpop.f32.mrb[0].mxu0
    %v1972 = vpop.f32.mrb[0].mxu0
    %v1973 = vadd.f32 %v1425, %v1972
    %v1974 = vpop.f32.mrb[0].mxu0
    %1975 = vdwg.mxu0
    %vm2008 = vcmask 1042432
    %vm2009 = vcmask 1046532
    %vm2010 = vmor %vm2008, %vm2009
    %v2011 = vrot.slane %v60, 5
    %v2012 = vrot.slane %v2011, 4
    %v2013 = vrot.slane %v61, 5
    %v2014 = vsel %vm2010, %v2012, %v2013
    %v2015 = vrot.slane %v2013, 4
    %v2016 = vrot.slane %v62, 5
    %v2017 = vsel %vm2010, %v2015, %v2016
    %v2018 = vrot.slane %v63, 5
    %v2019 = vrot.slane %v2018, 4
    %v2020 = vrot.slane %v64, 5
    %v2021 = vsel %vm2010, %v2019, %v2020
    %v2022 = vrot.slane %v2020, 4
    %v2023 = vrot.slane %v65, 5
    %v2024 = vsel %vm2010, %v2022, %v2023
    %v2025 = vrot.slane %v66, 5
    %v2026 = vrot.slane %v2025, 4
    %v2027 = vrot.slane %v67, 5
    %v2028 = vsel %vm2010, %v2026, %v2027
    %v2029 = vrot.slane %v2027, 4
    %v2030 = vrot.slane %v68, 5
    %v2031 = vsel %vm2010, %v2029, %v2030
    %v2032 = vrot.slane %v69, 5
    %v2033 = vrot.slane %v2032, 4
    %v2034 = vrot.slane %v70, 5
    %v2035 = vsel %vm2010, %v2033, %v2034
    %v2036 = vrot.slane %v2034, 4
    %v2037 = vrot.slane %v71, 5
    %v2038 = vsel %vm2010, %v2036, %v2037
    %v2039 = vrot.slane %v72, 5
    %v2040 = vrot.slane %v2039, 4
    %v2041 = vrot.slane %v73, 5
    %v2042 = vsel %vm2010, %v2040, %v2041
    %v2043 = vrot.slane %v2041, 4
    %v2044 = vrot.slane %v74, 5
    %v2045 = vsel %vm2010, %v2043, %v2044
    %v2046 = vrot.slane %v75, 5
    %v2047 = vrot.slane %v2046, 4
    %v2048 = vrot.slane %v76, 5
    %v2049 = vsel %vm2010, %v2047, %v2048
    %v2050 = vrot.slane %v2048, 4
    %v2051 = vrot.slane %v77, 5
    %v2052 = vsel %vm2010, %v2050, %v2051
    %v2053 = vrot.slane %v78, 5
    %v2054 = vrot.slane %v2053, 4
    %v2055 = vrot.slane %v79, 5
    %v2056 = vsel %vm2010, %v2054, %v2055
    %v2057 = vrot.slane %v2055, 4
    %v2058 = vrot.slane %v80, 5
    %v2059 = vsel %vm2010, %v2057, %v2058
    %v2060 = vrot.slane %v81, 5
    %v2061 = vrot.slane %v2060, 4
    %v2062 = vrot.slane %v82, 5
    %v2063 = vsel %vm2010, %v2061, %v2062
    %v2064 = vrot.slane %v2062, 4
    %v2065 = vrot.slane %v83, 5
    %v2066 = vsel %vm2010, %v2064, %v2065
    %v2067 = vrot.slane %v84, 5
    %v2068 = vrot.slane %v2067, 4
    %v2069 = vrot.slane %v85, 5
    %v2070 = vsel %vm2010, %v2068, %v2069
    %v2071 = vrot.slane %v2069, 4
    %v2072 = vrot.slane %v86, 5
    %v2073 = vsel %vm2010, %v2071, %v2072
    %v2074 = vrot.slane %v87, 5
    %v2075 = vrot.slane %v2074, 4
    %v2076 = vrot.slane %v88, 5
    %v2077 = vsel %vm2010, %v2075, %v2076
    %v2078 = vrot.slane %v2076, 4
    %v2079 = vrot.slane %v89, 5
    %v2080 = vsel %vm2010, %v2078, %v2079
    %v2081 = vrot.slane %v90, 5
    %v2082 = vrot.slane %v2081, 4
    %v2083 = vrot.slane %v91, 5
    %v2084 = vsel %vm2010, %v2082, %v2083
    %v2085 = vrot.slane %v2083, 4
    %v2086 = vrot.slane %v92, 5
    %v2087 = vsel %vm2010, %v2085, %v2086
    %v2088 = vrot.slane %v93, 5
    %v2089 = vrot.slane %v2088, 4
    %v2090 = vrot.slane %v94, 5
    %v2091 = vsel %vm2010, %v2089, %v2090
    %v2092 = vrot.slane %v2090, 4
    %v2093 = vrot.slane %v95, 5
    %v2094 = vsel %vm2010, %v2092, %v2093
    %v2095 = vrot.slane %v96, 5
    %v2096 = vrot.slane %v2095, 4
    %v2097 = vrot.slane %v97, 5
    %v2098 = vsel %vm2010, %v2096, %v2097
    %v2099 = vrot.slane %v2097, 4
    %v2100 = vrot.slane %v98, 5
    %v2101 = vsel %vm2010, %v2099, %v2100
    %v2102 = vrot.slane %v99, 5
    %v2103 = vrot.slane %v2102, 4
    %v2104 = vrot.slane %v100, 5
    %v2105 = vsel %vm2010, %v2103, %v2104
    %v2106 = vrot.slane %v2104, 4
    %v2107 = vrot.slane %v101, 5
    %v2108 = vsel %vm2010, %v2106, %v2107
    %v2109 = vrot.slane %v102, 5
    %v2110 = vrot.slane %v2109, 4
    %v2111 = vrot.slane %v103, 5
    %v2112 = vsel %vm2010, %v2110, %v2111
    %v2113 = vrot.slane %v2111, 4
    %v2114 = vrot.slane %v104, 5
    %v2115 = vsel %vm2010, %v2113, %v2114
    %v2116 = vrot.slane %v105, 5
    %v2117 = vrot.slane %v2116, 4
    %v2118 = vrot.slane %v106, 5
    %v2119 = vsel %vm2010, %v2117, %v2118
    %v2120 = vrot.slane %v2118, 4
    %v2121 = vrot.slane %v107, 5
    %v2122 = vsel %vm2010, %v2120, %v2121
    %v2123 = vrot.slane %v114, 5
    %v2124 = vrot.slane %v2123, 4
    %v2125 = vrot.slane %v115, 5
    %v2126 = vsel %vm2010, %v2124, %v2125
    %v2127 = vrot.slane %v2125, 4
    %v2128 = vrot.slane %v116, 5
    %v2129 = vsel %vm2010, %v2127, %v2128
    %v2130 = vrot.slane %v117, 5
    %v2131 = vrot.slane %v2130, 4
    %v2132 = vrot.slane %v118, 5
    %v2133 = vsel %vm2010, %v2131, %v2132
    %v2134 = vrot.slane %v2132, 4
    %v2135 = vrot.slane %v119, 5
    %v2136 = vsel %vm2010, %v2134, %v2135
    %v2137 = vrot.slane %v120, 5
    %v2138 = vrot.slane %v2137, 4
    %v2139 = vrot.slane %v121, 5
    %v2140 = vsel %vm2010, %v2138, %v2139
    %v2141 = vrot.slane %v2139, 4
    %v2142 = vrot.slane %v122, 5
    %v2143 = vsel %vm2010, %v2141, %v2142
    %v2144 = vrot.slane %v123, 5
    %v2145 = vrot.slane %v2144, 4
    %v2146 = vrot.slane %v124, 5
    %v2147 = vsel %vm2010, %v2145, %v2146
    %v2148 = vrot.slane %v2146, 4
    %v2149 = vrot.slane %v125, 5
    %v2150 = vsel %vm2010, %v2148, %v2149
    %v2151 = vrot.slane %v126, 5
    %v2152 = vrot.slane %v2151, 4
    %v2153 = vrot.slane %v127, 5
    %v2154 = vsel %vm2010, %v2152, %v2153
    %v2155 = vrot.slane %v2153, 4
    %v2156 = vrot.slane %v128, 5
    %v2157 = vsel %vm2010, %v2155, %v2156
    %v2158 = vrot.slane %v129, 5
    %v2159 = vrot.slane %v2158, 4
    %v2160 = vrot.slane %v130, 5
    %v2161 = vsel %vm2010, %v2159, %v2160
    %v2162 = vrot.slane %v2160, 4
    %v2163 = vrot.slane %v131, 5
    %v2164 = vsel %vm2010, %v2162, %v2163
    %v2165 = vrot.slane %v132, 5
    %v2166 = vrot.slane %v2165, 4
    %v2167 = vrot.slane %v133, 5
    %v2168 = vsel %vm2010, %v2166, %v2167
    %v2169 = vrot.slane %v2167, 4
    %v2170 = vrot.slane %v134, 5
    %v2171 = vsel %vm2010, %v2169, %v2170
    %v2172 = vrot.slane %v135, 5
    %v2173 = vrot.slane %v2172, 4
    %v2174 = vrot.slane %v136, 5
    %v2175 = vsel %vm2010, %v2173, %v2174
    %v2176 = vrot.slane %v2174, 4
    %v2177 = vrot.slane %v137, 5
    %v2178 = vsel %vm2010, %v2176, %v2177
    %v2179 = vrot.slane %v138, 5
    %v2180 = vrot.slane %v2179, 4
    %v2181 = vrot.slane %v139, 5
    %v2182 = vsel %vm2010, %v2180, %v2181
    %v2183 = vrot.slane %v2181, 4
    %v2184 = vrot.slane %v140, 5
    %v2185 = vsel %vm2010, %v2183, %v2184
    %v2186 = vrot.slane %v141, 5
    %v2187 = vrot.slane %v2186, 4
    %v2188 = vrot.slane %v142, 5
    %v2189 = vsel %vm2010, %v2187, %v2188
    %v2190 = vrot.slane %v2188, 4
    %v2191 = vrot.slane %v143, 5
    %v2192 = vsel %vm2010, %v2190, %v2191
    %v2193 = vrot.slane %v144, 5
    %v2194 = vrot.slane %v2193, 4
    %v2195 = vrot.slane %v145, 5
    %v2196 = vsel %vm2010, %v2194, %v2195
    %v2197 = vrot.slane %v2195, 4
    %v2198 = vrot.slane %v146, 5
    %v2199 = vsel %vm2010, %v2197, %v2198
    %v2200 = vrot.slane %v147, 5
    %v2201 = vrot.slane %v2200, 4
    %v2202 = vrot.slane %v148, 5
    %v2203 = vsel %vm2010, %v2201, %v2202
    %v2204 = vrot.slane %v2202, 4
    %v2205 = vrot.slane %v149, 5
    %v2206 = vsel %vm2010, %v2204, %v2205
    %v2207 = vrot.slane %v150, 5
    %v2208 = vrot.slane %v2207, 4
    %v2209 = vrot.slane %v151, 5
    %v2210 = vsel %vm2010, %v2208, %v2209
    %v2211 = vrot.slane %v2209, 4
    %v2212 = vrot.slane %v152, 5
    %v2213 = vsel %vm2010, %v2211, %v2212
    %v2214 = vrot.slane %v153, 5
    %v2215 = vrot.slane %v2214, 4
    %v2216 = vrot.slane %v154, 5
    %v2217 = vsel %vm2010, %v2215, %v2216
    %v2218 = vrot.slane %v2216, 4
    %v2219 = vrot.slane %v155, 5
    %v2220 = vsel %vm2010, %v2218, %v2219
    %v2221 = vrot.slane %v156, 5
    %v2222 = vrot.slane %v2221, 4
    %v2223 = vrot.slane %v157, 5
    %v2224 = vsel %vm2010, %v2222, %v2223
    %v2225 = vrot.slane %v2223, 4
    %v2226 = vrot.slane %v158, 5
    %v2227 = vsel %vm2010, %v2225, %v2226
    %v2228 = vrot.slane %v159, 5
    %v2229 = vrot.slane %v2228, 4
    %v2230 = vrot.slane %v160, 5
    %v2231 = vsel %vm2010, %v2229, %v2230
    %v2232 = vrot.slane %v2230, 4
    %v2233 = vrot.slane %v161, 5
    %v2234 = vsel %vm2010, %v2232, %v2233
    %s2235 = scalar_lea.vmem %s1, 4
    %v2236 = vld [vmem:[%s2235] sm:$0x3]
    %v2237 = vunpack.c.l.b16 %v2014
    %v2238 = vunpack.c.l.b16 %v2017
    %v2239 = vunpack.c.l.b16 %v2021
    %v2240 = vunpack.c.l.b16 %v2024
    %v2241 = vunpack.c.l.b16 %v2028
    %v2242 = vunpack.c.l.b16 %v2031
    %v2243 = vunpack.c.l.b16 %v2035
    %v2244 = vunpack.c.l.b16 %v2038
    %v2245 = vunpack.c.l.b16 %v2042
    %v2246 = vunpack.c.l.b16 %v2045
    %v2247 = vunpack.c.l.b16 %v2049
    %v2248 = vunpack.c.l.b16 %v2052
    %v2249 = vunpack.c.l.b16 %v2056
    %v2250 = vunpack.c.l.b16 %v2059
    %v2251 = vunpack.c.l.b16 %v2063
    %v2252 = vunpack.c.l.b16 %v2066
    %v2253 = vunpack.c.l.b16 %v2070
    %v2254 = vunpack.c.l.b16 %v2073
    %v2255 = vunpack.c.l.b16 %v2077
    %v2256 = vunpack.c.l.b16 %v2080
    %v2257 = vunpack.c.l.b16 %v2084
    %v2258 = vunpack.c.l.b16 %v2087
    %v2259 = vunpack.c.l.b16 %v2091
    %v2260 = vunpack.c.l.b16 %v2094
    %v2261 = vunpack.c.l.b16 %v2098
    %v2262 = vunpack.c.l.b16 %v2101
    %v2263 = vunpack.c.l.b16 %v2105
    %v2264 = vunpack.c.l.b16 %v2108
    %v2265 = vunpack.c.l.b16 %v2112
    %v2266 = vunpack.c.l.b16 %v2115
    %v2267 = vunpack.c.l.b16 %v2119
    %v2268 = vunpack.c.l.b16 %v2122
    %v2269 = vunpack.c.l.b16 %v2126
    %v2270 = vunpack.c.l.b16 %v2129
    %v2271 = vunpack.c.l.b16 %v2133
    %v2272 = vunpack.c.l.b16 %v2136
    %v2273 = vunpack.c.l.b16 %v2140
    %v2274 = vunpack.c.l.b16 %v2143
    %v2275 = vunpack.c.l.b16 %v2147
    %v2276 = vunpack.c.l.b16 %v2150
    %v2277 = vunpack.c.l.b16 %v2154
    %v2278 = vunpack.c.l.b16 %v2157
    %v2279 = vunpack.c.l.b16 %v2161
    %v2280 = vunpack.c.l.b16 %v2164
    %v2281 = vunpack.c.l.b16 %v2168
    %v2282 = vunpack.c.l.b16 %v2171
    %v2283 = vunpack.c.l.b16 %v2175
    %v2284 = vunpack.c.l.b16 %v2178
    %v2285 = vunpack.c.l.b16 %v2182
    %v2286 = vunpack.c.l.b16 %v2185
    %v2287 = vunpack.c.l.b16 %v2189
    %v2288 = vunpack.c.l.b16 %v2192
    %v2289 = vunpack.c.l.b16 %v2196
    %v2290 = vunpack.c.l.b16 %v2199
    %v2291 = vunpack.c.l.b16 %v2203
    %v2292 = vunpack.c.l.b16 %v2206
    %v2293 = vunpack.c.l.b16 %v2210
    %v2294 = vunpack.c.l.b16 %v2213
    %v2295 = vunpack.c.l.b16 %v2217
    %v2296 = vunpack.c.l.b16 %v2220
    %v2297 = vunpack.c.l.b16 %v2224
    %v2298 = vunpack.c.l.b16 %v2227
    %v2299 = vunpack.c.l.b16 %v2231
    %v2300 = vunpack.c.l.b16 %v2234
    %v2301 = vpack.c.b16 %v2238, %v2237
    %v2302 = vpack.c.b16 %v2240, %v2239
    %v2303 = vpack.c.b16 %v2242, %v2241
    %v2304 = vpack.c.b16 %v2244, %v2243
    %v2305 = vpack.c.b16 %v2246, %v2245
    %v2306 = vpack.c.b16 %v2248, %v2247
    %v2307 = vpack.c.b16 %v2250, %v2249
    %v2308 = vpack.c.b16 %v2252, %v2251
    %v2309 = vpack.c.b16 %v2254, %v2253
    %v2310 = vpack.c.b16 %v2256, %v2255
    %v2311 = vpack.c.b16 %v2258, %v2257
    %v2312 = vpack.c.b16 %v2260, %v2259
    %v2313 = vpack.c.b16 %v2262, %v2261
    %v2314 = vpack.c.b16 %v2264, %v2263
    %v2315 = vpack.c.b16 %v2266, %v2265
    %v2316 = vpack.c.b16 %v2268, %v2267
    %v2317 = vpack.c.b16 %v2270, %v2269
    %v2318 = vpack.c.b16 %v2272, %v2271
    %v2319 = vpack.c.b16 %v2274, %v2273
    %v2320 = vpack.c.b16 %v2276, %v2275
    %v2321 = vpack.c.b16 %v2278, %v2277
    %v2322 = vpack.c.b16 %v2280, %v2279
    %v2323 = vpack.c.b16 %v2282, %v2281
    %v2324 = vpack.c.b16 %v2284, %v2283
    %v2325 = vpack.c.b16 %v2286, %v2285
    %v2326 = vpack.c.b16 %v2288, %v2287
    %v2327 = vpack.c.b16 %v2290, %v2289
    %v2328 = vpack.c.b16 %v2292, %v2291
    %v2329 = vpack.c.b16 %v2294, %v2293
    %v2330 = vpack.c.b16 %v2296, %v2295
    %v2331 = vpack.c.b16 %v2298, %v2297
    %v2332 = vpack.c.b16 %v2300, %v2299
    %v2334 = vsel %vm1038, %v2301, 0
    %v2337 = vsel %vm1038, %v2302, 0
    %v2340 = vsel %vm1038, %v2303, 0
    %v2343 = vsel %vm1038, %v2304, 0
    %v2346 = vsel %vm1038, %v2305, 0
    %v2349 = vsel %vm1038, %v2306, 0
    %v2352 = vsel %vm1038, %v2307, 0
    %v2355 = vsel %vm1038, %v2308, 0
    %v2358 = vsel %vm1038, %v2309, 0
    %v2361 = vsel %vm1038, %v2310, 0
    %v2364 = vsel %vm1038, %v2311, 0
    %v2367 = vsel %vm1038, %v2312, 0
    %v2370 = vsel %vm1038, %v2313, 0
    %v2373 = vsel %vm1038, %v2314, 0
    %v2376 = vsel %vm1038, %v2315, 0
    %v2379 = vsel %vm1038, %v2316, 0
    %v2382 = vsel %vm1038, %v2317, 0
    %v2385 = vsel %vm1038, %v2318, 0
    %v2388 = vsel %vm1038, %v2319, 0
    %v2391 = vsel %vm1038, %v2320, 0
    %v2394 = vsel %vm1038, %v2321, 0
    %v2397 = vsel %vm1038, %v2322, 0
    %v2400 = vsel %vm1038, %v2323, 0
    %v2403 = vsel %vm1038, %v2324, 0
    %v2406 = vsel %vm1038, %v2325, 0
    %v2409 = vsel %vm1038, %v2326, 0
    %v2412 = vsel %vm1038, %v2327, 0
    %v2415 = vsel %vm1038, %v2328, 0
    %v2418 = vsel %vm1038, %v2329, 0
    %v2421 = vsel %vm1038, %v2330, 0
    %v2424 = vsel %vm1038, %v2331, 0
    %v2427 = vsel %vm1038, %v2332, 0
    %v2430 = vsel %vm1135, %v2236, 0
    %2432 = vmatprep.subr.bf16.mxu0 0
    %2433 = vmatpush1.bf16.msra.mxu0 %v2430
    %2434 = vmatprep.subr.bf16.mxu0 0
    %2435 = vmatpush1.bf16.msra.mxu0 0
    %2436 = vmatprep.subr.bf16.mxu0 0
    %2437 = vmatpush1.bf16.msra.mxu0 0
    %2438 = vmatprep.subr.bf16.mxu0 0
    %2439 = vmatpush1.bf16.msra.mxu0 0
    %2440 = vmatprep.subr.bf16.mxu0 0
    %2441 = vmatpush1.bf16.msra.mxu0 0
    %2442 = vmatprep.subr.bf16.mxu0 0
    %2443 = vmatpush1.bf16.msra.mxu0 0
    %2444 = vmatprep.subr.bf16.mxu0 0
    %2445 = vmatpush1.bf16.msra.mxu0 0
    %2446 = vmatprep.subr.bf16.mxu0 0
    %2447 = vmatpush1.bf16.msra.mxu0 0
    %2448 = vmatprep.subr.bf16.mxu0 0
    %2449 = vmatpush1.bf16.msra.mxu0 0
    %2450 = vmatprep.subr.bf16.mxu0 0
    %2451 = vmatpush1.bf16.msra.mxu0 0
    %2452 = vmatprep.subr.bf16.mxu0 0
    %2453 = vmatpush1.bf16.msra.mxu0 0
    %2454 = vmatprep.subr.bf16.mxu0 0
    %2455 = vmatpush1.bf16.msra.mxu0 0
    %2456 = vmatprep.subr.bf16.mxu0 0
    %2457 = vmatpush1.bf16.msra.mxu0 0
    %2458 = vmatprep.subr.bf16.mxu0 0
    %2459 = vmatpush1.bf16.msra.mxu0 0
    %2460 = vmatprep.subr.bf16.mxu0 0
    %2461 = vmatpush1.bf16.msra.mxu0 0
    %2462 = vmatprep.subr.bf16.mxu0 0
    %2463 = vmatpush1.bf16.msra.mxu0 0
    %2464 = vmatprep.mubr.bf16.mxu0 0
    %2465 = vmatmul.mubr.bf16.gmra.mrb[0].mxu0 %v2334
    %v2466 = vpop.f32.mrb[0].mxu0
    %v2467 = vadd.f32 0.0, %v2466
    %v2468 = vpop.f32.mrb[0].mxu0
    %v2469 = vpop.f32.mrb[0].mxu0
    %v2470 = vadd.f32 0.0, %v2469
    %v2471 = vpop.f32.mrb[0].mxu0
    %2472 = vmatprep.mubr.bf16.mxu0 0
    %2473 = vmatmul.mubr.bf16.gmra.mrb[0].mxu0 %v2337
    %v2474 = vpop.f32.mrb[0].mxu0
    %v2475 = vadd.f32 0.0, %v2474
    %v2476 = vpop.f32.mrb[0].mxu0
    %v2477 = vpop.f32.mrb[0].mxu0
    %v2478 = vadd.f32 0.0, %v2477
    %v2479 = vpop.f32.mrb[0].mxu0
    %2480 = vmatprep.mubr.bf16.mxu0 0
    %2481 = vmatmul.mubr.bf16.gmra.mrb[0].mxu0 %v2340
    %v2482 = vpop.f32.mrb[0].mxu0
    %v2483 = vadd.f32 0.0, %v2482
    %v2484 = vpop.f32.mrb[0].mxu0
    %v2485 = vpop.f32.mrb[0].mxu0
    %v2486 = vadd.f32 0.0, %v2485
    %v2487 = vpop.f32.mrb[0].mxu0
    %2488 = vmatprep.mubr.bf16.mxu0 0
    %2489 = vmatmul.mubr.bf16.gmra.mrb[0].mxu0 %v2343
    %v2490 = vpop.f32.mrb[0].mxu0
    %v2491 = vadd.f32 0.0, %v2490
    %v2492 = vpop.f32.mrb[0].mxu0
    %v2493 = vpop.f32.mrb[0].mxu0
    %v2494 = vadd.f32 0.0, %v2493
    %v2495 = vpop.f32.mrb[0].mxu0
    %2496 = vmatprep.mubr.bf16.mxu0 0
    %2497 = vmatmul.mubr.bf16.gmra.mrb[0].mxu0 %v2346
    %v2498 = vpop.f32.mrb[0].mxu0
    %v2499 = vadd.f32 0.0, %v2498
    %v2500 = vpop.f32.mrb[0].mxu0
    %v2501 = vpop.f32.mrb[0].mxu0
    %v2502 = vadd.f32 0.0, %v2501
    %v2503 = vpop.f32.mrb[0].mxu0
    %2504 = vmatprep.mubr.bf16.mxu0 0
    %2505 = vmatmul.mubr.bf16.gmra.mrb[0].mxu0 %v2349
    %v2506 = vpop.f32.mrb[0].mxu0
    %v2507 = vadd.f32 0.0, %v2506
    %v2508 = vpop.f32.mrb[0].mxu0
    %v2509 = vpop.f32.mrb[0].mxu0
    %v2510 = vadd.f32 0.0, %v2509
    %v2511 = vpop.f32.mrb[0].mxu0
    %2512 = vmatprep.mubr.bf16.mxu0 0
    %2513 = vmatmul.mubr.bf16.gmra.mrb[0].mxu0 %v2352
    %v2514 = vpop.f32.mrb[0].mxu0
    %v2515 = vadd.f32 0.0, %v2514
    %v2516 = vpop.f32.mrb[0].mxu0
    %v2517 = vpop.f32.mrb[0].mxu0
    %v2518 = vadd.f32 0.0, %v2517
    %v2519 = vpop.f32.mrb[0].mxu0
    %2520 = vmatprep.mubr.bf16.mxu0 0
    %2521 = vmatmul.mubr.bf16.gmra.mrb[0].mxu0 %v2355
    %v2522 = vpop.f32.mrb[0].mxu0
    %v2523 = vadd.f32 0.0, %v2522
    %v2524 = vpop.f32.mrb[0].mxu0
    %v2525 = vpop.f32.mrb[0].mxu0
    %v2526 = vadd.f32 0.0, %v2525
    %v2527 = vpop.f32.mrb[0].mxu0
    %2528 = vmatprep.mubr.bf16.mxu0 0
    %2529 = vmatmul.mubr.bf16.gmra.mrb[0].mxu0 %v2358
    %v2530 = vpop.f32.mrb[0].mxu0
    %v2531 = vadd.f32 0.0, %v2530
    %v2532 = vpop.f32.mrb[0].mxu0
    %v2533 = vpop.f32.mrb[0].mxu0
    %v2534 = vadd.f32 0.0, %v2533
    %v2535 = vpop.f32.mrb[0].mxu0
    %2536 = vmatprep.mubr.bf16.mxu0 0
    %2537 = vmatmul.mubr.bf16.gmra.mrb[0].mxu0 %v2361
    %v2538 = vpop.f32.mrb[0].mxu0
    %v2539 = vadd.f32 0.0, %v2538
    %v2540 = vpop.f32.mrb[0].mxu0
    %v2541 = vpop.f32.mrb[0].mxu0
    %v2542 = vadd.f32 0.0, %v2541
    %v2543 = vpop.f32.mrb[0].mxu0
    %2544 = vmatprep.mubr.bf16.mxu0 0
    %2545 = vmatmul.mubr.bf16.gmra.mrb[0].mxu0 %v2364
    %v2546 = vpop.f32.mrb[0].mxu0
    %v2547 = vadd.f32 0.0, %v2546
    %v2548 = vpop.f32.mrb[0].mxu0
    %v2549 = vpop.f32.mrb[0].mxu0
    %v2550 = vadd.f32 0.0, %v2549
    %v2551 = vpop.f32.mrb[0].mxu0
    %2552 = vmatprep.mubr.bf16.mxu0 0
    %2553 = vmatmul.mubr.bf16.gmra.mrb[0].mxu0 %v2367
    %v2554 = vpop.f32.mrb[0].mxu0
    %v2555 = vadd.f32 0.0, %v2554
    %v2556 = vpop.f32.mrb[0].mxu0
    %v2557 = vpop.f32.mrb[0].mxu0
    %v2558 = vadd.f32 0.0, %v2557
    %v2559 = vpop.f32.mrb[0].mxu0
    %2560 = vmatprep.mubr.bf16.mxu0 0
    %2561 = vmatmul.mubr.bf16.gmra.mrb[0].mxu0 %v2370
    %v2562 = vpop.f32.mrb[0].mxu0
    %v2563 = vadd.f32 0.0, %v2562
    %v2564 = vpop.f32.mrb[0].mxu0
    %v2565 = vpop.f32.mrb[0].mxu0
    %v2566 = vadd.f32 0.0, %v2565
    %v2567 = vpop.f32.mrb[0].mxu0
    %2568 = vmatprep.mubr.bf16.mxu0 0
    %2569 = vmatmul.mubr.bf16.gmra.mrb[0].mxu0 %v2373
    %v2570 = vpop.f32.mrb[0].mxu0
    %v2571 = vadd.f32 0.0, %v2570
    %v2572 = vpop.f32.mrb[0].mxu0
    %v2573 = vpop.f32.mrb[0].mxu0
    %v2574 = vadd.f32 0.0, %v2573
    %v2575 = vpop.f32.mrb[0].mxu0
    %2576 = vmatprep.mubr.bf16.mxu0 0
    %2577 = vmatmul.mubr.bf16.gmra.mrb[0].mxu0 %v2376
    %v2578 = vpop.f32.mrb[0].mxu0
    %v2579 = vadd.f32 0.0, %v2578
    %v2580 = vpop.f32.mrb[0].mxu0
    %v2581 = vpop.f32.mrb[0].mxu0
    %v2582 = vadd.f32 0.0, %v2581
    %v2583 = vpop.f32.mrb[0].mxu0
    %2584 = vmatprep.mubr.bf16.mxu0 0
    %2585 = vmatmul.mubr.bf16.gmra.mrb[0].mxu0 %v2379
    %v2586 = vpop.f32.mrb[0].mxu0
    %v2587 = vadd.f32 0.0, %v2586
    %v2588 = vpop.f32.mrb[0].mxu0
    %v2589 = vpop.f32.mrb[0].mxu0
    %v2590 = vadd.f32 0.0, %v2589
    %v2591 = vpop.f32.mrb[0].mxu0
    %2592 = vmatprep.mubr.bf16.mxu0 0
    %2593 = vmatmul.mubr.bf16.gmra.mrb[0].mxu0 %v2382
    %v2594 = vpop.f32.mrb[0].mxu0
    %v2595 = vadd.f32 0.0, %v2594
    %v2596 = vpop.f32.mrb[0].mxu0
    %v2597 = vpop.f32.mrb[0].mxu0
    %v2598 = vadd.f32 0.0, %v2597
    %v2599 = vpop.f32.mrb[0].mxu0
    %2600 = vmatprep.mubr.bf16.mxu0 0
    %2601 = vmatmul.mubr.bf16.gmra.mrb[0].mxu0 %v2385
    %v2602 = vpop.f32.mrb[0].mxu0
    %v2603 = vadd.f32 0.0, %v2602
    %v2604 = vpop.f32.mrb[0].mxu0
    %v2605 = vpop.f32.mrb[0].mxu0
    %v2606 = vadd.f32 0.0, %v2605
    %v2607 = vpop.f32.mrb[0].mxu0
    %2608 = vmatprep.mubr.bf16.mxu0 0
    %2609 = vmatmul.mubr.bf16.gmra.mrb[0].mxu0 %v2388
    %v2610 = vpop.f32.mrb[0].mxu0
    %v2611 = vadd.f32 0.0, %v2610
    %v2612 = vpop.f32.mrb[0].mxu0
    %v2613 = vpop.f32.mrb[0].mxu0
    %v2614 = vadd.f32 0.0, %v2613
    %v2615 = vpop.f32.mrb[0].mxu0
    %2616 = vmatprep.mubr.bf16.mxu0 0
    %2617 = vmatmul.mubr.bf16.gmra.mrb[0].mxu0 %v2391
    %v2618 = vpop.f32.mrb[0].mxu0
    %v2619 = vadd.f32 0.0, %v2618
    %v2620 = vpop.f32.mrb[0].mxu0
    %v2621 = vpop.f32.mrb[0].mxu0
    %v2622 = vadd.f32 0.0, %v2621
    %v2623 = vpop.f32.mrb[0].mxu0
    %2624 = vmatprep.mubr.bf16.mxu0 0
    %2625 = vmatmul.mubr.bf16.gmra.mrb[0].mxu0 %v2394
    %v2626 = vpop.f32.mrb[0].mxu0
    %v2627 = vadd.f32 0.0, %v2626
    %v2628 = vpop.f32.mrb[0].mxu0
    %v2629 = vpop.f32.mrb[0].mxu0
    %v2630 = vadd.f32 0.0, %v2629
    %v2631 = vpop.f32.mrb[0].mxu0
    %2632 = vmatprep.mubr.bf16.mxu0 0
    %2633 = vmatmul.mubr.bf16.gmra.mrb[0].mxu0 %v2397
    %v2634 = vpop.f32.mrb[0].mxu0
    %v2635 = vadd.f32 0.0, %v2634
    %v2636 = vpop.f32.mrb[0].mxu0
    %v2637 = vpop.f32.mrb[0].mxu0
    %v2638 = vadd.f32 0.0, %v2637
    %v2639 = vpop.f32.mrb[0].mxu0
    %2640 = vmatprep.mubr.bf16.mxu0 0
    %2641 = vmatmul.mubr.bf16.gmra.mrb[0].mxu0 %v2400
    %v2642 = vpop.f32.mrb[0].mxu0
    %v2643 = vadd.f32 0.0, %v2642
    %v2644 = vpop.f32.mrb[0].mxu0
    %v2645 = vpop.f32.mrb[0].mxu0
    %v2646 = vadd.f32 0.0, %v2645
    %v2647 = vpop.f32.mrb[0].mxu0
    %2648 = vmatprep.mubr.bf16.mxu0 0
    %2649 = vmatmul.mubr.bf16.gmra.mrb[0].mxu0 %v2403
    %v2650 = vpop.f32.mrb[0].mxu0
    %v2651 = vadd.f32 0.0, %v2650
    %v2652 = vpop.f32.mrb[0].mxu0
    %v2653 = vpop.f32.mrb[0].mxu0
    %v2654 = vadd.f32 0.0, %v2653
    %v2655 = vpop.f32.mrb[0].mxu0
    %2656 = vmatprep.mubr.bf16.mxu0 0
    %2657 = vmatmul.mubr.bf16.gmra.mrb[0].mxu0 %v2406
    %v2658 = vpop.f32.mrb[0].mxu0
    %v2659 = vadd.f32 0.0, %v2658
    %v2660 = vpop.f32.mrb[0].mxu0
    %v2661 = vpop.f32.mrb[0].mxu0
    %v2662 = vadd.f32 0.0, %v2661
    %v2663 = vpop.f32.mrb[0].mxu0
    %2664 = vmatprep.mubr.bf16.mxu0 0
    %2665 = vmatmul.mubr.bf16.gmra.mrb[0].mxu0 %v2409
    %v2666 = vpop.f32.mrb[0].mxu0
    %v2667 = vadd.f32 0.0, %v2666
    %v2668 = vpop.f32.mrb[0].mxu0
    %v2669 = vpop.f32.mrb[0].mxu0
    %v2670 = vadd.f32 0.0, %v2669
    %v2671 = vpop.f32.mrb[0].mxu0
    %2672 = vmatprep.mubr.bf16.mxu0 0
    %2673 = vmatmul.mubr.bf16.gmra.mrb[0].mxu0 %v2412
    %v2674 = vpop.f32.mrb[0].mxu0
    %v2675 = vadd.f32 0.0, %v2674
    %v2676 = vpop.f32.mrb[0].mxu0
    %v2677 = vpop.f32.mrb[0].mxu0
    %v2678 = vadd.f32 0.0, %v2677
    %v2679 = vpop.f32.mrb[0].mxu0
    %2680 = vmatprep.mubr.bf16.mxu0 0
    %2681 = vmatmul.mubr.bf16.gmra.mrb[0].mxu0 %v2415
    %v2682 = vpop.f32.mrb[0].mxu0
    %v2683 = vadd.f32 0.0, %v2682
    %v2684 = vpop.f32.mrb[0].mxu0
    %v2685 = vpop.f32.mrb[0].mxu0
    %v2686 = vadd.f32 0.0, %v2685
    %v2687 = vpop.f32.mrb[0].mxu0
    %2688 = vmatprep.mubr.bf16.mxu0 0
    %2689 = vmatmul.mubr.bf16.gmra.mrb[0].mxu0 %v2418
    %v2690 = vpop.f32.mrb[0].mxu0
    %v2691 = vadd.f32 0.0, %v2690
    %v2692 = vpop.f32.mrb[0].mxu0
    %v2693 = vpop.f32.mrb[0].mxu0
    %v2694 = vadd.f32 0.0, %v2693
    %v2695 = vpop.f32.mrb[0].mxu0
    %2696 = vmatprep.mubr.bf16.mxu0 0
    %2697 = vmatmul.mubr.bf16.gmra.mrb[0].mxu0 %v2421
    %v2698 = vpop.f32.mrb[0].mxu0
    %v2699 = vadd.f32 0.0, %v2698
    %v2700 = vpop.f32.mrb[0].mxu0
    %v2701 = vpop.f32.mrb[0].mxu0
    %v2702 = vadd.f32 0.0, %v2701
    %v2703 = vpop.f32.mrb[0].mxu0
    %2704 = vmatprep.mubr.bf16.mxu0 0
    %2705 = vmatmul.mubr.bf16.gmra.mrb[0].mxu0 %v2424
    %v2706 = vpop.f32.mrb[0].mxu0
    %v2707 = vadd.f32 0.0, %v2706
    %v2708 = vpop.f32.mrb[0].mxu0
    %v2709 = vpop.f32.mrb[0].mxu0
    %v2710 = vadd.f32 0.0, %v2709
    %v2711 = vpop.f32.mrb[0].mxu0
    %2712 = vmatprep.mubr.bf16.mxu0 0
    %2713 = vmatmul.mubr.bf16.gmra.mrb[0].mxu0 %v2427
    %v2714 = vpop.f32.mrb[0].mxu0
    %v2715 = vadd.f32 0.0, %v2714
    %v2716 = vpop.f32.mrb[0].mxu0
    %v2717 = vpop.f32.mrb[0].mxu0
    %v2718 = vadd.f32 0.0, %v2717
    %v2719 = vpop.f32.mrb[0].mxu0
    %2720 = vdwg.mxu0
    %v2721 = vadd.f32 %v1722, %v2467
    %v2722 = vadd.f32 %v1725, %v2470
    %v2723 = vadd.f32 %v1730, %v2475
    %v2724 = vadd.f32 %v1733, %v2478
    %v2725 = vadd.f32 %v1738, %v2483
    %v2726 = vadd.f32 %v1741, %v2486
    %v2727 = vadd.f32 %v1746, %v2491
    %v2728 = vadd.f32 %v1749, %v2494
    %v2729 = vadd.f32 %v1754, %v2499
    %v2730 = vadd.f32 %v1757, %v2502
    %v2731 = vadd.f32 %v1762, %v2507
    %v2732 = vadd.f32 %v1765, %v2510
    %v2733 = vadd.f32 %v1770, %v2515
    %v2734 = vadd.f32 %v1773, %v2518
    %v2735 = vadd.f32 %v1778, %v2523
    %v2736 = vadd.f32 %v1781, %v2526
    %v2737 = vadd.f32 %v1786, %v2531
    %v2738 = vadd.f32 %v1789, %v2534
    %v2739 = vadd.f32 %v1794, %v2539
    %v2740 = vadd.f32 %v1797, %v2542
    %v2741 = vadd.f32 %v1802, %v2547
    %v2742 = vadd.f32 %v1805, %v2550
    %v2743 = vadd.f32 %v1810, %v2555
    %v2744 = vadd.f32 %v1813, %v2558
    %v2745 = vadd.f32 %v1818, %v2563
    %v2746 = vadd.f32 %v1821, %v2566
    %v2747 = vadd.f32 %v1826, %v2571
    %v2748 = vadd.f32 %v1829, %v2574
    %v2749 = vadd.f32 %v1834, %v2579
    %v2750 = vadd.f32 %v1837, %v2582
    %v2751 = vadd.f32 %v1842, %v2587
    %v2752 = vadd.f32 %v1845, %v2590
    %v2753 = vadd.f32 %v1850, %v2595
    %v2754 = vadd.f32 %v1853, %v2598
    %v2755 = vadd.f32 %v1858, %v2603
    %v2756 = vadd.f32 %v1861, %v2606
    %v2757 = vadd.f32 %v1866, %v2611
    %v2758 = vadd.f32 %v1869, %v2614
    %v2759 = vadd.f32 %v1874, %v2619
    %v2760 = vadd.f32 %v1877, %v2622
    %v2761 = vadd.f32 %v1882, %v2627
    %v2762 = vadd.f32 %v1885, %v2630
    %v2763 = vadd.f32 %v1890, %v2635
    %v2764 = vadd.f32 %v1893, %v2638
    %v2765 = vadd.f32 %v1898, %v2643
    %v2766 = vadd.f32 %v1901, %v2646
    %v2767 = vadd.f32 %v1906, %v2651
    %v2768 = vadd.f32 %v1909, %v2654
    %v2769 = vadd.f32 %v1914, %v2659
    %v2770 = vadd.f32 %v1917, %v2662
    %v2771 = vadd.f32 %v1922, %v2667
    %v2772 = vadd.f32 %v1925, %v2670
    %v2773 = vadd.f32 %v1930, %v2675
    %v2774 = vadd.f32 %v1933, %v2678
    %v2775 = vadd.f32 %v1938, %v2683
    %v2776 = vadd.f32 %v1941, %v2686
    %v2777 = vadd.f32 %v1946, %v2691
    %v2778 = vadd.f32 %v1949, %v2694
    %v2779 = vadd.f32 %v1954, %v2699
    %v2780 = vadd.f32 %v1957, %v2702
    %v2781 = vadd.f32 %v1962, %v2707
    %v2782 = vadd.f32 %v1965, %v2710
    %v2783 = vadd.f32 %v1970, %v2715
    %v2784 = vadd.f32 %v1973, %v2718
    %s2785 = scalar_lea.vmem %s1, 6
    %v2786 = vld [vmem:[%s2785] sm:$0x3]
    %v2791 = vunpack.c.l.b16 %v108
    %v2792 = vunpack.c.l.b16 %v109
    %v2793 = vunpack.c.l.b16 %v162
    %v2794 = vunpack.c.l.b16 %v163
    %v2795 = vpack.c.b16 %v2792, %v2791
    %v2796 = vpack.c.b16 %v2794, %v2793
    %v2798 = vsel %vm1038, %v2795, 0
    %v2801 = vsel %vm1038, %v2796, 0
    %v2804 = vsel %vm1135, %v2786, 0
    %2806 = vmatprep.subr.bf16.mxu0 0
    %2807 = vmatpush1.bf16.msra.mxu0 %v2804
    %2808 = vmatprep.subr.bf16.mxu0 0
    %2809 = vmatpush1.bf16.msra.mxu0 0
    %2810 = vmatprep.subr.bf16.mxu0 0
    %2811 = vmatpush1.bf16.msra.mxu0 0
    %2812 = vmatprep.subr.bf16.mxu0 0
    %2813 = vmatpush1.bf16.msra.mxu0 0
    %2814 = vmatprep.subr.bf16.mxu0 0
    %2815 = vmatpush1.bf16.msra.mxu0 0
    %2816 = vmatprep.subr.bf16.mxu0 0
    %2817 = vmatpush1.bf16.msra.mxu0 0
    %2818 = vmatprep.subr.bf16.mxu0 0
    %2819 = vmatpush1.bf16.msra.mxu0 0
    %2820 = vmatprep.subr.bf16.mxu0 0
    %2821 = vmatpush1.bf16.msra.mxu0 0
    %2822 = vmatprep.subr.bf16.mxu0 0
    %2823 = vmatpush1.bf16.msra.mxu0 0
    %2824 = vmatprep.subr.bf16.mxu0 0
    %2825 = vmatpush1.bf16.msra.mxu0 0
    %2826 = vmatprep.subr.bf16.mxu0 0
    %2827 = vmatpush1.bf16.msra.mxu0 0
    %2828 = vmatprep.subr.bf16.mxu0 0
    %2829 = vmatpush1.bf16.msra.mxu0 0
    %2830 = vmatprep.subr.bf16.mxu0 0
    %2831 = vmatpush1.bf16.msra.mxu0 0
    %2832 = vmatprep.subr.bf16.mxu0 0
    %2833 = vmatpush1.bf16.msra.mxu0 0
    %2834 = vmatprep.subr.bf16.mxu0 0
    %2835 = vmatpush1.bf16.msra.mxu0 0
    %2836 = vmatprep.subr.bf16.mxu0 0
    %2837 = vmatpush1.bf16.msra.mxu0 0
    %2838 = vmatprep.mubr.bf16.mxu0 0
    %2839 = vmatmul.mubr.bf16.gmra.mrb[0].mxu0 %v1592
    %v2840 = vpop.f32.mrb[0].mxu0
    %v2841 = vadd.f32 0.0, %v2840
    %v2842 = vpop.f32.mrb[0].mxu0
    %v2843 = vpop.f32.mrb[0].mxu0
    %v2844 = vadd.f32 0.0, %v2843
    %v2845 = vpop.f32.mrb[0].mxu0
    %2846 = vmatprep.mubr.bf16.mxu0 0
    %2847 = vmatmul.mubr.bf16.gmra.mrb[0].mxu0 %v1595
    %v2848 = vpop.f32.mrb[0].mxu0
    %v2849 = vadd.f32 0.0, %v2848
    %v2850 = vpop.f32.mrb[0].mxu0
    %v2851 = vpop.f32.mrb[0].mxu0
    %v2852 = vadd.f32 0.0, %v2851
    %v2853 = vpop.f32.mrb[0].mxu0
    %2854 = vmatprep.mubr.bf16.mxu0 0
    %2855 = vmatmul.mubr.bf16.gmra.mrb[0].mxu0 %v1598
    %v2856 = vpop.f32.mrb[0].mxu0
    %v2857 = vadd.f32 0.0, %v2856
    %v2858 = vpop.f32.mrb[0].mxu0
    %v2859 = vpop.f32.mrb[0].mxu0
    %v2860 = vadd.f32 0.0, %v2859
    %v2861 = vpop.f32.mrb[0].mxu0
    %2862 = vmatprep.mubr.bf16.mxu0 0
    %2863 = vmatmul.mubr.bf16.gmra.mrb[0].mxu0 %v1601
    %v2864 = vpop.f32.mrb[0].mxu0
    %v2865 = vadd.f32 0.0, %v2864
    %v2866 = vpop.f32.mrb[0].mxu0
    %v2867 = vpop.f32.mrb[0].mxu0
    %v2868 = vadd.f32 0.0, %v2867
    %v2869 = vpop.f32.mrb[0].mxu0
    %2870 = vmatprep.mubr.bf16.mxu0 0
    %2871 = vmatmul.mubr.bf16.gmra.mrb[0].mxu0 %v1604
    %v2872 = vpop.f32.mrb[0].mxu0
    %v2873 = vadd.f32 0.0, %v2872
    %v2874 = vpop.f32.mrb[0].mxu0
    %v2875 = vpop.f32.mrb[0].mxu0
    %v2876 = vadd.f32 0.0, %v2875
    %v2877 = vpop.f32.mrb[0].mxu0
    %2878 = vmatprep.mubr.bf16.mxu0 0
    %2879 = vmatmul.mubr.bf16.gmra.mrb[0].mxu0 %v1607
    %v2880 = vpop.f32.mrb[0].mxu0
    %v2881 = vadd.f32 0.0, %v2880
    %v2882 = vpop.f32.mrb[0].mxu0
    %v2883 = vpop.f32.mrb[0].mxu0
    %v2884 = vadd.f32 0.0, %v2883
    %v2885 = vpop.f32.mrb[0].mxu0
    %2886 = vmatprep.mubr.bf16.mxu0 0
    %2887 = vmatmul.mubr.bf16.gmra.mrb[0].mxu0 %v1610
    %v2888 = vpop.f32.mrb[0].mxu0
    %v2889 = vadd.f32 0.0, %v2888
    %v2890 = vpop.f32.mrb[0].mxu0
    %v2891 = vpop.f32.mrb[0].mxu0
    %v2892 = vadd.f32 0.0, %v2891
    %v2893 = vpop.f32.mrb[0].mxu0
    %2894 = vmatprep.mubr.bf16.mxu0 0
    %2895 = vmatmul.mubr.bf16.gmra.mrb[0].mxu0 %v1613
    %v2896 = vpop.f32.mrb[0].mxu0
    %v2897 = vadd.f32 0.0, %v2896
    %v2898 = vpop.f32.mrb[0].mxu0
    %v2899 = vpop.f32.mrb[0].mxu0
    %v2900 = vadd.f32 0.0, %v2899
    %v2901 = vpop.f32.mrb[0].mxu0
    %2902 = vmatprep.mubr.bf16.mxu0 0
    %2903 = vmatmul.mubr.bf16.gmra.mrb[0].mxu0 %v1616
    %v2904 = vpop.f32.mrb[0].mxu0
    %v2905 = vadd.f32 0.0, %v2904
    %v2906 = vpop.f32.mrb[0].mxu0
    %v2907 = vpop.f32.mrb[0].mxu0
    %v2908 = vadd.f32 0.0, %v2907
    %v2909 = vpop.f32.mrb[0].mxu0
    %2910 = vmatprep.mubr.bf16.mxu0 0
    %2911 = vmatmul.mubr.bf16.gmra.mrb[0].mxu0 %v1619
    %v2912 = vpop.f32.mrb[0].mxu0
    %v2913 = vadd.f32 0.0, %v2912
    %v2914 = vpop.f32.mrb[0].mxu0
    %v2915 = vpop.f32.mrb[0].mxu0
    %v2916 = vadd.f32 0.0, %v2915
    %v2917 = vpop.f32.mrb[0].mxu0
    %2918 = vmatprep.mubr.bf16.mxu0 0
    %2919 = vmatmul.mubr.bf16.gmra.mrb[0].mxu0 %v1622
    %v2920 = vpop.f32.mrb[0].mxu0
    %v2921 = vadd.f32 0.0, %v2920
    %v2922 = vpop.f32.mrb[0].mxu0
    %v2923 = vpop.f32.mrb[0].mxu0
    %v2924 = vadd.f32 0.0, %v2923
    %v2925 = vpop.f32.mrb[0].mxu0
    %2926 = vmatprep.mubr.bf16.mxu0 0
    %2927 = vmatmul.mubr.bf16.gmra.mrb[0].mxu0 %v1625
    %v2928 = vpop.f32.mrb[0].mxu0
    %v2929 = vadd.f32 0.0, %v2928
    %v2930 = vpop.f32.mrb[0].mxu0
    %v2931 = vpop.f32.mrb[0].mxu0
    %v2932 = vadd.f32 0.0, %v2931
    %v2933 = vpop.f32.mrb[0].mxu0
    %2934 = vmatprep.mubr.bf16.mxu0 0
    %2935 = vmatmul.mubr.bf16.gmra.mrb[0].mxu0 %v1628
    %v2936 = vpop.f32.mrb[0].mxu0
    %v2937 = vadd.f32 0.0, %v2936
    %v2938 = vpop.f32.mrb[0].mxu0
    %v2939 = vpop.f32.mrb[0].mxu0
    %v2940 = vadd.f32 0.0, %v2939
    %v2941 = vpop.f32.mrb[0].mxu0
    %2942 = vmatprep.mubr.bf16.mxu0 0
    %2943 = vmatmul.mubr.bf16.gmra.mrb[0].mxu0 %v1631
    %v2944 = vpop.f32.mrb[0].mxu0
    %v2945 = vadd.f32 0.0, %v2944
    %v2946 = vpop.f32.mrb[0].mxu0
    %v2947 = vpop.f32.mrb[0].mxu0
    %v2948 = vadd.f32 0.0, %v2947
    %v2949 = vpop.f32.mrb[0].mxu0
    %2950 = vmatprep.mubr.bf16.mxu0 0
    %2951 = vmatmul.mubr.bf16.gmra.mrb[0].mxu0 %v1634
    %v2952 = vpop.f32.mrb[0].mxu0
    %v2953 = vadd.f32 0.0, %v2952
    %v2954 = vpop.f32.mrb[0].mxu0
    %v2955 = vpop.f32.mrb[0].mxu0
    %v2956 = vadd.f32 0.0, %v2955
    %v2957 = vpop.f32.mrb[0].mxu0
    %2958 = vmatprep.mubr.bf16.mxu0 0
    %2959 = vmatmul.mubr.bf16.gmra.mrb[0].mxu0 %v2798
    %v2960 = vpop.f32.mrb[0].mxu0
    %v2961 = vadd.f32 0.0, %v2960
    %v2962 = vpop.f32.mrb[0].mxu0
    %v2963 = vpop.f32.mrb[0].mxu0
    %v2964 = vadd.f32 0.0, %v2963
    %v2965 = vpop.f32.mrb[0].mxu0
    %2966 = vmatprep.mubr.bf16.mxu0 0
    %2967 = vmatmul.mubr.bf16.gmra.mrb[0].mxu0 %v1640
    %v2968 = vpop.f32.mrb[0].mxu0
    %v2969 = vadd.f32 0.0, %v2968
    %v2970 = vpop.f32.mrb[0].mxu0
    %v2971 = vpop.f32.mrb[0].mxu0
    %v2972 = vadd.f32 0.0, %v2971
    %v2973 = vpop.f32.mrb[0].mxu0
    %2974 = vmatprep.mubr.bf16.mxu0 0
    %2975 = vmatmul.mubr.bf16.gmra.mrb[0].mxu0 %v1643
    %v2976 = vpop.f32.mrb[0].mxu0
    %v2977 = vadd.f32 0.0, %v2976
    %v2978 = vpop.f32.mrb[0].mxu0
    %v2979 = vpop.f32.mrb[0].mxu0
    %v2980 = vadd.f32 0.0, %v2979
    %v2981 = vpop.f32.mrb[0].mxu0
    %2982 = vmatprep.mubr.bf16.mxu0 0
    %2983 = vmatmul.mubr.bf16.gmra.mrb[0].mxu0 %v1646
    %v2984 = vpop.f32.mrb[0].mxu0
    %v2985 = vadd.f32 0.0, %v2984
    %v2986 = vpop.f32.mrb[0].mxu0
    %v2987 = vpop.f32.mrb[0].mxu0
    %v2988 = vadd.f32 0.0, %v2987
    %v2989 = vpop.f32.mrb[0].mxu0
    %2990 = vmatprep.mubr.bf16.mxu0 0
    %2991 = vmatmul.mubr.bf16.gmra.mrb[0].mxu0 %v1649
    %v2992 = vpop.f32.mrb[0].mxu0
    %v2993 = vadd.f32 0.0, %v2992
    %v2994 = vpop.f32.mrb[0].mxu0
    %v2995 = vpop.f32.mrb[0].mxu0
    %v2996 = vadd.f32 0.0, %v2995
    %v2997 = vpop.f32.mrb[0].mxu0
    %2998 = vmatprep.mubr.bf16.mxu0 0
    %2999 = vmatmul.mubr.bf16.gmra.mrb[0].mxu0 %v1652
    %v3000 = vpop.f32.mrb[0].mxu0
    %v3001 = vadd.f32 0.0, %v3000
    %v3002 = vpop.f32.mrb[0].mxu0
    %v3003 = vpop.f32.mrb[0].mxu0
    %v3004 = vadd.f32 0.0, %v3003
    %v3005 = vpop.f32.mrb[0].mxu0
    %3006 = vmatprep.mubr.bf16.mxu0 0
    %3007 = vmatmul.mubr.bf16.gmra.mrb[0].mxu0 %v1655
    %v3008 = vpop.f32.mrb[0].mxu0
    %v3009 = vadd.f32 0.0, %v3008
    %v3010 = vpop.f32.mrb[0].mxu0
    %v3011 = vpop.f32.mrb[0].mxu0
    %v3012 = vadd.f32 0.0, %v3011
    %v3013 = vpop.f32.mrb[0].mxu0
    %3014 = vmatprep.mubr.bf16.mxu0 0
    %3015 = vmatmul.mubr.bf16.gmra.mrb[0].mxu0 %v1658
    %v3016 = vpop.f32.mrb[0].mxu0
    %v3017 = vadd.f32 0.0, %v3016
    %v3018 = vpop.f32.mrb[0].mxu0
    %v3019 = vpop.f32.mrb[0].mxu0
    %v3020 = vadd.f32 0.0, %v3019
    %v3021 = vpop.f32.mrb[0].mxu0
    %3022 = vmatprep.mubr.bf16.mxu0 0
    %3023 = vmatmul.mubr.bf16.gmra.mrb[0].mxu0 %v1661
    %v3024 = vpop.f32.mrb[0].mxu0
    %v3025 = vadd.f32 0.0, %v3024
    %v3026 = vpop.f32.mrb[0].mxu0
    %v3027 = vpop.f32.mrb[0].mxu0
    %v3028 = vadd.f32 0.0, %v3027
    %v3029 = vpop.f32.mrb[0].mxu0
    %3030 = vmatprep.mubr.bf16.mxu0 0
    %3031 = vmatmul.mubr.bf16.gmra.mrb[0].mxu0 %v1664
    %v3032 = vpop.f32.mrb[0].mxu0
    %v3033 = vadd.f32 0.0, %v3032
    %v3034 = vpop.f32.mrb[0].mxu0
    %v3035 = vpop.f32.mrb[0].mxu0
    %v3036 = vadd.f32 0.0, %v3035
    %v3037 = vpop.f32.mrb[0].mxu0
    %3038 = vmatprep.mubr.bf16.mxu0 0
    %3039 = vmatmul.mubr.bf16.gmra.mrb[0].mxu0 %v1667
    %v3040 = vpop.f32.mrb[0].mxu0
    %v3041 = vadd.f32 0.0, %v3040
    %v3042 = vpop.f32.mrb[0].mxu0
    %v3043 = vpop.f32.mrb[0].mxu0
    %v3044 = vadd.f32 0.0, %v3043
    %v3045 = vpop.f32.mrb[0].mxu0
    %3046 = vmatprep.mubr.bf16.mxu0 0
    %3047 = vmatmul.mubr.bf16.gmra.mrb[0].mxu0 %v1670
    %v3048 = vpop.f32.mrb[0].mxu0
    %v3049 = vadd.f32 0.0, %v3048
    %v3050 = vpop.f32.mrb[0].mxu0
    %v3051 = vpop.f32.mrb[0].mxu0
    %v3052 = vadd.f32 0.0, %v3051
    %v3053 = vpop.f32.mrb[0].mxu0
    %3054 = vmatprep.mubr.bf16.mxu0 0
    %3055 = vmatmul.mubr.bf16.gmra.mrb[0].mxu0 %v1673
    %v3056 = vpop.f32.mrb[0].mxu0
    %v3057 = vadd.f32 0.0, %v3056
    %v3058 = vpop.f32.mrb[0].mxu0
    %v3059 = vpop.f32.mrb[0].mxu0
    %v3060 = vadd.f32 0.0, %v3059
    %v3061 = vpop.f32.mrb[0].mxu0
    %3062 = vmatprep.mubr.bf16.mxu0 0
    %3063 = vmatmul.mubr.bf16.gmra.mrb[0].mxu0 %v1676
    %v3064 = vpop.f32.mrb[0].mxu0
    %v3065 = vadd.f32 0.0, %v3064
    %v3066 = vpop.f32.mrb[0].mxu0
    %v3067 = vpop.f32.mrb[0].mxu0
    %v3068 = vadd.f32 0.0, %v3067
    %v3069 = vpop.f32.mrb[0].mxu0
    %3070 = vmatprep.mubr.bf16.mxu0 0
    %3071 = vmatmul.mubr.bf16.gmra.mrb[0].mxu0 %v1679
    %v3072 = vpop.f32.mrb[0].mxu0
    %v3073 = vadd.f32 0.0, %v3072
    %v3074 = vpop.f32.mrb[0].mxu0
    %v3075 = vpop.f32.mrb[0].mxu0
    %v3076 = vadd.f32 0.0, %v3075
    %v3077 = vpop.f32.mrb[0].mxu0
    %3078 = vmatprep.mubr.bf16.mxu0 0
    %3079 = vmatmul.mubr.bf16.gmra.mrb[0].mxu0 %v1682
    %v3080 = vpop.f32.mrb[0].mxu0
    %v3081 = vadd.f32 0.0, %v3080
    %v3082 = vpop.f32.mrb[0].mxu0
    %v3083 = vpop.f32.mrb[0].mxu0
    %v3084 = vadd.f32 0.0, %v3083
    %v3085 = vpop.f32.mrb[0].mxu0
    %3086 = vmatprep.mubr.bf16.mxu0 0
    %3087 = vmatmul.mubr.bf16.gmra.mrb[0].mxu0 %v2801
    %v3088 = vpop.f32.mrb[0].mxu0
    %v3089 = vadd.f32 0.0, %v3088
    %v3090 = vpop.f32.mrb[0].mxu0
    %v3091 = vpop.f32.mrb[0].mxu0
    %v3092 = vadd.f32 0.0, %v3091
    %v3093 = vpop.f32.mrb[0].mxu0
    %3094 = vdwg.mxu0
    %v3095 = vadd.f32 %v2721, %v2841
    %v3096 = vadd.f32 %v2722, %v2844
    %v3097 = vadd.f32 %v2723, %v2849
    %v3098 = vadd.f32 %v2724, %v2852
    %v3099 = vadd.f32 %v2725, %v2857
    %v3100 = vadd.f32 %v2726, %v2860
    %v3101 = vadd.f32 %v2727, %v2865
    %v3102 = vadd.f32 %v2728, %v2868
    %v3103 = vadd.f32 %v2729, %v2873
    %v3104 = vadd.f32 %v2730, %v2876
    %v3105 = vadd.f32 %v2731, %v2881
    %v3106 = vadd.f32 %v2732, %v2884
    %v3107 = vadd.f32 %v2733, %v2889
    %v3108 = vadd.f32 %v2734, %v2892
    %v3109 = vadd.f32 %v2735, %v2897
    %v3110 = vadd.f32 %v2736, %v2900
    %v3111 = vadd.f32 %v2737, %v2905
    %v3112 = vadd.f32 %v2738, %v2908
    %v3113 = vadd.f32 %v2739, %v2913
    %v3114 = vadd.f32 %v2740, %v2916
    %v3115 = vadd.f32 %v2741, %v2921
    %v3116 = vadd.f32 %v2742, %v2924
    %v3117 = vadd.f32 %v2743, %v2929
    %v3118 = vadd.f32 %v2744, %v2932
    %v3119 = vadd.f32 %v2745, %v2937
    %v3120 = vadd.f32 %v2746, %v2940
    %v3121 = vadd.f32 %v2747, %v2945
    %v3122 = vadd.f32 %v2748, %v2948
    %v3123 = vadd.f32 %v2749, %v2953
    %v3124 = vadd.f32 %v2750, %v2956
    %v3125 = vadd.f32 %v2751, %v2961
    %v3126 = vadd.f32 %v2752, %v2964
    %v3127 = vadd.f32 %v2753, %v2969
    %v3128 = vadd.f32 %v2754, %v2972
    %v3129 = vadd.f32 %v2755, %v2977
    %v3130 = vadd.f32 %v2756, %v2980
    %v3131 = vadd.f32 %v2757, %v2985
    %v3132 = vadd.f32 %v2758, %v2988
    %v3133 = vadd.f32 %v2759, %v2993
    %v3134 = vadd.f32 %v2760, %v2996
    %v3135 = vadd.f32 %v2761, %v3001
    %v3136 = vadd.f32 %v2762, %v3004
    %v3137 = vadd.f32 %v2763, %v3009
    %v3138 = vadd.f32 %v2764, %v3012
    %v3139 = vadd.f32 %v2765, %v3017
    %v3140 = vadd.f32 %v2766, %v3020
    %v3141 = vadd.f32 %v2767, %v3025
    %v3142 = vadd.f32 %v2768, %v3028
    %v3143 = vadd.f32 %v2769, %v3033
    %v3144 = vadd.f32 %v2770, %v3036
    %v3145 = vadd.f32 %v2771, %v3041
    %v3146 = vadd.f32 %v2772, %v3044
    %v3147 = vadd.f32 %v2773, %v3049
    %v3148 = vadd.f32 %v2774, %v3052
    %v3149 = vadd.f32 %v2775, %v3057
    %v3150 = vadd.f32 %v2776, %v3060
    %v3151 = vadd.f32 %v2777, %v3065
    %v3152 = vadd.f32 %v2778, %v3068
    %v3153 = vadd.f32 %v2779, %v3073
    %v3154 = vadd.f32 %v2780, %v3076
    %v3155 = vadd.f32 %v2781, %v3081
    %v3156 = vadd.f32 %v2782, %v3084
    %v3157 = vadd.f32 %v2783, %v3089
    %v3158 = vadd.f32 %v2784, %v3092
    %v3160 = vshrl.u32 %v108, 16
    %v3162 = vrot.slane %v3160, 4
    %v3163 = vshll.u32 %v108, 16
    %v3165 = vrot.slane %v3163, 5
    %v3166 = vor.u32 %v3162, %v3165
    %v3167 = vrot.slane %v3166, 4
    %v3169 = vshll.u32 %v109, 16
    %v3171 = vrot.slane %v3169, 5
    %v3172 = vsel %vm171, %v3167, %v3171
    %v3173 = vshrl.u32 %v109, 16
    %v3175 = vrot.slane %v3173, 4
    %v3176 = vor.u32 %v3175, %v3171
    %v3177 = vrot.slane %v3176, 4
    %v3179 = vshll.u32 %v110, 16
    %v3181 = vrot.slane %v3179, 5
    %v3182 = vsel %vm171, %v3177, %v3181
    %v3184 = vshrl.u32 %v162, 16
    %v3186 = vrot.slane %v3184, 4
    %v3187 = vshll.u32 %v162, 16
    %v3189 = vrot.slane %v3187, 5
    %v3190 = vor.u32 %v3186, %v3189
    %v3191 = vrot.slane %v3190, 4
    %v3193 = vshll.u32 %v163, 16
    %v3195 = vrot.slane %v3193, 5
    %v3196 = vsel %vm171, %v3191, %v3195
    %v3197 = vshrl.u32 %v163, 16
    %v3199 = vrot.slane %v3197, 4
    %v3200 = vor.u32 %v3199, %v3195
    %v3201 = vrot.slane %v3200, 4
    %v3203 = vshll.u32 %v164, 16
    %v3205 = vrot.slane %v3203, 5
    %v3206 = vsel %vm171, %v3201, %v3205
    %s3207 = scalar_lea.vmem %s1, 8
    %v3208 = vld [vmem:[%s3207] sm:$0x3]
    %v3209 = vunpack.c.l.b16 %v3172
    %v3210 = vunpack.c.l.b16 %v3182
    %v3211 = vunpack.c.l.b16 %v3196
    %v3212 = vunpack.c.l.b16 %v3206
    %v3213 = vpack.c.b16 %v3210, %v3209
    %v3214 = vpack.c.b16 %v3212, %v3211
    %v3216 = vsel %vm1038, %v3213, 0
    %v3219 = vsel %vm1038, %v3214, 0
    %v3222 = vsel %vm1135, %v3208, 0
    %3224 = vmatprep.subr.bf16.mxu0 0
    %3225 = vmatpush1.bf16.msra.mxu0 %v3222
    %3226 = vmatprep.subr.bf16.mxu0 0
    %3227 = vmatpush1.bf16.msra.mxu0 0
    %3228 = vmatprep.subr.bf16.mxu0 0
    %3229 = vmatpush1.bf16.msra.mxu0 0
    %3230 = vmatprep.subr.bf16.mxu0 0
    %3231 = vmatpush1.bf16.msra.mxu0 0
    %3232 = vmatprep.subr.bf16.mxu0 0
    %3233 = vmatpush1.bf16.msra.mxu0 0
    %3234 = vmatprep.subr.bf16.mxu0 0
    %3235 = vmatpush1.bf16.msra.mxu0 0
    %3236 = vmatprep.subr.bf16.mxu0 0
    %3237 = vmatpush1.bf16.msra.mxu0 0
    %3238 = vmatprep.subr.bf16.mxu0 0
    %3239 = vmatpush1.bf16.msra.mxu0 0
    %3240 = vmatprep.subr.bf16.mxu0 0
    %3241 = vmatpush1.bf16.msra.mxu0 0
    %3242 = vmatprep.subr.bf16.mxu0 0
    %3243 = vmatpush1.bf16.msra.mxu0 0
    %3244 = vmatprep.subr.bf16.mxu0 0
    %3245 = vmatpush1.bf16.msra.mxu0 0
    %3246 = vmatprep.subr.bf16.mxu0 0
    %3247 = vmatpush1.bf16.msra.mxu0 0
    %3248 = vmatprep.subr.bf16.mxu0 0
    %3249 = vmatpush1.bf16.msra.mxu0 0
    %3250 = vmatprep.subr.bf16.mxu0 0
    %3251 = vmatpush1.bf16.msra.mxu0 0
    %3252 = vmatprep.subr.bf16.mxu0 0
    %3253 = vmatpush1.bf16.msra.mxu0 0
    %3254 = vmatprep.subr.bf16.mxu0 0
    %3255 = vmatpush1.bf16.msra.mxu0 0
    %3256 = vmatprep.mubr.bf16.mxu0 0
    %3257 = vmatmul.mubr.bf16.gmra.mrb[0].mxu0 %v1043
    %v3258 = vpop.f32.mrb[0].mxu0
    %v3259 = vadd.f32 0.0, %v3258
    %v3260 = vpop.f32.mrb[0].mxu0
    %v3261 = vpop.f32.mrb[0].mxu0
    %v3262 = vadd.f32 0.0, %v3261
    %v3263 = vpop.f32.mrb[0].mxu0
    %3264 = vmatprep.mubr.bf16.mxu0 0
    %3265 = vmatmul.mubr.bf16.gmra.mrb[0].mxu0 %v1046
    %v3266 = vpop.f32.mrb[0].mxu0
    %v3267 = vadd.f32 0.0, %v3266
    %v3268 = vpop.f32.mrb[0].mxu0
    %v3269 = vpop.f32.mrb[0].mxu0
    %v3270 = vadd.f32 0.0, %v3269
    %v3271 = vpop.f32.mrb[0].mxu0
    %3272 = vmatprep.mubr.bf16.mxu0 0
    %3273 = vmatmul.mubr.bf16.gmra.mrb[0].mxu0 %v1049
    %v3274 = vpop.f32.mrb[0].mxu0
    %v3275 = vadd.f32 0.0, %v3274
    %v3276 = vpop.f32.mrb[0].mxu0
    %v3277 = vpop.f32.mrb[0].mxu0
    %v3278 = vadd.f32 0.0, %v3277
    %v3279 = vpop.f32.mrb[0].mxu0
    %3280 = vmatprep.mubr.bf16.mxu0 0
    %3281 = vmatmul.mubr.bf16.gmra.mrb[0].mxu0 %v1052
    %v3282 = vpop.f32.mrb[0].mxu0
    %v3283 = vadd.f32 0.0, %v3282
    %v3284 = vpop.f32.mrb[0].mxu0
    %v3285 = vpop.f32.mrb[0].mxu0
    %v3286 = vadd.f32 0.0, %v3285
    %v3287 = vpop.f32.mrb[0].mxu0
    %3288 = vmatprep.mubr.bf16.mxu0 0
    %3289 = vmatmul.mubr.bf16.gmra.mrb[0].mxu0 %v1055
    %v3290 = vpop.f32.mrb[0].mxu0
    %v3291 = vadd.f32 0.0, %v3290
    %v3292 = vpop.f32.mrb[0].mxu0
    %v3293 = vpop.f32.mrb[0].mxu0
    %v3294 = vadd.f32 0.0, %v3293
    %v3295 = vpop.f32.mrb[0].mxu0
    %3296 = vmatprep.mubr.bf16.mxu0 0
    %3297 = vmatmul.mubr.bf16.gmra.mrb[0].mxu0 %v1058
    %v3298 = vpop.f32.mrb[0].mxu0
    %v3299 = vadd.f32 0.0, %v3298
    %v3300 = vpop.f32.mrb[0].mxu0
    %v3301 = vpop.f32.mrb[0].mxu0
    %v3302 = vadd.f32 0.0, %v3301
    %v3303 = vpop.f32.mrb[0].mxu0
    %3304 = vmatprep.mubr.bf16.mxu0 0
    %3305 = vmatmul.mubr.bf16.gmra.mrb[0].mxu0 %v1061
    %v3306 = vpop.f32.mrb[0].mxu0
    %v3307 = vadd.f32 0.0, %v3306
    %v3308 = vpop.f32.mrb[0].mxu0
    %v3309 = vpop.f32.mrb[0].mxu0
    %v3310 = vadd.f32 0.0, %v3309
    %v3311 = vpop.f32.mrb[0].mxu0
    %3312 = vmatprep.mubr.bf16.mxu0 0
    %3313 = vmatmul.mubr.bf16.gmra.mrb[0].mxu0 %v1064
    %v3314 = vpop.f32.mrb[0].mxu0
    %v3315 = vadd.f32 0.0, %v3314
    %v3316 = vpop.f32.mrb[0].mxu0
    %v3317 = vpop.f32.mrb[0].mxu0
    %v3318 = vadd.f32 0.0, %v3317
    %v3319 = vpop.f32.mrb[0].mxu0
    %3320 = vmatprep.mubr.bf16.mxu0 0
    %3321 = vmatmul.mubr.bf16.gmra.mrb[0].mxu0 %v1067
    %v3322 = vpop.f32.mrb[0].mxu0
    %v3323 = vadd.f32 0.0, %v3322
    %v3324 = vpop.f32.mrb[0].mxu0
    %v3325 = vpop.f32.mrb[0].mxu0
    %v3326 = vadd.f32 0.0, %v3325
    %v3327 = vpop.f32.mrb[0].mxu0
    %3328 = vmatprep.mubr.bf16.mxu0 0
    %3329 = vmatmul.mubr.bf16.gmra.mrb[0].mxu0 %v1070
    %v3330 = vpop.f32.mrb[0].mxu0
    %v3331 = vadd.f32 0.0, %v3330
    %v3332 = vpop.f32.mrb[0].mxu0
    %v3333 = vpop.f32.mrb[0].mxu0
    %v3334 = vadd.f32 0.0, %v3333
    %v3335 = vpop.f32.mrb[0].mxu0
    %3336 = vmatprep.mubr.bf16.mxu0 0
    %3337 = vmatmul.mubr.bf16.gmra.mrb[0].mxu0 %v1073
    %v3338 = vpop.f32.mrb[0].mxu0
    %v3339 = vadd.f32 0.0, %v3338
    %v3340 = vpop.f32.mrb[0].mxu0
    %v3341 = vpop.f32.mrb[0].mxu0
    %v3342 = vadd.f32 0.0, %v3341
    %v3343 = vpop.f32.mrb[0].mxu0
    %3344 = vmatprep.mubr.bf16.mxu0 0
    %3345 = vmatmul.mubr.bf16.gmra.mrb[0].mxu0 %v1076
    %v3346 = vpop.f32.mrb[0].mxu0
    %v3347 = vadd.f32 0.0, %v3346
    %v3348 = vpop.f32.mrb[0].mxu0
    %v3349 = vpop.f32.mrb[0].mxu0
    %v3350 = vadd.f32 0.0, %v3349
    %v3351 = vpop.f32.mrb[0].mxu0
    %3352 = vmatprep.mubr.bf16.mxu0 0
    %3353 = vmatmul.mubr.bf16.gmra.mrb[0].mxu0 %v1079
    %v3354 = vpop.f32.mrb[0].mxu0
    %v3355 = vadd.f32 0.0, %v3354
    %v3356 = vpop.f32.mrb[0].mxu0
    %v3357 = vpop.f32.mrb[0].mxu0
    %v3358 = vadd.f32 0.0, %v3357
    %v3359 = vpop.f32.mrb[0].mxu0
    %3360 = vmatprep.mubr.bf16.mxu0 0
    %3361 = vmatmul.mubr.bf16.gmra.mrb[0].mxu0 %v1082
    %v3362 = vpop.f32.mrb[0].mxu0
    %v3363 = vadd.f32 0.0, %v3362
    %v3364 = vpop.f32.mrb[0].mxu0
    %v3365 = vpop.f32.mrb[0].mxu0
    %v3366 = vadd.f32 0.0, %v3365
    %v3367 = vpop.f32.mrb[0].mxu0
    %3368 = vmatprep.mubr.bf16.mxu0 0
    %3369 = vmatmul.mubr.bf16.gmra.mrb[0].mxu0 %v1085
    %v3370 = vpop.f32.mrb[0].mxu0
    %v3371 = vadd.f32 0.0, %v3370
    %v3372 = vpop.f32.mrb[0].mxu0
    %v3373 = vpop.f32.mrb[0].mxu0
    %v3374 = vadd.f32 0.0, %v3373
    %v3375 = vpop.f32.mrb[0].mxu0
    %3376 = vmatprep.mubr.bf16.mxu0 0
    %3377 = vmatmul.mubr.bf16.gmra.mrb[0].mxu0 %v3216
    %v3378 = vpop.f32.mrb[0].mxu0
    %v3379 = vadd.f32 0.0, %v3378
    %v3380 = vpop.f32.mrb[0].mxu0
    %v3381 = vpop.f32.mrb[0].mxu0
    %v3382 = vadd.f32 0.0, %v3381
    %v3383 = vpop.f32.mrb[0].mxu0
    %3384 = vmatprep.mubr.bf16.mxu0 0
    %3385 = vmatmul.mubr.bf16.gmra.mrb[0].mxu0 %v1091
    %v3386 = vpop.f32.mrb[0].mxu0
    %v3387 = vadd.f32 0.0, %v3386
    %v3388 = vpop.f32.mrb[0].mxu0
    %v3389 = vpop.f32.mrb[0].mxu0
    %v3390 = vadd.f32 0.0, %v3389
    %v3391 = vpop.f32.mrb[0].mxu0
    %3392 = vmatprep.mubr.bf16.mxu0 0
    %3393 = vmatmul.mubr.bf16.gmra.mrb[0].mxu0 %v1094
    %v3394 = vpop.f32.mrb[0].mxu0
    %v3395 = vadd.f32 0.0, %v3394
    %v3396 = vpop.f32.mrb[0].mxu0
    %v3397 = vpop.f32.mrb[0].mxu0
    %v3398 = vadd.f32 0.0, %v3397
    %v3399 = vpop.f32.mrb[0].mxu0
    %3400 = vmatprep.mubr.bf16.mxu0 0
    %3401 = vmatmul.mubr.bf16.gmra.mrb[0].mxu0 %v1097
    %v3402 = vpop.f32.mrb[0].mxu0
    %v3403 = vadd.f32 0.0, %v3402
    %v3404 = vpop.f32.mrb[0].mxu0
    %v3405 = vpop.f32.mrb[0].mxu0
    %v3406 = vadd.f32 0.0, %v3405
    %v3407 = vpop.f32.mrb[0].mxu0
    %3408 = vmatprep.mubr.bf16.mxu0 0
    %3409 = vmatmul.mubr.bf16.gmra.mrb[0].mxu0 %v1100
    %v3410 = vpop.f32.mrb[0].mxu0
    %v3411 = vadd.f32 0.0, %v3410
    %v3412 = vpop.f32.mrb[0].mxu0
    %v3413 = vpop.f32.mrb[0].mxu0
    %v3414 = vadd.f32 0.0, %v3413
    %v3415 = vpop.f32.mrb[0].mxu0
    %3416 = vmatprep.mubr.bf16.mxu0 0
    %3417 = vmatmul.mubr.bf16.gmra.mrb[0].mxu0 %v1103
    %v3418 = vpop.f32.mrb[0].mxu0
    %v3419 = vadd.f32 0.0, %v3418
    %v3420 = vpop.f32.mrb[0].mxu0
    %v3421 = vpop.f32.mrb[0].mxu0
    %v3422 = vadd.f32 0.0, %v3421
    %v3423 = vpop.f32.mrb[0].mxu0
    %3424 = vmatprep.mubr.bf16.mxu0 0
    %3425 = vmatmul.mubr.bf16.gmra.mrb[0].mxu0 %v1106
    %v3426 = vpop.f32.mrb[0].mxu0
    %v3427 = vadd.f32 0.0, %v3426
    %v3428 = vpop.f32.mrb[0].mxu0
    %v3429 = vpop.f32.mrb[0].mxu0
    %v3430 = vadd.f32 0.0, %v3429
    %v3431 = vpop.f32.mrb[0].mxu0
    %3432 = vmatprep.mubr.bf16.mxu0 0
    %3433 = vmatmul.mubr.bf16.gmra.mrb[0].mxu0 %v1109
    %v3434 = vpop.f32.mrb[0].mxu0
    %v3435 = vadd.f32 0.0, %v3434
    %v3436 = vpop.f32.mrb[0].mxu0
    %v3437 = vpop.f32.mrb[0].mxu0
    %v3438 = vadd.f32 0.0, %v3437
    %v3439 = vpop.f32.mrb[0].mxu0
    %3440 = vmatprep.mubr.bf16.mxu0 0
    %3441 = vmatmul.mubr.bf16.gmra.mrb[0].mxu0 %v1112
    %v3442 = vpop.f32.mrb[0].mxu0
    %v3443 = vadd.f32 0.0, %v3442
    %v3444 = vpop.f32.mrb[0].mxu0
    %v3445 = vpop.f32.mrb[0].mxu0
    %v3446 = vadd.f32 0.0, %v3445
    %v3447 = vpop.f32.mrb[0].mxu0
    %3448 = vmatprep.mubr.bf16.mxu0 0
    %3449 = vmatmul.mubr.bf16.gmra.mrb[0].mxu0 %v1115
    %v3450 = vpop.f32.mrb[0].mxu0
    %v3451 = vadd.f32 0.0, %v3450
    %v3452 = vpop.f32.mrb[0].mxu0
    %v3453 = vpop.f32.mrb[0].mxu0
    %v3454 = vadd.f32 0.0, %v3453
    %v3455 = vpop.f32.mrb[0].mxu0
    %3456 = vmatprep.mubr.bf16.mxu0 0
    %3457 = vmatmul.mubr.bf16.gmra.mrb[0].mxu0 %v1118
    %v3458 = vpop.f32.mrb[0].mxu0
    %v3459 = vadd.f32 0.0, %v3458
    %v3460 = vpop.f32.mrb[0].mxu0
    %v3461 = vpop.f32.mrb[0].mxu0
    %v3462 = vadd.f32 0.0, %v3461
    %v3463 = vpop.f32.mrb[0].mxu0
    %3464 = vmatprep.mubr.bf16.mxu0 0
    %3465 = vmatmul.mubr.bf16.gmra.mrb[0].mxu0 %v1121
    %v3466 = vpop.f32.mrb[0].mxu0
    %v3467 = vadd.f32 0.0, %v3466
    %v3468 = vpop.f32.mrb[0].mxu0
    %v3469 = vpop.f32.mrb[0].mxu0
    %v3470 = vadd.f32 0.0, %v3469
    %v3471 = vpop.f32.mrb[0].mxu0
    %3472 = vmatprep.mubr.bf16.mxu0 0
    %3473 = vmatmul.mubr.bf16.gmra.mrb[0].mxu0 %v1124
    %v3474 = vpop.f32.mrb[0].mxu0
    %v3475 = vadd.f32 0.0, %v3474
    %v3476 = vpop.f32.mrb[0].mxu0
    %v3477 = vpop.f32.mrb[0].mxu0
    %v3478 = vadd.f32 0.0, %v3477
    %v3479 = vpop.f32.mrb[0].mxu0
    %3480 = vmatprep.mubr.bf16.mxu0 0
    %3481 = vmatmul.mubr.bf16.gmra.mrb[0].mxu0 %v1127
    %v3482 = vpop.f32.mrb[0].mxu0
    %v3483 = vadd.f32 0.0, %v3482
    %v3484 = vpop.f32.mrb[0].mxu0
    %v3485 = vpop.f32.mrb[0].mxu0
    %v3486 = vadd.f32 0.0, %v3485
    %v3487 = vpop.f32.mrb[0].mxu0
    %3488 = vmatprep.mubr.bf16.mxu0 0
    %3489 = vmatmul.mubr.bf16.gmra.mrb[0].mxu0 %v1130
    %v3490 = vpop.f32.mrb[0].mxu0
    %v3491 = vadd.f32 0.0, %v3490
    %v3492 = vpop.f32.mrb[0].mxu0
    %v3493 = vpop.f32.mrb[0].mxu0
    %v3494 = vadd.f32 0.0, %v3493
    %v3495 = vpop.f32.mrb[0].mxu0
    %3496 = vmatprep.mubr.bf16.mxu0 0
    %3497 = vmatmul.mubr.bf16.gmra.mrb[0].mxu0 %v1133
    %v3498 = vpop.f32.mrb[0].mxu0
    %v3499 = vadd.f32 0.0, %v3498
    %v3500 = vpop.f32.mrb[0].mxu0
    %v3501 = vpop.f32.mrb[0].mxu0
    %v3502 = vadd.f32 0.0, %v3501
    %v3503 = vpop.f32.mrb[0].mxu0
    %3504 = vmatprep.mubr.bf16.mxu0 0
    %3505 = vmatmul.mubr.bf16.gmra.mrb[0].mxu0 %v3219
    %v3506 = vpop.f32.mrb[0].mxu0
    %v3507 = vadd.f32 0.0, %v3506
    %v3508 = vpop.f32.mrb[0].mxu0
    %v3509 = vpop.f32.mrb[0].mxu0
    %v3510 = vadd.f32 0.0, %v3509
    %v3511 = vpop.f32.mrb[0].mxu0
    %3512 = vdwg.mxu0
    %v3513 = vadd.f32 %v3095, %v3259
    %v3514 = vadd.f32 %v3096, %v3262
    %v3515 = vadd.f32 %v3097, %v3267
    %v3516 = vadd.f32 %v3098, %v3270
    %v3517 = vadd.f32 %v3099, %v3275
    %v3518 = vadd.f32 %v3100, %v3278
    %v3519 = vadd.f32 %v3101, %v3283
    %v3520 = vadd.f32 %v3102, %v3286
    %v3521 = vadd.f32 %v3103, %v3291
    %v3522 = vadd.f32 %v3104, %v3294
    %v3523 = vadd.f32 %v3105, %v3299
    %v3524 = vadd.f32 %v3106, %v3302
    %v3525 = vadd.f32 %v3107, %v3307
    %v3526 = vadd.f32 %v3108, %v3310
    %v3527 = vadd.f32 %v3109, %v3315
    %v3528 = vadd.f32 %v3110, %v3318
    %v3529 = vadd.f32 %v3111, %v3323
    %v3530 = vadd.f32 %v3112, %v3326
    %v3531 = vadd.f32 %v3113, %v3331
    %v3532 = vadd.f32 %v3114, %v3334
    %v3533 = vadd.f32 %v3115, %v3339
    %v3534 = vadd.f32 %v3116, %v3342
    %v3535 = vadd.f32 %v3117, %v3347
    %v3536 = vadd.f32 %v3118, %v3350
    %v3537 = vadd.f32 %v3119, %v3355
    %v3538 = vadd.f32 %v3120, %v3358
    %v3539 = vadd.f32 %v3121, %v3363
    %v3540 = vadd.f32 %v3122, %v3366
    %v3541 = vadd.f32 %v3123, %v3371
    %v3542 = vadd.f32 %v3124, %v3374
    %v3543 = vadd.f32 %v3125, %v3379
    %v3544 = vadd.f32 %v3126, %v3382
    %v3545 = vadd.f32 %v3127, %v3387
    %v3546 = vadd.f32 %v3128, %v3390
    %v3547 = vadd.f32 %v3129, %v3395
    %v3548 = vadd.f32 %v3130, %v3398
    %v3549 = vadd.f32 %v3131, %v3403
    %v3550 = vadd.f32 %v3132, %v3406
    %v3551 = vadd.f32 %v3133, %v3411
    %v3552 = vadd.f32 %v3134, %v3414
    %v3553 = vadd.f32 %v3135, %v3419
    %v3554 = vadd.f32 %v3136, %v3422
    %v3555 = vadd.f32 %v3137, %v3427
    %v3556 = vadd.f32 %v3138, %v3430
    %v3557 = vadd.f32 %v3139, %v3435
    %v3558 = vadd.f32 %v3140, %v3438
    %v3559 = vadd.f32 %v3141, %v3443
    %v3560 = vadd.f32 %v3142, %v3446
    %v3561 = vadd.f32 %v3143, %v3451
    %v3562 = vadd.f32 %v3144, %v3454
    %v3563 = vadd.f32 %v3145, %v3459
    %v3564 = vadd.f32 %v3146, %v3462
    %v3565 = vadd.f32 %v3147, %v3467
    %v3566 = vadd.f32 %v3148, %v3470
    %v3567 = vadd.f32 %v3149, %v3475
    %v3568 = vadd.f32 %v3150, %v3478
    %v3569 = vadd.f32 %v3151, %v3483
    %v3570 = vadd.f32 %v3152, %v3486
    %v3571 = vadd.f32 %v3153, %v3491
    %v3572 = vadd.f32 %v3154, %v3494
    %v3573 = vadd.f32 %v3155, %v3499
    %v3574 = vadd.f32 %v3156, %v3502
    %v3575 = vadd.f32 %v3157, %v3507
    %v3576 = vadd.f32 %v3158, %v3510
    %v3579 = vrot.slane %v108, 5
    %v3580 = vrot.slane %v3579, 4
    %v3581 = vrot.slane %v109, 5
    %v3582 = vsel %vm2010, %v3580, %v3581
    %v3583 = vrot.slane %v3581, 4
    %v3584 = vrot.slane %v110, 5
    %v3585 = vsel %vm2010, %v3583, %v3584
    %v3586 = vrot.slane %v162, 5
    %v3587 = vrot.slane %v3586, 4
    %v3588 = vrot.slane %v163, 5
    %v3589 = vsel %vm2010, %v3587, %v3588
    %v3590 = vrot.slane %v3588, 4
    %v3591 = vrot.slane %v164, 5
    %v3592 = vsel %vm2010, %v3590, %v3591
    %s3593 = scalar_lea.vmem %s1, 10
    %v3594 = vld [vmem:[%s3593] sm:$0x3]
    %v3595 = vunpack.c.l.b16 %v3582
    %v3596 = vunpack.c.l.b16 %v3585
    %v3597 = vunpack.c.l.b16 %v3589
    %v3598 = vunpack.c.l.b16 %v3592
    %v3599 = vpack.c.b16 %v3596, %v3595
    %v3600 = vpack.c.b16 %v3598, %v3597
    %v3602 = vsel %vm1038, %v3599, 0
    %v3605 = vsel %vm1038, %v3600, 0
    %v3608 = vsel %vm1135, %v3594, 0
    %3610 = vmatprep.subr.bf16.mxu0 0
    %3611 = vmatpush1.bf16.msra.mxu0 %v3608
    %3612 = vmatprep.subr.bf16.mxu0 0
    %3613 = vmatpush1.bf16.msra.mxu0 0
    %3614 = vmatprep.subr.bf16.mxu0 0
    %3615 = vmatpush1.bf16.msra.mxu0 0
    %3616 = vmatprep.subr.bf16.mxu0 0
    %3617 = vmatpush1.bf16.msra.mxu0 0
    %3618 = vmatprep.subr.bf16.mxu0 0
    %3619 = vmatpush1.bf16.msra.mxu0 0
    %3620 = vmatprep.subr.bf16.mxu0 0
    %3621 = vmatpush1.bf16.msra.mxu0 0
    %3622 = vmatprep.subr.bf16.mxu0 0
    %3623 = vmatpush1.bf16.msra.mxu0 0
    %3624 = vmatprep.subr.bf16.mxu0 0
    %3625 = vmatpush1.bf16.msra.mxu0 0
    %3626 = vmatprep.subr.bf16.mxu0 0
    %3627 = vmatpush1.bf16.msra.mxu0 0
    %3628 = vmatprep.subr.bf16.mxu0 0
    %3629 = vmatpush1.bf16.msra.mxu0 0
    %3630 = vmatprep.subr.bf16.mxu0 0
    %3631 = vmatpush1.bf16.msra.mxu0 0
    %3632 = vmatprep.subr.bf16.mxu0 0
    %3633 = vmatpush1.bf16.msra.mxu0 0
    %3634 = vmatprep.subr.bf16.mxu0 0
    %3635 = vmatpush1.bf16.msra.mxu0 0
    %3636 = vmatprep.subr.bf16.mxu0 0
    %3637 = vmatpush1.bf16.msra.mxu0 0
    %3638 = vmatprep.subr.bf16.mxu0 0
    %3639 = vmatpush1.bf16.msra.mxu0 0
    %3640 = vmatprep.subr.bf16.mxu0 0
    %3641 = vmatpush1.bf16.msra.mxu0 0
    %3642 = vmatprep.mubr.bf16.mxu0 0
    %3643 = vmatmul.mubr.bf16.gmra.mrb[0].mxu0 %v2337
    %v3644 = vpop.f32.mrb[0].mxu0
    %v3645 = vadd.f32 0.0, %v3644
    %v3646 = vpop.f32.mrb[0].mxu0
    %v3647 = vpop.f32.mrb[0].mxu0
    %v3648 = vadd.f32 0.0, %v3647
    %v3649 = vpop.f32.mrb[0].mxu0
    %3650 = vmatprep.mubr.bf16.mxu0 0
    %3651 = vmatmul.mubr.bf16.gmra.mrb[0].mxu0 %v2340
    %v3652 = vpop.f32.mrb[0].mxu0
    %v3653 = vadd.f32 0.0, %v3652
    %v3654 = vpop.f32.mrb[0].mxu0
    %v3655 = vpop.f32.mrb[0].mxu0
    %v3656 = vadd.f32 0.0, %v3655
    %v3657 = vpop.f32.mrb[0].mxu0
    %3658 = vmatprep.mubr.bf16.mxu0 0
    %3659 = vmatmul.mubr.bf16.gmra.mrb[0].mxu0 %v2343
    %v3660 = vpop.f32.mrb[0].mxu0
    %v3661 = vadd.f32 0.0, %v3660
    %v3662 = vpop.f32.mrb[0].mxu0
    %v3663 = vpop.f32.mrb[0].mxu0
    %v3664 = vadd.f32 0.0, %v3663
    %v3665 = vpop.f32.mrb[0].mxu0
    %3666 = vmatprep.mubr.bf16.mxu0 0
    %3667 = vmatmul.mubr.bf16.gmra.mrb[0].mxu0 %v2346
    %v3668 = vpop.f32.mrb[0].mxu0
    %v3669 = vadd.f32 0.0, %v3668
    %v3670 = vpop.f32.mrb[0].mxu0
    %v3671 = vpop.f32.mrb[0].mxu0
    %v3672 = vadd.f32 0.0, %v3671
    %v3673 = vpop.f32.mrb[0].mxu0
    %3674 = vmatprep.mubr.bf16.mxu0 0
    %3675 = vmatmul.mubr.bf16.gmra.mrb[0].mxu0 %v2349
    %v3676 = vpop.f32.mrb[0].mxu0
    %v3677 = vadd.f32 0.0, %v3676
    %v3678 = vpop.f32.mrb[0].mxu0
    %v3679 = vpop.f32.mrb[0].mxu0
    %v3680 = vadd.f32 0.0, %v3679
    %v3681 = vpop.f32.mrb[0].mxu0
    %3682 = vmatprep.mubr.bf16.mxu0 0
    %3683 = vmatmul.mubr.bf16.gmra.mrb[0].mxu0 %v2352
    %v3684 = vpop.f32.mrb[0].mxu0
    %v3685 = vadd.f32 0.0, %v3684
    %v3686 = vpop.f32.mrb[0].mxu0
    %v3687 = vpop.f32.mrb[0].mxu0
    %v3688 = vadd.f32 0.0, %v3687
    %v3689 = vpop.f32.mrb[0].mxu0
    %3690 = vmatprep.mubr.bf16.mxu0 0
    %3691 = vmatmul.mubr.bf16.gmra.mrb[0].mxu0 %v2355
    %v3692 = vpop.f32.mrb[0].mxu0
    %v3693 = vadd.f32 0.0, %v3692
    %v3694 = vpop.f32.mrb[0].mxu0
    %v3695 = vpop.f32.mrb[0].mxu0
    %v3696 = vadd.f32 0.0, %v3695
    %v3697 = vpop.f32.mrb[0].mxu0
    %3698 = vmatprep.mubr.bf16.mxu0 0
    %3699 = vmatmul.mubr.bf16.gmra.mrb[0].mxu0 %v2358
    %v3700 = vpop.f32.mrb[0].mxu0
    %v3701 = vadd.f32 0.0, %v3700
    %v3702 = vpop.f32.mrb[0].mxu0
    %v3703 = vpop.f32.mrb[0].mxu0
    %v3704 = vadd.f32 0.0, %v3703
    %v3705 = vpop.f32.mrb[0].mxu0
    %3706 = vmatprep.mubr.bf16.mxu0 0
    %3707 = vmatmul.mubr.bf16.gmra.mrb[0].mxu0 %v2361
    %v3708 = vpop.f32.mrb[0].mxu0
    %v3709 = vadd.f32 0.0, %v3708
    %v3710 = vpop.f32.mrb[0].mxu0
    %v3711 = vpop.f32.mrb[0].mxu0
    %v3712 = vadd.f32 0.0, %v3711
    %v3713 = vpop.f32.mrb[0].mxu0
    %3714 = vmatprep.mubr.bf16.mxu0 0
    %3715 = vmatmul.mubr.bf16.gmra.mrb[0].mxu0 %v2364
    %v3716 = vpop.f32.mrb[0].mxu0
    %v3717 = vadd.f32 0.0, %v3716
    %v3718 = vpop.f32.mrb[0].mxu0
    %v3719 = vpop.f32.mrb[0].mxu0
    %v3720 = vadd.f32 0.0, %v3719
    %v3721 = vpop.f32.mrb[0].mxu0
    %3722 = vmatprep.mubr.bf16.mxu0 0
    %3723 = vmatmul.mubr.bf16.gmra.mrb[0].mxu0 %v2367
    %v3724 = vpop.f32.mrb[0].mxu0
    %v3725 = vadd.f32 0.0, %v3724
    %v3726 = vpop.f32.mrb[0].mxu0
    %v3727 = vpop.f32.mrb[0].mxu0
    %v3728 = vadd.f32 0.0, %v3727
    %v3729 = vpop.f32.mrb[0].mxu0
    %3730 = vmatprep.mubr.bf16.mxu0 0
    %3731 = vmatmul.mubr.bf16.gmra.mrb[0].mxu0 %v2370
    %v3732 = vpop.f32.mrb[0].mxu0
    %v3733 = vadd.f32 0.0, %v3732
    %v3734 = vpop.f32.mrb[0].mxu0
    %v3735 = vpop.f32.mrb[0].mxu0
    %v3736 = vadd.f32 0.0, %v3735
    %v3737 = vpop.f32.mrb[0].mxu0
    %3738 = vmatprep.mubr.bf16.mxu0 0
    %3739 = vmatmul.mubr.bf16.gmra.mrb[0].mxu0 %v2373
    %v3740 = vpop.f32.mrb[0].mxu0
    %v3741 = vadd.f32 0.0, %v3740
    %v3742 = vpop.f32.mrb[0].mxu0
    %v3743 = vpop.f32.mrb[0].mxu0
    %v3744 = vadd.f32 0.0, %v3743
    %v3745 = vpop.f32.mrb[0].mxu0
    %3746 = vmatprep.mubr.bf16.mxu0 0
    %3747 = vmatmul.mubr.bf16.gmra.mrb[0].mxu0 %v2376
    %v3748 = vpop.f32.mrb[0].mxu0
    %v3749 = vadd.f32 0.0, %v3748
    %v3750 = vpop.f32.mrb[0].mxu0
    %v3751 = vpop.f32.mrb[0].mxu0
    %v3752 = vadd.f32 0.0, %v3751
    %v3753 = vpop.f32.mrb[0].mxu0
    %3754 = vmatprep.mubr.bf16.mxu0 0
    %3755 = vmatmul.mubr.bf16.gmra.mrb[0].mxu0 %v2379
    %v3756 = vpop.f32.mrb[0].mxu0
    %v3757 = vadd.f32 0.0, %v3756
    %v3758 = vpop.f32.mrb[0].mxu0
    %v3759 = vpop.f32.mrb[0].mxu0
    %v3760 = vadd.f32 0.0, %v3759
    %v3761 = vpop.f32.mrb[0].mxu0
    %3762 = vmatprep.mubr.bf16.mxu0 0
    %3763 = vmatmul.mubr.bf16.gmra.mrb[0].mxu0 %v3602
    %v3764 = vpop.f32.mrb[0].mxu0
    %v3765 = vadd.f32 0.0, %v3764
    %v3766 = vpop.f32.mrb[0].mxu0
    %v3767 = vpop.f32.mrb[0].mxu0
    %v3768 = vadd.f32 0.0, %v3767
    %v3769 = vpop.f32.mrb[0].mxu0
    %3770 = vmatprep.mubr.bf16.mxu0 0
    %3771 = vmatmul.mubr.bf16.gmra.mrb[0].mxu0 %v2385
    %v3772 = vpop.f32.mrb[0].mxu0
    %v3773 = vadd.f32 0.0, %v3772
    %v3774 = vpop.f32.mrb[0].mxu0
    %v3775 = vpop.f32.mrb[0].mxu0
    %v3776 = vadd.f32 0.0, %v3775
    %v3777 = vpop.f32.mrb[0].mxu0
    %3778 = vmatprep.mubr.bf16.mxu0 0
    %3779 = vmatmul.mubr.bf16.gmra.mrb[0].mxu0 %v2388
    %v3780 = vpop.f32.mrb[0].mxu0
    %v3781 = vadd.f32 0.0, %v3780
    %v3782 = vpop.f32.mrb[0].mxu0
    %v3783 = vpop.f32.mrb[0].mxu0
    %v3784 = vadd.f32 0.0, %v3783
    %v3785 = vpop.f32.mrb[0].mxu0
    %3786 = vmatprep.mubr.bf16.mxu0 0
    %3787 = vmatmul.mubr.bf16.gmra.mrb[0].mxu0 %v2391
    %v3788 = vpop.f32.mrb[0].mxu0
    %v3789 = vadd.f32 0.0, %v3788
    %v3790 = vpop.f32.mrb[0].mxu0
    %v3791 = vpop.f32.mrb[0].mxu0
    %v3792 = vadd.f32 0.0, %v3791
    %v3793 = vpop.f32.mrb[0].mxu0
    %3794 = vmatprep.mubr.bf16.mxu0 0
    %3795 = vmatmul.mubr.bf16.gmra.mrb[0].mxu0 %v2394
    %v3796 = vpop.f32.mrb[0].mxu0
    %v3797 = vadd.f32 0.0, %v3796
    %v3798 = vpop.f32.mrb[0].mxu0
    %v3799 = vpop.f32.mrb[0].mxu0
    %v3800 = vadd.f32 0.0, %v3799
    %v3801 = vpop.f32.mrb[0].mxu0
    %3802 = vmatprep.mubr.bf16.mxu0 0
    %3803 = vmatmul.mubr.bf16.gmra.mrb[0].mxu0 %v2397
    %v3804 = vpop.f32.mrb[0].mxu0
    %v3805 = vadd.f32 0.0, %v3804
    %v3806 = vpop.f32.mrb[0].mxu0
    %v3807 = vpop.f32.mrb[0].mxu0
    %v3808 = vadd.f32 0.0, %v3807
    %v3809 = vpop.f32.mrb[0].mxu0
    %3810 = vmatprep.mubr.bf16.mxu0 0
    %3811 = vmatmul.mubr.bf16.gmra.mrb[0].mxu0 %v2400
    %v3812 = vpop.f32.mrb[0].mxu0
    %v3813 = vadd.f32 0.0, %v3812
    %v3814 = vpop.f32.mrb[0].mxu0
    %v3815 = vpop.f32.mrb[0].mxu0
    %v3816 = vadd.f32 0.0, %v3815
    %v3817 = vpop.f32.mrb[0].mxu0
    %3818 = vmatprep.mubr.bf16.mxu0 0
    %3819 = vmatmul.mubr.bf16.gmra.mrb[0].mxu0 %v2403
    %v3820 = vpop.f32.mrb[0].mxu0
    %v3821 = vadd.f32 0.0, %v3820
    %v3822 = vpop.f32.mrb[0].mxu0
    %v3823 = vpop.f32.mrb[0].mxu0
    %v3824 = vadd.f32 0.0, %v3823
    %v3825 = vpop.f32.mrb[0].mxu0
    %3826 = vmatprep.mubr.bf16.mxu0 0
    %3827 = vmatmul.mubr.bf16.gmra.mrb[0].mxu0 %v2406
    %v3828 = vpop.f32.mrb[0].mxu0
    %v3829 = vadd.f32 0.0, %v3828
    %v3830 = vpop.f32.mrb[0].mxu0
    %v3831 = vpop.f32.mrb[0].mxu0
    %v3832 = vadd.f32 0.0, %v3831
    %v3833 = vpop.f32.mrb[0].mxu0
    %3834 = vmatprep.mubr.bf16.mxu0 0
    %3835 = vmatmul.mubr.bf16.gmra.mrb[0].mxu0 %v2409
    %v3836 = vpop.f32.mrb[0].mxu0
    %v3837 = vadd.f32 0.0, %v3836
    %v3838 = vpop.f32.mrb[0].mxu0
    %v3839 = vpop.f32.mrb[0].mxu0
    %v3840 = vadd.f32 0.0, %v3839
    %v3841 = vpop.f32.mrb[0].mxu0
    %3842 = vmatprep.mubr.bf16.mxu0 0
    %3843 = vmatmul.mubr.bf16.gmra.mrb[0].mxu0 %v2412
    %v3844 = vpop.f32.mrb[0].mxu0
    %v3845 = vadd.f32 0.0, %v3844
    %v3846 = vpop.f32.mrb[0].mxu0
    %v3847 = vpop.f32.mrb[0].mxu0
    %v3848 = vadd.f32 0.0, %v3847
    %v3849 = vpop.f32.mrb[0].mxu0
    %3850 = vmatprep.mubr.bf16.mxu0 0
    %3851 = vmatmul.mubr.bf16.gmra.mrb[0].mxu0 %v2415
    %v3852 = vpop.f32.mrb[0].mxu0
    %v3853 = vadd.f32 0.0, %v3852
    %v3854 = vpop.f32.mrb[0].mxu0
    %v3855 = vpop.f32.mrb[0].mxu0
    %v3856 = vadd.f32 0.0, %v3855
    %v3857 = vpop.f32.mrb[0].mxu0
    %3858 = vmatprep.mubr.bf16.mxu0 0
    %3859 = vmatmul.mubr.bf16.gmra.mrb[0].mxu0 %v2418
    %v3860 = vpop.f32.mrb[0].mxu0
    %v3861 = vadd.f32 0.0, %v3860
    %v3862 = vpop.f32.mrb[0].mxu0
    %v3863 = vpop.f32.mrb[0].mxu0
    %v3864 = vadd.f32 0.0, %v3863
    %v3865 = vpop.f32.mrb[0].mxu0
    %3866 = vmatprep.mubr.bf16.mxu0 0
    %3867 = vmatmul.mubr.bf16.gmra.mrb[0].mxu0 %v2421
    %v3868 = vpop.f32.mrb[0].mxu0
    %v3869 = vadd.f32 0.0, %v3868
    %v3870 = vpop.f32.mrb[0].mxu0
    %v3871 = vpop.f32.mrb[0].mxu0
    %v3872 = vadd.f32 0.0, %v3871
    %v3873 = vpop.f32.mrb[0].mxu0
    %3874 = vmatprep.mubr.bf16.mxu0 0
    %3875 = vmatmul.mubr.bf16.gmra.mrb[0].mxu0 %v2424
    %v3876 = vpop.f32.mrb[0].mxu0
    %v3877 = vadd.f32 0.0, %v3876
    %v3878 = vpop.f32.mrb[0].mxu0
    %v3879 = vpop.f32.mrb[0].mxu0
    %v3880 = vadd.f32 0.0, %v3879
    %v3881 = vpop.f32.mrb[0].mxu0
    %3882 = vmatprep.mubr.bf16.mxu0 0
    %3883 = vmatmul.mubr.bf16.gmra.mrb[0].mxu0 %v2427
    %v3884 = vpop.f32.mrb[0].mxu0
    %v3885 = vadd.f32 0.0, %v3884
    %v3886 = vpop.f32.mrb[0].mxu0
    %v3887 = vpop.f32.mrb[0].mxu0
    %v3888 = vadd.f32 0.0, %v3887
    %v3889 = vpop.f32.mrb[0].mxu0
    %3890 = vmatprep.mubr.bf16.mxu0 0
    %3891 = vmatmul.mubr.bf16.gmra.mrb[0].mxu0 %v3605
    %v3892 = vpop.f32.mrb[0].mxu0
    %v3893 = vadd.f32 0.0, %v3892
    %v3894 = vpop.f32.mrb[0].mxu0
    %v3895 = vpop.f32.mrb[0].mxu0
    %v3896 = vadd.f32 0.0, %v3895
    %v3897 = vpop.f32.mrb[0].mxu0
    %3898 = vdwg.mxu0
    %v3899 = vadd.f32 %v3513, %v3645
    %v3900 = vadd.f32 %v3514, %v3648
    %v3901 = vadd.f32 %v3515, %v3653
    %v3902 = vadd.f32 %v3516, %v3656
    %v3903 = vadd.f32 %v3517, %v3661
    %v3904 = vadd.f32 %v3518, %v3664
    %v3905 = vadd.f32 %v3519, %v3669
    %v3906 = vadd.f32 %v3520, %v3672
    %v3907 = vadd.f32 %v3521, %v3677
    %v3908 = vadd.f32 %v3522, %v3680
    %v3909 = vadd.f32 %v3523, %v3685
    %v3910 = vadd.f32 %v3524, %v3688
    %v3911 = vadd.f32 %v3525, %v3693
    %v3912 = vadd.f32 %v3526, %v3696
    %v3913 = vadd.f32 %v3527, %v3701
    %v3914 = vadd.f32 %v3528, %v3704
    %v3915 = vadd.f32 %v3529, %v3709
    %v3916 = vadd.f32 %v3530, %v3712
    %v3917 = vadd.f32 %v3531, %v3717
    %v3918 = vadd.f32 %v3532, %v3720
    %v3919 = vadd.f32 %v3533, %v3725
    %v3920 = vadd.f32 %v3534, %v3728
    %v3921 = vadd.f32 %v3535, %v3733
    %v3922 = vadd.f32 %v3536, %v3736
    %v3923 = vadd.f32 %v3537, %v3741
    %v3924 = vadd.f32 %v3538, %v3744
    %v3925 = vadd.f32 %v3539, %v3749
    %v3926 = vadd.f32 %v3540, %v3752
    %v3927 = vadd.f32 %v3541, %v3757
    %v3928 = vadd.f32 %v3542, %v3760
    %v3929 = vadd.f32 %v3543, %v3765
    %v3930 = vadd.f32 %v3544, %v3768
    %v3931 = vadd.f32 %v3545, %v3773
    %v3932 = vadd.f32 %v3546, %v3776
    %v3933 = vadd.f32 %v3547, %v3781
    %v3934 = vadd.f32 %v3548, %v3784
    %v3935 = vadd.f32 %v3549, %v3789
    %v3936 = vadd.f32 %v3550, %v3792
    %v3937 = vadd.f32 %v3551, %v3797
    %v3938 = vadd.f32 %v3552, %v3800
    %v3939 = vadd.f32 %v3553, %v3805
    %v3940 = vadd.f32 %v3554, %v3808
    %v3941 = vadd.f32 %v3555, %v3813
    %v3942 = vadd.f32 %v3556, %v3816
    %v3943 = vadd.f32 %v3557, %v3821
    %v3944 = vadd.f32 %v3558, %v3824
    %v3945 = vadd.f32 %v3559, %v3829
    %v3946 = vadd.f32 %v3560, %v3832
    %v3947 = vadd.f32 %v3561, %v3837
    %v3948 = vadd.f32 %v3562, %v3840
    %v3949 = vadd.f32 %v3563, %v3845
    %v3950 = vadd.f32 %v3564, %v3848
    %v3951 = vadd.f32 %v3565, %v3853
    %v3952 = vadd.f32 %v3566, %v3856
    %v3953 = vadd.f32 %v3567, %v3861
    %v3954 = vadd.f32 %v3568, %v3864
    %v3955 = vadd.f32 %v3569, %v3869
    %v3956 = vadd.f32 %v3570, %v3872
    %v3957 = vadd.f32 %v3571, %v3877
    %v3958 = vadd.f32 %v3572, %v3880
    %v3959 = vadd.f32 %v3573, %v3885
    %v3960 = vadd.f32 %v3574, %v3888
    %v3961 = vadd.f32 %v3575, %v3893
    %v3962 = vadd.f32 %v3576, %v3896
    %s3963 = scalar_lea.vmem %s1, 12
    %v3964 = vld [vmem:[%s3963] sm:$0x3]
    %v3969 = vunpack.c.l.b16 %v111
    %v3970 = vunpack.c.l.b16 %v112
    %v3971 = vunpack.c.l.b16 %v165
    %v3972 = vunpack.c.l.b16 %v166
    %v3973 = vpack.c.b16 %v3970, %v3969
    %v3974 = vpack.c.b16 %v3972, %v3971
    %v3976 = vsel %vm1038, %v3973, 0
    %v3979 = vsel %vm1038, %v3974, 0
    %v3982 = vsel %vm1135, %v3964, 0
    %3984 = vmatprep.subr.bf16.mxu0 0
    %3985 = vmatpush1.bf16.msra.mxu0 %v3982
    %3986 = vmatprep.subr.bf16.mxu0 0
    %3987 = vmatpush1.bf16.msra.mxu0 0
    %3988 = vmatprep.subr.bf16.mxu0 0
    %3989 = vmatpush1.bf16.msra.mxu0 0
    %3990 = vmatprep.subr.bf16.mxu0 0
    %3991 = vmatpush1.bf16.msra.mxu0 0
    %3992 = vmatprep.subr.bf16.mxu0 0
    %3993 = vmatpush1.bf16.msra.mxu0 0
    %3994 = vmatprep.subr.bf16.mxu0 0
    %3995 = vmatpush1.bf16.msra.mxu0 0
    %3996 = vmatprep.subr.bf16.mxu0 0
    %3997 = vmatpush1.bf16.msra.mxu0 0
    %3998 = vmatprep.subr.bf16.mxu0 0
    %3999 = vmatpush1.bf16.msra.mxu0 0
    %4000 = vmatprep.subr.bf16.mxu0 0
    %4001 = vmatpush1.bf16.msra.mxu0 0
    %4002 = vmatprep.subr.bf16.mxu0 0
    %4003 = vmatpush1.bf16.msra.mxu0 0
    %4004 = vmatprep.subr.bf16.mxu0 0
    %4005 = vmatpush1.bf16.msra.mxu0 0
    %4006 = vmatprep.subr.bf16.mxu0 0
    %4007 = vmatpush1.bf16.msra.mxu0 0
    %4008 = vmatprep.subr.bf16.mxu0 0
    %4009 = vmatpush1.bf16.msra.mxu0 0
    %4010 = vmatprep.subr.bf16.mxu0 0
    %4011 = vmatpush1.bf16.msra.mxu0 0
    %4012 = vmatprep.subr.bf16.mxu0 0
    %4013 = vmatpush1.bf16.msra.mxu0 0
    %4014 = vmatprep.subr.bf16.mxu0 0
    %4015 = vmatpush1.bf16.msra.mxu0 0
    %4016 = vmatprep.mubr.bf16.mxu0 0
    %4017 = vmatmul.mubr.bf16.gmra.mrb[0].mxu0 %v1595
    %v4018 = vpop.f32.mrb[0].mxu0
    %v4019 = vadd.f32 0.0, %v4018
    %v4020 = vpop.f32.mrb[0].mxu0
    %v4021 = vpop.f32.mrb[0].mxu0
    %v4022 = vadd.f32 0.0, %v4021
    %v4023 = vpop.f32.mrb[0].mxu0
    %4024 = vmatprep.mubr.bf16.mxu0 0
    %4025 = vmatmul.mubr.bf16.gmra.mrb[0].mxu0 %v1598
    %v4026 = vpop.f32.mrb[0].mxu0
    %v4027 = vadd.f32 0.0, %v4026
    %v4028 = vpop.f32.mrb[0].mxu0
    %v4029 = vpop.f32.mrb[0].mxu0
    %v4030 = vadd.f32 0.0, %v4029
    %v4031 = vpop.f32.mrb[0].mxu0
    %4032 = vmatprep.mubr.bf16.mxu0 0
    %4033 = vmatmul.mubr.bf16.gmra.mrb[0].mxu0 %v1601
    %v4034 = vpop.f32.mrb[0].mxu0
    %v4035 = vadd.f32 0.0, %v4034
    %v4036 = vpop.f32.mrb[0].mxu0
    %v4037 = vpop.f32.mrb[0].mxu0
    %v4038 = vadd.f32 0.0, %v4037
    %v4039 = vpop.f32.mrb[0].mxu0
    %4040 = vmatprep.mubr.bf16.mxu0 0
    %4041 = vmatmul.mubr.bf16.gmra.mrb[0].mxu0 %v1604
    %v4042 = vpop.f32.mrb[0].mxu0
    %v4043 = vadd.f32 0.0, %v4042
    %v4044 = vpop.f32.mrb[0].mxu0
    %v4045 = vpop.f32.mrb[0].mxu0
    %v4046 = vadd.f32 0.0, %v4045
    %v4047 = vpop.f32.mrb[0].mxu0
    %4048 = vmatprep.mubr.bf16.mxu0 0
    %4049 = vmatmul.mubr.bf16.gmra.mrb[0].mxu0 %v1607
    %v4050 = vpop.f32.mrb[0].mxu0
    %v4051 = vadd.f32 0.0, %v4050
    %v4052 = vpop.f32.mrb[0].mxu0
    %v4053 = vpop.f32.mrb[0].mxu0
    %v4054 = vadd.f32 0.0, %v4053
    %v4055 = vpop.f32.mrb[0].mxu0
    %4056 = vmatprep.mubr.bf16.mxu0 0
    %4057 = vmatmul.mubr.bf16.gmra.mrb[0].mxu0 %v1610
    %v4058 = vpop.f32.mrb[0].mxu0
    %v4059 = vadd.f32 0.0, %v4058
    %v4060 = vpop.f32.mrb[0].mxu0
    %v4061 = vpop.f32.mrb[0].mxu0
    %v4062 = vadd.f32 0.0, %v4061
    %v4063 = vpop.f32.mrb[0].mxu0
    %4064 = vmatprep.mubr.bf16.mxu0 0
    %4065 = vmatmul.mubr.bf16.gmra.mrb[0].mxu0 %v1613
    %v4066 = vpop.f32.mrb[0].mxu0
    %v4067 = vadd.f32 0.0, %v4066
    %v4068 = vpop.f32.mrb[0].mxu0
    %v4069 = vpop.f32.mrb[0].mxu0
    %v4070 = vadd.f32 0.0, %v4069
    %v4071 = vpop.f32.mrb[0].mxu0
    %4072 = vmatprep.mubr.bf16.mxu0 0
    %4073 = vmatmul.mubr.bf16.gmra.mrb[0].mxu0 %v1616
    %v4074 = vpop.f32.mrb[0].mxu0
    %v4075 = vadd.f32 0.0, %v4074
    %v4076 = vpop.f32.mrb[0].mxu0
    %v4077 = vpop.f32.mrb[0].mxu0
    %v4078 = vadd.f32 0.0, %v4077
    %v4079 = vpop.f32.mrb[0].mxu0
    %4080 = vmatprep.mubr.bf16.mxu0 0
    %4081 = vmatmul.mubr.bf16.gmra.mrb[0].mxu0 %v1619
    %v4082 = vpop.f32.mrb[0].mxu0
    %v4083 = vadd.f32 0.0, %v4082
    %v4084 = vpop.f32.mrb[0].mxu0
    %v4085 = vpop.f32.mrb[0].mxu0
    %v4086 = vadd.f32 0.0, %v4085
    %v4087 = vpop.f32.mrb[0].mxu0
    %4088 = vmatprep.mubr.bf16.mxu0 0
    %4089 = vmatmul.mubr.bf16.gmra.mrb[0].mxu0 %v1622
    %v4090 = vpop.f32.mrb[0].mxu0
    %v4091 = vadd.f32 0.0, %v4090
    %v4092 = vpop.f32.mrb[0].mxu0
    %v4093 = vpop.f32.mrb[0].mxu0
    %v4094 = vadd.f32 0.0, %v4093
    %v4095 = vpop.f32.mrb[0].mxu0
    %4096 = vmatprep.mubr.bf16.mxu0 0
    %4097 = vmatmul.mubr.bf16.gmra.mrb[0].mxu0 %v1625
    %v4098 = vpop.f32.mrb[0].mxu0
    %v4099 = vadd.f32 0.0, %v4098
    %v4100 = vpop.f32.mrb[0].mxu0
    %v4101 = vpop.f32.mrb[0].mxu0
    %v4102 = vadd.f32 0.0, %v4101
    %v4103 = vpop.f32.mrb[0].mxu0
    %4104 = vmatprep.mubr.bf16.mxu0 0
    %4105 = vmatmul.mubr.bf16.gmra.mrb[0].mxu0 %v1628
    %v4106 = vpop.f32.mrb[0].mxu0
    %v4107 = vadd.f32 0.0, %v4106
    %v4108 = vpop.f32.mrb[0].mxu0
    %v4109 = vpop.f32.mrb[0].mxu0
    %v4110 = vadd.f32 0.0, %v4109
    %v4111 = vpop.f32.mrb[0].mxu0
    %4112 = vmatprep.mubr.bf16.mxu0 0
    %4113 = vmatmul.mubr.bf16.gmra.mrb[0].mxu0 %v1631
    %v4114 = vpop.f32.mrb[0].mxu0
    %v4115 = vadd.f32 0.0, %v4114
    %v4116 = vpop.f32.mrb[0].mxu0
    %v4117 = vpop.f32.mrb[0].mxu0
    %v4118 = vadd.f32 0.0, %v4117
    %v4119 = vpop.f32.mrb[0].mxu0
    %4120 = vmatprep.mubr.bf16.mxu0 0
    %4121 = vmatmul.mubr.bf16.gmra.mrb[0].mxu0 %v1634
    %v4122 = vpop.f32.mrb[0].mxu0
    %v4123 = vadd.f32 0.0, %v4122
    %v4124 = vpop.f32.mrb[0].mxu0
    %v4125 = vpop.f32.mrb[0].mxu0
    %v4126 = vadd.f32 0.0, %v4125
    %v4127 = vpop.f32.mrb[0].mxu0
    %4128 = vmatprep.mubr.bf16.mxu0 0
    %4129 = vmatmul.mubr.bf16.gmra.mrb[0].mxu0 %v2798
    %v4130 = vpop.f32.mrb[0].mxu0
    %v4131 = vadd.f32 0.0, %v4130
    %v4132 = vpop.f32.mrb[0].mxu0
    %v4133 = vpop.f32.mrb[0].mxu0
    %v4134 = vadd.f32 0.0, %v4133
    %v4135 = vpop.f32.mrb[0].mxu0
    %4136 = vmatprep.mubr.bf16.mxu0 0
    %4137 = vmatmul.mubr.bf16.gmra.mrb[0].mxu0 %v3976
    %v4138 = vpop.f32.mrb[0].mxu0
    %v4139 = vadd.f32 0.0, %v4138
    %v4140 = vpop.f32.mrb[0].mxu0
    %v4141 = vpop.f32.mrb[0].mxu0
    %v4142 = vadd.f32 0.0, %v4141
    %v4143 = vpop.f32.mrb[0].mxu0
    %4144 = vmatprep.mubr.bf16.mxu0 0
    %4145 = vmatmul.mubr.bf16.gmra.mrb[0].mxu0 %v1643
    %v4146 = vpop.f32.mrb[0].mxu0
    %v4147 = vadd.f32 0.0, %v4146
    %v4148 = vpop.f32.mrb[0].mxu0
    %v4149 = vpop.f32.mrb[0].mxu0
    %v4150 = vadd.f32 0.0, %v4149
    %v4151 = vpop.f32.mrb[0].mxu0
    %4152 = vmatprep.mubr.bf16.mxu0 0
    %4153 = vmatmul.mubr.bf16.gmra.mrb[0].mxu0 %v1646
    %v4154 = vpop.f32.mrb[0].mxu0
    %v4155 = vadd.f32 0.0, %v4154
    %v4156 = vpop.f32.mrb[0].mxu0
    %v4157 = vpop.f32.mrb[0].mxu0
    %v4158 = vadd.f32 0.0, %v4157
    %v4159 = vpop.f32.mrb[0].mxu0
    %4160 = vmatprep.mubr.bf16.mxu0 0
    %4161 = vmatmul.mubr.bf16.gmra.mrb[0].mxu0 %v1649
    %v4162 = vpop.f32.mrb[0].mxu0
    %v4163 = vadd.f32 0.0, %v4162
    %v4164 = vpop.f32.mrb[0].mxu0
    %v4165 = vpop.f32.mrb[0].mxu0
    %v4166 = vadd.f32 0.0, %v4165
    %v4167 = vpop.f32.mrb[0].mxu0
    %4168 = vmatprep.mubr.bf16.mxu0 0
    %4169 = vmatmul.mubr.bf16.gmra.mrb[0].mxu0 %v1652
    %v4170 = vpop.f32.mrb[0].mxu0
    %v4171 = vadd.f32 0.0, %v4170
    %v4172 = vpop.f32.mrb[0].mxu0
    %v4173 = vpop.f32.mrb[0].mxu0
    %v4174 = vadd.f32 0.0, %v4173
    %v4175 = vpop.f32.mrb[0].mxu0
    %4176 = vmatprep.mubr.bf16.mxu0 0
    %4177 = vmatmul.mubr.bf16.gmra.mrb[0].mxu0 %v1655
    %v4178 = vpop.f32.mrb[0].mxu0
    %v4179 = vadd.f32 0.0, %v4178
    %v4180 = vpop.f32.mrb[0].mxu0
    %v4181 = vpop.f32.mrb[0].mxu0
    %v4182 = vadd.f32 0.0, %v4181
    %v4183 = vpop.f32.mrb[0].mxu0
    %4184 = vmatprep.mubr.bf16.mxu0 0
    %4185 = vmatmul.mubr.bf16.gmra.mrb[0].mxu0 %v1658
    %v4186 = vpop.f32.mrb[0].mxu0
    %v4187 = vadd.f32 0.0, %v4186
    %v4188 = vpop.f32.mrb[0].mxu0
    %v4189 = vpop.f32.mrb[0].mxu0
    %v4190 = vadd.f32 0.0, %v4189
    %v4191 = vpop.f32.mrb[0].mxu0
    %4192 = vmatprep.mubr.bf16.mxu0 0
    %4193 = vmatmul.mubr.bf16.gmra.mrb[0].mxu0 %v1661
    %v4194 = vpop.f32.mrb[0].mxu0
    %v4195 = vadd.f32 0.0, %v4194
    %v4196 = vpop.f32.mrb[0].mxu0
    %v4197 = vpop.f32.mrb[0].mxu0
    %v4198 = vadd.f32 0.0, %v4197
    %v4199 = vpop.f32.mrb[0].mxu0
    %4200 = vmatprep.mubr.bf16.mxu0 0
    %4201 = vmatmul.mubr.bf16.gmra.mrb[0].mxu0 %v1664
    %v4202 = vpop.f32.mrb[0].mxu0
    %v4203 = vadd.f32 0.0, %v4202
    %v4204 = vpop.f32.mrb[0].mxu0
    %v4205 = vpop.f32.mrb[0].mxu0
    %v4206 = vadd.f32 0.0, %v4205
    %v4207 = vpop.f32.mrb[0].mxu0
    %4208 = vmatprep.mubr.bf16.mxu0 0
    %4209 = vmatmul.mubr.bf16.gmra.mrb[0].mxu0 %v1667
    %v4210 = vpop.f32.mrb[0].mxu0
    %v4211 = vadd.f32 0.0, %v4210
    %v4212 = vpop.f32.mrb[0].mxu0
    %v4213 = vpop.f32.mrb[0].mxu0
    %v4214 = vadd.f32 0.0, %v4213
    %v4215 = vpop.f32.mrb[0].mxu0
    %4216 = vmatprep.mubr.bf16.mxu0 0
    %4217 = vmatmul.mubr.bf16.gmra.mrb[0].mxu0 %v1670
    %v4218 = vpop.f32.mrb[0].mxu0
    %v4219 = vadd.f32 0.0, %v4218
    %v4220 = vpop.f32.mrb[0].mxu0
    %v4221 = vpop.f32.mrb[0].mxu0
    %v4222 = vadd.f32 0.0, %v4221
    %v4223 = vpop.f32.mrb[0].mxu0
    %4224 = vmatprep.mubr.bf16.mxu0 0
    %4225 = vmatmul.mubr.bf16.gmra.mrb[0].mxu0 %v1673
    %v4226 = vpop.f32.mrb[0].mxu0
    %v4227 = vadd.f32 0.0, %v4226
    %v4228 = vpop.f32.mrb[0].mxu0
    %v4229 = vpop.f32.mrb[0].mxu0
    %v4230 = vadd.f32 0.0, %v4229
    %v4231 = vpop.f32.mrb[0].mxu0
    %4232 = vmatprep.mubr.bf16.mxu0 0
    %4233 = vmatmul.mubr.bf16.gmra.mrb[0].mxu0 %v1676
    %v4234 = vpop.f32.mrb[0].mxu0
    %v4235 = vadd.f32 0.0, %v4234
    %v4236 = vpop.f32.mrb[0].mxu0
    %v4237 = vpop.f32.mrb[0].mxu0
    %v4238 = vadd.f32 0.0, %v4237
    %v4239 = vpop.f32.mrb[0].mxu0
    %4240 = vmatprep.mubr.bf16.mxu0 0
    %4241 = vmatmul.mubr.bf16.gmra.mrb[0].mxu0 %v1679
    %v4242 = vpop.f32.mrb[0].mxu0
    %v4243 = vadd.f32 0.0, %v4242
    %v4244 = vpop.f32.mrb[0].mxu0
    %v4245 = vpop.f32.mrb[0].mxu0
    %v4246 = vadd.f32 0.0, %v4245
    %v4247 = vpop.f32.mrb[0].mxu0
    %4248 = vmatprep.mubr.bf16.mxu0 0
    %4249 = vmatmul.mubr.bf16.gmra.mrb[0].mxu0 %v1682
    %v4250 = vpop.f32.mrb[0].mxu0
    %v4251 = vadd.f32 0.0, %v4250
    %v4252 = vpop.f32.mrb[0].mxu0
    %v4253 = vpop.f32.mrb[0].mxu0
    %v4254 = vadd.f32 0.0, %v4253
    %v4255 = vpop.f32.mrb[0].mxu0
    %4256 = vmatprep.mubr.bf16.mxu0 0
    %4257 = vmatmul.mubr.bf16.gmra.mrb[0].mxu0 %v2801
    %v4258 = vpop.f32.mrb[0].mxu0
    %v4259 = vadd.f32 0.0, %v4258
    %v4260 = vpop.f32.mrb[0].mxu0
    %v4261 = vpop.f32.mrb[0].mxu0
    %v4262 = vadd.f32 0.0, %v4261
    %v4263 = vpop.f32.mrb[0].mxu0
    %4264 = vmatprep.mubr.bf16.mxu0 0
    %4265 = vmatmul.mubr.bf16.gmra.mrb[0].mxu0 %v3979
    %v4266 = vpop.f32.mrb[0].mxu0
    %v4267 = vadd.f32 0.0, %v4266
    %v4268 = vpop.f32.mrb[0].mxu0
    %v4269 = vpop.f32.mrb[0].mxu0
    %v4270 = vadd.f32 0.0, %v4269
    %v4271 = vpop.f32.mrb[0].mxu0
    %4272 = vdwg.mxu0
    %v4273 = vadd.f32 %v3899, %v4019
    %v4274 = vadd.f32 %v3900, %v4022
    %v4275 = vadd.f32 %v3901, %v4027
    %v4276 = vadd.f32 %v3902, %v4030
    %v4277 = vadd.f32 %v3903, %v4035
    %v4278 = vadd.f32 %v3904, %v4038
    %v4279 = vadd.f32 %v3905, %v4043
    %v4280 = vadd.f32 %v3906, %v4046
    %v4281 = vadd.f32 %v3907, %v4051
    %v4282 = vadd.f32 %v3908, %v4054
    %v4283 = vadd.f32 %v3909, %v4059
    %v4284 = vadd.f32 %v3910, %v4062
    %v4285 = vadd.f32 %v3911, %v4067
    %v4286 = vadd.f32 %v3912, %v4070
    %v4287 = vadd.f32 %v3913, %v4075
    %v4288 = vadd.f32 %v3914, %v4078
    %v4289 = vadd.f32 %v3915, %v4083
    %v4290 = vadd.f32 %v3916, %v4086
    %v4291 = vadd.f32 %v3917, %v4091
    %v4292 = vadd.f32 %v3918, %v4094
    %v4293 = vadd.f32 %v3919, %v4099
    %v4294 = vadd.f32 %v3920, %v4102
    %v4295 = vadd.f32 %v3921, %v4107
    %v4296 = vadd.f32 %v3922, %v4110
    %v4297 = vadd.f32 %v3923, %v4115
    %v4298 = vadd.f32 %v3924, %v4118
    %v4299 = vadd.f32 %v3925, %v4123
    %v4300 = vadd.f32 %v3926, %v4126
    %v4301 = vadd.f32 %v3927, %v4131
    %v4302 = vadd.f32 %v3928, %v4134
    %v4303 = vadd.f32 %v3929, %v4139
    %v4304 = vadd.f32 %v3930, %v4142
    %v4305 = vadd.f32 %v3931, %v4147
    %v4306 = vadd.f32 %v3932, %v4150
    %v4307 = vadd.f32 %v3933, %v4155
    %v4308 = vadd.f32 %v3934, %v4158
    %v4309 = vadd.f32 %v3935, %v4163
    %v4310 = vadd.f32 %v3936, %v4166
    %v4311 = vadd.f32 %v3937, %v4171
    %v4312 = vadd.f32 %v3938, %v4174
    %v4313 = vadd.f32 %v3939, %v4179
    %v4314 = vadd.f32 %v3940, %v4182
    %v4315 = vadd.f32 %v3941, %v4187
    %v4316 = vadd.f32 %v3942, %v4190
    %v4317 = vadd.f32 %v3943, %v4195
    %v4318 = vadd.f32 %v3944, %v4198
    %v4319 = vadd.f32 %v3945, %v4203
    %v4320 = vadd.f32 %v3946, %v4206
    %v4321 = vadd.f32 %v3947, %v4211
    %v4322 = vadd.f32 %v3948, %v4214
    %v4323 = vadd.f32 %v3949, %v4219
    %v4324 = vadd.f32 %v3950, %v4222
    %v4325 = vadd.f32 %v3951, %v4227
    %v4326 = vadd.f32 %v3952, %v4230
    %v4327 = vadd.f32 %v3953, %v4235
    %v4328 = vadd.f32 %v3954, %v4238
    %v4329 = vadd.f32 %v3955, %v4243
    %v4330 = vadd.f32 %v3956, %v4246
    %v4331 = vadd.f32 %v3957, %v4251
    %v4332 = vadd.f32 %v3958, %v4254
    %v4333 = vadd.f32 %v3959, %v4259
    %v4334 = vadd.f32 %v3960, %v4262
    %v4335 = vadd.f32 %v3961, %v4267
    %v4336 = vadd.f32 %v3962, %v4270
    %v4338 = vshrl.u32 %v111, 16
    %v4340 = vrot.slane %v4338, 4
    %v4341 = vshll.u32 %v111, 16
    %v4343 = vrot.slane %v4341, 5
    %v4344 = vor.u32 %v4340, %v4343
    %v4345 = vrot.slane %v4344, 4
    %v4347 = vshll.u32 %v112, 16
    %v4349 = vrot.slane %v4347, 5
    %v4350 = vsel %vm171, %v4345, %v4349
    %v4351 = vshrl.u32 %v112, 16
    %v4353 = vrot.slane %v4351, 4
    %v4354 = vor.u32 %v4353, %v4349
    %v4355 = vrot.slane %v4354, 4
    %v4357 = vshll.u32 %v113, 16
    %v4359 = vrot.slane %v4357, 5
    %v4360 = vsel %vm171, %v4355, %v4359
    %v4362 = vshrl.u32 %v165, 16
    %v4364 = vrot.slane %v4362, 4
    %v4365 = vshll.u32 %v165, 16
    %v4367 = vrot.slane %v4365, 5
    %v4368 = vor.u32 %v4364, %v4367
    %v4369 = vrot.slane %v4368, 4
    %v4371 = vshll.u32 %v166, 16
    %v4373 = vrot.slane %v4371, 5
    %v4374 = vsel %vm171, %v4369, %v4373
    %v4375 = vshrl.u32 %v166, 16
    %v4377 = vrot.slane %v4375, 4
    %v4378 = vor.u32 %v4377, %v4373
    %v4379 = vrot.slane %v4378, 4
    %v4381 = vshll.u32 %v167, 16
    %v4383 = vrot.slane %v4381, 5
    %v4384 = vsel %vm171, %v4379, %v4383
    %s4385 = scalar_lea.vmem %s1, 14
    %v4386 = vld [vmem:[%s4385] sm:$0x3]
    %v4387 = vunpack.c.l.b16 %v4350
    %v4388 = vunpack.c.l.b16 %v4360
    %v4389 = vunpack.c.l.b16 %v4374
    %v4390 = vunpack.c.l.b16 %v4384
    %v4391 = vpack.c.b16 %v4388, %v4387
    %v4392 = vpack.c.b16 %v4390, %v4389
    %v4394 = vsel %vm1038, %v4391, 0
    %v4397 = vsel %vm1038, %v4392, 0
    %v4400 = vsel %vm1135, %v4386, 0
    %4402 = vmatprep.subr.bf16.mxu0 0
    %4403 = vmatpush1.bf16.msra.mxu0 %v4400
    %4404 = vmatprep.subr.bf16.mxu0 0
    %4405 = vmatpush1.bf16.msra.mxu0 0
    %4406 = vmatprep.subr.bf16.mxu0 0
    %4407 = vmatpush1.bf16.msra.mxu0 0
    %4408 = vmatprep.subr.bf16.mxu0 0
    %4409 = vmatpush1.bf16.msra.mxu0 0
    %4410 = vmatprep.subr.bf16.mxu0 0
    %4411 = vmatpush1.bf16.msra.mxu0 0
    %4412 = vmatprep.subr.bf16.mxu0 0
    %4413 = vmatpush1.bf16.msra.mxu0 0
    %4414 = vmatprep.subr.bf16.mxu0 0
    %4415 = vmatpush1.bf16.msra.mxu0 0
    %4416 = vmatprep.subr.bf16.mxu0 0
    %4417 = vmatpush1.bf16.msra.mxu0 0
    %4418 = vmatprep.subr.bf16.mxu0 0
    %4419 = vmatpush1.bf16.msra.mxu0 0
    %4420 = vmatprep.subr.bf16.mxu0 0
    %4421 = vmatpush1.bf16.msra.mxu0 0
    %4422 = vmatprep.subr.bf16.mxu0 0
    %4423 = vmatpush1.bf16.msra.mxu0 0
    %4424 = vmatprep.subr.bf16.mxu0 0
    %4425 = vmatpush1.bf16.msra.mxu0 0
    %4426 = vmatprep.subr.bf16.mxu0 0
    %4427 = vmatpush1.bf16.msra.mxu0 0
    %4428 = vmatprep.subr.bf16.mxu0 0
    %4429 = vmatpush1.bf16.msra.mxu0 0
    %4430 = vmatprep.subr.bf16.mxu0 0
    %4431 = vmatpush1.bf16.msra.mxu0 0
    %4432 = vmatprep.subr.bf16.mxu0 0
    %4433 = vmatpush1.bf16.msra.mxu0 0
    %4434 = vmatprep.mubr.bf16.mxu0 0
    %4435 = vmatmul.mubr.bf16.gmra.mrb[0].mxu0 %v1046
    %v4436 = vpop.f32.mrb[0].mxu0
    %v4437 = vadd.f32 0.0, %v4436
    %v4438 = vpop.f32.mrb[0].mxu0
    %v4439 = vpop.f32.mrb[0].mxu0
    %v4440 = vadd.f32 0.0, %v4439
    %v4441 = vpop.f32.mrb[0].mxu0
    %4442 = vmatprep.mubr.bf16.mxu0 0
    %4443 = vmatmul.mubr.bf16.gmra.mrb[0].mxu0 %v1049
    %v4444 = vpop.f32.mrb[0].mxu0
    %v4445 = vadd.f32 0.0, %v4444
    %v4446 = vpop.f32.mrb[0].mxu0
    %v4447 = vpop.f32.mrb[0].mxu0
    %v4448 = vadd.f32 0.0, %v4447
    %v4449 = vpop.f32.mrb[0].mxu0
    %4450 = vmatprep.mubr.bf16.mxu0 0
    %4451 = vmatmul.mubr.bf16.gmra.mrb[0].mxu0 %v1052
    %v4452 = vpop.f32.mrb[0].mxu0
    %v4453 = vadd.f32 0.0, %v4452
    %v4454 = vpop.f32.mrb[0].mxu0
    %v4455 = vpop.f32.mrb[0].mxu0
    %v4456 = vadd.f32 0.0, %v4455
    %v4457 = vpop.f32.mrb[0].mxu0
    %4458 = vmatprep.mubr.bf16.mxu0 0
    %4459 = vmatmul.mubr.bf16.gmra.mrb[0].mxu0 %v1055
    %v4460 = vpop.f32.mrb[0].mxu0
    %v4461 = vadd.f32 0.0, %v4460
    %v4462 = vpop.f32.mrb[0].mxu0
    %v4463 = vpop.f32.mrb[0].mxu0
    %v4464 = vadd.f32 0.0, %v4463
    %v4465 = vpop.f32.mrb[0].mxu0
    %4466 = vmatprep.mubr.bf16.mxu0 0
    %4467 = vmatmul.mubr.bf16.gmra.mrb[0].mxu0 %v1058
    %v4468 = vpop.f32.mrb[0].mxu0
    %v4469 = vadd.f32 0.0, %v4468
    %v4470 = vpop.f32.mrb[0].mxu0
    %v4471 = vpop.f32.mrb[0].mxu0
    %v4472 = vadd.f32 0.0, %v4471
    %v4473 = vpop.f32.mrb[0].mxu0
    %4474 = vmatprep.mubr.bf16.mxu0 0
    %4475 = vmatmul.mubr.bf16.gmra.mrb[0].mxu0 %v1061
    %v4476 = vpop.f32.mrb[0].mxu0
    %v4477 = vadd.f32 0.0, %v4476
    %v4478 = vpop.f32.mrb[0].mxu0
    %v4479 = vpop.f32.mrb[0].mxu0
    %v4480 = vadd.f32 0.0, %v4479
    %v4481 = vpop.f32.mrb[0].mxu0
    %4482 = vmatprep.mubr.bf16.mxu0 0
    %4483 = vmatmul.mubr.bf16.gmra.mrb[0].mxu0 %v1064
    %v4484 = vpop.f32.mrb[0].mxu0
    %v4485 = vadd.f32 0.0, %v4484
    %v4486 = vpop.f32.mrb[0].mxu0
    %v4487 = vpop.f32.mrb[0].mxu0
    %v4488 = vadd.f32 0.0, %v4487
    %v4489 = vpop.f32.mrb[0].mxu0
    %4490 = vmatprep.mubr.bf16.mxu0 0
    %4491 = vmatmul.mubr.bf16.gmra.mrb[0].mxu0 %v1067
    %v4492 = vpop.f32.mrb[0].mxu0
    %v4493 = vadd.f32 0.0, %v4492
    %v4494 = vpop.f32.mrb[0].mxu0
    %v4495 = vpop.f32.mrb[0].mxu0
    %v4496 = vadd.f32 0.0, %v4495
    %v4497 = vpop.f32.mrb[0].mxu0
    %4498 = vmatprep.mubr.bf16.mxu0 0
    %4499 = vmatmul.mubr.bf16.gmra.mrb[0].mxu0 %v1070
    %v4500 = vpop.f32.mrb[0].mxu0
    %v4501 = vadd.f32 0.0, %v4500
    %v4502 = vpop.f32.mrb[0].mxu0
    %v4503 = vpop.f32.mrb[0].mxu0
    %v4504 = vadd.f32 0.0, %v4503
    %v4505 = vpop.f32.mrb[0].mxu0
    %4506 = vmatprep.mubr.bf16.mxu0 0
    %4507 = vmatmul.mubr.bf16.gmra.mrb[0].mxu0 %v1073
    %v4508 = vpop.f32.mrb[0].mxu0
    %v4509 = vadd.f32 0.0, %v4508
    %v4510 = vpop.f32.mrb[0].mxu0
    %v4511 = vpop.f32.mrb[0].mxu0
    %v4512 = vadd.f32 0.0, %v4511
    %v4513 = vpop.f32.mrb[0].mxu0
    %4514 = vmatprep.mubr.bf16.mxu0 0
    %4515 = vmatmul.mubr.bf16.gmra.mrb[0].mxu0 %v1076
    %v4516 = vpop.f32.mrb[0].mxu0
    %v4517 = vadd.f32 0.0, %v4516
    %v4518 = vpop.f32.mrb[0].mxu0
    %v4519 = vpop.f32.mrb[0].mxu0
    %v4520 = vadd.f32 0.0, %v4519
    %v4521 = vpop.f32.mrb[0].mxu0
    %4522 = vmatprep.mubr.bf16.mxu0 0
    %4523 = vmatmul.mubr.bf16.gmra.mrb[0].mxu0 %v1079
    %v4524 = vpop.f32.mrb[0].mxu0
    %v4525 = vadd.f32 0.0, %v4524
    %v4526 = vpop.f32.mrb[0].mxu0
    %v4527 = vpop.f32.mrb[0].mxu0
    %v4528 = vadd.f32 0.0, %v4527
    %v4529 = vpop.f32.mrb[0].mxu0
    %4530 = vmatprep.mubr.bf16.mxu0 0
    %4531 = vmatmul.mubr.bf16.gmra.mrb[0].mxu0 %v1082
    %v4532 = vpop.f32.mrb[0].mxu0
    %v4533 = vadd.f32 0.0, %v4532
    %v4534 = vpop.f32.mrb[0].mxu0
    %v4535 = vpop.f32.mrb[0].mxu0
    %v4536 = vadd.f32 0.0, %v4535
    %v4537 = vpop.f32.mrb[0].mxu0
    %4538 = vmatprep.mubr.bf16.mxu0 0
    %4539 = vmatmul.mubr.bf16.gmra.mrb[0].mxu0 %v1085
    %v4540 = vpop.f32.mrb[0].mxu0
    %v4541 = vadd.f32 0.0, %v4540
    %v4542 = vpop.f32.mrb[0].mxu0
    %v4543 = vpop.f32.mrb[0].mxu0
    %v4544 = vadd.f32 0.0, %v4543
    %v4545 = vpop.f32.mrb[0].mxu0
    %4546 = vmatprep.mubr.bf16.mxu0 0
    %4547 = vmatmul.mubr.bf16.gmra.mrb[0].mxu0 %v3216
    %v4548 = vpop.f32.mrb[0].mxu0
    %v4549 = vadd.f32 0.0, %v4548
    %v4550 = vpop.f32.mrb[0].mxu0
    %v4551 = vpop.f32.mrb[0].mxu0
    %v4552 = vadd.f32 0.0, %v4551
    %v4553 = vpop.f32.mrb[0].mxu0
    %4554 = vmatprep.mubr.bf16.mxu0 0
    %4555 = vmatmul.mubr.bf16.gmra.mrb[0].mxu0 %v4394
    %v4556 = vpop.f32.mrb[0].mxu0
    %v4557 = vadd.f32 0.0, %v4556
    %v4558 = vpop.f32.mrb[0].mxu0
    %v4559 = vpop.f32.mrb[0].mxu0
    %v4560 = vadd.f32 0.0, %v4559
    %v4561 = vpop.f32.mrb[0].mxu0
    %4562 = vmatprep.mubr.bf16.mxu0 0
    %4563 = vmatmul.mubr.bf16.gmra.mrb[0].mxu0 %v1094
    %v4564 = vpop.f32.mrb[0].mxu0
    %v4565 = vadd.f32 0.0, %v4564
    %v4566 = vpop.f32.mrb[0].mxu0
    %v4567 = vpop.f32.mrb[0].mxu0
    %v4568 = vadd.f32 0.0, %v4567
    %v4569 = vpop.f32.mrb[0].mxu0
    %4570 = vmatprep.mubr.bf16.mxu0 0
    %4571 = vmatmul.mubr.bf16.gmra.mrb[0].mxu0 %v1097
    %v4572 = vpop.f32.mrb[0].mxu0
    %v4573 = vadd.f32 0.0, %v4572
    %v4574 = vpop.f32.mrb[0].mxu0
    %v4575 = vpop.f32.mrb[0].mxu0
    %v4576 = vadd.f32 0.0, %v4575
    %v4577 = vpop.f32.mrb[0].mxu0
    %4578 = vmatprep.mubr.bf16.mxu0 0
    %4579 = vmatmul.mubr.bf16.gmra.mrb[0].mxu0 %v1100
    %v4580 = vpop.f32.mrb[0].mxu0
    %v4581 = vadd.f32 0.0, %v4580
    %v4582 = vpop.f32.mrb[0].mxu0
    %v4583 = vpop.f32.mrb[0].mxu0
    %v4584 = vadd.f32 0.0, %v4583
    %v4585 = vpop.f32.mrb[0].mxu0
    %4586 = vmatprep.mubr.bf16.mxu0 0
    %4587 = vmatmul.mubr.bf16.gmra.mrb[0].mxu0 %v1103
    %v4588 = vpop.f32.mrb[0].mxu0
    %v4589 = vadd.f32 0.0, %v4588
    %v4590 = vpop.f32.mrb[0].mxu0
    %v4591 = vpop.f32.mrb[0].mxu0
    %v4592 = vadd.f32 0.0, %v4591
    %v4593 = vpop.f32.mrb[0].mxu0
    %4594 = vmatprep.mubr.bf16.mxu0 0
    %4595 = vmatmul.mubr.bf16.gmra.mrb[0].mxu0 %v1106
    %v4596 = vpop.f32.mrb[0].mxu0
    %v4597 = vadd.f32 0.0, %v4596
    %v4598 = vpop.f32.mrb[0].mxu0
    %v4599 = vpop.f32.mrb[0].mxu0
    %v4600 = vadd.f32 0.0, %v4599
    %v4601 = vpop.f32.mrb[0].mxu0
    %4602 = vmatprep.mubr.bf16.mxu0 0
    %4603 = vmatmul.mubr.bf16.gmra.mrb[0].mxu0 %v1109
    %v4604 = vpop.f32.mrb[0].mxu0
    %v4605 = vadd.f32 0.0, %v4604
    %v4606 = vpop.f32.mrb[0].mxu0
    %v4607 = vpop.f32.mrb[0].mxu0
    %v4608 = vadd.f32 0.0, %v4607
    %v4609 = vpop.f32.mrb[0].mxu0
    %4610 = vmatprep.mubr.bf16.mxu0 0
    %4611 = vmatmul.mubr.bf16.gmra.mrb[0].mxu0 %v1112
    %v4612 = vpop.f32.mrb[0].mxu0
    %v4613 = vadd.f32 0.0, %v4612
    %v4614 = vpop.f32.mrb[0].mxu0
    %v4615 = vpop.f32.mrb[0].mxu0
    %v4616 = vadd.f32 0.0, %v4615
    %v4617 = vpop.f32.mrb[0].mxu0
    %4618 = vmatprep.mubr.bf16.mxu0 0
    %4619 = vmatmul.mubr.bf16.gmra.mrb[0].mxu0 %v1115
    %v4620 = vpop.f32.mrb[0].mxu0
    %v4621 = vadd.f32 0.0, %v4620
    %v4622 = vpop.f32.mrb[0].mxu0
    %v4623 = vpop.f32.mrb[0].mxu0
    %v4624 = vadd.f32 0.0, %v4623
    %v4625 = vpop.f32.mrb[0].mxu0
    %4626 = vmatprep.mubr.bf16.mxu0 0
    %4627 = vmatmul.mubr.bf16.gmra.mrb[0].mxu0 %v1118
    %v4628 = vpop.f32.mrb[0].mxu0
    %v4629 = vadd.f32 0.0, %v4628
    %v4630 = vpop.f32.mrb[0].mxu0
    %v4631 = vpop.f32.mrb[0].mxu0
    %v4632 = vadd.f32 0.0, %v4631
    %v4633 = vpop.f32.mrb[0].mxu0
    %4634 = vmatprep.mubr.bf16.mxu0 0
    %4635 = vmatmul.mubr.bf16.gmra.mrb[0].mxu0 %v1121
    %v4636 = vpop.f32.mrb[0].mxu0
    %v4637 = vadd.f32 0.0, %v4636
    %v4638 = vpop.f32.mrb[0].mxu0
    %v4639 = vpop.f32.mrb[0].mxu0
    %v4640 = vadd.f32 0.0, %v4639
    %v4641 = vpop.f32.mrb[0].mxu0
    %4642 = vmatprep.mubr.bf16.mxu0 0
    %4643 = vmatmul.mubr.bf16.gmra.mrb[0].mxu0 %v1124
    %v4644 = vpop.f32.mrb[0].mxu0
    %v4645 = vadd.f32 0.0, %v4644
    %v4646 = vpop.f32.mrb[0].mxu0
    %v4647 = vpop.f32.mrb[0].mxu0
    %v4648 = vadd.f32 0.0, %v4647
    %v4649 = vpop.f32.mrb[0].mxu0
    %4650 = vmatprep.mubr.bf16.mxu0 0
    %4651 = vmatmul.mubr.bf16.gmra.mrb[0].mxu0 %v1127
    %v4652 = vpop.f32.mrb[0].mxu0
    %v4653 = vadd.f32 0.0, %v4652
    %v4654 = vpop.f32.mrb[0].mxu0
    %v4655 = vpop.f32.mrb[0].mxu0
    %v4656 = vadd.f32 0.0, %v4655
    %v4657 = vpop.f32.mrb[0].mxu0
    %4658 = vmatprep.mubr.bf16.mxu0 0
    %4659 = vmatmul.mubr.bf16.gmra.mrb[0].mxu0 %v1130
    %v4660 = vpop.f32.mrb[0].mxu0
    %v4661 = vadd.f32 0.0, %v4660
    %v4662 = vpop.f32.mrb[0].mxu0
    %v4663 = vpop.f32.mrb[0].mxu0
    %v4664 = vadd.f32 0.0, %v4663
    %v4665 = vpop.f32.mrb[0].mxu0
    %4666 = vmatprep.mubr.bf16.mxu0 0
    %4667 = vmatmul.mubr.bf16.gmra.mrb[0].mxu0 %v1133
    %v4668 = vpop.f32.mrb[0].mxu0
    %v4669 = vadd.f32 0.0, %v4668
    %v4670 = vpop.f32.mrb[0].mxu0
    %v4671 = vpop.f32.mrb[0].mxu0
    %v4672 = vadd.f32 0.0, %v4671
    %v4673 = vpop.f32.mrb[0].mxu0
    %4674 = vmatprep.mubr.bf16.mxu0 0
    %4675 = vmatmul.mubr.bf16.gmra.mrb[0].mxu0 %v3219
    %v4676 = vpop.f32.mrb[0].mxu0
    %v4677 = vadd.f32 0.0, %v4676
    %v4678 = vpop.f32.mrb[0].mxu0
    %v4679 = vpop.f32.mrb[0].mxu0
    %v4680 = vadd.f32 0.0, %v4679
    %v4681 = vpop.f32.mrb[0].mxu0
    %4682 = vmatprep.mubr.bf16.mxu0 0
    %4683 = vmatmul.mubr.bf16.gmra.mrb[0].mxu0 %v4397
    %v4684 = vpop.f32.mrb[0].mxu0
    %v4685 = vadd.f32 0.0, %v4684
    %v4686 = vpop.f32.mrb[0].mxu0
    %v4687 = vpop.f32.mrb[0].mxu0
    %v4688 = vadd.f32 0.0, %v4687
    %v4689 = vpop.f32.mrb[0].mxu0
    %4690 = vdwg.mxu0
    %v4691 = vadd.f32 %v4273, %v4437
    %v4692 = vadd.f32 %v4274, %v4440
    %v4693 = vadd.f32 %v4275, %v4445
    %v4694 = vadd.f32 %v4276, %v4448
    %v4695 = vadd.f32 %v4277, %v4453
    %v4696 = vadd.f32 %v4278, %v4456
    %v4697 = vadd.f32 %v4279, %v4461
    %v4698 = vadd.f32 %v4280, %v4464
    %v4699 = vadd.f32 %v4281, %v4469
    %v4700 = vadd.f32 %v4282, %v4472
    %v4701 = vadd.f32 %v4283, %v4477
    %v4702 = vadd.f32 %v4284, %v4480
    %v4703 = vadd.f32 %v4285, %v4485
    %v4704 = vadd.f32 %v4286, %v4488
    %v4705 = vadd.f32 %v4287, %v4493
    %v4706 = vadd.f32 %v4288, %v4496
    %v4707 = vadd.f32 %v4289, %v4501
    %v4708 = vadd.f32 %v4290, %v4504
    %v4709 = vadd.f32 %v4291, %v4509
    %v4710 = vadd.f32 %v4292, %v4512
    %v4711 = vadd.f32 %v4293, %v4517
    %v4712 = vadd.f32 %v4294, %v4520
    %v4713 = vadd.f32 %v4295, %v4525
    %v4714 = vadd.f32 %v4296, %v4528
    %v4715 = vadd.f32 %v4297, %v4533
    %v4716 = vadd.f32 %v4298, %v4536
    %v4717 = vadd.f32 %v4299, %v4541
    %v4718 = vadd.f32 %v4300, %v4544
    %v4719 = vadd.f32 %v4301, %v4549
    %v4720 = vadd.f32 %v4302, %v4552
    %v4721 = vadd.f32 %v4303, %v4557
    %v4722 = vadd.f32 %v4304, %v4560
    %v4723 = vadd.f32 %v4305, %v4565
    %v4724 = vadd.f32 %v4306, %v4568
    %v4725 = vadd.f32 %v4307, %v4573
    %v4726 = vadd.f32 %v4308, %v4576
    %v4727 = vadd.f32 %v4309, %v4581
    %v4728 = vadd.f32 %v4310, %v4584
    %v4729 = vadd.f32 %v4311, %v4589
    %v4730 = vadd.f32 %v4312, %v4592
    %v4731 = vadd.f32 %v4313, %v4597
    %v4732 = vadd.f32 %v4314, %v4600
    %v4733 = vadd.f32 %v4315, %v4605
    %v4734 = vadd.f32 %v4316, %v4608
    %v4735 = vadd.f32 %v4317, %v4613
    %v4736 = vadd.f32 %v4318, %v4616
    %v4737 = vadd.f32 %v4319, %v4621
    %v4738 = vadd.f32 %v4320, %v4624
    %v4739 = vadd.f32 %v4321, %v4629
    %v4740 = vadd.f32 %v4322, %v4632
    %v4741 = vadd.f32 %v4323, %v4637
    %v4742 = vadd.f32 %v4324, %v4640
    %v4743 = vadd.f32 %v4325, %v4645
    %v4744 = vadd.f32 %v4326, %v4648
    %v4745 = vadd.f32 %v4327, %v4653
    %v4746 = vadd.f32 %v4328, %v4656
    %v4747 = vadd.f32 %v4329, %v4661
    %v4748 = vadd.f32 %v4330, %v4664
    %v4749 = vadd.f32 %v4331, %v4669
    %v4750 = vadd.f32 %v4332, %v4672
    %v4751 = vadd.f32 %v4333, %v4677
    %v4752 = vadd.f32 %v4334, %v4680
    %v4753 = vadd.f32 %v4335, %v4685
    %v4754 = vadd.f32 %v4336, %v4688
    %v4757 = vrot.slane %v111, 5
    %v4758 = vrot.slane %v4757, 4
    %v4759 = vrot.slane %v112, 5
    %v4760 = vsel %vm2010, %v4758, %v4759
    %v4761 = vrot.slane %v4759, 4
    %v4762 = vrot.slane %v113, 5
    %v4763 = vsel %vm2010, %v4761, %v4762
    %v4764 = vrot.slane %v165, 5
    %v4765 = vrot.slane %v4764, 4
    %v4766 = vrot.slane %v166, 5
    %v4767 = vsel %vm2010, %v4765, %v4766
    %v4768 = vrot.slane %v4766, 4
    %v4769 = vrot.slane %v167, 5
    %v4770 = vsel %vm2010, %v4768, %v4769
    %s4771 = scalar_lea.vmem %s1, 16
    %v4772 = vld [vmem:[%s4771] sm:$0x3]
    %v4773 = vunpack.c.l.b16 %v4760
    %v4774 = vunpack.c.l.b16 %v4763
    %v4775 = vunpack.c.l.b16 %v4767
    %v4776 = vunpack.c.l.b16 %v4770
    %v4777 = vpack.c.b16 %v4774, %v4773
    %v4778 = vpack.c.b16 %v4776, %v4775
    %v4780 = vsel %vm1038, %v4777, 0
    %v4783 = vsel %vm1038, %v4778, 0
    %v4786 = vsel %vm1135, %v4772, 0
    %4788 = vmatprep.subr.bf16.mxu0 0
    %4789 = vmatpush1.bf16.msra.mxu0 %v4786
    %4790 = vmatprep.subr.bf16.mxu0 0
    %4791 = vmatpush1.bf16.msra.mxu0 0
    %4792 = vmatprep.subr.bf16.mxu0 0
    %4793 = vmatpush1.bf16.msra.mxu0 0
    %4794 = vmatprep.subr.bf16.mxu0 0
    %4795 = vmatpush1.bf16.msra.mxu0 0
    %4796 = vmatprep.subr.bf16.mxu0 0
    %4797 = vmatpush1.bf16.msra.mxu0 0
    %4798 = vmatprep.subr.bf16.mxu0 0
    %4799 = vmatpush1.bf16.msra.mxu0 0
    %4800 = vmatprep.subr.bf16.mxu0 0
    %4801 = vmatpush1.bf16.msra.mxu0 0
    %4802 = vmatprep.subr.bf16.mxu0 0
    %4803 = vmatpush1.bf16.msra.mxu0 0
    %4804 = vmatprep.subr.bf16.mxu0 0
    %4805 = vmatpush1.bf16.msra.mxu0 0
    %4806 = vmatprep.subr.bf16.mxu0 0
    %4807 = vmatpush1.bf16.msra.mxu0 0
    %4808 = vmatprep.subr.bf16.mxu0 0
    %4809 = vmatpush1.bf16.msra.mxu0 0
    %4810 = vmatprep.subr.bf16.mxu0 0
    %4811 = vmatpush1.bf16.msra.mxu0 0
    %4812 = vmatprep.subr.bf16.mxu0 0
    %4813 = vmatpush1.bf16.msra.mxu0 0
    %4814 = vmatprep.subr.bf16.mxu0 0
    %4815 = vmatpush1.bf16.msra.mxu0 0
    %4816 = vmatprep.subr.bf16.mxu0 0
    %4817 = vmatpush1.bf16.msra.mxu0 0
    %4818 = vmatprep.subr.bf16.mxu0 0
    %4819 = vmatpush1.bf16.msra.mxu0 0
    %4820 = vmatprep.mubr.bf16.mxu0 0
    %4821 = vmatmul.mubr.bf16.gmra.mrb[0].mxu0 %v2340
    %v4822 = vpop.f32.mrb[0].mxu0
    %v4823 = vadd.f32 0.0, %v4822
    %v4824 = vpop.f32.mrb[0].mxu0
    %v4825 = vpop.f32.mrb[0].mxu0
    %v4826 = vadd.f32 0.0, %v4825
    %v4827 = vpop.f32.mrb[0].mxu0
    %4828 = vmatprep.mubr.bf16.mxu0 0
    %4829 = vmatmul.mubr.bf16.gmra.mrb[0].mxu0 %v2343
    %v4830 = vpop.f32.mrb[0].mxu0
    %v4831 = vadd.f32 0.0, %v4830
    %v4832 = vpop.f32.mrb[0].mxu0
    %v4833 = vpop.f32.mrb[0].mxu0
    %v4834 = vadd.f32 0.0, %v4833
    %v4835 = vpop.f32.mrb[0].mxu0
    %4836 = vmatprep.mubr.bf16.mxu0 0
    %4837 = vmatmul.mubr.bf16.gmra.mrb[0].mxu0 %v2346
    %v4838 = vpop.f32.mrb[0].mxu0
    %v4839 = vadd.f32 0.0, %v4838
    %v4840 = vpop.f32.mrb[0].mxu0
    %v4841 = vpop.f32.mrb[0].mxu0
    %v4842 = vadd.f32 0.0, %v4841
    %v4843 = vpop.f32.mrb[0].mxu0
    %4844 = vmatprep.mubr.bf16.mxu0 0
    %4845 = vmatmul.mubr.bf16.gmra.mrb[0].mxu0 %v2349
    %v4846 = vpop.f32.mrb[0].mxu0
    %v4847 = vadd.f32 0.0, %v4846
    %v4848 = vpop.f32.mrb[0].mxu0
    %v4849 = vpop.f32.mrb[0].mxu0
    %v4850 = vadd.f32 0.0, %v4849
    %v4851 = vpop.f32.mrb[0].mxu0
    %4852 = vmatprep.mubr.bf16.mxu0 0
    %4853 = vmatmul.mubr.bf16.gmra.mrb[0].mxu0 %v2352
    %v4854 = vpop.f32.mrb[0].mxu0
    %v4855 = vadd.f32 0.0, %v4854
    %v4856 = vpop.f32.mrb[0].mxu0
    %v4857 = vpop.f32.mrb[0].mxu0
    %v4858 = vadd.f32 0.0, %v4857
    %v4859 = vpop.f32.mrb[0].mxu0
    %4860 = vmatprep.mubr.bf16.mxu0 0
    %4861 = vmatmul.mubr.bf16.gmra.mrb[0].mxu0 %v2355
    %v4862 = vpop.f32.mrb[0].mxu0
    %v4863 = vadd.f32 0.0, %v4862
    %v4864 = vpop.f32.mrb[0].mxu0
    %v4865 = vpop.f32.mrb[0].mxu0
    %v4866 = vadd.f32 0.0, %v4865
    %v4867 = vpop.f32.mrb[0].mxu0
    %4868 = vmatprep.mubr.bf16.mxu0 0
    %4869 = vmatmul.mubr.bf16.gmra.mrb[0].mxu0 %v2358
    %v4870 = vpop.f32.mrb[0].mxu0
    %v4871 = vadd.f32 0.0, %v4870
    %v4872 = vpop.f32.mrb[0].mxu0
    %v4873 = vpop.f32.mrb[0].mxu0
    %v4874 = vadd.f32 0.0, %v4873
    %v4875 = vpop.f32.mrb[0].mxu0
    %4876 = vmatprep.mubr.bf16.mxu0 0
    %4877 = vmatmul.mubr.bf16.gmra.mrb[0].mxu0 %v2361
    %v4878 = vpop.f32.mrb[0].mxu0
    %v4879 = vadd.f32 0.0, %v4878
    %v4880 = vpop.f32.mrb[0].mxu0
    %v4881 = vpop.f32.mrb[0].mxu0
    %v4882 = vadd.f32 0.0, %v4881
    %v4883 = vpop.f32.mrb[0].mxu0
    %4884 = vmatprep.mubr.bf16.mxu0 0
    %4885 = vmatmul.mubr.bf16.gmra.mrb[0].mxu0 %v2364
    %v4886 = vpop.f32.mrb[0].mxu0
    %v4887 = vadd.f32 0.0, %v4886
    %v4888 = vpop.f32.mrb[0].mxu0
    %v4889 = vpop.f32.mrb[0].mxu0
    %v4890 = vadd.f32 0.0, %v4889
    %v4891 = vpop.f32.mrb[0].mxu0
    %4892 = vmatprep.mubr.bf16.mxu0 0
    %4893 = vmatmul.mubr.bf16.gmra.mrb[0].mxu0 %v2367
    %v4894 = vpop.f32.mrb[0].mxu0
    %v4895 = vadd.f32 0.0, %v4894
    %v4896 = vpop.f32.mrb[0].mxu0
    %v4897 = vpop.f32.mrb[0].mxu0
    %v4898 = vadd.f32 0.0, %v4897
    %v4899 = vpop.f32.mrb[0].mxu0
    %4900 = vmatprep.mubr.bf16.mxu0 0
    %4901 = vmatmul.mubr.bf16.gmra.mrb[0].mxu0 %v2370
    %v4902 = vpop.f32.mrb[0].mxu0
    %v4903 = vadd.f32 0.0, %v4902
    %v4904 = vpop.f32.mrb[0].mxu0
    %v4905 = vpop.f32.mrb[0].mxu0
    %v4906 = vadd.f32 0.0, %v4905
    %v4907 = vpop.f32.mrb[0].mxu0
    %4908 = vmatprep.mubr.bf16.mxu0 0
    %4909 = vmatmul.mubr.bf16.gmra.mrb[0].mxu0 %v2373
    %v4910 = vpop.f32.mrb[0].mxu0
    %v4911 = vadd.f32 0.0, %v4910
    %v4912 = vpop.f32.mrb[0].mxu0
    %v4913 = vpop.f32.mrb[0].mxu0
    %v4914 = vadd.f32 0.0, %v4913
    %v4915 = vpop.f32.mrb[0].mxu0
    %4916 = vmatprep.mubr.bf16.mxu0 0
    %4917 = vmatmul.mubr.bf16.gmra.mrb[0].mxu0 %v2376
    %v4918 = vpop.f32.mrb[0].mxu0
    %v4919 = vadd.f32 0.0, %v4918
    %v4920 = vpop.f32.mrb[0].mxu0
    %v4921 = vpop.f32.mrb[0].mxu0
    %v4922 = vadd.f32 0.0, %v4921
    %v4923 = vpop.f32.mrb[0].mxu0
    %4924 = vmatprep.mubr.bf16.mxu0 0
    %4925 = vmatmul.mubr.bf16.gmra.mrb[0].mxu0 %v2379
    %v4926 = vpop.f32.mrb[0].mxu0
    %v4927 = vadd.f32 0.0, %v4926
    %v4928 = vpop.f32.mrb[0].mxu0
    %v4929 = vpop.f32.mrb[0].mxu0
    %v4930 = vadd.f32 0.0, %v4929
    %v4931 = vpop.f32.mrb[0].mxu0
    %4932 = vmatprep.mubr.bf16.mxu0 0
    %4933 = vmatmul.mubr.bf16.gmra.mrb[0].mxu0 %v3602
    %v4934 = vpop.f32.mrb[0].mxu0
    %v4935 = vadd.f32 0.0, %v4934
    %v4936 = vpop.f32.mrb[0].mxu0
    %v4937 = vpop.f32.mrb[0].mxu0
    %v4938 = vadd.f32 0.0, %v4937
    %v4939 = vpop.f32.mrb[0].mxu0
    %4940 = vmatprep.mubr.bf16.mxu0 0
    %4941 = vmatmul.mubr.bf16.gmra.mrb[0].mxu0 %v4780
    %v4942 = vpop.f32.mrb[0].mxu0
    %v4943 = vadd.f32 0.0, %v4942
    %v4944 = vpop.f32.mrb[0].mxu0
    %v4945 = vpop.f32.mrb[0].mxu0
    %v4946 = vadd.f32 0.0, %v4945
    %v4947 = vpop.f32.mrb[0].mxu0
    %4948 = vmatprep.mubr.bf16.mxu0 0
    %4949 = vmatmul.mubr.bf16.gmra.mrb[0].mxu0 %v2388
    %v4950 = vpop.f32.mrb[0].mxu0
    %v4951 = vadd.f32 0.0, %v4950
    %v4952 = vpop.f32.mrb[0].mxu0
    %v4953 = vpop.f32.mrb[0].mxu0
    %v4954 = vadd.f32 0.0, %v4953
    %v4955 = vpop.f32.mrb[0].mxu0
    %4956 = vmatprep.mubr.bf16.mxu0 0
    %4957 = vmatmul.mubr.bf16.gmra.mrb[0].mxu0 %v2391
    %v4958 = vpop.f32.mrb[0].mxu0
    %v4959 = vadd.f32 0.0, %v4958
    %v4960 = vpop.f32.mrb[0].mxu0
    %v4961 = vpop.f32.mrb[0].mxu0
    %v4962 = vadd.f32 0.0, %v4961
    %v4963 = vpop.f32.mrb[0].mxu0
    %4964 = vmatprep.mubr.bf16.mxu0 0
    %4965 = vmatmul.mubr.bf16.gmra.mrb[0].mxu0 %v2394
    %v4966 = vpop.f32.mrb[0].mxu0
    %v4967 = vadd.f32 0.0, %v4966
    %v4968 = vpop.f32.mrb[0].mxu0
    %v4969 = vpop.f32.mrb[0].mxu0
    %v4970 = vadd.f32 0.0, %v4969
    %v4971 = vpop.f32.mrb[0].mxu0
    %4972 = vmatprep.mubr.bf16.mxu0 0
    %4973 = vmatmul.mubr.bf16.gmra.mrb[0].mxu0 %v2397
    %v4974 = vpop.f32.mrb[0].mxu0
    %v4975 = vadd.f32 0.0, %v4974
    %v4976 = vpop.f32.mrb[0].mxu0
    %v4977 = vpop.f32.mrb[0].mxu0
    %v4978 = vadd.f32 0.0, %v4977
    %v4979 = vpop.f32.mrb[0].mxu0
    %4980 = vmatprep.mubr.bf16.mxu0 0
    %4981 = vmatmul.mubr.bf16.gmra.mrb[0].mxu0 %v2400
    %v4982 = vpop.f32.mrb[0].mxu0
    %v4983 = vadd.f32 0.0, %v4982
    %v4984 = vpop.f32.mrb[0].mxu0
    %v4985 = vpop.f32.mrb[0].mxu0
    %v4986 = vadd.f32 0.0, %v4985
    %v4987 = vpop.f32.mrb[0].mxu0
    %4988 = vmatprep.mubr.bf16.mxu0 0
    %4989 = vmatmul.mubr.bf16.gmra.mrb[0].mxu0 %v2403
    %v4990 = vpop.f32.mrb[0].mxu0
    %v4991 = vadd.f32 0.0, %v4990
    %v4992 = vpop.f32.mrb[0].mxu0
    %v4993 = vpop.f32.mrb[0].mxu0
    %v4994 = vadd.f32 0.0, %v4993
    %v4995 = vpop.f32.mrb[0].mxu0
    %4996 = vmatprep.mubr.bf16.mxu0 0
    %4997 = vmatmul.mubr.bf16.gmra.mrb[0].mxu0 %v2406
    %v4998 = vpop.f32.mrb[0].mxu0
    %v4999 = vadd.f32 0.0, %v4998
    %v5000 = vpop.f32.mrb[0].mxu0
    %v5001 = vpop.f32.mrb[0].mxu0
    %v5002 = vadd.f32 0.0, %v5001
    %v5003 = vpop.f32.mrb[0].mxu0
    %5004 = vmatprep.mubr.bf16.mxu0 0
    %5005 = vmatmul.mubr.bf16.gmra.mrb[0].mxu0 %v2409
    %v5006 = vpop.f32.mrb[0].mxu0
    %v5007 = vadd.f32 0.0, %v5006
    %v5008 = vpop.f32.mrb[0].mxu0
    %v5009 = vpop.f32.mrb[0].mxu0
    %v5010 = vadd.f32 0.0, %v5009
    %v5011 = vpop.f32.mrb[0].mxu0
    %5012 = vmatprep.mubr.bf16.mxu0 0
    %5013 = vmatmul.mubr.bf16.gmra.mrb[0].mxu0 %v2412
    %v5014 = vpop.f32.mrb[0].mxu0
    %v5015 = vadd.f32 0.0, %v5014
    %v5016 = vpop.f32.mrb[0].mxu0
    %v5017 = vpop.f32.mrb[0].mxu0
    %v5018 = vadd.f32 0.0, %v5017
    %v5019 = vpop.f32.mrb[0].mxu0
    %5020 = vmatprep.mubr.bf16.mxu0 0
    %5021 = vmatmul.mubr.bf16.gmra.mrb[0].mxu0 %v2415
    %v5022 = vpop.f32.mrb[0].mxu0
    %v5023 = vadd.f32 0.0, %v5022
    %v5024 = vpop.f32.mrb[0].mxu0
    %v5025 = vpop.f32.mrb[0].mxu0
    %v5026 = vadd.f32 0.0, %v5025
    %v5027 = vpop.f32.mrb[0].mxu0
    %5028 = vmatprep.mubr.bf16.mxu0 0
    %5029 = vmatmul.mubr.bf16.gmra.mrb[0].mxu0 %v2418
    %v5030 = vpop.f32.mrb[0].mxu0
    %v5031 = vadd.f32 0.0, %v5030
    %v5032 = vpop.f32.mrb[0].mxu0
    %v5033 = vpop.f32.mrb[0].mxu0
    %v5034 = vadd.f32 0.0, %v5033
    %v5035 = vpop.f32.mrb[0].mxu0
    %5036 = vmatprep.mubr.bf16.mxu0 0
    %5037 = vmatmul.mubr.bf16.gmra.mrb[0].mxu0 %v2421
    %v5038 = vpop.f32.mrb[0].mxu0
    %v5039 = vadd.f32 0.0, %v5038
    %v5040 = vpop.f32.mrb[0].mxu0
    %v5041 = vpop.f32.mrb[0].mxu0
    %v5042 = vadd.f32 0.0, %v5041
    %v5043 = vpop.f32.mrb[0].mxu0
    %5044 = vmatprep.mubr.bf16.mxu0 0
    %5045 = vmatmul.mubr.bf16.gmra.mrb[0].mxu0 %v2424
    %v5046 = vpop.f32.mrb[0].mxu0
    %v5047 = vadd.f32 0.0, %v5046
    %v5048 = vpop.f32.mrb[0].mxu0
    %v5049 = vpop.f32.mrb[0].mxu0
    %v5050 = vadd.f32 0.0, %v5049
    %v5051 = vpop.f32.mrb[0].mxu0
    %5052 = vmatprep.mubr.bf16.mxu0 0
    %5053 = vmatmul.mubr.bf16.gmra.mrb[0].mxu0 %v2427
    %v5054 = vpop.f32.mrb[0].mxu0
    %v5055 = vadd.f32 0.0, %v5054
    %v5056 = vpop.f32.mrb[0].mxu0
    %v5057 = vpop.f32.mrb[0].mxu0
    %v5058 = vadd.f32 0.0, %v5057
    %v5059 = vpop.f32.mrb[0].mxu0
    %5060 = vmatprep.mubr.bf16.mxu0 0
    %5061 = vmatmul.mubr.bf16.gmra.mrb[0].mxu0 %v3605
    %v5062 = vpop.f32.mrb[0].mxu0
    %v5063 = vadd.f32 0.0, %v5062
    %v5064 = vpop.f32.mrb[0].mxu0
    %v5065 = vpop.f32.mrb[0].mxu0
    %v5066 = vadd.f32 0.0, %v5065
    %v5067 = vpop.f32.mrb[0].mxu0
    %5068 = vmatprep.mubr.bf16.mxu0 0
    %5069 = vmatmul.mubr.bf16.gmra.mrb[0].mxu0 %v4783
    %v5070 = vpop.f32.mrb[0].mxu0
    %v5071 = vadd.f32 0.0, %v5070
    %v5072 = vpop.f32.mrb[0].mxu0
    %v5073 = vpop.f32.mrb[0].mxu0
    %v5074 = vadd.f32 0.0, %v5073
    %v5075 = vpop.f32.mrb[0].mxu0
    %5076 = vdwg.mxu0
    %v5077 = vadd.f32 %v4691, %v4823
    %v5078 = vadd.f32 %v4692, %v4826
    %v5079 = vadd.f32 %v4693, %v4831
    %v5080 = vadd.f32 %v4694, %v4834
    %v5081 = vadd.f32 %v4695, %v4839
    %v5082 = vadd.f32 %v4696, %v4842
    %v5083 = vadd.f32 %v4697, %v4847
    %v5084 = vadd.f32 %v4698, %v4850
    %v5085 = vadd.f32 %v4699, %v4855
    %v5086 = vadd.f32 %v4700, %v4858
    %v5087 = vadd.f32 %v4701, %v4863
    %v5088 = vadd.f32 %v4702, %v4866
    %v5089 = vadd.f32 %v4703, %v4871
    %v5090 = vadd.f32 %v4704, %v4874
    %v5091 = vadd.f32 %v4705, %v4879
    %v5092 = vadd.f32 %v4706, %v4882
    %v5093 = vadd.f32 %v4707, %v4887
    %v5094 = vadd.f32 %v4708, %v4890
    %v5095 = vadd.f32 %v4709, %v4895
    %v5096 = vadd.f32 %v4710, %v4898
    %v5097 = vadd.f32 %v4711, %v4903
    %v5098 = vadd.f32 %v4712, %v4906
    %v5099 = vadd.f32 %v4713, %v4911
    %v5100 = vadd.f32 %v4714, %v4914
    %v5101 = vadd.f32 %v4715, %v4919
    %v5102 = vadd.f32 %v4716, %v4922
    %v5103 = vadd.f32 %v4717, %v4927
    %v5104 = vadd.f32 %v4718, %v4930
    %v5105 = vadd.f32 %v4719, %v4935
    %v5106 = vadd.f32 %v4720, %v4938
    %v5107 = vadd.f32 %v4721, %v4943
    %v5108 = vadd.f32 %v4722, %v4946
    %v5109 = vadd.f32 %v4723, %v4951
    %v5110 = vadd.f32 %v4724, %v4954
    %v5111 = vadd.f32 %v4725, %v4959
    %v5112 = vadd.f32 %v4726, %v4962
    %v5113 = vadd.f32 %v4727, %v4967
    %v5114 = vadd.f32 %v4728, %v4970
    %v5115 = vadd.f32 %v4729, %v4975
    %v5116 = vadd.f32 %v4730, %v4978
    %v5117 = vadd.f32 %v4731, %v4983
    %v5118 = vadd.f32 %v4732, %v4986
    %v5119 = vadd.f32 %v4733, %v4991
    %v5120 = vadd.f32 %v4734, %v4994
    %v5121 = vadd.f32 %v4735, %v4999
    %v5122 = vadd.f32 %v4736, %v5002
    %v5123 = vadd.f32 %v4737, %v5007
    %v5124 = vadd.f32 %v4738, %v5010
    %v5125 = vadd.f32 %v4739, %v5015
    %v5126 = vadd.f32 %v4740, %v5018
    %v5127 = vadd.f32 %v4741, %v5023
    %v5128 = vadd.f32 %v4742, %v5026
    %v5129 = vadd.f32 %v4743, %v5031
    %v5130 = vadd.f32 %v4744, %v5034
    %v5131 = vadd.f32 %v4745, %v5039
    %v5132 = vadd.f32 %v4746, %v5042
    %v5133 = vadd.f32 %v4747, %v5047
    %v5134 = vadd.f32 %v4748, %v5050
    %v5135 = vadd.f32 %v4749, %v5055
    %v5136 = vadd.f32 %v4750, %v5058
    %v5137 = vadd.f32 %v4751, %v5063
    %v5138 = vadd.f32 %v4752, %v5066
    %v5139 = vadd.f32 %v4753, %v5071
    %v5140 = vadd.f32 %v4754, %v5074
    %v5141 = vld [vmem:[%s2] sm:$0x1]
    %v5143 = vlaneseq
    %v5144 = vshrl.u32 %v5143, 7
    %v5145 = vsub.s32 0, %v5144
    %v5146 = vrot.slane %v5141, %v5145
    %v5148 = vadd.f32 %v5077, %v5146
    %v5149 = vadd.f32 %v5078, %v5146
    %v5150 = vadd.f32 %v5079, %v5146
    %v5151 = vadd.f32 %v5080, %v5146
    %v5152 = vadd.f32 %v5081, %v5146
    %v5153 = vadd.f32 %v5082, %v5146
    %v5154 = vadd.f32 %v5083, %v5146
    %v5155 = vadd.f32 %v5084, %v5146
    %v5156 = vadd.f32 %v5085, %v5146
    %v5157 = vadd.f32 %v5086, %v5146
    %v5158 = vadd.f32 %v5087, %v5146
    %v5159 = vadd.f32 %v5088, %v5146
    %v5160 = vadd.f32 %v5089, %v5146
    %v5161 = vadd.f32 %v5090, %v5146
    %v5162 = vadd.f32 %v5091, %v5146
    %v5163 = vadd.f32 %v5092, %v5146
    %v5164 = vadd.f32 %v5093, %v5146
    %v5165 = vadd.f32 %v5094, %v5146
    %v5166 = vadd.f32 %v5095, %v5146
    %v5167 = vadd.f32 %v5096, %v5146
    %v5168 = vadd.f32 %v5097, %v5146
    %v5169 = vadd.f32 %v5098, %v5146
    %v5170 = vadd.f32 %v5099, %v5146
    %v5171 = vadd.f32 %v5100, %v5146
    %v5172 = vadd.f32 %v5101, %v5146
    %v5173 = vadd.f32 %v5102, %v5146
    %v5174 = vadd.f32 %v5103, %v5146
    %v5175 = vadd.f32 %v5104, %v5146
    %v5176 = vadd.f32 %v5105, %v5146
    %v5177 = vadd.f32 %v5106, %v5146
    %v5178 = vadd.f32 %v5107, %v5146
    %v5179 = vadd.f32 %v5108, %v5146
    %v5180 = vadd.f32 %v5109, %v5146
    %v5181 = vadd.f32 %v5110, %v5146
    %v5182 = vadd.f32 %v5111, %v5146
    %v5183 = vadd.f32 %v5112, %v5146
    %v5184 = vadd.f32 %v5113, %v5146
    %v5185 = vadd.f32 %v5114, %v5146
    %v5186 = vadd.f32 %v5115, %v5146
    %v5187 = vadd.f32 %v5116, %v5146
    %v5188 = vadd.f32 %v5117, %v5146
    %v5189 = vadd.f32 %v5118, %v5146
    %v5190 = vadd.f32 %v5119, %v5146
    %v5191 = vadd.f32 %v5120, %v5146
    %v5192 = vadd.f32 %v5121, %v5146
    %v5193 = vadd.f32 %v5122, %v5146
    %v5194 = vadd.f32 %v5123, %v5146
    %v5195 = vadd.f32 %v5124, %v5146
    %v5196 = vadd.f32 %v5125, %v5146
    %v5197 = vadd.f32 %v5126, %v5146
    %v5198 = vadd.f32 %v5127, %v5146
    %v5199 = vadd.f32 %v5128, %v5146
    %v5200 = vadd.f32 %v5129, %v5146
    %v5201 = vadd.f32 %v5130, %v5146
    %v5202 = vadd.f32 %v5131, %v5146
    %v5203 = vadd.f32 %v5132, %v5146
    %v5204 = vadd.f32 %v5133, %v5146
    %v5205 = vadd.f32 %v5134, %v5146
    %v5206 = vadd.f32 %v5135, %v5146
    %v5207 = vadd.f32 %v5136, %v5146
    %v5208 = vadd.f32 %v5137, %v5146
    %v5209 = vadd.f32 %v5138, %v5146
    %v5210 = vadd.f32 %v5139, %v5146
    %v5211 = vadd.f32 %v5140, %v5146
    %v5212 = vadd.f32 %v5148, %v5149
    %v5213 = vadd.f32 %v5212, %v5150
    %v5214 = vadd.f32 %v5213, %v5151
    %v5215 = vadd.f32 %v5214, %v5152
    %v5216 = vadd.f32 %v5215, %v5153
    %v5217 = vadd.f32 %v5216, %v5154
    %v5218 = vadd.f32 %v5217, %v5155
    %v5219 = vadd.f32 %v5218, %v5156
    %v5220 = vadd.f32 %v5219, %v5157
    %v5221 = vadd.f32 %v5220, %v5158
    %v5222 = vadd.f32 %v5221, %v5159
    %v5223 = vadd.f32 %v5222, %v5160
    %v5224 = vadd.f32 %v5223, %v5161
    %v5225 = vadd.f32 %v5224, %v5162
    %v5226 = vadd.f32 %v5225, %v5163
    %v5227 = vadd.f32 %v5226, %v5164
    %v5228 = vadd.f32 %v5227, %v5165
    %v5229 = vadd.f32 %v5228, %v5166
    %v5230 = vadd.f32 %v5229, %v5167
    %v5231 = vadd.f32 %v5230, %v5168
    %v5232 = vadd.f32 %v5231, %v5169
    %v5233 = vadd.f32 %v5232, %v5170
    %v5234 = vadd.f32 %v5233, %v5171
    %v5235 = vadd.f32 %v5234, %v5172
    %v5236 = vadd.f32 %v5235, %v5173
    %v5237 = vadd.f32 %v5236, %v5174
    %v5238 = vadd.f32 %v5237, %v5175
    %v5239 = vadd.f32 %v5238, %v5176
    %v5240 = vadd.f32 %v5239, %v5177
    %v5241 = vadd.f32 %v5240, %v5178
    %v5242 = vadd.f32 %v5241, %v5179
    %v5243 = vadd.f32 %v5242, %v5180
    %v5244 = vadd.f32 %v5243, %v5181
    %v5245 = vadd.f32 %v5244, %v5182
    %v5246 = vadd.f32 %v5245, %v5183
    %v5247 = vadd.f32 %v5246, %v5184
    %v5248 = vadd.f32 %v5247, %v5185
    %v5249 = vadd.f32 %v5248, %v5186
    %v5250 = vadd.f32 %v5249, %v5187
    %v5251 = vadd.f32 %v5250, %v5188
    %v5252 = vadd.f32 %v5251, %v5189
    %v5253 = vadd.f32 %v5252, %v5190
    %v5254 = vadd.f32 %v5253, %v5191
    %v5255 = vadd.f32 %v5254, %v5192
    %v5256 = vadd.f32 %v5255, %v5193
    %v5257 = vadd.f32 %v5256, %v5194
    %v5258 = vadd.f32 %v5257, %v5195
    %v5259 = vadd.f32 %v5258, %v5196
    %v5260 = vadd.f32 %v5259, %v5197
    %v5261 = vadd.f32 %v5260, %v5198
    %v5262 = vadd.f32 %v5261, %v5199
    %v5263 = vadd.f32 %v5262, %v5200
    %v5264 = vadd.f32 %v5263, %v5201
    %v5265 = vadd.f32 %v5264, %v5202
    %v5266 = vadd.f32 %v5265, %v5203
    %v5267 = vadd.f32 %v5266, %v5204
    %v5268 = vadd.f32 %v5267, %v5205
    %v5269 = vadd.f32 %v5268, %v5206
    %v5270 = vadd.f32 %v5269, %v5207
    %v5271 = vadd.f32 %v5270, %v5208
    %v5272 = vadd.f32 %v5271, %v5209
    %v5273 = vadd.f32 %v5272, %v5210
    %v5274 = vadd.f32 %v5273, %v5211
    %v5275 = vrot.slane %v5274, 4
    %v5276 = vadd.f32 %v5274, %v5275
    %v5277 = vrot.slane %v5276, 2
    %v5278 = vadd.f32 %v5276, %v5277
    %v5279 = vrot.slane %v5278, 1
    %v5280 = vadd.f32 %v5278, %v5279
    %v5281 = vmul.f32 %v5280, 0.001953125
    %v5282 = vmul.f32 %v5148, %v5148
    %v5283 = vmul.f32 %v5149, %v5149
    %v5284 = vmul.f32 %v5150, %v5150
    %v5285 = vmul.f32 %v5151, %v5151
    %v5286 = vmul.f32 %v5152, %v5152
    %v5287 = vmul.f32 %v5153, %v5153
    %v5288 = vmul.f32 %v5154, %v5154
    %v5289 = vmul.f32 %v5155, %v5155
    %v5290 = vmul.f32 %v5156, %v5156
    %v5291 = vmul.f32 %v5157, %v5157
    %v5292 = vmul.f32 %v5158, %v5158
    %v5293 = vmul.f32 %v5159, %v5159
    %v5294 = vmul.f32 %v5160, %v5160
    %v5295 = vmul.f32 %v5161, %v5161
    %v5296 = vmul.f32 %v5162, %v5162
    %v5297 = vmul.f32 %v5163, %v5163
    %v5298 = vmul.f32 %v5164, %v5164
    %v5299 = vmul.f32 %v5165, %v5165
    %v5300 = vmul.f32 %v5166, %v5166
    %v5301 = vmul.f32 %v5167, %v5167
    %v5302 = vmul.f32 %v5168, %v5168
    %v5303 = vmul.f32 %v5169, %v5169
    %v5304 = vmul.f32 %v5170, %v5170
    %v5305 = vmul.f32 %v5171, %v5171
    %v5306 = vmul.f32 %v5172, %v5172
    %v5307 = vmul.f32 %v5173, %v5173
    %v5308 = vmul.f32 %v5174, %v5174
    %v5309 = vmul.f32 %v5175, %v5175
    %v5310 = vmul.f32 %v5176, %v5176
    %v5311 = vmul.f32 %v5177, %v5177
    %v5312 = vmul.f32 %v5178, %v5178
    %v5313 = vmul.f32 %v5179, %v5179
    %v5314 = vmul.f32 %v5180, %v5180
    %v5315 = vmul.f32 %v5181, %v5181
    %v5316 = vmul.f32 %v5182, %v5182
    %v5317 = vmul.f32 %v5183, %v5183
    %v5318 = vmul.f32 %v5184, %v5184
    %v5319 = vmul.f32 %v5185, %v5185
    %v5320 = vmul.f32 %v5186, %v5186
    %v5321 = vmul.f32 %v5187, %v5187
    %v5322 = vmul.f32 %v5188, %v5188
    %v5323 = vmul.f32 %v5189, %v5189
    %v5324 = vmul.f32 %v5190, %v5190
    %v5325 = vmul.f32 %v5191, %v5191
    %v5326 = vmul.f32 %v5192, %v5192
    %v5327 = vmul.f32 %v5193, %v5193
    %v5328 = vmul.f32 %v5194, %v5194
    %v5329 = vmul.f32 %v5195, %v5195
    %v5330 = vmul.f32 %v5196, %v5196
    %v5331 = vmul.f32 %v5197, %v5197
    %v5332 = vmul.f32 %v5198, %v5198
    %v5333 = vmul.f32 %v5199, %v5199
    %v5334 = vmul.f32 %v5200, %v5200
    %v5335 = vmul.f32 %v5201, %v5201
    %v5336 = vmul.f32 %v5202, %v5202
    %v5337 = vmul.f32 %v5203, %v5203
    %v5338 = vmul.f32 %v5204, %v5204
    %v5339 = vmul.f32 %v5205, %v5205
    %v5340 = vmul.f32 %v5206, %v5206
    %v5341 = vmul.f32 %v5207, %v5207
    %v5342 = vmul.f32 %v5208, %v5208
    %v5343 = vmul.f32 %v5209, %v5209
    %v5344 = vmul.f32 %v5210, %v5210
    %v5345 = vmul.f32 %v5211, %v5211
    %v5346 = vadd.f32 %v5282, %v5283
    %v5347 = vadd.f32 %v5346, %v5284
    %v5348 = vadd.f32 %v5347, %v5285
    %v5349 = vadd.f32 %v5348, %v5286
    %v5350 = vadd.f32 %v5349, %v5287
    %v5351 = vadd.f32 %v5350, %v5288
    %v5352 = vadd.f32 %v5351, %v5289
    %v5353 = vadd.f32 %v5352, %v5290
    %v5354 = vadd.f32 %v5353, %v5291
    %v5355 = vadd.f32 %v5354, %v5292
    %v5356 = vadd.f32 %v5355, %v5293
    %v5357 = vadd.f32 %v5356, %v5294
    %v5358 = vadd.f32 %v5357, %v5295
    %v5359 = vadd.f32 %v5358, %v5296
    %v5360 = vadd.f32 %v5359, %v5297
    %v5361 = vadd.f32 %v5360, %v5298
    %v5362 = vadd.f32 %v5361, %v5299
    %v5363 = vadd.f32 %v5362, %v5300
    %v5364 = vadd.f32 %v5363, %v5301
    %v5365 = vadd.f32 %v5364, %v5302
    %v5366 = vadd.f32 %v5365, %v5303
    %v5367 = vadd.f32 %v5366, %v5304
    %v5368 = vadd.f32 %v5367, %v5305
    %v5369 = vadd.f32 %v5368, %v5306
    %v5370 = vadd.f32 %v5369, %v5307
    %v5371 = vadd.f32 %v5370, %v5308
    %v5372 = vadd.f32 %v5371, %v5309
    %v5373 = vadd.f32 %v5372, %v5310
    %v5374 = vadd.f32 %v5373, %v5311
    %v5375 = vadd.f32 %v5374, %v5312
    %v5376 = vadd.f32 %v5375, %v5313
    %v5377 = vadd.f32 %v5376, %v5314
    %v5378 = vadd.f32 %v5377, %v5315
    %v5379 = vadd.f32 %v5378, %v5316
    %v5380 = vadd.f32 %v5379, %v5317
    %v5381 = vadd.f32 %v5380, %v5318
    %v5382 = vadd.f32 %v5381, %v5319
    %v5383 = vadd.f32 %v5382, %v5320
    %v5384 = vadd.f32 %v5383, %v5321
    %v5385 = vadd.f32 %v5384, %v5322
    %v5386 = vadd.f32 %v5385, %v5323
    %v5387 = vadd.f32 %v5386, %v5324
    %v5388 = vadd.f32 %v5387, %v5325
    %v5389 = vadd.f32 %v5388, %v5326
    %v5390 = vadd.f32 %v5389, %v5327
    %v5391 = vadd.f32 %v5390, %v5328
    %v5392 = vadd.f32 %v5391, %v5329
    %v5393 = vadd.f32 %v5392, %v5330
    %v5394 = vadd.f32 %v5393, %v5331
    %v5395 = vadd.f32 %v5394, %v5332
    %v5396 = vadd.f32 %v5395, %v5333
    %v5397 = vadd.f32 %v5396, %v5334
    %v5398 = vadd.f32 %v5397, %v5335
    %v5399 = vadd.f32 %v5398, %v5336
    %v5400 = vadd.f32 %v5399, %v5337
    %v5401 = vadd.f32 %v5400, %v5338
    %v5402 = vadd.f32 %v5401, %v5339
    %v5403 = vadd.f32 %v5402, %v5340
    %v5404 = vadd.f32 %v5403, %v5341
    %v5405 = vadd.f32 %v5404, %v5342
    %v5406 = vadd.f32 %v5405, %v5343
    %v5407 = vadd.f32 %v5406, %v5344
    %v5408 = vadd.f32 %v5407, %v5345
    %v5409 = vrot.slane %v5408, 4
    %v5410 = vadd.f32 %v5408, %v5409
    %v5411 = vrot.slane %v5410, 2
    %v5412 = vadd.f32 %v5410, %v5411
    %v5413 = vrot.slane %v5412, 1
    %v5414 = vadd.f32 %v5412, %v5413
    %v5415 = vmul.f32 %v5414, 0.001953125
    %v5416 = vmul.f32 %v5281, %v5281
    %v5417 = vsub.f32 %v5415, %v5416
    %v5418 = vsub.f32 %v5148, %v5281
    %v5419 = vsub.f32 %v5149, %v5281
    %v5420 = vsub.f32 %v5150, %v5281
    %v5421 = vsub.f32 %v5151, %v5281
    %v5422 = vsub.f32 %v5152, %v5281
    %v5423 = vsub.f32 %v5153, %v5281
    %v5424 = vsub.f32 %v5154, %v5281
    %v5425 = vsub.f32 %v5155, %v5281
    %v5426 = vsub.f32 %v5156, %v5281
    %v5427 = vsub.f32 %v5157, %v5281
    %v5428 = vsub.f32 %v5158, %v5281
    %v5429 = vsub.f32 %v5159, %v5281
    %v5430 = vsub.f32 %v5160, %v5281
    %v5431 = vsub.f32 %v5161, %v5281
    %v5432 = vsub.f32 %v5162, %v5281
    %v5433 = vsub.f32 %v5163, %v5281
    %v5434 = vsub.f32 %v5164, %v5281
    %v5435 = vsub.f32 %v5165, %v5281
    %v5436 = vsub.f32 %v5166, %v5281
    %v5437 = vsub.f32 %v5167, %v5281
    %v5438 = vsub.f32 %v5168, %v5281
    %v5439 = vsub.f32 %v5169, %v5281
    %v5440 = vsub.f32 %v5170, %v5281
    %v5441 = vsub.f32 %v5171, %v5281
    %v5442 = vsub.f32 %v5172, %v5281
    %v5443 = vsub.f32 %v5173, %v5281
    %v5444 = vsub.f32 %v5174, %v5281
    %v5445 = vsub.f32 %v5175, %v5281
    %v5446 = vsub.f32 %v5176, %v5281
    %v5447 = vsub.f32 %v5177, %v5281
    %v5448 = vsub.f32 %v5178, %v5281
    %v5449 = vsub.f32 %v5179, %v5281
    %v5450 = vsub.f32 %v5180, %v5281
    %v5451 = vsub.f32 %v5181, %v5281
    %v5452 = vsub.f32 %v5182, %v5281
    %v5453 = vsub.f32 %v5183, %v5281
    %v5454 = vsub.f32 %v5184, %v5281
    %v5455 = vsub.f32 %v5185, %v5281
    %v5456 = vsub.f32 %v5186, %v5281
    %v5457 = vsub.f32 %v5187, %v5281
    %v5458 = vsub.f32 %v5188, %v5281
    %v5459 = vsub.f32 %v5189, %v5281
    %v5460 = vsub.f32 %v5190, %v5281
    %v5461 = vsub.f32 %v5191, %v5281
    %v5462 = vsub.f32 %v5192, %v5281
    %v5463 = vsub.f32 %v5193, %v5281
    %v5464 = vsub.f32 %v5194, %v5281
    %v5465 = vsub.f32 %v5195, %v5281
    %v5466 = vsub.f32 %v5196, %v5281
    %v5467 = vsub.f32 %v5197, %v5281
    %v5468 = vsub.f32 %v5198, %v5281
    %v5469 = vsub.f32 %v5199, %v5281
    %v5470 = vsub.f32 %v5200, %v5281
    %v5471 = vsub.f32 %v5201, %v5281
    %v5472 = vsub.f32 %v5202, %v5281
    %v5473 = vsub.f32 %v5203, %v5281
    %v5474 = vsub.f32 %v5204, %v5281
    %v5475 = vsub.f32 %v5205, %v5281
    %v5476 = vsub.f32 %v5206, %v5281
    %v5477 = vsub.f32 %v5207, %v5281
    %v5478 = vsub.f32 %v5208, %v5281
    %v5479 = vsub.f32 %v5209, %v5281
    %v5480 = vsub.f32 %v5210, %v5281
    %v5481 = vsub.f32 %v5211, %v5281
    %v5482 = vadd.f32 %v5417, 1e-05
    %v5483 = vrsqrt.pop %v5482
    %v5484 = vmul.f32 %v5418, %v5483
    %v5485 = vmul.f32 %v5419, %v5483
    %v5486 = vmul.f32 %v5420, %v5483
    %v5487 = vmul.f32 %v5421, %v5483
    %v5488 = vmul.f32 %v5422, %v5483
    %v5489 = vmul.f32 %v5423, %v5483
    %v5490 = vmul.f32 %v5424, %v5483
    %v5491 = vmul.f32 %v5425, %v5483
    %v5492 = vmul.f32 %v5426, %v5483
    %v5493 = vmul.f32 %v5427, %v5483
    %v5494 = vmul.f32 %v5428, %v5483
    %v5495 = vmul.f32 %v5429, %v5483
    %v5496 = vmul.f32 %v5430, %v5483
    %v5497 = vmul.f32 %v5431, %v5483
    %v5498 = vmul.f32 %v5432, %v5483
    %v5499 = vmul.f32 %v5433, %v5483
    %v5500 = vmul.f32 %v5434, %v5483
    %v5501 = vmul.f32 %v5435, %v5483
    %v5502 = vmul.f32 %v5436, %v5483
    %v5503 = vmul.f32 %v5437, %v5483
    %v5504 = vmul.f32 %v5438, %v5483
    %v5505 = vmul.f32 %v5439, %v5483
    %v5506 = vmul.f32 %v5440, %v5483
    %v5507 = vmul.f32 %v5441, %v5483
    %v5508 = vmul.f32 %v5442, %v5483
    %v5509 = vmul.f32 %v5443, %v5483
    %v5510 = vmul.f32 %v5444, %v5483
    %v5511 = vmul.f32 %v5445, %v5483
    %v5512 = vmul.f32 %v5446, %v5483
    %v5513 = vmul.f32 %v5447, %v5483
    %v5514 = vmul.f32 %v5448, %v5483
    %v5515 = vmul.f32 %v5449, %v5483
    %v5516 = vmul.f32 %v5450, %v5483
    %v5517 = vmul.f32 %v5451, %v5483
    %v5518 = vmul.f32 %v5452, %v5483
    %v5519 = vmul.f32 %v5453, %v5483
    %v5520 = vmul.f32 %v5454, %v5483
    %v5521 = vmul.f32 %v5455, %v5483
    %v5522 = vmul.f32 %v5456, %v5483
    %v5523 = vmul.f32 %v5457, %v5483
    %v5524 = vmul.f32 %v5458, %v5483
    %v5525 = vmul.f32 %v5459, %v5483
    %v5526 = vmul.f32 %v5460, %v5483
    %v5527 = vmul.f32 %v5461, %v5483
    %v5528 = vmul.f32 %v5462, %v5483
    %v5529 = vmul.f32 %v5463, %v5483
    %v5530 = vmul.f32 %v5464, %v5483
    %v5531 = vmul.f32 %v5465, %v5483
    %v5532 = vmul.f32 %v5466, %v5483
    %v5533 = vmul.f32 %v5467, %v5483
    %v5534 = vmul.f32 %v5468, %v5483
    %v5535 = vmul.f32 %v5469, %v5483
    %v5536 = vmul.f32 %v5470, %v5483
    %v5537 = vmul.f32 %v5471, %v5483
    %v5538 = vmul.f32 %v5472, %v5483
    %v5539 = vmul.f32 %v5473, %v5483
    %v5540 = vmul.f32 %v5474, %v5483
    %v5541 = vmul.f32 %v5475, %v5483
    %v5542 = vmul.f32 %v5476, %v5483
    %v5543 = vmul.f32 %v5477, %v5483
    %v5544 = vmul.f32 %v5478, %v5483
    %v5545 = vmul.f32 %v5479, %v5483
    %v5546 = vmul.f32 %v5480, %v5483
    %v5547 = vmul.f32 %v5481, %v5483
    %v5548 = vld [vmem:[%s3] sm:$0x1]
    %v5550 = vlaneseq
    %v5551 = vshrl.u32 %v5550, 7
    %v5552 = vsub.s32 0, %v5551
    %v5553 = vrot.slane %v5548, %v5552
    %v5555 = vmul.f32 %v5484, %v5553
    %v5556 = vmul.f32 %v5485, %v5553
    %v5557 = vmul.f32 %v5486, %v5553
    %v5558 = vmul.f32 %v5487, %v5553
    %v5559 = vmul.f32 %v5488, %v5553
    %v5560 = vmul.f32 %v5489, %v5553
    %v5561 = vmul.f32 %v5490, %v5553
    %v5562 = vmul.f32 %v5491, %v5553
    %v5563 = vmul.f32 %v5492, %v5553
    %v5564 = vmul.f32 %v5493, %v5553
    %v5565 = vmul.f32 %v5494, %v5553
    %v5566 = vmul.f32 %v5495, %v5553
    %v5567 = vmul.f32 %v5496, %v5553
    %v5568 = vmul.f32 %v5497, %v5553
    %v5569 = vmul.f32 %v5498, %v5553
    %v5570 = vmul.f32 %v5499, %v5553
    %v5571 = vmul.f32 %v5500, %v5553
    %v5572 = vmul.f32 %v5501, %v5553
    %v5573 = vmul.f32 %v5502, %v5553
    %v5574 = vmul.f32 %v5503, %v5553
    %v5575 = vmul.f32 %v5504, %v5553
    %v5576 = vmul.f32 %v5505, %v5553
    %v5577 = vmul.f32 %v5506, %v5553
    %v5578 = vmul.f32 %v5507, %v5553
    %v5579 = vmul.f32 %v5508, %v5553
    %v5580 = vmul.f32 %v5509, %v5553
    %v5581 = vmul.f32 %v5510, %v5553
    %v5582 = vmul.f32 %v5511, %v5553
    %v5583 = vmul.f32 %v5512, %v5553
    %v5584 = vmul.f32 %v5513, %v5553
    %v5585 = vmul.f32 %v5514, %v5553
    %v5586 = vmul.f32 %v5515, %v5553
    %v5587 = vmul.f32 %v5516, %v5553
    %v5588 = vmul.f32 %v5517, %v5553
    %v5589 = vmul.f32 %v5518, %v5553
    %v5590 = vmul.f32 %v5519, %v5553
    %v5591 = vmul.f32 %v5520, %v5553
    %v5592 = vmul.f32 %v5521, %v5553
    %v5593 = vmul.f32 %v5522, %v5553
    %v5594 = vmul.f32 %v5523, %v5553
    %v5595 = vmul.f32 %v5524, %v5553
    %v5596 = vmul.f32 %v5525, %v5553
    %v5597 = vmul.f32 %v5526, %v5553
    %v5598 = vmul.f32 %v5527, %v5553
    %v5599 = vmul.f32 %v5528, %v5553
    %v5600 = vmul.f32 %v5529, %v5553
    %v5601 = vmul.f32 %v5530, %v5553
    %v5602 = vmul.f32 %v5531, %v5553
    %v5603 = vmul.f32 %v5532, %v5553
    %v5604 = vmul.f32 %v5533, %v5553
    %v5605 = vmul.f32 %v5534, %v5553
    %v5606 = vmul.f32 %v5535, %v5553
    %v5607 = vmul.f32 %v5536, %v5553
    %v5608 = vmul.f32 %v5537, %v5553
    %v5609 = vmul.f32 %v5538, %v5553
    %v5610 = vmul.f32 %v5539, %v5553
    %v5611 = vmul.f32 %v5540, %v5553
    %v5612 = vmul.f32 %v5541, %v5553
    %v5613 = vmul.f32 %v5542, %v5553
    %v5614 = vmul.f32 %v5543, %v5553
    %v5615 = vmul.f32 %v5544, %v5553
    %v5616 = vmul.f32 %v5545, %v5553
    %v5617 = vmul.f32 %v5546, %v5553
    %v5618 = vmul.f32 %v5547, %v5553
    %v5619 = vld [vmem:[%s4] sm:$0x1]
    %v5621 = vlaneseq
    %v5622 = vshrl.u32 %v5621, 7
    %v5623 = vsub.s32 0, %v5622
    %v5624 = vrot.slane %v5619, %v5623
    %v5626 = vadd.f32 %v5555, %v5624
    %v5627 = vadd.f32 %v5556, %v5624
    %v5628 = vadd.f32 %v5557, %v5624
    %v5629 = vadd.f32 %v5558, %v5624
    %v5630 = vadd.f32 %v5559, %v5624
    %v5631 = vadd.f32 %v5560, %v5624
    %v5632 = vadd.f32 %v5561, %v5624
    %v5633 = vadd.f32 %v5562, %v5624
    %v5634 = vadd.f32 %v5563, %v5624
    %v5635 = vadd.f32 %v5564, %v5624
    %v5636 = vadd.f32 %v5565, %v5624
    %v5637 = vadd.f32 %v5566, %v5624
    %v5638 = vadd.f32 %v5567, %v5624
    %v5639 = vadd.f32 %v5568, %v5624
    %v5640 = vadd.f32 %v5569, %v5624
    %v5641 = vadd.f32 %v5570, %v5624
    %v5642 = vadd.f32 %v5571, %v5624
    %v5643 = vadd.f32 %v5572, %v5624
    %v5644 = vadd.f32 %v5573, %v5624
    %v5645 = vadd.f32 %v5574, %v5624
    %v5646 = vadd.f32 %v5575, %v5624
    %v5647 = vadd.f32 %v5576, %v5624
    %v5648 = vadd.f32 %v5577, %v5624
    %v5649 = vadd.f32 %v5578, %v5624
    %v5650 = vadd.f32 %v5579, %v5624
    %v5651 = vadd.f32 %v5580, %v5624
    %v5652 = vadd.f32 %v5581, %v5624
    %v5653 = vadd.f32 %v5582, %v5624
    %v5654 = vadd.f32 %v5583, %v5624
    %v5655 = vadd.f32 %v5584, %v5624
    %v5656 = vadd.f32 %v5585, %v5624
    %v5657 = vadd.f32 %v5586, %v5624
    %v5658 = vadd.f32 %v5587, %v5624
    %v5659 = vadd.f32 %v5588, %v5624
    %v5660 = vadd.f32 %v5589, %v5624
    %v5661 = vadd.f32 %v5590, %v5624
    %v5662 = vadd.f32 %v5591, %v5624
    %v5663 = vadd.f32 %v5592, %v5624
    %v5664 = vadd.f32 %v5593, %v5624
    %v5665 = vadd.f32 %v5594, %v5624
    %v5666 = vadd.f32 %v5595, %v5624
    %v5667 = vadd.f32 %v5596, %v5624
    %v5668 = vadd.f32 %v5597, %v5624
    %v5669 = vadd.f32 %v5598, %v5624
    %v5670 = vadd.f32 %v5599, %v5624
    %v5671 = vadd.f32 %v5600, %v5624
    %v5672 = vadd.f32 %v5601, %v5624
    %v5673 = vadd.f32 %v5602, %v5624
    %v5674 = vadd.f32 %v5603, %v5624
    %v5675 = vadd.f32 %v5604, %v5624
    %v5676 = vadd.f32 %v5605, %v5624
    %v5677 = vadd.f32 %v5606, %v5624
    %v5678 = vadd.f32 %v5607, %v5624
    %v5679 = vadd.f32 %v5608, %v5624
    %v5680 = vadd.f32 %v5609, %v5624
    %v5681 = vadd.f32 %v5610, %v5624
    %v5682 = vadd.f32 %v5611, %v5624
    %v5683 = vadd.f32 %v5612, %v5624
    %v5684 = vadd.f32 %v5613, %v5624
    %v5685 = vadd.f32 %v5614, %v5624
    %v5686 = vadd.f32 %v5615, %v5624
    %v5687 = vadd.f32 %v5616, %v5624
    %v5688 = vadd.f32 %v5617, %v5624
    %v5689 = vadd.f32 %v5618, %v5624
    %v5690 = vmax.f32 %v5626, 0.0
    %v5691 = vmax.f32 %v5627, 0.0
    %v5692 = vmax.f32 %v5628, 0.0
    %v5693 = vmax.f32 %v5629, 0.0
    %v5694 = vmax.f32 %v5630, 0.0
    %v5695 = vmax.f32 %v5631, 0.0
    %v5696 = vmax.f32 %v5632, 0.0
    %v5697 = vmax.f32 %v5633, 0.0
    %v5698 = vmax.f32 %v5634, 0.0
    %v5699 = vmax.f32 %v5635, 0.0
    %v5700 = vmax.f32 %v5636, 0.0
    %v5701 = vmax.f32 %v5637, 0.0
    %v5702 = vmax.f32 %v5638, 0.0
    %v5703 = vmax.f32 %v5639, 0.0
    %v5704 = vmax.f32 %v5640, 0.0
    %v5705 = vmax.f32 %v5641, 0.0
    %v5706 = vmax.f32 %v5642, 0.0
    %v5707 = vmax.f32 %v5643, 0.0
    %v5708 = vmax.f32 %v5644, 0.0
    %v5709 = vmax.f32 %v5645, 0.0
    %v5710 = vmax.f32 %v5646, 0.0
    %v5711 = vmax.f32 %v5647, 0.0
    %v5712 = vmax.f32 %v5648, 0.0
    %v5713 = vmax.f32 %v5649, 0.0
    %v5714 = vmax.f32 %v5650, 0.0
    %v5715 = vmax.f32 %v5651, 0.0
    %v5716 = vmax.f32 %v5652, 0.0
    %v5717 = vmax.f32 %v5653, 0.0
    %v5718 = vmax.f32 %v5654, 0.0
    %v5719 = vmax.f32 %v5655, 0.0
    %v5720 = vmax.f32 %v5656, 0.0
    %v5721 = vmax.f32 %v5657, 0.0
    %v5722 = vmax.f32 %v5658, 0.0
    %v5723 = vmax.f32 %v5659, 0.0
    %v5724 = vmax.f32 %v5660, 0.0
    %v5725 = vmax.f32 %v5661, 0.0
    %v5726 = vmax.f32 %v5662, 0.0
    %v5727 = vmax.f32 %v5663, 0.0
    %v5728 = vmax.f32 %v5664, 0.0
    %v5729 = vmax.f32 %v5665, 0.0
    %v5730 = vmax.f32 %v5666, 0.0
    %v5731 = vmax.f32 %v5667, 0.0
    %v5732 = vmax.f32 %v5668, 0.0
    %v5733 = vmax.f32 %v5669, 0.0
    %v5734 = vmax.f32 %v5670, 0.0
    %v5735 = vmax.f32 %v5671, 0.0
    %v5736 = vmax.f32 %v5672, 0.0
    %v5737 = vmax.f32 %v5673, 0.0
    %v5738 = vmax.f32 %v5674, 0.0
    %v5739 = vmax.f32 %v5675, 0.0
    %v5740 = vmax.f32 %v5676, 0.0
    %v5741 = vmax.f32 %v5677, 0.0
    %v5742 = vmax.f32 %v5678, 0.0
    %v5743 = vmax.f32 %v5679, 0.0
    %v5744 = vmax.f32 %v5680, 0.0
    %v5745 = vmax.f32 %v5681, 0.0
    %v5746 = vmax.f32 %v5682, 0.0
    %v5747 = vmax.f32 %v5683, 0.0
    %v5748 = vmax.f32 %v5684, 0.0
    %v5749 = vmax.f32 %v5685, 0.0
    %v5750 = vmax.f32 %v5686, 0.0
    %v5751 = vmax.f32 %v5687, 0.0
    %v5752 = vmax.f32 %v5688, 0.0
    %v5753 = vmax.f32 %v5689, 0.0
    %5754 = vst [vmem:[#allocation2] sm:$0xff] 0.0
    %5755 = vst [vmem:[#allocation2 + $0x8] sm:$0xff] 0.0
    %5756 = vst [vmem:[#allocation2 + $0x10] sm:$0x3] 0.0
    %5757 = vst [vmem:[#allocation2 + $0x18] sm:$0xff] 0.0
    %5758 = vst [vmem:[#allocation2 + $0x20] sm:$0xff] 0.0
    %5759 = vst [vmem:[#allocation2 + $0x28] sm:$0x3] 0.0
    %5760 = vst [vmem:[#allocation2 + $0x30] sm:$0xff] 0.0
    %5761 = vst [vmem:[#allocation2 + $0x38] sm:$0xff] 0.0
    %5762 = vst [vmem:[#allocation2 + $0x40] sm:$0x3] 0.0
    %5763 = vst [vmem:[#allocation2 + $0x48] sm:$0xff] 0.0
    %5764 = vst [vmem:[#allocation2 + $0x50] sm:$0xff] 0.0
    %5765 = vst [vmem:[#allocation2 + $0x58] sm:$0x3] 0.0
    %5766 = vst [vmem:[#allocation2 + $0x60] sm:$0xff] 0.0
    %5767 = vst [vmem:[#allocation2 + $0x68] sm:$0xff] 0.0
    %5768 = vst [vmem:[#allocation2 + $0x70] sm:$0x3] 0.0
    %5769 = vst [vmem:[#allocation2 + $0x78] sm:$0xff] 0.0
    %5770 = vst [vmem:[#allocation2 + $0x80] sm:$0xff] 0.0
    %5771 = vst [vmem:[#allocation2 + $0x88] sm:$0x3] 0.0
    %5772 = vst [vmem:[#allocation2 + $0x90] sm:$0xff] 0.0
    %5773 = vst [vmem:[#allocation2 + $0x98] sm:$0xff] 0.0
    %5774 = vst [vmem:[#allocation2 + $0xa0] sm:$0x3] 0.0
    %5775 = vst [vmem:[#allocation2 + $0xa8] sm:$0xff] 0.0
    %5776 = vst [vmem:[#allocation2 + $0xb0] sm:$0xff] 0.0
    %5777 = vst [vmem:[#allocation2 + $0xb8] sm:$0x3] 0.0
    %5778 = vst [vmem:[#allocation2 + $0xc0] sm:$0xff] 0.0
    %5779 = vst [vmem:[#allocation2 + $0xc8] sm:$0xff] 0.0
    %5780 = vst [vmem:[#allocation2 + $0xd0] sm:$0x3] 0.0
    %5781 = vst [vmem:[#allocation2 + $0xd8] sm:$0xff] 0.0
    %5782 = vst [vmem:[#allocation2 + $0xe0] sm:$0xff] 0.0
    %5783 = vst [vmem:[#allocation2 + $0xe8] sm:$0x3] 0.0
    %5784 = vst [vmem:[#allocation2 + $0xf0] sm:$0xff] 0.0
    %5785 = vst [vmem:[#allocation2 + $0xf8] sm:$0xff] 0.0
    %5786 = vst [vmem:[#allocation2 + $0x100] sm:$0x3] 0.0
    %5787 = vst [vmem:[#allocation2 + $0x108] sm:$0xff] 0.0
    %5788 = vst [vmem:[#allocation2 + $0x110] sm:$0xff] 0.0
    %5789 = vst [vmem:[#allocation2 + $0x118] sm:$0x3] 0.0
    %5790 = vst [vmem:[#allocation2 + $0x120] sm:$0xff] 0.0
    %5791 = vst [vmem:[#allocation2 + $0x128] sm:$0xff] 0.0
    %5792 = vst [vmem:[#allocation2 + $0x130] sm:$0x3] 0.0
    %5793 = vst [vmem:[#allocation2 + $0x138] sm:$0xff] 0.0
    %5794 = vst [vmem:[#allocation2 + $0x140] sm:$0xff] 0.0
    %5795 = vst [vmem:[#allocation2 + $0x148] sm:$0x3] 0.0
    %5796 = vst [vmem:[#allocation2 + $0x150] sm:$0xff] 0.0
    %5797 = vst [vmem:[#allocation2 + $0x158] sm:$0xff] 0.0
    %5798 = vst [vmem:[#allocation2 + $0x160] sm:$0x3] 0.0
    %5799 = vst [vmem:[#allocation2 + $0x168] sm:$0xff] 0.0
    %5800 = vst [vmem:[#allocation2 + $0x170] sm:$0xff] 0.0
    %5801 = vst [vmem:[#allocation2 + $0x178] sm:$0x3] 0.0
    %5802 = vst [vmem:[#allocation2 + $0x180] sm:$0xff] 0.0
    %5803 = vst [vmem:[#allocation2 + $0x188] sm:$0xff] 0.0
    %5804 = vst [vmem:[#allocation2 + $0x190] sm:$0x3] 0.0
    %5805 = vst [vmem:[#allocation2 + $0x198] sm:$0xff] 0.0
    %5806 = vst [vmem:[#allocation2 + $0x1a0] sm:$0xff] 0.0
    %5807 = vst [vmem:[#allocation2 + $0x1a8] sm:$0x3] 0.0
    %5808 = vst [vmem:[#allocation2 + $0x1b0] sm:$0xff] 0.0
    %5809 = vst [vmem:[#allocation2 + $0x1b8] sm:$0xff] 0.0
    %5810 = vst [vmem:[#allocation2 + $0x1c0] sm:$0x3] 0.0
    %5811 = vst [vmem:[#allocation2 + $0x1c8] sm:$0xff] 0.0
    %5812 = vst [vmem:[#allocation2 + $0x1d0] sm:$0xff] 0.0
    %5813 = vst [vmem:[#allocation2 + $0x1d8] sm:$0x3] 0.0
    %5814 = vst [vmem:[#allocation2 + $0x1e0] sm:$0xff] 0.0
    %5815 = vst [vmem:[#allocation2 + $0x1e8] sm:$0xff] 0.0
    %5816 = vst [vmem:[#allocation2 + $0x1f0] sm:$0x3] 0.0
    %5817 = vst [vmem:[#allocation2 + $0x1f8] sm:$0xff] 0.0
    %5818 = vst [vmem:[#allocation2 + $0x200] sm:$0xff] 0.0
    %5819 = vst [vmem:[#allocation2 + $0x208] sm:$0x3] 0.0
    %5820 = vst [vmem:[#allocation2 + $0x210] sm:$0xff] 0.0
    %5821 = vst [vmem:[#allocation2 + $0x218] sm:$0xff] 0.0
    %5822 = vst [vmem:[#allocation2 + $0x220] sm:$0x3] 0.0
    %5823 = vst [vmem:[#allocation2 + $0x228] sm:$0xff] 0.0
    %5824 = vst [vmem:[#allocation2 + $0x230] sm:$0xff] 0.0
    %5825 = vst [vmem:[#allocation2 + $0x238] sm:$0x3] 0.0
    %5826 = vst [vmem:[#allocation2 + $0x240] sm:$0xff] 0.0
    %5827 = vst [vmem:[#allocation2 + $0x248] sm:$0xff] 0.0
    %5828 = vst [vmem:[#allocation2 + $0x250] sm:$0x3] 0.0
    %5829 = vst [vmem:[#allocation2 + $0x258] sm:$0xff] 0.0
    %5830 = vst [vmem:[#allocation2 + $0x260] sm:$0xff] 0.0
    %5831 = vst [vmem:[#allocation2 + $0x268] sm:$0x3] 0.0
    %5832 = vst [vmem:[#allocation2 + $0x270] sm:$0xff] 0.0
    %5833 = vst [vmem:[#allocation2 + $0x278] sm:$0xff] 0.0
    %5834 = vst [vmem:[#allocation2 + $0x280] sm:$0x3] 0.0
    %5835 = vst [vmem:[#allocation2 + $0x288] sm:$0xff] 0.0
    %5836 = vst [vmem:[#allocation2 + $0x290] sm:$0xff] 0.0
    %5837 = vst [vmem:[#allocation2 + $0x298] sm:$0x3] 0.0
    %5838 = vst [vmem:[#allocation2 + $0x2a0] sm:$0xff] 0.0
    %5839 = vst [vmem:[#allocation2 + $0x2a8] sm:$0xff] 0.0
    %5840 = vst [vmem:[#allocation2 + $0x2b0] sm:$0x3] 0.0
    %5841 = vst [vmem:[#allocation2 + $0x2b8] sm:$0xff] 0.0
    %5842 = vst [vmem:[#allocation2 + $0x2c0] sm:$0xff] 0.0
    %5843 = vst [vmem:[#allocation2 + $0x2c8] sm:$0x3] 0.0
    %5844 = vst [vmem:[#allocation2 + $0x2d0] sm:$0xff] 0.0
    %5845 = vst [vmem:[#allocation2 + $0x2d8] sm:$0xff] 0.0
    %5846 = vst [vmem:[#allocation2 + $0x2e0] sm:$0x3] 0.0
    %5847 = vst [vmem:[#allocation2 + $0x2e8] sm:$0xff] 0.0
    %5848 = vst [vmem:[#allocation2 + $0x2f0] sm:$0xff] 0.0
    %5849 = vst [vmem:[#allocation2 + $0x2f8] sm:$0x3] 0.0
    %5850 = vst [vmem:[#allocation2 + $0x300] sm:$0xff] 0.0
    %5851 = vst [vmem:[#allocation2 + $0x308] sm:$0xff] 0.0
    %5852 = vst [vmem:[#allocation2 + $0x310] sm:$0x3] 0.0
    %5853 = vst [vmem:[#allocation2 + $0x318] sm:$0xff] 0.0
    %5854 = vst [vmem:[#allocation2 + $0x320] sm:$0xff] 0.0
    %5855 = vst [vmem:[#allocation2 + $0x328] sm:$0x3] 0.0
    %5856 = vst [vmem:[#allocation2 + $0x330] sm:$0xff] 0.0
    %5857 = vst [vmem:[#allocation2 + $0x338] sm:$0xff] 0.0
    %5858 = vst [vmem:[#allocation2 + $0x340] sm:$0x3] 0.0
    %5859 = vst [vmem:[#allocation2 + $0x348] sm:$0xff] 0.0
    %5860 = vst [vmem:[#allocation2 + $0x350] sm:$0xff] 0.0
    %5861 = vst [vmem:[#allocation2 + $0x358] sm:$0x3] 0.0
    %s5862 = scalar_lea.vmem [#allocation2], 24
    %5863 = vst [vmem:[%s5862 + $0x1] sm:$0xff] %v5690
    %5864 = vst [vmem:[%s5862 + $0x9] sm:$0xff] %v5691
    %5865 = vst [vmem:[%s5862 + $0x19] sm:$0xff] %v5692
    %5866 = vst [vmem:[%s5862 + $0x21] sm:$0xff] %v5693
    %5867 = vst [vmem:[%s5862 + $0x31] sm:$0xff] %v5694
    %5868 = vst [vmem:[%s5862 + $0x39] sm:$0xff] %v5695
    %5869 = vst [vmem:[%s5862 + $0x49] sm:$0xff] %v5696
    %5870 = vst [vmem:[%s5862 + $0x51] sm:$0xff] %v5697
    %5871 = vst [vmem:[%s5862 + $0x61] sm:$0xff] %v5698
    %5872 = vst [vmem:[%s5862 + $0x69] sm:$0xff] %v5699
    %5873 = vst [vmem:[%s5862 + $0x79] sm:$0xff] %v5700
    %5874 = vst [vmem:[%s5862 + $0x81] sm:$0xff] %v5701
    %5875 = vst [vmem:[%s5862 + $0x91] sm:$0xff] %v5702
    %5876 = vst [vmem:[%s5862 + $0x99] sm:$0xff] %v5703
    %5877 = vst [vmem:[%s5862 + $0xa9] sm:$0xff] %v5704
    %5878 = vst [vmem:[%s5862 + $0xb1] sm:$0xff] %v5705
    %5879 = vst [vmem:[%s5862 + $0xc1] sm:$0xff] %v5706
    %5880 = vst [vmem:[%s5862 + $0xc9] sm:$0xff] %v5707
    %5881 = vst [vmem:[%s5862 + $0xd9] sm:$0xff] %v5708
    %5882 = vst [vmem:[%s5862 + $0xe1] sm:$0xff] %v5709
    %5883 = vst [vmem:[%s5862 + $0xf1] sm:$0xff] %v5710
    %5884 = vst [vmem:[%s5862 + $0xf9] sm:$0xff] %v5711
    %5885 = vst [vmem:[%s5862 + $0x109] sm:$0xff] %v5712
    %5886 = vst [vmem:[%s5862 + $0x111] sm:$0xff] %v5713
    %5887 = vst [vmem:[%s5862 + $0x121] sm:$0xff] %v5714
    %5888 = vst [vmem:[%s5862 + $0x129] sm:$0xff] %v5715
    %5889 = vst [vmem:[%s5862 + $0x139] sm:$0xff] %v5716
    %5890 = vst [vmem:[%s5862 + $0x141] sm:$0xff] %v5717
    %5891 = vst [vmem:[%s5862 + $0x151] sm:$0xff] %v5718
    %5892 = vst [vmem:[%s5862 + $0x159] sm:$0xff] %v5719
    %5893 = vst [vmem:[%s5862 + $0x169] sm:$0xff] %v5720
    %5894 = vst [vmem:[%s5862 + $0x171] sm:$0xff] %v5721
    %5895 = vst [vmem:[%s5862 + $0x1b1] sm:$0xff] %v5722
    %5896 = vst [vmem:[%s5862 + $0x1b9] sm:$0xff] %v5723
    %5897 = vst [vmem:[%s5862 + $0x1c9] sm:$0xff] %v5724
    %5898 = vst [vmem:[%s5862 + $0x1d1] sm:$0xff] %v5725
    %5899 = vst [vmem:[%s5862 + $0x1e1] sm:$0xff] %v5726
    %5900 = vst [vmem:[%s5862 + $0x1e9] sm:$0xff] %v5727
    %5901 = vst [vmem:[%s5862 + $0x1f9] sm:$0xff] %v5728
    %5902 = vst [vmem:[%s5862 + $0x201] sm:$0xff] %v5729
    %5903 = vst [vmem:[%s5862 + $0x211] sm:$0xff] %v5730
    %5904 = vst [vmem:[%s5862 + $0x219] sm:$0xff] %v5731
    %5905 = vst [vmem:[%s5862 + $0x229] sm:$0xff] %v5732
    %5906 = vst [vmem:[%s5862 + $0x231] sm:$0xff] %v5733
    %5907 = vst [vmem:[%s5862 + $0x241] sm:$0xff] %v5734
    %5908 = vst [vmem:[%s5862 + $0x249] sm:$0xff] %v5735
    %5909 = vst [vmem:[%s5862 + $0x259] sm:$0xff] %v5736
    %5910 = vst [vmem:[%s5862 + $0x261] sm:$0xff] %v5737
    %5911 = vst [vmem:[%s5862 + $0x271] sm:$0xff] %v5738
    %5912 = vst [vmem:[%s5862 + $0x279] sm:$0xff] %v5739
    %5913 = vst [vmem:[%s5862 + $0x289] sm:$0xff] %v5740
    %5914 = vst [vmem:[%s5862 + $0x291] sm:$0xff] %v5741
    %5915 = vst [vmem:[%s5862 + $0x2a1] sm:$0xff] %v5742
    %5916 = vst [vmem:[%s5862 + $0x2a9] sm:$0xff] %v5743
    %5917 = vst [vmem:[%s5862 + $0x2b9] sm:$0xff] %v5744
    %5918 = vst [vmem:[%s5862 + $0x2c1] sm:$0xff] %v5745
    %5919 = vst [vmem:[%s5862 + $0x2d1] sm:$0xff] %v5746
    %5920 = vst [vmem:[%s5862 + $0x2d9] sm:$0xff] %v5747
    %5921 = vst [vmem:[%s5862 + $0x2e9] sm:$0xff] %v5748
    %5922 = vst [vmem:[%s5862 + $0x2f1] sm:$0xff] %v5749
    %5923 = vst [vmem:[%s5862 + $0x301] sm:$0xff] %v5750
    %5924 = vst [vmem:[%s5862 + $0x309] sm:$0xff] %v5751
    %5925 = vst [vmem:[%s5862 + $0x319] sm:$0xff] %v5752
    %5926 = vst [vmem:[%s5862 + $0x321] sm:$0xff] %v5753
    %v5927 = vld [vmem:[#allocation2] sm:$0xff]
    %v5928 = vld [vmem:[#allocation2 + $0x8] sm:$0xff]
    %v5929 = vld [vmem:[#allocation2 + $0x18] sm:$0xff]
    %v5930 = vld [vmem:[#allocation2 + $0x20] sm:$0xff]
    %v5931 = vld [vmem:[#allocation2 + $0x30] sm:$0xff]
    %v5932 = vld [vmem:[#allocation2 + $0x38] sm:$0xff]
    %v5933 = vld [vmem:[#allocation2 + $0x48] sm:$0xff]
    %v5934 = vld [vmem:[#allocation2 + $0x50] sm:$0xff]
    %v5935 = vld [vmem:[#allocation2 + $0x60] sm:$0xff]
    %v5936 = vld [vmem:[#allocation2 + $0x68] sm:$0xff]
    %v5937 = vld [vmem:[#allocation2 + $0x78] sm:$0xff]
    %v5938 = vld [vmem:[#allocation2 + $0x80] sm:$0xff]
    %v5939 = vld [vmem:[#allocation2 + $0x90] sm:$0xff]
    %v5940 = vld [vmem:[#allocation2 + $0x98] sm:$0xff]
    %v5941 = vld [vmem:[#allocation2 + $0xa8] sm:$0xff]
    %v5942 = vld [vmem:[#allocation2 + $0xb0] sm:$0xff]
    %v5943 = vld [vmem:[#allocation2 + $0xc0] sm:$0xff]
    %v5944 = vld [vmem:[#allocation2 + $0xc8] sm:$0xff]
    %v5945 = vld [vmem:[#allocation2 + $0xd8] sm:$0xff]
    %v5946 = vld [vmem:[#allocation2 + $0xe0] sm:$0xff]
    %v5947 = vld [vmem:[#allocation2 + $0xf0] sm:$0xff]
    %v5948 = vld [vmem:[#allocation2 + $0xf8] sm:$0xff]
    %v5949 = vld [vmem:[#allocation2 + $0x108] sm:$0xff]
    %v5950 = vld [vmem:[#allocation2 + $0x110] sm:$0xff]
    %v5951 = vld [vmem:[#allocation2 + $0x120] sm:$0xff]
    %v5952 = vld [vmem:[#allocation2 + $0x128] sm:$0xff]
    %v5953 = vld [vmem:[#allocation2 + $0x138] sm:$0xff]
    %v5954 = vld [vmem:[#allocation2 + $0x140] sm:$0xff]
    %v5955 = vld [vmem:[#allocation2 + $0x150] sm:$0xff]
    %v5956 = vld [vmem:[#allocation2 + $0x158] sm:$0xff]
    %v5957 = vld [vmem:[#allocation2 + $0x168] sm:$0xff]
    %v5958 = vld [vmem:[#allocation2 + $0x170] sm:$0xff]
    %v5959 = vld [vmem:[#allocation2 + $0x1b0] sm:$0xff]
    %v5960 = vld [vmem:[#allocation2 + $0x1b8] sm:$0xff]
    %v5961 = vld [vmem:[#allocation2 + $0x1c8] sm:$0xff]
    %v5962 = vld [vmem:[#allocation2 + $0x1d0] sm:$0xff]
    %v5963 = vld [vmem:[#allocation2 + $0x1e0] sm:$0xff]
    %v5964 = vld [vmem:[#allocation2 + $0x1e8] sm:$0xff]
    %v5965 = vld [vmem:[#allocation2 + $0x1f8] sm:$0xff]
    %v5966 = vld [vmem:[#allocation2 + $0x200] sm:$0xff]
    %v5967 = vld [vmem:[#allocation2 + $0x210] sm:$0xff]
    %v5968 = vld [vmem:[#allocation2 + $0x218] sm:$0xff]
    %v5969 = vld [vmem:[#allocation2 + $0x228] sm:$0xff]
    %v5970 = vld [vmem:[#allocation2 + $0x230] sm:$0xff]
    %v5971 = vld [vmem:[#allocation2 + $0x240] sm:$0xff]
    %v5972 = vld [vmem:[#allocation2 + $0x248] sm:$0xff]
    %v5973 = vld [vmem:[#allocation2 + $0x258] sm:$0xff]
    %v5974 = vld [vmem:[#allocation2 + $0x260] sm:$0xff]
    %v5975 = vld [vmem:[#allocation2 + $0x270] sm:$0xff]
    %v5976 = vld [vmem:[#allocation2 + $0x278] sm:$0xff]
    %v5977 = vld [vmem:[#allocation2 + $0x288] sm:$0xff]
    %v5978 = vld [vmem:[#allocation2 + $0x290] sm:$0xff]
    %v5979 = vld [vmem:[#allocation2 + $0x2a0] sm:$0xff]
    %v5980 = vld [vmem:[#allocation2 + $0x2a8] sm:$0xff]
    %v5981 = vld [vmem:[#allocation2 + $0x2b8] sm:$0xff]
    %v5982 = vld [vmem:[#allocation2 + $0x2c0] sm:$0xff]
    %v5983 = vld [vmem:[#allocation2 + $0x2d0] sm:$0xff]
    %v5984 = vld [vmem:[#allocation2 + $0x2d8] sm:$0xff]
    %v5985 = vld [vmem:[#allocation2 + $0x2e8] sm:$0xff]
    %v5986 = vld [vmem:[#allocation2 + $0x2f0] sm:$0xff]
    %v5987 = vld [vmem:[#allocation2 + $0x300] sm:$0xff]
    %v5988 = vld [vmem:[#allocation2 + $0x308] sm:$0xff]
    %v5989 = vld [vmem:[#allocation2 + $0x318] sm:$0xff]
    %v5990 = vld [vmem:[#allocation2 + $0x320] sm:$0xff]
    %v5991 = vpack.c.bf16 %v5928, %v5927
    %v5992 = vpack.c.bf16 %v5930, %v5929
    %v5993 = vpack.c.bf16 %v5932, %v5931
    %v5994 = vpack.c.bf16 %v5934, %v5933
    %v5995 = vpack.c.bf16 %v5936, %v5935
    %v5996 = vpack.c.bf16 %v5938, %v5937
    %v5997 = vpack.c.bf16 %v5940, %v5939
    %v5998 = vpack.c.bf16 %v5942, %v5941
    %v5999 = vpack.c.bf16 %v5944, %v5943
    %v6000 = vpack.c.bf16 %v5946, %v5945
    %v6001 = vpack.c.bf16 %v5948, %v5947
    %v6002 = vpack.c.bf16 %v5950, %v5949
    %v6003 = vpack.c.bf16 %v5952, %v5951
    %v6004 = vpack.c.bf16 %v5954, %v5953
    %v6005 = vpack.c.bf16 %v5956, %v5955
    %v6006 = vpack.c.bf16 %v5958, %v5957
    %v6007 = vpack.c.bf16 %v5960, %v5959
    %v6008 = vpack.c.bf16 %v5962, %v5961
    %v6009 = vpack.c.bf16 %v5964, %v5963
    %v6010 = vpack.c.bf16 %v5966, %v5965
    %v6011 = vpack.c.bf16 %v5968, %v5967
    %v6012 = vpack.c.bf16 %v5970, %v5969
    %v6013 = vpack.c.bf16 %v5972, %v5971
    %v6014 = vpack.c.bf16 %v5974, %v5973
    %v6015 = vpack.c.bf16 %v5976, %v5975
    %v6016 = vpack.c.bf16 %v5978, %v5977
    %v6017 = vpack.c.bf16 %v5980, %v5979
    %v6018 = vpack.c.bf16 %v5982, %v5981
    %v6019 = vpack.c.bf16 %v5984, %v5983
    %v6020 = vpack.c.bf16 %v5986, %v5985
    %v6021 = vpack.c.bf16 %v5988, %v5987
    %v6022 = vpack.c.bf16 %v5990, %v5989
    %v6023 = vld [vmem:[#allocation3] sm:$0xf]
    %v6024 = vld [vmem:[#allocation3 + $0x4] sm:$0xf]
    %v6025 = vld [vmem:[#allocation3 + $0x8] sm:$0xf]
    %v6026 = vld [vmem:[#allocation3 + $0xc] sm:$0xf]
    %v6027 = vld [vmem:[#allocation3 + $0x10] sm:$0xf]
    %v6028 = vld [vmem:[#allocation3 + $0x14] sm:$0xf]
    %v6029 = vld [vmem:[#allocation3 + $0x18] sm:$0xf]
    %v6030 = vld [vmem:[#allocation3 + $0x1c] sm:$0xf]
    %v6031 = vld [vmem:[#allocation3 + $0x20] sm:$0xf]
    %v6032 = vld [vmem:[#allocation3 + $0x24] sm:$0xf]
    %v6033 = vld [vmem:[#allocation3 + $0x28] sm:$0xf]
    %v6034 = vld [vmem:[#allocation3 + $0x2c] sm:$0xf]
    %v6035 = vld [vmem:[#allocation3 + $0x30] sm:$0xf]
    %v6036 = vld [vmem:[#allocation3 + $0x34] sm:$0xf]
    %v6037 = vld [vmem:[#allocation3 + $0x38] sm:$0xf]
    %v6038 = vld [vmem:[#allocation3 + $0x3c] sm:$0xf]
    %v6039 = vld [vmem:[#allocation2 + $0x1] sm:$0xff]
    %v6040 = vld [vmem:[#allocation2 + $0x9] sm:$0xff]
    %v6041 = vld [vmem:[#allocation2 + $0x19] sm:$0xff]
    %v6042 = vld [vmem:[#allocation2 + $0x21] sm:$0xff]
    %v6043 = vld [vmem:[#allocation2 + $0x31] sm:$0xff]
    %v6044 = vld [vmem:[#allocation2 + $0x39] sm:$0xff]
    %v6045 = vld [vmem:[#allocation2 + $0x49] sm:$0xff]
    %v6046 = vld [vmem:[#allocation2 + $0x51] sm:$0xff]
    %v6047 = vld [vmem:[#allocation2 + $0x61] sm:$0xff]
    %v6048 = vld [vmem:[#allocation2 + $0x69] sm:$0xff]
    %v6049 = vld [vmem:[#allocation2 + $0x79] sm:$0xff]
    %v6050 = vld [vmem:[#allocation2 + $0x81] sm:$0xff]
    %v6051 = vld [vmem:[#allocation2 + $0x91] sm:$0xff]
    %v6052 = vld [vmem:[#allocation2 + $0x99] sm:$0xff]
    %v6053 = vld [vmem:[#allocation2 + $0xa9] sm:$0xff]
    %v6054 = vld [vmem:[#allocation2 + $0xb1] sm:$0xff]
    %v6055 = vld [vmem:[#allocation2 + $0xc1] sm:$0xff]
    %v6056 = vld [vmem:[#allocation2 + $0xc9] sm:$0xff]
    %v6057 = vld [vmem:[#allocation2 + $0xd9] sm:$0xff]
    %v6058 = vld [vmem:[#allocation2 + $0xe1] sm:$0xff]
    %v6059 = vld [vmem:[#allocation2 + $0xf1] sm:$0xff]
    %v6060 = vld [vmem:[#allocation2 + $0xf9] sm:$0xff]
    %v6061 = vld [vmem:[#allocation2 + $0x109] sm:$0xff]
    %v6062 = vld [vmem:[#allocation2 + $0x111] sm:$0xff]
    %v6063 = vld [vmem:[#allocation2 + $0x121] sm:$0xff]
    %v6064 = vld [vmem:[#allocation2 + $0x129] sm:$0xff]
    %v6065 = vld [vmem:[#allocation2 + $0x139] sm:$0xff]
    %v6066 = vld [vmem:[#allocation2 + $0x141] sm:$0xff]
    %v6067 = vld [vmem:[#allocation2 + $0x151] sm:$0xff]
    %v6068 = vld [vmem:[#allocation2 + $0x159] sm:$0xff]
    %v6069 = vld [vmem:[#allocation2 + $0x169] sm:$0xff]
    %v6070 = vld [vmem:[#allocation2 + $0x171] sm:$0xff]
    %v6071 = vld [vmem:[#allocation2 + $0x1b1] sm:$0xff]
    %v6072 = vld [vmem:[#allocation2 + $0x1b9] sm:$0xff]
    %v6073 = vld [vmem:[#allocation2 + $0x1c9] sm:$0xff]
    %v6074 = vld [vmem:[#allocation2 + $0x1d1] sm:$0xff]
    %v6075 = vld [vmem:[#allocation2 + $0x1e1] sm:$0xff]
    %v6076 = vld [vmem:[#allocation2 + $0x1e9] sm:$0xff]
    %v6077 = vld [vmem:[#allocation2 + $0x1f9] sm:$0xff]
    %v6078 = vld [vmem:[#allocation2 + $0x201] sm:$0xff]
    %v6079 = vld [vmem:[#allocation2 + $0x211] sm:$0xff]
    %v6080 = vld [vmem:[#allocation2 + $0x219] sm:$0xff]
    %v6081 = vld [vmem:[#allocation2 + $0x229] sm:$0xff]
    %v6082 = vld [vmem:[#allocation2 + $0x231] sm:$0xff]
    %v6083 = vld [vmem:[#allocation2 + $0x241] sm:$0xff]
    %v6084 = vld [vmem:[#allocation2 + $0x249] sm:$0xff]
    %v6085 = vld [vmem:[#allocation2 + $0x259] sm:$0xff]
    %v6086 = vld [vmem:[#allocation2 + $0x261] sm:$0xff]
    %v6087 = vld [vmem:[#allocation2 + $0x271] sm:$0xff]
    %v6088 = vld [vmem:[#allocation2 + $0x279] sm:$0xff]
    %v6089 = vld [vmem:[#allocation2 + $0x289] sm:$0xff]
    %v6090 = vld [vmem:[#allocation2 + $0x291] sm:$0xff]
    %v6091 = vld [vmem:[#allocation2 + $0x2a1] sm:$0xff]
    %v6092 = vld [vmem:[#allocation2 + $0x2a9] sm:$0xff]
    %v6093 = vld [vmem:[#allocation2 + $0x2b9] sm:$0xff]
    %v6094 = vld [vmem:[#allocation2 + $0x2c1] sm:$0xff]
    %v6095 = vld [vmem:[#allocation2 + $0x2d1] sm:$0xff]
    %v6096 = vld [vmem:[#allocation2 + $0x2d9] sm:$0xff]
    %v6097 = vld [vmem:[#allocation2 + $0x2e9] sm:$0xff]
    %v6098 = vld [vmem:[#allocation2 + $0x2f1] sm:$0xff]
    %v6099 = vld [vmem:[#allocation2 + $0x301] sm:$0xff]
    %v6100 = vld [vmem:[#allocation2 + $0x309] sm:$0xff]
    %v6101 = vld [vmem:[#allocation2 + $0x319] sm:$0xff]
    %v6102 = vld [vmem:[#allocation2 + $0x321] sm:$0xff]
    %v6103 = vpack.c.bf16 %v6040, %v6039
    %v6104 = vpack.c.bf16 %v6042, %v6041
    %v6105 = vpack.c.bf16 %v6044, %v6043
    %v6106 = vpack.c.bf16 %v6046, %v6045
    %v6107 = vpack.c.bf16 %v6048, %v6047
    %v6108 = vpack.c.bf16 %v6050, %v6049
    %v6109 = vpack.c.bf16 %v6052, %v6051
    %v6110 = vpack.c.bf16 %v6054, %v6053
    %v6111 = vpack.c.bf16 %v6056, %v6055
    %v6112 = vpack.c.bf16 %v6058, %v6057
    %v6113 = vpack.c.bf16 %v6060, %v6059
    %v6114 = vpack.c.bf16 %v6062, %v6061
    %v6115 = vpack.c.bf16 %v6064, %v6063
    %v6116 = vpack.c.bf16 %v6066, %v6065
    %v6117 = vpack.c.bf16 %v6068, %v6067
    %v6118 = vpack.c.bf16 %v6070, %v6069
    %v6119 = vpack.c.bf16 %v6072, %v6071
    %v6120 = vpack.c.bf16 %v6074, %v6073
    %v6121 = vpack.c.bf16 %v6076, %v6075
    %v6122 = vpack.c.bf16 %v6078, %v6077
    %v6123 = vpack.c.bf16 %v6080, %v6079
    %v6124 = vpack.c.bf16 %v6082, %v6081
    %v6125 = vpack.c.bf16 %v6084, %v6083
    %v6126 = vpack.c.bf16 %v6086, %v6085
    %v6127 = vpack.c.bf16 %v6088, %v6087
    %v6128 = vpack.c.bf16 %v6090, %v6089
    %v6129 = vpack.c.bf16 %v6092, %v6091
    %v6130 = vpack.c.bf16 %v6094, %v6093
    %v6131 = vpack.c.bf16 %v6096, %v6095
    %v6132 = vpack.c.bf16 %v6098, %v6097
    %v6133 = vpack.c.bf16 %v6100, %v6099
    %v6134 = vpack.c.bf16 %v6102, %v6101
    %s6135 = scalar_lea.vmem [#allocation3], 64
    %v6136 = vld [vmem:[%s6135] sm:$0xf]
    %v6137 = vld [vmem:[%s6135 + $0x4] sm:$0xf]
    %v6138 = vld [vmem:[%s6135 + $0x8] sm:$0xf]
    %v6139 = vld [vmem:[%s6135 + $0xc] sm:$0xf]
    %v6140 = vld [vmem:[%s6135 + $0x10] sm:$0xf]
    %v6141 = vld [vmem:[%s6135 + $0x14] sm:$0xf]
    %v6142 = vld [vmem:[%s6135 + $0x18] sm:$0xf]
    %v6143 = vld [vmem:[%s6135 + $0x1c] sm:$0xf]
    %v6144 = vld [vmem:[%s6135 + $0x20] sm:$0xf]
    %v6145 = vld [vmem:[%s6135 + $0x24] sm:$0xf]
    %v6146 = vld [vmem:[%s6135 + $0x28] sm:$0xf]
    %v6147 = vld [vmem:[%s6135 + $0x2c] sm:$0xf]
    %v6148 = vld [vmem:[%s6135 + $0x30] sm:$0xf]
    %v6149 = vld [vmem:[%s6135 + $0x34] sm:$0xf]
    %v6150 = vld [vmem:[%s6135 + $0x38] sm:$0xf]
    %v6151 = vld [vmem:[%s6135 + $0x3c] sm:$0xf]
    %v6168 = vunpack.c.l.b16 %v6136
    %v6169 = vunpack.c.l.b16 %v6137
    %v6170 = vunpack.c.l.b16 %v6138
    %v6171 = vunpack.c.l.b16 %v6139
    %v6172 = vunpack.c.l.b16 %v6140
    %v6173 = vunpack.c.l.b16 %v6141
    %v6174 = vunpack.c.l.b16 %v6142
    %v6175 = vunpack.c.l.b16 %v6143
    %v6176 = vunpack.c.l.b16 %v6144
    %v6177 = vunpack.c.l.b16 %v6145
    %v6178 = vunpack.c.l.b16 %v6146
    %v6179 = vunpack.c.l.b16 %v6147
    %v6180 = vunpack.c.l.b16 %v6148
    %v6181 = vunpack.c.l.b16 %v6149
    %v6182 = vunpack.c.l.b16 %v6150
    %v6183 = vunpack.c.l.b16 %v6151
    %v6184 = vpack.c.b16 %v6169, %v6168
    %v6185 = vpack.c.b16 %v6171, %v6170
    %v6186 = vpack.c.b16 %v6173, %v6172
    %v6187 = vpack.c.b16 %v6175, %v6174
    %v6188 = vpack.c.b16 %v6177, %v6176
    %v6189 = vpack.c.b16 %v6179, %v6178
    %v6190 = vpack.c.b16 %v6181, %v6180
    %v6191 = vpack.c.b16 %v6183, %v6182
    %6200 = vmatprep.subr.bf16.mxu0 0
    %6201 = vmatpush1.bf16.msra.mxu0 %v6184
    %6202 = vmatprep.subr.bf16.mxu0 0
    %6203 = vmatpush1.bf16.msra.mxu0 %v6185
    %6204 = vmatprep.subr.bf16.mxu0 0
    %6205 = vmatpush1.bf16.msra.mxu0 %v6186
    %6206 = vmatprep.subr.bf16.mxu0 0
    %6207 = vmatpush1.bf16.msra.mxu0 %v6187
    %6208 = vmatprep.subr.bf16.mxu0 0
    %6209 = vmatpush1.bf16.msra.mxu0 %v6188
    %6210 = vmatprep.subr.bf16.mxu0 0
    %6211 = vmatpush1.bf16.msra.mxu0 %v6189
    %6212 = vmatprep.subr.bf16.mxu0 0
    %6213 = vmatpush1.bf16.msra.mxu0 %v6190
    %6214 = vmatprep.subr.bf16.mxu0 0
    %6215 = vmatpush1.bf16.msra.mxu0 %v6191
    %6216 = vmatprep.subr.bf16.mxu0 0
    %6217 = vmatpush1.bf16.msra.mxu0 0
    %6218 = vmatprep.subr.bf16.mxu0 0
    %6219 = vmatpush1.bf16.msra.mxu0 0
    %6220 = vmatprep.subr.bf16.mxu0 0
    %6221 = vmatpush1.bf16.msra.mxu0 0
    %6222 = vmatprep.subr.bf16.mxu0 0
    %6223 = vmatpush1.bf16.msra.mxu0 0
    %6224 = vmatprep.subr.bf16.mxu0 0
    %6225 = vmatpush1.bf16.msra.mxu0 0
    %6226 = vmatprep.subr.bf16.mxu0 0
    %6227 = vmatpush1.bf16.msra.mxu0 0
    %6228 = vmatprep.subr.bf16.mxu0 0
    %6229 = vmatpush1.bf16.msra.mxu0 0
    %6230 = vmatprep.subr.bf16.mxu0 0
    %6231 = vmatpush1.bf16.msra.mxu0 0
    %6232 = vmatprep.mubr.bf16.mxu0 0
    %6233 = vmatmul.mubr.bf16.gmra.mrb[0].mxu0 %v6103
    %v6234 = vpop.f32.mrb[0].mxu0
    %v6235 = vadd.f32 0.0, %v6234
    %v6236 = vpop.f32.mrb[0].mxu0
    %v6237 = vpop.f32.mrb[0].mxu0
    %v6238 = vadd.f32 0.0, %v6237
    %v6239 = vpop.f32.mrb[0].mxu0
    %6240 = vmatprep.mubr.bf16.mxu0 0
    %6241 = vmatmul.mubr.bf16.gmra.mrb[0].mxu0 %v6104
    %v6242 = vpop.f32.mrb[0].mxu0
    %v6243 = vadd.f32 0.0, %v6242
    %v6244 = vpop.f32.mrb[0].mxu0
    %v6245 = vpop.f32.mrb[0].mxu0
    %v6246 = vadd.f32 0.0, %v6245
    %v6247 = vpop.f32.mrb[0].mxu0
    %6248 = vmatprep.mubr.bf16.mxu0 0
    %6249 = vmatmul.mubr.bf16.gmra.mrb[0].mxu0 %v6105
    %v6250 = vpop.f32.mrb[0].mxu0
    %v6251 = vadd.f32 0.0, %v6250
    %v6252 = vpop.f32.mrb[0].mxu0
    %v6253 = vpop.f32.mrb[0].mxu0
    %v6254 = vadd.f32 0.0, %v6253
    %v6255 = vpop.f32.mrb[0].mxu0
    %6256 = vmatprep.mubr.bf16.mxu0 0
    %6257 = vmatmul.mubr.bf16.gmra.mrb[0].mxu0 %v6106
    %v6258 = vpop.f32.mrb[0].mxu0
    %v6259 = vadd.f32 0.0, %v6258
    %v6260 = vpop.f32.mrb[0].mxu0
    %v6261 = vpop.f32.mrb[0].mxu0
    %v6262 = vadd.f32 0.0, %v6261
    %v6263 = vpop.f32.mrb[0].mxu0
    %6264 = vmatprep.mubr.bf16.mxu0 0
    %6265 = vmatmul.mubr.bf16.gmra.mrb[0].mxu0 %v6107
    %v6266 = vpop.f32.mrb[0].mxu0
    %v6267 = vadd.f32 0.0, %v6266
    %v6268 = vpop.f32.mrb[0].mxu0
    %v6269 = vpop.f32.mrb[0].mxu0
    %v6270 = vadd.f32 0.0, %v6269
    %v6271 = vpop.f32.mrb[0].mxu0
    %6272 = vmatprep.mubr.bf16.mxu0 0
    %6273 = vmatmul.mubr.bf16.gmra.mrb[0].mxu0 %v6108
    %v6274 = vpop.f32.mrb[0].mxu0
    %v6275 = vadd.f32 0.0, %v6274
    %v6276 = vpop.f32.mrb[0].mxu0
    %v6277 = vpop.f32.mrb[0].mxu0
    %v6278 = vadd.f32 0.0, %v6277
    %v6279 = vpop.f32.mrb[0].mxu0
    %6280 = vmatprep.mubr.bf16.mxu0 0
    %6281 = vmatmul.mubr.bf16.gmra.mrb[0].mxu0 %v6109
    %v6282 = vpop.f32.mrb[0].mxu0
    %v6283 = vadd.f32 0.0, %v6282
    %v6284 = vpop.f32.mrb[0].mxu0
    %v6285 = vpop.f32.mrb[0].mxu0
    %v6286 = vadd.f32 0.0, %v6285
    %v6287 = vpop.f32.mrb[0].mxu0
    %6288 = vmatprep.mubr.bf16.mxu0 0
    %6289 = vmatmul.mubr.bf16.gmra.mrb[0].mxu0 %v6110
    %v6290 = vpop.f32.mrb[0].mxu0
    %v6291 = vadd.f32 0.0, %v6290
    %v6292 = vpop.f32.mrb[0].mxu0
    %v6293 = vpop.f32.mrb[0].mxu0
    %v6294 = vadd.f32 0.0, %v6293
    %v6295 = vpop.f32.mrb[0].mxu0
    %6296 = vmatprep.mubr.bf16.mxu0 0
    %6297 = vmatmul.mubr.bf16.gmra.mrb[0].mxu0 %v6111
    %v6298 = vpop.f32.mrb[0].mxu0
    %v6299 = vadd.f32 0.0, %v6298
    %v6300 = vpop.f32.mrb[0].mxu0
    %v6301 = vpop.f32.mrb[0].mxu0
    %v6302 = vadd.f32 0.0, %v6301
    %v6303 = vpop.f32.mrb[0].mxu0
    %6304 = vmatprep.mubr.bf16.mxu0 0
    %6305 = vmatmul.mubr.bf16.gmra.mrb[0].mxu0 %v6112
    %v6306 = vpop.f32.mrb[0].mxu0
    %v6307 = vadd.f32 0.0, %v6306
    %v6308 = vpop.f32.mrb[0].mxu0
    %v6309 = vpop.f32.mrb[0].mxu0
    %v6310 = vadd.f32 0.0, %v6309
    %v6311 = vpop.f32.mrb[0].mxu0
    %6312 = vmatprep.mubr.bf16.mxu0 0
    %6313 = vmatmul.mubr.bf16.gmra.mrb[0].mxu0 %v6113
    %v6314 = vpop.f32.mrb[0].mxu0
    %v6315 = vadd.f32 0.0, %v6314
    %v6316 = vpop.f32.mrb[0].mxu0
    %v6317 = vpop.f32.mrb[0].mxu0
    %v6318 = vadd.f32 0.0, %v6317
    %v6319 = vpop.f32.mrb[0].mxu0
    %6320 = vmatprep.mubr.bf16.mxu0 0
    %6321 = vmatmul.mubr.bf16.gmra.mrb[0].mxu0 %v6114
    %v6322 = vpop.f32.mrb[0].mxu0
    %v6323 = vadd.f32 0.0, %v6322
    %v6324 = vpop.f32.mrb[0].mxu0
    %v6325 = vpop.f32.mrb[0].mxu0
    %v6326 = vadd.f32 0.0, %v6325
    %v6327 = vpop.f32.mrb[0].mxu0
    %6328 = vmatprep.mubr.bf16.mxu0 0
    %6329 = vmatmul.mubr.bf16.gmra.mrb[0].mxu0 %v6115
    %v6330 = vpop.f32.mrb[0].mxu0
    %v6331 = vadd.f32 0.0, %v6330
    %v6332 = vpop.f32.mrb[0].mxu0
    %v6333 = vpop.f32.mrb[0].mxu0
    %v6334 = vadd.f32 0.0, %v6333
    %v6335 = vpop.f32.mrb[0].mxu0
    %6336 = vmatprep.mubr.bf16.mxu0 0
    %6337 = vmatmul.mubr.bf16.gmra.mrb[0].mxu0 %v6116
    %v6338 = vpop.f32.mrb[0].mxu0
    %v6339 = vadd.f32 0.0, %v6338
    %v6340 = vpop.f32.mrb[0].mxu0
    %v6341 = vpop.f32.mrb[0].mxu0
    %v6342 = vadd.f32 0.0, %v6341
    %v6343 = vpop.f32.mrb[0].mxu0
    %6344 = vmatprep.mubr.bf16.mxu0 0
    %6345 = vmatmul.mubr.bf16.gmra.mrb[0].mxu0 %v6117
    %v6346 = vpop.f32.mrb[0].mxu0
    %v6347 = vadd.f32 0.0, %v6346
    %v6348 = vpop.f32.mrb[0].mxu0
    %v6349 = vpop.f32.mrb[0].mxu0
    %v6350 = vadd.f32 0.0, %v6349
    %v6351 = vpop.f32.mrb[0].mxu0
    %6352 = vmatprep.mubr.bf16.mxu0 0
    %6353 = vmatmul.mubr.bf16.gmra.mrb[0].mxu0 %v6118
    %v6354 = vpop.f32.mrb[0].mxu0
    %v6355 = vadd.f32 0.0, %v6354
    %v6356 = vpop.f32.mrb[0].mxu0
    %v6357 = vpop.f32.mrb[0].mxu0
    %v6358 = vadd.f32 0.0, %v6357
    %v6359 = vpop.f32.mrb[0].mxu0
    %6360 = vmatprep.mubr.bf16.mxu0 0
    %6361 = vmatmul.mubr.bf16.gmra.mrb[0].mxu0 %v6119
    %v6362 = vpop.f32.mrb[0].mxu0
    %v6363 = vadd.f32 0.0, %v6362
    %v6364 = vpop.f32.mrb[0].mxu0
    %v6365 = vpop.f32.mrb[0].mxu0
    %v6366 = vadd.f32 0.0, %v6365
    %v6367 = vpop.f32.mrb[0].mxu0
    %6368 = vmatprep.mubr.bf16.mxu0 0
    %6369 = vmatmul.mubr.bf16.gmra.mrb[0].mxu0 %v6120
    %v6370 = vpop.f32.mrb[0].mxu0
    %v6371 = vadd.f32 0.0, %v6370
    %v6372 = vpop.f32.mrb[0].mxu0
    %v6373 = vpop.f32.mrb[0].mxu0
    %v6374 = vadd.f32 0.0, %v6373
    %v6375 = vpop.f32.mrb[0].mxu0
    %6376 = vmatprep.mubr.bf16.mxu0 0
    %6377 = vmatmul.mubr.bf16.gmra.mrb[0].mxu0 %v6121
    %v6378 = vpop.f32.mrb[0].mxu0
    %v6379 = vadd.f32 0.0, %v6378
    %v6380 = vpop.f32.mrb[0].mxu0
    %v6381 = vpop.f32.mrb[0].mxu0
    %v6382 = vadd.f32 0.0, %v6381
    %v6383 = vpop.f32.mrb[0].mxu0
    %6384 = vmatprep.mubr.bf16.mxu0 0
    %6385 = vmatmul.mubr.bf16.gmra.mrb[0].mxu0 %v6122
    %v6386 = vpop.f32.mrb[0].mxu0
    %v6387 = vadd.f32 0.0, %v6386
    %v6388 = vpop.f32.mrb[0].mxu0
    %v6389 = vpop.f32.mrb[0].mxu0
    %v6390 = vadd.f32 0.0, %v6389
    %v6391 = vpop.f32.mrb[0].mxu0
    %6392 = vmatprep.mubr.bf16.mxu0 0
    %6393 = vmatmul.mubr.bf16.gmra.mrb[0].mxu0 %v6123
    %v6394 = vpop.f32.mrb[0].mxu0
    %v6395 = vadd.f32 0.0, %v6394
    %v6396 = vpop.f32.mrb[0].mxu0
    %v6397 = vpop.f32.mrb[0].mxu0
    %v6398 = vadd.f32 0.0, %v6397
    %v6399 = vpop.f32.mrb[0].mxu0
    %6400 = vmatprep.mubr.bf16.mxu0 0
    %6401 = vmatmul.mubr.bf16.gmra.mrb[0].mxu0 %v6124
    %v6402 = vpop.f32.mrb[0].mxu0
    %v6403 = vadd.f32 0.0, %v6402
    %v6404 = vpop.f32.mrb[0].mxu0
    %v6405 = vpop.f32.mrb[0].mxu0
    %v6406 = vadd.f32 0.0, %v6405
    %v6407 = vpop.f32.mrb[0].mxu0
    %6408 = vmatprep.mubr.bf16.mxu0 0
    %6409 = vmatmul.mubr.bf16.gmra.mrb[0].mxu0 %v6125
    %v6410 = vpop.f32.mrb[0].mxu0
    %v6411 = vadd.f32 0.0, %v6410
    %v6412 = vpop.f32.mrb[0].mxu0
    %v6413 = vpop.f32.mrb[0].mxu0
    %v6414 = vadd.f32 0.0, %v6413
    %v6415 = vpop.f32.mrb[0].mxu0
    %6416 = vmatprep.mubr.bf16.mxu0 0
    %6417 = vmatmul.mubr.bf16.gmra.mrb[0].mxu0 %v6126
    %v6418 = vpop.f32.mrb[0].mxu0
    %v6419 = vadd.f32 0.0, %v6418
    %v6420 = vpop.f32.mrb[0].mxu0
    %v6421 = vpop.f32.mrb[0].mxu0
    %v6422 = vadd.f32 0.0, %v6421
    %v6423 = vpop.f32.mrb[0].mxu0
    %6424 = vmatprep.mubr.bf16.mxu0 0
    %6425 = vmatmul.mubr.bf16.gmra.mrb[0].mxu0 %v6127
    %v6426 = vpop.f32.mrb[0].mxu0
    %v6427 = vadd.f32 0.0, %v6426
    %v6428 = vpop.f32.mrb[0].mxu0
    %v6429 = vpop.f32.mrb[0].mxu0
    %v6430 = vadd.f32 0.0, %v6429
    %v6431 = vpop.f32.mrb[0].mxu0
    %6432 = vmatprep.mubr.bf16.mxu0 0
    %6433 = vmatmul.mubr.bf16.gmra.mrb[0].mxu0 %v6128
    %v6434 = vpop.f32.mrb[0].mxu0
    %v6435 = vadd.f32 0.0, %v6434
    %v6436 = vpop.f32.mrb[0].mxu0
    %v6437 = vpop.f32.mrb[0].mxu0
    %v6438 = vadd.f32 0.0, %v6437
    %v6439 = vpop.f32.mrb[0].mxu0
    %6440 = vmatprep.mubr.bf16.mxu0 0
    %6441 = vmatmul.mubr.bf16.gmra.mrb[0].mxu0 %v6129
    %v6442 = vpop.f32.mrb[0].mxu0
    %v6443 = vadd.f32 0.0, %v6442
    %v6444 = vpop.f32.mrb[0].mxu0
    %v6445 = vpop.f32.mrb[0].mxu0
    %v6446 = vadd.f32 0.0, %v6445
    %v6447 = vpop.f32.mrb[0].mxu0
    %6448 = vmatprep.mubr.bf16.mxu0 0
    %6449 = vmatmul.mubr.bf16.gmra.mrb[0].mxu0 %v6130
    %v6450 = vpop.f32.mrb[0].mxu0
    %v6451 = vadd.f32 0.0, %v6450
    %v6452 = vpop.f32.mrb[0].mxu0
    %v6453 = vpop.f32.mrb[0].mxu0
    %v6454 = vadd.f32 0.0, %v6453
    %v6455 = vpop.f32.mrb[0].mxu0
    %6456 = vmatprep.mubr.bf16.mxu0 0
    %6457 = vmatmul.mubr.bf16.gmra.mrb[0].mxu0 %v6131
    %v6458 = vpop.f32.mrb[0].mxu0
    %v6459 = vadd.f32 0.0, %v6458
    %v6460 = vpop.f32.mrb[0].mxu0
    %v6461 = vpop.f32.mrb[0].mxu0
    %v6462 = vadd.f32 0.0, %v6461
    %v6463 = vpop.f32.mrb[0].mxu0
    %6464 = vmatprep.mubr.bf16.mxu0 0
    %6465 = vmatmul.mubr.bf16.gmra.mrb[0].mxu0 %v6132
    %v6466 = vpop.f32.mrb[0].mxu0
    %v6467 = vadd.f32 0.0, %v6466
    %v6468 = vpop.f32.mrb[0].mxu0
    %v6469 = vpop.f32.mrb[0].mxu0
    %v6470 = vadd.f32 0.0, %v6469
    %v6471 = vpop.f32.mrb[0].mxu0
    %6472 = vmatprep.mubr.bf16.mxu0 0
    %6473 = vmatmul.mubr.bf16.gmra.mrb[0].mxu0 %v6133
    %v6474 = vpop.f32.mrb[0].mxu0
    %v6475 = vadd.f32 0.0, %v6474
    %v6476 = vpop.f32.mrb[0].mxu0
    %v6477 = vpop.f32.mrb[0].mxu0
    %v6478 = vadd.f32 0.0, %v6477
    %v6479 = vpop.f32.mrb[0].mxu0
    %6480 = vmatprep.mubr.bf16.mxu0 0
    %6481 = vmatmul.mubr.bf16.gmra.mrb[0].mxu0 %v6134
    %v6482 = vpop.f32.mrb[0].mxu0
    %v6483 = vadd.f32 0.0, %v6482
    %v6484 = vpop.f32.mrb[0].mxu0
    %v6485 = vpop.f32.mrb[0].mxu0
    %v6486 = vadd.f32 0.0, %v6485
    %v6487 = vpop.f32.mrb[0].mxu0
    %6488 = vdwg.mxu0
    %v6505 = vunpack.c.l.b16 %v6023
    %v6506 = vunpack.c.l.b16 %v6024
    %v6507 = vunpack.c.l.b16 %v6025
    %v6508 = vunpack.c.l.b16 %v6026
    %v6509 = vunpack.c.l.b16 %v6027
    %v6510 = vunpack.c.l.b16 %v6028
    %v6511 = vunpack.c.l.b16 %v6029
    %v6512 = vunpack.c.l.b16 %v6030
    %v6513 = vunpack.c.l.b16 %v6031
    %v6514 = vunpack.c.l.b16 %v6032
    %v6515 = vunpack.c.l.b16 %v6033
    %v6516 = vunpack.c.l.b16 %v6034
    %v6517 = vunpack.c.l.b16 %v6035
    %v6518 = vunpack.c.l.b16 %v6036
    %v6519 = vunpack.c.l.b16 %v6037
    %v6520 = vunpack.c.l.b16 %v6038
    %v6521 = vpack.c.b16 %v6506, %v6505
    %v6522 = vpack.c.b16 %v6508, %v6507
    %v6523 = vpack.c.b16 %v6510, %v6509
    %v6524 = vpack.c.b16 %v6512, %v6511
    %v6525 = vpack.c.b16 %v6514, %v6513
    %v6526 = vpack.c.b16 %v6516, %v6515
    %v6527 = vpack.c.b16 %v6518, %v6517
    %v6528 = vpack.c.b16 %v6520, %v6519
    %6537 = vmatprep.subr.bf16.mxu0 0
    %6538 = vmatpush1.bf16.msra.mxu0 %v6521
    %6539 = vmatprep.subr.bf16.mxu0 0
    %6540 = vmatpush1.bf16.msra.mxu0 %v6522
    %6541 = vmatprep.subr.bf16.mxu0 0
    %6542 = vmatpush1.bf16.msra.mxu0 %v6523
    %6543 = vmatprep.subr.bf16.mxu0 0
    %6544 = vmatpush1.bf16.msra.mxu0 %v6524
    %6545 = vmatprep.subr.bf16.mxu0 0
    %6546 = vmatpush1.bf16.msra.mxu0 %v6525
    %6547 = vmatprep.subr.bf16.mxu0 0
    %6548 = vmatpush1.bf16.msra.mxu0 %v6526
    %6549 = vmatprep.subr.bf16.mxu0 0
    %6550 = vmatpush1.bf16.msra.mxu0 %v6527
    %6551 = vmatprep.subr.bf16.mxu0 0
    %6552 = vmatpush1.bf16.msra.mxu0 %v6528
    %6553 = vmatprep.subr.bf16.mxu0 0
    %6554 = vmatpush1.bf16.msra.mxu0 0
    %6555 = vmatprep.subr.bf16.mxu0 0
    %6556 = vmatpush1.bf16.msra.mxu0 0
    %6557 = vmatprep.subr.bf16.mxu0 0
    %6558 = vmatpush1.bf16.msra.mxu0 0
    %6559 = vmatprep.subr.bf16.mxu0 0
    %6560 = vmatpush1.bf16.msra.mxu0 0
    %6561 = vmatprep.subr.bf16.mxu0 0
    %6562 = vmatpush1.bf16.msra.mxu0 0
    %6563 = vmatprep.subr.bf16.mxu0 0
    %6564 = vmatpush1.bf16.msra.mxu0 0
    %6565 = vmatprep.subr.bf16.mxu0 0
    %6566 = vmatpush1.bf16.msra.mxu0 0
    %6567 = vmatprep.subr.bf16.mxu0 0
    %6568 = vmatpush1.bf16.msra.mxu0 0
    %6569 = vmatprep.mubr.bf16.mxu0 0
    %6570 = vmatmul.mubr.bf16.gmra.mrb[0].mxu0 %v5991
    %v6571 = vpop.f32.mrb[0].mxu0
    %v6572 = vadd.f32 %v6235, %v6571
    %v6573 = vpop.f32.mrb[0].mxu0
    %v6574 = vpop.f32.mrb[0].mxu0
    %v6575 = vadd.f32 %v6238, %v6574
    %v6576 = vpop.f32.mrb[0].mxu0
    %6577 = vmatprep.mubr.bf16.mxu0 0
    %6578 = vmatmul.mubr.bf16.gmra.mrb[0].mxu0 %v5992
    %v6579 = vpop.f32.mrb[0].mxu0
    %v6580 = vadd.f32 %v6243, %v6579
    %v6581 = vpop.f32.mrb[0].mxu0
    %v6582 = vpop.f32.mrb[0].mxu0
    %v6583 = vadd.f32 %v6246, %v6582
    %v6584 = vpop.f32.mrb[0].mxu0
    %6585 = vmatprep.mubr.bf16.mxu0 0
    %6586 = vmatmul.mubr.bf16.gmra.mrb[0].mxu0 %v5993
    %v6587 = vpop.f32.mrb[0].mxu0
    %v6588 = vadd.f32 %v6251, %v6587
    %v6589 = vpop.f32.mrb[0].mxu0
    %v6590 = vpop.f32.mrb[0].mxu0
    %v6591 = vadd.f32 %v6254, %v6590
    %v6592 = vpop.f32.mrb[0].mxu0
    %6593 = vmatprep.mubr.bf16.mxu0 0
    %6594 = vmatmul.mubr.bf16.gmra.mrb[0].mxu0 %v5994
    %v6595 = vpop.f32.mrb[0].mxu0
    %v6596 = vadd.f32 %v6259, %v6595
    %v6597 = vpop.f32.mrb[0].mxu0
    %v6598 = vpop.f32.mrb[0].mxu0
    %v6599 = vadd.f32 %v6262, %v6598
    %v6600 = vpop.f32.mrb[0].mxu0
    %6601 = vmatprep.mubr.bf16.mxu0 0
    %6602 = vmatmul.mubr.bf16.gmra.mrb[0].mxu0 %v5995
    %v6603 = vpop.f32.mrb[0].mxu0
    %v6604 = vadd.f32 %v6267, %v6603
    %v6605 = vpop.f32.mrb[0].mxu0
    %v6606 = vpop.f32.mrb[0].mxu0
    %v6607 = vadd.f32 %v6270, %v6606
    %v6608 = vpop.f32.mrb[0].mxu0
    %6609 = vmatprep.mubr.bf16.mxu0 0
    %6610 = vmatmul.mubr.bf16.gmra.mrb[0].mxu0 %v5996
    %v6611 = vpop.f32.mrb[0].mxu0
    %v6612 = vadd.f32 %v6275, %v6611
    %v6613 = vpop.f32.mrb[0].mxu0
    %v6614 = vpop.f32.mrb[0].mxu0
    %v6615 = vadd.f32 %v6278, %v6614
    %v6616 = vpop.f32.mrb[0].mxu0
    %6617 = vmatprep.mubr.bf16.mxu0 0
    %6618 = vmatmul.mubr.bf16.gmra.mrb[0].mxu0 %v5997
    %v6619 = vpop.f32.mrb[0].mxu0
    %v6620 = vadd.f32 %v6283, %v6619
    %v6621 = vpop.f32.mrb[0].mxu0
    %v6622 = vpop.f32.mrb[0].mxu0
    %v6623 = vadd.f32 %v6286, %v6622
    %v6624 = vpop.f32.mrb[0].mxu0
    %6625 = vmatprep.mubr.bf16.mxu0 0
    %6626 = vmatmul.mubr.bf16.gmra.mrb[0].mxu0 %v5998
    %v6627 = vpop.f32.mrb[0].mxu0
    %v6628 = vadd.f32 %v6291, %v6627
    %v6629 = vpop.f32.mrb[0].mxu0
    %v6630 = vpop.f32.mrb[0].mxu0
    %v6631 = vadd.f32 %v6294, %v6630
    %v6632 = vpop.f32.mrb[0].mxu0
    %6633 = vmatprep.mubr.bf16.mxu0 0
    %6634 = vmatmul.mubr.bf16.gmra.mrb[0].mxu0 %v5999
    %v6635 = vpop.f32.mrb[0].mxu0
    %v6636 = vadd.f32 %v6299, %v6635
    %v6637 = vpop.f32.mrb[0].mxu0
    %v6638 = vpop.f32.mrb[0].mxu0
    %v6639 = vadd.f32 %v6302, %v6638
    %v6640 = vpop.f32.mrb[0].mxu0
    %6641 = vmatprep.mubr.bf16.mxu0 0
    %6642 = vmatmul.mubr.bf16.gmra.mrb[0].mxu0 %v6000
    %v6643 = vpop.f32.mrb[0].mxu0
    %v6644 = vadd.f32 %v6307, %v6643
    %v6645 = vpop.f32.mrb[0].mxu0
    %v6646 = vpop.f32.mrb[0].mxu0
    %v6647 = vadd.f32 %v6310, %v6646
    %v6648 = vpop.f32.mrb[0].mxu0
    %6649 = vmatprep.mubr.bf16.mxu0 0
    %6650 = vmatmul.mubr.bf16.gmra.mrb[0].mxu0 %v6001
    %v6651 = vpop.f32.mrb[0].mxu0
    %v6652 = vadd.f32 %v6315, %v6651
    %v6653 = vpop.f32.mrb[0].mxu0
    %v6654 = vpop.f32.mrb[0].mxu0
    %v6655 = vadd.f32 %v6318, %v6654
    %v6656 = vpop.f32.mrb[0].mxu0
    %6657 = vmatprep.mubr.bf16.mxu0 0
    %6658 = vmatmul.mubr.bf16.gmra.mrb[0].mxu0 %v6002
    %v6659 = vpop.f32.mrb[0].mxu0
    %v6660 = vadd.f32 %v6323, %v6659
    %v6661 = vpop.f32.mrb[0].mxu0
    %v6662 = vpop.f32.mrb[0].mxu0
    %v6663 = vadd.f32 %v6326, %v6662
    %v6664 = vpop.f32.mrb[0].mxu0
    %6665 = vmatprep.mubr.bf16.mxu0 0
    %6666 = vmatmul.mubr.bf16.gmra.mrb[0].mxu0 %v6003
    %v6667 = vpop.f32.mrb[0].mxu0
    %v6668 = vadd.f32 %v6331, %v6667
    %v6669 = vpop.f32.mrb[0].mxu0
    %v6670 = vpop.f32.mrb[0].mxu0
    %v6671 = vadd.f32 %v6334, %v6670
    %v6672 = vpop.f32.mrb[0].mxu0
    %6673 = vmatprep.mubr.bf16.mxu0 0
    %6674 = vmatmul.mubr.bf16.gmra.mrb[0].mxu0 %v6004
    %v6675 = vpop.f32.mrb[0].mxu0
    %v6676 = vadd.f32 %v6339, %v6675
    %v6677 = vpop.f32.mrb[0].mxu0
    %v6678 = vpop.f32.mrb[0].mxu0
    %v6679 = vadd.f32 %v6342, %v6678
    %v6680 = vpop.f32.mrb[0].mxu0
    %6681 = vmatprep.mubr.bf16.mxu0 0
    %6682 = vmatmul.mubr.bf16.gmra.mrb[0].mxu0 %v6005
    %v6683 = vpop.f32.mrb[0].mxu0
    %v6684 = vadd.f32 %v6347, %v6683
    %v6685 = vpop.f32.mrb[0].mxu0
    %v6686 = vpop.f32.mrb[0].mxu0
    %v6687 = vadd.f32 %v6350, %v6686
    %v6688 = vpop.f32.mrb[0].mxu0
    %6689 = vmatprep.mubr.bf16.mxu0 0
    %6690 = vmatmul.mubr.bf16.gmra.mrb[0].mxu0 %v6006
    %v6691 = vpop.f32.mrb[0].mxu0
    %v6692 = vadd.f32 %v6355, %v6691
    %v6693 = vpop.f32.mrb[0].mxu0
    %v6694 = vpop.f32.mrb[0].mxu0
    %v6695 = vadd.f32 %v6358, %v6694
    %v6696 = vpop.f32.mrb[0].mxu0
    %6697 = vmatprep.mubr.bf16.mxu0 0
    %6698 = vmatmul.mubr.bf16.gmra.mrb[0].mxu0 %v6007
    %v6699 = vpop.f32.mrb[0].mxu0
    %v6700 = vadd.f32 %v6363, %v6699
    %v6701 = vpop.f32.mrb[0].mxu0
    %v6702 = vpop.f32.mrb[0].mxu0
    %v6703 = vadd.f32 %v6366, %v6702
    %v6704 = vpop.f32.mrb[0].mxu0
    %6705 = vmatprep.mubr.bf16.mxu0 0
    %6706 = vmatmul.mubr.bf16.gmra.mrb[0].mxu0 %v6008
    %v6707 = vpop.f32.mrb[0].mxu0
    %v6708 = vadd.f32 %v6371, %v6707
    %v6709 = vpop.f32.mrb[0].mxu0
    %v6710 = vpop.f32.mrb[0].mxu0
    %v6711 = vadd.f32 %v6374, %v6710
    %v6712 = vpop.f32.mrb[0].mxu0
    %6713 = vmatprep.mubr.bf16.mxu0 0
    %6714 = vmatmul.mubr.bf16.gmra.mrb[0].mxu0 %v6009
    %v6715 = vpop.f32.mrb[0].mxu0
    %v6716 = vadd.f32 %v6379, %v6715
    %v6717 = vpop.f32.mrb[0].mxu0
    %v6718 = vpop.f32.mrb[0].mxu0
    %v6719 = vadd.f32 %v6382, %v6718
    %v6720 = vpop.f32.mrb[0].mxu0
    %6721 = vmatprep.mubr.bf16.mxu0 0
    %6722 = vmatmul.mubr.bf16.gmra.mrb[0].mxu0 %v6010
    %v6723 = vpop.f32.mrb[0].mxu0
    %v6724 = vadd.f32 %v6387, %v6723
    %v6725 = vpop.f32.mrb[0].mxu0
    %v6726 = vpop.f32.mrb[0].mxu0
    %v6727 = vadd.f32 %v6390, %v6726
    %v6728 = vpop.f32.mrb[0].mxu0
    %6729 = vmatprep.mubr.bf16.mxu0 0
    %6730 = vmatmul.mubr.bf16.gmra.mrb[0].mxu0 %v6011
    %v6731 = vpop.f32.mrb[0].mxu0
    %v6732 = vadd.f32 %v6395, %v6731
    %v6733 = vpop.f32.mrb[0].mxu0
    %v6734 = vpop.f32.mrb[0].mxu0
    %v6735 = vadd.f32 %v6398, %v6734
    %v6736 = vpop.f32.mrb[0].mxu0
    %6737 = vmatprep.mubr.bf16.mxu0 0
    %6738 = vmatmul.mubr.bf16.gmra.mrb[0].mxu0 %v6012
    %v6739 = vpop.f32.mrb[0].mxu0
    %v6740 = vadd.f32 %v6403, %v6739
    %v6741 = vpop.f32.mrb[0].mxu0
    %v6742 = vpop.f32.mrb[0].mxu0
    %v6743 = vadd.f32 %v6406, %v6742
    %v6744 = vpop.f32.mrb[0].mxu0
    %6745 = vmatprep.mubr.bf16.mxu0 0
    %6746 = vmatmul.mubr.bf16.gmra.mrb[0].mxu0 %v6013
    %v6747 = vpop.f32.mrb[0].mxu0
    %v6748 = vadd.f32 %v6411, %v6747
    %v6749 = vpop.f32.mrb[0].mxu0
    %v6750 = vpop.f32.mrb[0].mxu0
    %v6751 = vadd.f32 %v6414, %v6750
    %v6752 = vpop.f32.mrb[0].mxu0
    %6753 = vmatprep.mubr.bf16.mxu0 0
    %6754 = vmatmul.mubr.bf16.gmra.mrb[0].mxu0 %v6014
    %v6755 = vpop.f32.mrb[0].mxu0
    %v6756 = vadd.f32 %v6419, %v6755
    %v6757 = vpop.f32.mrb[0].mxu0
    %v6758 = vpop.f32.mrb[0].mxu0
    %v6759 = vadd.f32 %v6422, %v6758
    %v6760 = vpop.f32.mrb[0].mxu0
    %6761 = vmatprep.mubr.bf16.mxu0 0
    %6762 = vmatmul.mubr.bf16.gmra.mrb[0].mxu0 %v6015
    %v6763 = vpop.f32.mrb[0].mxu0
    %v6764 = vadd.f32 %v6427, %v6763
    %v6765 = vpop.f32.mrb[0].mxu0
    %v6766 = vpop.f32.mrb[0].mxu0
    %v6767 = vadd.f32 %v6430, %v6766
    %v6768 = vpop.f32.mrb[0].mxu0
    %6769 = vmatprep.mubr.bf16.mxu0 0
    %6770 = vmatmul.mubr.bf16.gmra.mrb[0].mxu0 %v6016
    %v6771 = vpop.f32.mrb[0].mxu0
    %v6772 = vadd.f32 %v6435, %v6771
    %v6773 = vpop.f32.mrb[0].mxu0
    %v6774 = vpop.f32.mrb[0].mxu0
    %v6775 = vadd.f32 %v6438, %v6774
    %v6776 = vpop.f32.mrb[0].mxu0
    %6777 = vmatprep.mubr.bf16.mxu0 0
    %6778 = vmatmul.mubr.bf16.gmra.mrb[0].mxu0 %v6017
    %v6779 = vpop.f32.mrb[0].mxu0
    %v6780 = vadd.f32 %v6443, %v6779
    %v6781 = vpop.f32.mrb[0].mxu0
    %v6782 = vpop.f32.mrb[0].mxu0
    %v6783 = vadd.f32 %v6446, %v6782
    %v6784 = vpop.f32.mrb[0].mxu0
    %6785 = vmatprep.mubr.bf16.mxu0 0
    %6786 = vmatmul.mubr.bf16.gmra.mrb[0].mxu0 %v6018
    %v6787 = vpop.f32.mrb[0].mxu0
    %v6788 = vadd.f32 %v6451, %v6787
    %v6789 = vpop.f32.mrb[0].mxu0
    %v6790 = vpop.f32.mrb[0].mxu0
    %v6791 = vadd.f32 %v6454, %v6790
    %v6792 = vpop.f32.mrb[0].mxu0
    %6793 = vmatprep.mubr.bf16.mxu0 0
    %6794 = vmatmul.mubr.bf16.gmra.mrb[0].mxu0 %v6019
    %v6795 = vpop.f32.mrb[0].mxu0
    %v6796 = vadd.f32 %v6459, %v6795
    %v6797 = vpop.f32.mrb[0].mxu0
    %v6798 = vpop.f32.mrb[0].mxu0
    %v6799 = vadd.f32 %v6462, %v6798
    %v6800 = vpop.f32.mrb[0].mxu0
    %6801 = vmatprep.mubr.bf16.mxu0 0
    %6802 = vmatmul.mubr.bf16.gmra.mrb[0].mxu0 %v6020
    %v6803 = vpop.f32.mrb[0].mxu0
    %v6804 = vadd.f32 %v6467, %v6803
    %v6805 = vpop.f32.mrb[0].mxu0
    %v6806 = vpop.f32.mrb[0].mxu0
    %v6807 = vadd.f32 %v6470, %v6806
    %v6808 = vpop.f32.mrb[0].mxu0
    %6809 = vmatprep.mubr.bf16.mxu0 0
    %6810 = vmatmul.mubr.bf16.gmra.mrb[0].mxu0 %v6021
    %v6811 = vpop.f32.mrb[0].mxu0
    %v6812 = vadd.f32 %v6475, %v6811
    %v6813 = vpop.f32.mrb[0].mxu0
    %v6814 = vpop.f32.mrb[0].mxu0
    %v6815 = vadd.f32 %v6478, %v6814
    %v6816 = vpop.f32.mrb[0].mxu0
    %6817 = vmatprep.mubr.bf16.mxu0 0
    %6818 = vmatmul.mubr.bf16.gmra.mrb[0].mxu0 %v6022
    %v6819 = vpop.f32.mrb[0].mxu0
    %v6820 = vadd.f32 %v6483, %v6819
    %v6821 = vpop.f32.mrb[0].mxu0
    %v6822 = vpop.f32.mrb[0].mxu0
    %v6823 = vadd.f32 %v6486, %v6822
    %v6824 = vpop.f32.mrb[0].mxu0
    %6825 = vdwg.mxu0
    %v6826 = vld [vmem:[#allocation2 + $0x2] sm:$0xff]
    %v6827 = vld [vmem:[#allocation2 + $0xa] sm:$0xff]
    %v6828 = vld [vmem:[#allocation2 + $0x1a] sm:$0xff]
    %v6829 = vld [vmem:[#allocation2 + $0x22] sm:$0xff]
    %v6830 = vld [vmem:[#allocation2 + $0x32] sm:$0xff]
    %v6831 = vld [vmem:[#allocation2 + $0x3a] sm:$0xff]
    %v6832 = vld [vmem:[#allocation2 + $0x4a] sm:$0xff]
    %v6833 = vld [vmem:[#allocation2 + $0x52] sm:$0xff]
    %v6834 = vld [vmem:[#allocation2 + $0x62] sm:$0xff]
    %v6835 = vld [vmem:[#allocation2 + $0x6a] sm:$0xff]
    %v6836 = vld [vmem:[#allocation2 + $0x7a] sm:$0xff]
    %v6837 = vld [vmem:[#allocation2 + $0x82] sm:$0xff]
    %v6838 = vld [vmem:[#allocation2 + $0x92] sm:$0xff]
    %v6839 = vld [vmem:[#allocation2 + $0x9a] sm:$0xff]
    %v6840 = vld [vmem:[#allocation2 + $0xaa] sm:$0xff]
    %v6841 = vld [vmem:[#allocation2 + $0xb2] sm:$0xff]
    %v6842 = vld [vmem:[#allocation2 + $0xc2] sm:$0xff]
    %v6843 = vld [vmem:[#allocation2 + $0xca] sm:$0xff]
    %v6844 = vld [vmem:[#allocation2 + $0xda] sm:$0xff]
    %v6845 = vld [vmem:[#allocation2 + $0xe2] sm:$0xff]
    %v6846 = vld [vmem:[#allocation2 + $0xf2] sm:$0xff]
    %v6847 = vld [vmem:[#allocation2 + $0xfa] sm:$0xff]
    %v6848 = vld [vmem:[#allocation2 + $0x10a] sm:$0xff]
    %v6849 = vld [vmem:[#allocation2 + $0x112] sm:$0xff]
    %v6850 = vld [vmem:[#allocation2 + $0x122] sm:$0xff]
    %v6851 = vld [vmem:[#allocation2 + $0x12a] sm:$0xff]
    %v6852 = vld [vmem:[#allocation2 + $0x13a] sm:$0xff]
    %v6853 = vld [vmem:[#allocation2 + $0x142] sm:$0xff]
    %v6854 = vld [vmem:[#allocation2 + $0x152] sm:$0xff]
    %v6855 = vld [vmem:[#allocation2 + $0x15a] sm:$0xff]
    %v6856 = vld [vmem:[#allocation2 + $0x16a] sm:$0xff]
    %v6857 = vld [vmem:[#allocation2 + $0x172] sm:$0xff]
    %v6858 = vld [vmem:[#allocation2 + $0x1b2] sm:$0xff]
    %v6859 = vld [vmem:[#allocation2 + $0x1ba] sm:$0xff]
    %v6860 = vld [vmem:[#allocation2 + $0x1ca] sm:$0xff]
    %v6861 = vld [vmem:[#allocation2 + $0x1d2] sm:$0xff]
    %v6862 = vld [vmem:[#allocation2 + $0x1e2] sm:$0xff]
    %v6863 = vld [vmem:[#allocation2 + $0x1ea] sm:$0xff]
    %v6864 = vld [vmem:[#allocation2 + $0x1fa] sm:$0xff]
    %v6865 = vld [vmem:[#allocation2 + $0x202] sm:$0xff]
    %v6866 = vld [vmem:[#allocation2 + $0x212] sm:$0xff]
    %v6867 = vld [vmem:[#allocation2 + $0x21a] sm:$0xff]
    %v6868 = vld [vmem:[#allocation2 + $0x22a] sm:$0xff]
    %v6869 = vld [vmem:[#allocation2 + $0x232] sm:$0xff]
    %v6870 = vld [vmem:[#allocation2 + $0x242] sm:$0xff]
    %v6871 = vld [vmem:[#allocation2 + $0x24a] sm:$0xff]
    %v6872 = vld [vmem:[#allocation2 + $0x25a] sm:$0xff]
    %v6873 = vld [vmem:[#allocation2 + $0x262] sm:$0xff]
    %v6874 = vld [vmem:[#allocation2 + $0x272] sm:$0xff]
    %v6875 = vld [vmem:[#allocation2 + $0x27a] sm:$0xff]
    %v6876 = vld [vmem:[#allocation2 + $0x28a] sm:$0xff]
    %v6877 = vld [vmem:[#allocation2 + $0x292] sm:$0xff]
    %v6878 = vld [vmem:[#allocation2 + $0x2a2] sm:$0xff]
    %v6879 = vld [vmem:[#allocation2 + $0x2aa] sm:$0xff]
    %v6880 = vld [vmem:[#allocation2 + $0x2ba] sm:$0xff]
    %v6881 = vld [vmem:[#allocation2 + $0x2c2] sm:$0xff]
    %v6882 = vld [vmem:[#allocation2 + $0x2d2] sm:$0xff]
    %v6883 = vld [vmem:[#allocation2 + $0x2da] sm:$0xff]
    %v6884 = vld [vmem:[#allocation2 + $0x2ea] sm:$0xff]
    %v6885 = vld [vmem:[#allocation2 + $0x2f2] sm:$0xff]
    %v6886 = vld [vmem:[#allocation2 + $0x302] sm:$0xff]
    %v6887 = vld [vmem:[#allocation2 + $0x30a] sm:$0xff]
    %v6888 = vld [vmem:[#allocation2 + $0x31a] sm:$0xff]
    %v6889 = vld [vmem:[#allocation2 + $0x322] sm:$0xff]
    %v6890 = vpack.c.bf16 %v6827, %v6826
    %v6891 = vpack.c.bf16 %v6829, %v6828
    %v6892 = vpack.c.bf16 %v6831, %v6830
    %v6893 = vpack.c.bf16 %v6833, %v6832
    %v6894 = vpack.c.bf16 %v6835, %v6834
    %v6895 = vpack.c.bf16 %v6837, %v6836
    %v6896 = vpack.c.bf16 %v6839, %v6838
    %v6897 = vpack.c.bf16 %v6841, %v6840
    %v6898 = vpack.c.bf16 %v6843, %v6842
    %v6899 = vpack.c.bf16 %v6845, %v6844
    %v6900 = vpack.c.bf16 %v6847, %v6846
    %v6901 = vpack.c.bf16 %v6849, %v6848
    %v6902 = vpack.c.bf16 %v6851, %v6850
    %v6903 = vpack.c.bf16 %v6853, %v6852
    %v6904 = vpack.c.bf16 %v6855, %v6854
    %v6905 = vpack.c.bf16 %v6857, %v6856
    %v6906 = vpack.c.bf16 %v6859, %v6858
    %v6907 = vpack.c.bf16 %v6861, %v6860
    %v6908 = vpack.c.bf16 %v6863, %v6862
    %v6909 = vpack.c.bf16 %v6865, %v6864
    %v6910 = vpack.c.bf16 %v6867, %v6866
    %v6911 = vpack.c.bf16 %v6869, %v6868
    %v6912 = vpack.c.bf16 %v6871, %v6870
    %v6913 = vpack.c.bf16 %v6873, %v6872
    %v6914 = vpack.c.bf16 %v6875, %v6874
    %v6915 = vpack.c.bf16 %v6877, %v6876
    %v6916 = vpack.c.bf16 %v6879, %v6878
    %v6917 = vpack.c.bf16 %v6881, %v6880
    %v6918 = vpack.c.bf16 %v6883, %v6882
    %v6919 = vpack.c.bf16 %v6885, %v6884
    %v6920 = vpack.c.bf16 %v6887, %v6886
    %v6921 = vpack.c.bf16 %v6889, %v6888
    %s6922 = scalar_lea.vmem [#allocation3], 128
    %v6923 = vld [vmem:[%s6922] sm:$0xf]
    %v6924 = vld [vmem:[%s6922 + $0x4] sm:$0xf]
    %v6925 = vld [vmem:[%s6922 + $0x8] sm:$0xf]
    %v6926 = vld [vmem:[%s6922 + $0xc] sm:$0xf]
    %v6927 = vld [vmem:[%s6922 + $0x10] sm:$0xf]
    %v6928 = vld [vmem:[%s6922 + $0x14] sm:$0xf]
    %v6929 = vld [vmem:[%s6922 + $0x18] sm:$0xf]
    %v6930 = vld [vmem:[%s6922 + $0x1c] sm:$0xf]
    %v6931 = vld [vmem:[%s6922 + $0x20] sm:$0xf]
    %v6932 = vld [vmem:[%s6922 + $0x24] sm:$0xf]
    %v6933 = vld [vmem:[%s6922 + $0x28] sm:$0xf]
    %v6934 = vld [vmem:[%s6922 + $0x2c] sm:$0xf]
    %v6935 = vld [vmem:[%s6922 + $0x30] sm:$0xf]
    %v6936 = vld [vmem:[%s6922 + $0x34] sm:$0xf]
    %v6937 = vld [vmem:[%s6922 + $0x38] sm:$0xf]
    %v6938 = vld [vmem:[%s6922 + $0x3c] sm:$0xf]
    %v6955 = vunpack.c.l.b16 %v6923
    %v6956 = vunpack.c.l.b16 %v6924
    %v6957 = vunpack.c.l.b16 %v6925
    %v6958 = vunpack.c.l.b16 %v6926
    %v6959 = vunpack.c.l.b16 %v6927
    %v6960 = vunpack.c.l.b16 %v6928
    %v6961 = vunpack.c.l.b16 %v6929
    %v6962 = vunpack.c.l.b16 %v6930
    %v6963 = vunpack.c.l.b16 %v6931
    %v6964 = vunpack.c.l.b16 %v6932
    %v6965 = vunpack.c.l.b16 %v6933
    %v6966 = vunpack.c.l.b16 %v6934
    %v6967 = vunpack.c.l.b16 %v6935
    %v6968 = vunpack.c.l.b16 %v6936
    %v6969 = vunpack.c.l.b16 %v6937
    %v6970 = vunpack.c.l.b16 %v6938
    %v6971 = vpack.c.b16 %v6956, %v6955
    %v6972 = vpack.c.b16 %v6958, %v6957
    %v6973 = vpack.c.b16 %v6960, %v6959
    %v6974 = vpack.c.b16 %v6962, %v6961
    %v6975 = vpack.c.b16 %v6964, %v6963
    %v6976 = vpack.c.b16 %v6966, %v6965
    %v6977 = vpack.c.b16 %v6968, %v6967
    %v6978 = vpack.c.b16 %v6970, %v6969
    %6987 = vmatprep.subr.bf16.mxu0 0
    %6988 = vmatpush1.bf16.msra.mxu0 %v6971
    %6989 = vmatprep.subr.bf16.mxu0 0
    %6990 = vmatpush1.bf16.msra.mxu0 %v6972
    %6991 = vmatprep.subr.bf16.mxu0 0
    %6992 = vmatpush1.bf16.msra.mxu0 %v6973
    %6993 = vmatprep.subr.bf16.mxu0 0
    %6994 = vmatpush1.bf16.msra.mxu0 %v6974
    %6995 = vmatprep.subr.bf16.mxu0 0
    %6996 = vmatpush1.bf16.msra.mxu0 %v6975
    %6997 = vmatprep.subr.bf16.mxu0 0
    %6998 = vmatpush1.bf16.msra.mxu0 %v6976
    %6999 = vmatprep.subr.bf16.mxu0 0
    %7000 = vmatpush1.bf16.msra.mxu0 %v6977
    %7001 = vmatprep.subr.bf16.mxu0 0
    %7002 = vmatpush1.bf16.msra.mxu0 %v6978
    %7003 = vmatprep.subr.bf16.mxu0 0
    %7004 = vmatpush1.bf16.msra.mxu0 0
    %7005 = vmatprep.subr.bf16.mxu0 0
    %7006 = vmatpush1.bf16.msra.mxu0 0
    %7007 = vmatprep.subr.bf16.mxu0 0
    %7008 = vmatpush1.bf16.msra.mxu0 0
    %7009 = vmatprep.subr.bf16.mxu0 0
    %7010 = vmatpush1.bf16.msra.mxu0 0
    %7011 = vmatprep.subr.bf16.mxu0 0
    %7012 = vmatpush1.bf16.msra.mxu0 0
    %7013 = vmatprep.subr.bf16.mxu0 0
    %7014 = vmatpush1.bf16.msra.mxu0 0
    %7015 = vmatprep.subr.bf16.mxu0 0
    %7016 = vmatpush1.bf16.msra.mxu0 0
    %7017 = vmatprep.subr.bf16.mxu0 0
    %7018 = vmatpush1.bf16.msra.mxu0 0
    %7019 = vmatprep.mubr.bf16.mxu0 0
    %7020 = vmatmul.mubr.bf16.gmra.mrb[0].mxu0 %v6890
    %v7021 = vpop.f32.mrb[0].mxu0
    %v7022 = vadd.f32 0.0, %v7021
    %v7023 = vpop.f32.mrb[0].mxu0
    %v7024 = vpop.f32.mrb[0].mxu0
    %v7025 = vadd.f32 0.0, %v7024
    %v7026 = vpop.f32.mrb[0].mxu0
    %7027 = vmatprep.mubr.bf16.mxu0 0
    %7028 = vmatmul.mubr.bf16.gmra.mrb[0].mxu0 %v6891
    %v7029 = vpop.f32.mrb[0].mxu0
    %v7030 = vadd.f32 0.0, %v7029
    %v7031 = vpop.f32.mrb[0].mxu0
    %v7032 = vpop.f32.mrb[0].mxu0
    %v7033 = vadd.f32 0.0, %v7032
    %v7034 = vpop.f32.mrb[0].mxu0
    %7035 = vmatprep.mubr.bf16.mxu0 0
    %7036 = vmatmul.mubr.bf16.gmra.mrb[0].mxu0 %v6892
    %v7037 = vpop.f32.mrb[0].mxu0
    %v7038 = vadd.f32 0.0, %v7037
    %v7039 = vpop.f32.mrb[0].mxu0
    %v7040 = vpop.f32.mrb[0].mxu0
    %v7041 = vadd.f32 0.0, %v7040
    %v7042 = vpop.f32.mrb[0].mxu0
    %7043 = vmatprep.mubr.bf16.mxu0 0
    %7044 = vmatmul.mubr.bf16.gmra.mrb[0].mxu0 %v6893
    %v7045 = vpop.f32.mrb[0].mxu0
    %v7046 = vadd.f32 0.0, %v7045
    %v7047 = vpop.f32.mrb[0].mxu0
    %v7048 = vpop.f32.mrb[0].mxu0
    %v7049 = vadd.f32 0.0, %v7048
    %v7050 = vpop.f32.mrb[0].mxu0
    %7051 = vmatprep.mubr.bf16.mxu0 0
    %7052 = vmatmul.mubr.bf16.gmra.mrb[0].mxu0 %v6894
    %v7053 = vpop.f32.mrb[0].mxu0
    %v7054 = vadd.f32 0.0, %v7053
    %v7055 = vpop.f32.mrb[0].mxu0
    %v7056 = vpop.f32.mrb[0].mxu0
    %v7057 = vadd.f32 0.0, %v7056
    %v7058 = vpop.f32.mrb[0].mxu0
    %7059 = vmatprep.mubr.bf16.mxu0 0
    %7060 = vmatmul.mubr.bf16.gmra.mrb[0].mxu0 %v6895
    %v7061 = vpop.f32.mrb[0].mxu0
    %v7062 = vadd.f32 0.0, %v7061
    %v7063 = vpop.f32.mrb[0].mxu0
    %v7064 = vpop.f32.mrb[0].mxu0
    %v7065 = vadd.f32 0.0, %v7064
    %v7066 = vpop.f32.mrb[0].mxu0
    %7067 = vmatprep.mubr.bf16.mxu0 0
    %7068 = vmatmul.mubr.bf16.gmra.mrb[0].mxu0 %v6896
    %v7069 = vpop.f32.mrb[0].mxu0
    %v7070 = vadd.f32 0.0, %v7069
    %v7071 = vpop.f32.mrb[0].mxu0
    %v7072 = vpop.f32.mrb[0].mxu0
    %v7073 = vadd.f32 0.0, %v7072
    %v7074 = vpop.f32.mrb[0].mxu0
    %7075 = vmatprep.mubr.bf16.mxu0 0
    %7076 = vmatmul.mubr.bf16.gmra.mrb[0].mxu0 %v6897
    %v7077 = vpop.f32.mrb[0].mxu0
    %v7078 = vadd.f32 0.0, %v7077
    %v7079 = vpop.f32.mrb[0].mxu0
    %v7080 = vpop.f32.mrb[0].mxu0
    %v7081 = vadd.f32 0.0, %v7080
    %v7082 = vpop.f32.mrb[0].mxu0
    %7083 = vmatprep.mubr.bf16.mxu0 0
    %7084 = vmatmul.mubr.bf16.gmra.mrb[0].mxu0 %v6898
    %v7085 = vpop.f32.mrb[0].mxu0
    %v7086 = vadd.f32 0.0, %v7085
    %v7087 = vpop.f32.mrb[0].mxu0
    %v7088 = vpop.f32.mrb[0].mxu0
    %v7089 = vadd.f32 0.0, %v7088
    %v7090 = vpop.f32.mrb[0].mxu0
    %7091 = vmatprep.mubr.bf16.mxu0 0
    %7092 = vmatmul.mubr.bf16.gmra.mrb[0].mxu0 %v6899
    %v7093 = vpop.f32.mrb[0].mxu0
    %v7094 = vadd.f32 0.0, %v7093
    %v7095 = vpop.f32.mrb[0].mxu0
    %v7096 = vpop.f32.mrb[0].mxu0
    %v7097 = vadd.f32 0.0, %v7096
    %v7098 = vpop.f32.mrb[0].mxu0
    %7099 = vmatprep.mubr.bf16.mxu0 0
    %7100 = vmatmul.mubr.bf16.gmra.mrb[0].mxu0 %v6900
    %v7101 = vpop.f32.mrb[0].mxu0
    %v7102 = vadd.f32 0.0, %v7101
    %v7103 = vpop.f32.mrb[0].mxu0
    %v7104 = vpop.f32.mrb[0].mxu0
    %v7105 = vadd.f32 0.0, %v7104
    %v7106 = vpop.f32.mrb[0].mxu0
    %7107 = vmatprep.mubr.bf16.mxu0 0
    %7108 = vmatmul.mubr.bf16.gmra.mrb[0].mxu0 %v6901
    %v7109 = vpop.f32.mrb[0].mxu0
    %v7110 = vadd.f32 0.0, %v7109
    %v7111 = vpop.f32.mrb[0].mxu0
    %v7112 = vpop.f32.mrb[0].mxu0
    %v7113 = vadd.f32 0.0, %v7112
    %v7114 = vpop.f32.mrb[0].mxu0
    %7115 = vmatprep.mubr.bf16.mxu0 0
    %7116 = vmatmul.mubr.bf16.gmra.mrb[0].mxu0 %v6902
    %v7117 = vpop.f32.mrb[0].mxu0
    %v7118 = vadd.f32 0.0, %v7117
    %v7119 = vpop.f32.mrb[0].mxu0
    %v7120 = vpop.f32.mrb[0].mxu0
    %v7121 = vadd.f32 0.0, %v7120
    %v7122 = vpop.f32.mrb[0].mxu0
    %7123 = vmatprep.mubr.bf16.mxu0 0
    %7124 = vmatmul.mubr.bf16.gmra.mrb[0].mxu0 %v6903
    %v7125 = vpop.f32.mrb[0].mxu0
    %v7126 = vadd.f32 0.0, %v7125
    %v7127 = vpop.f32.mrb[0].mxu0
    %v7128 = vpop.f32.mrb[0].mxu0
    %v7129 = vadd.f32 0.0, %v7128
    %v7130 = vpop.f32.mrb[0].mxu0
    %7131 = vmatprep.mubr.bf16.mxu0 0
    %7132 = vmatmul.mubr.bf16.gmra.mrb[0].mxu0 %v6904
    %v7133 = vpop.f32.mrb[0].mxu0
    %v7134 = vadd.f32 0.0, %v7133
    %v7135 = vpop.f32.mrb[0].mxu0
    %v7136 = vpop.f32.mrb[0].mxu0
    %v7137 = vadd.f32 0.0, %v7136
    %v7138 = vpop.f32.mrb[0].mxu0
    %7139 = vmatprep.mubr.bf16.mxu0 0
    %7140 = vmatmul.mubr.bf16.gmra.mrb[0].mxu0 %v6905
    %v7141 = vpop.f32.mrb[0].mxu0
    %v7142 = vadd.f32 0.0, %v7141
    %v7143 = vpop.f32.mrb[0].mxu0
    %v7144 = vpop.f32.mrb[0].mxu0
    %v7145 = vadd.f32 0.0, %v7144
    %v7146 = vpop.f32.mrb[0].mxu0
    %7147 = vmatprep.mubr.bf16.mxu0 0
    %7148 = vmatmul.mubr.bf16.gmra.mrb[0].mxu0 %v6906
    %v7149 = vpop.f32.mrb[0].mxu0
    %v7150 = vadd.f32 0.0, %v7149
    %v7151 = vpop.f32.mrb[0].mxu0
    %v7152 = vpop.f32.mrb[0].mxu0
    %v7153 = vadd.f32 0.0, %v7152
    %v7154 = vpop.f32.mrb[0].mxu0
    %7155 = vmatprep.mubr.bf16.mxu0 0
    %7156 = vmatmul.mubr.bf16.gmra.mrb[0].mxu0 %v6907
    %v7157 = vpop.f32.mrb[0].mxu0
    %v7158 = vadd.f32 0.0, %v7157
    %v7159 = vpop.f32.mrb[0].mxu0
    %v7160 = vpop.f32.mrb[0].mxu0
    %v7161 = vadd.f32 0.0, %v7160
    %v7162 = vpop.f32.mrb[0].mxu0
    %7163 = vmatprep.mubr.bf16.mxu0 0
    %7164 = vmatmul.mubr.bf16.gmra.mrb[0].mxu0 %v6908
    %v7165 = vpop.f32.mrb[0].mxu0
    %v7166 = vadd.f32 0.0, %v7165
    %v7167 = vpop.f32.mrb[0].mxu0
    %v7168 = vpop.f32.mrb[0].mxu0
    %v7169 = vadd.f32 0.0, %v7168
    %v7170 = vpop.f32.mrb[0].mxu0
    %7171 = vmatprep.mubr.bf16.mxu0 0
    %7172 = vmatmul.mubr.bf16.gmra.mrb[0].mxu0 %v6909
    %v7173 = vpop.f32.mrb[0].mxu0
    %v7174 = vadd.f32 0.0, %v7173
    %v7175 = vpop.f32.mrb[0].mxu0
    %v7176 = vpop.f32.mrb[0].mxu0
    %v7177 = vadd.f32 0.0, %v7176
    %v7178 = vpop.f32.mrb[0].mxu0
    %7179 = vmatprep.mubr.bf16.mxu0 0
    %7180 = vmatmul.mubr.bf16.gmra.mrb[0].mxu0 %v6910
    %v7181 = vpop.f32.mrb[0].mxu0
    %v7182 = vadd.f32 0.0, %v7181
    %v7183 = vpop.f32.mrb[0].mxu0
    %v7184 = vpop.f32.mrb[0].mxu0
    %v7185 = vadd.f32 0.0, %v7184
    %v7186 = vpop.f32.mrb[0].mxu0
    %7187 = vmatprep.mubr.bf16.mxu0 0
    %7188 = vmatmul.mubr.bf16.gmra.mrb[0].mxu0 %v6911
    %v7189 = vpop.f32.mrb[0].mxu0
    %v7190 = vadd.f32 0.0, %v7189
    %v7191 = vpop.f32.mrb[0].mxu0
    %v7192 = vpop.f32.mrb[0].mxu0
    %v7193 = vadd.f32 0.0, %v7192
    %v7194 = vpop.f32.mrb[0].mxu0
    %7195 = vmatprep.mubr.bf16.mxu0 0
    %7196 = vmatmul.mubr.bf16.gmra.mrb[0].mxu0 %v6912
    %v7197 = vpop.f32.mrb[0].mxu0
    %v7198 = vadd.f32 0.0, %v7197
    %v7199 = vpop.f32.mrb[0].mxu0
    %v7200 = vpop.f32.mrb[0].mxu0
    %v7201 = vadd.f32 0.0, %v7200
    %v7202 = vpop.f32.mrb[0].mxu0
    %7203 = vmatprep.mubr.bf16.mxu0 0
    %7204 = vmatmul.mubr.bf16.gmra.mrb[0].mxu0 %v6913
    %v7205 = vpop.f32.mrb[0].mxu0
    %v7206 = vadd.f32 0.0, %v7205
    %v7207 = vpop.f32.mrb[0].mxu0
    %v7208 = vpop.f32.mrb[0].mxu0
    %v7209 = vadd.f32 0.0, %v7208
    %v7210 = vpop.f32.mrb[0].mxu0
    %7211 = vmatprep.mubr.bf16.mxu0 0
    %7212 = vmatmul.mubr.bf16.gmra.mrb[0].mxu0 %v6914
    %v7213 = vpop.f32.mrb[0].mxu0
    %v7214 = vadd.f32 0.0, %v7213
    %v7215 = vpop.f32.mrb[0].mxu0
    %v7216 = vpop.f32.mrb[0].mxu0
    %v7217 = vadd.f32 0.0, %v7216
    %v7218 = vpop.f32.mrb[0].mxu0
    %7219 = vmatprep.mubr.bf16.mxu0 0
    %7220 = vmatmul.mubr.bf16.gmra.mrb[0].mxu0 %v6915
    %v7221 = vpop.f32.mrb[0].mxu0
    %v7222 = vadd.f32 0.0, %v7221
    %v7223 = vpop.f32.mrb[0].mxu0
    %v7224 = vpop.f32.mrb[0].mxu0
    %v7225 = vadd.f32 0.0, %v7224
    %v7226 = vpop.f32.mrb[0].mxu0
    %7227 = vmatprep.mubr.bf16.mxu0 0
    %7228 = vmatmul.mubr.bf16.gmra.mrb[0].mxu0 %v6916
    %v7229 = vpop.f32.mrb[0].mxu0
    %v7230 = vadd.f32 0.0, %v7229
    %v7231 = vpop.f32.mrb[0].mxu0
    %v7232 = vpop.f32.mrb[0].mxu0
    %v7233 = vadd.f32 0.0, %v7232
    %v7234 = vpop.f32.mrb[0].mxu0
    %7235 = vmatprep.mubr.bf16.mxu0 0
    %7236 = vmatmul.mubr.bf16.gmra.mrb[0].mxu0 %v6917
    %v7237 = vpop.f32.mrb[0].mxu0
    %v7238 = vadd.f32 0.0, %v7237
    %v7239 = vpop.f32.mrb[0].mxu0
    %v7240 = vpop.f32.mrb[0].mxu0
    %v7241 = vadd.f32 0.0, %v7240
    %v7242 = vpop.f32.mrb[0].mxu0
    %7243 = vmatprep.mubr.bf16.mxu0 0
    %7244 = vmatmul.mubr.bf16.gmra.mrb[0].mxu0 %v6918
    %v7245 = vpop.f32.mrb[0].mxu0
    %v7246 = vadd.f32 0.0, %v7245
    %v7247 = vpop.f32.mrb[0].mxu0
    %v7248 = vpop.f32.mrb[0].mxu0
    %v7249 = vadd.f32 0.0, %v7248
    %v7250 = vpop.f32.mrb[0].mxu0
    %7251 = vmatprep.mubr.bf16.mxu0 0
    %7252 = vmatmul.mubr.bf16.gmra.mrb[0].mxu0 %v6919
    %v7253 = vpop.f32.mrb[0].mxu0
    %v7254 = vadd.f32 0.0, %v7253
    %v7255 = vpop.f32.mrb[0].mxu0
    %v7256 = vpop.f32.mrb[0].mxu0
    %v7257 = vadd.f32 0.0, %v7256
    %v7258 = vpop.f32.mrb[0].mxu0
    %7259 = vmatprep.mubr.bf16.mxu0 0
    %7260 = vmatmul.mubr.bf16.gmra.mrb[0].mxu0 %v6920
    %v7261 = vpop.f32.mrb[0].mxu0
    %v7262 = vadd.f32 0.0, %v7261
    %v7263 = vpop.f32.mrb[0].mxu0
    %v7264 = vpop.f32.mrb[0].mxu0
    %v7265 = vadd.f32 0.0, %v7264
    %v7266 = vpop.f32.mrb[0].mxu0
    %7267 = vmatprep.mubr.bf16.mxu0 0
    %7268 = vmatmul.mubr.bf16.gmra.mrb[0].mxu0 %v6921
    %v7269 = vpop.f32.mrb[0].mxu0
    %v7270 = vadd.f32 0.0, %v7269
    %v7271 = vpop.f32.mrb[0].mxu0
    %v7272 = vpop.f32.mrb[0].mxu0
    %v7273 = vadd.f32 0.0, %v7272
    %v7274 = vpop.f32.mrb[0].mxu0
    %7275 = vdwg.mxu0
    %v7276 = vadd.f32 %v6572, %v7022
    %v7277 = vadd.f32 %v6575, %v7025
    %v7278 = vadd.f32 %v6580, %v7030
    %v7279 = vadd.f32 %v6583, %v7033
    %v7280 = vadd.f32 %v6588, %v7038
    %v7281 = vadd.f32 %v6591, %v7041
    %v7282 = vadd.f32 %v6596, %v7046
    %v7283 = vadd.f32 %v6599, %v7049
    %v7284 = vadd.f32 %v6604, %v7054
    %v7285 = vadd.f32 %v6607, %v7057
    %v7286 = vadd.f32 %v6612, %v7062
    %v7287 = vadd.f32 %v6615, %v7065
    %v7288 = vadd.f32 %v6620, %v7070
    %v7289 = vadd.f32 %v6623, %v7073
    %v7290 = vadd.f32 %v6628, %v7078
    %v7291 = vadd.f32 %v6631, %v7081
    %v7292 = vadd.f32 %v6636, %v7086
    %v7293 = vadd.f32 %v6639, %v7089
    %v7294 = vadd.f32 %v6644, %v7094
    %v7295 = vadd.f32 %v6647, %v7097
    %v7296 = vadd.f32 %v6652, %v7102
    %v7297 = vadd.f32 %v6655, %v7105
    %v7298 = vadd.f32 %v6660, %v7110
    %v7299 = vadd.f32 %v6663, %v7113
    %v7300 = vadd.f32 %v6668, %v7118
    %v7301 = vadd.f32 %v6671, %v7121
    %v7302 = vadd.f32 %v6676, %v7126
    %v7303 = vadd.f32 %v6679, %v7129
    %v7304 = vadd.f32 %v6684, %v7134
    %v7305 = vadd.f32 %v6687, %v7137
    %v7306 = vadd.f32 %v6692, %v7142
    %v7307 = vadd.f32 %v6695, %v7145
    %v7308 = vadd.f32 %v6700, %v7150
    %v7309 = vadd.f32 %v6703, %v7153
    %v7310 = vadd.f32 %v6708, %v7158
    %v7311 = vadd.f32 %v6711, %v7161
    %v7312 = vadd.f32 %v6716, %v7166
    %v7313 = vadd.f32 %v6719, %v7169
    %v7314 = vadd.f32 %v6724, %v7174
    %v7315 = vadd.f32 %v6727, %v7177
    %v7316 = vadd.f32 %v6732, %v7182
    %v7317 = vadd.f32 %v6735, %v7185
    %v7318 = vadd.f32 %v6740, %v7190
    %v7319 = vadd.f32 %v6743, %v7193
    %v7320 = vadd.f32 %v6748, %v7198
    %v7321 = vadd.f32 %v6751, %v7201
    %v7322 = vadd.f32 %v6756, %v7206
    %v7323 = vadd.f32 %v6759, %v7209
    %v7324 = vadd.f32 %v6764, %v7214
    %v7325 = vadd.f32 %v6767, %v7217
    %v7326 = vadd.f32 %v6772, %v7222
    %v7327 = vadd.f32 %v6775, %v7225
    %v7328 = vadd.f32 %v6780, %v7230
    %v7329 = vadd.f32 %v6783, %v7233
    %v7330 = vadd.f32 %v6788, %v7238
    %v7331 = vadd.f32 %v6791, %v7241
    %v7332 = vadd.f32 %v6796, %v7246
    %v7333 = vadd.f32 %v6799, %v7249
    %v7334 = vadd.f32 %v6804, %v7254
    %v7335 = vadd.f32 %v6807, %v7257
    %v7336 = vadd.f32 %v6812, %v7262
    %v7337 = vadd.f32 %v6815, %v7265
    %v7338 = vadd.f32 %v6820, %v7270
    %v7339 = vadd.f32 %v6823, %v7273
    %v7340 = vld [vmem:[%s5862] sm:$0xff]
    %v7341 = vld [vmem:[%s5862 + $0x8] sm:$0xff]
    %v7342 = vld [vmem:[%s5862 + $0x18] sm:$0xff]
    %v7343 = vld [vmem:[%s5862 + $0x20] sm:$0xff]
    %v7344 = vld [vmem:[%s5862 + $0x30] sm:$0xff]
    %v7345 = vld [vmem:[%s5862 + $0x38] sm:$0xff]
    %v7346 = vld [vmem:[%s5862 + $0x48] sm:$0xff]
    %v7347 = vld [vmem:[%s5862 + $0x50] sm:$0xff]
    %v7348 = vld [vmem:[%s5862 + $0x60] sm:$0xff]
    %v7349 = vld [vmem:[%s5862 + $0x68] sm:$0xff]
    %v7350 = vld [vmem:[%s5862 + $0x78] sm:$0xff]
    %v7351 = vld [vmem:[%s5862 + $0x80] sm:$0xff]
    %v7352 = vld [vmem:[%s5862 + $0x90] sm:$0xff]
    %v7353 = vld [vmem:[%s5862 + $0x98] sm:$0xff]
    %v7354 = vld [vmem:[%s5862 + $0xa8] sm:$0xff]
    %v7355 = vld [vmem:[%s5862 + $0xb0] sm:$0xff]
    %v7356 = vld [vmem:[%s5862 + $0xc0] sm:$0xff]
    %v7357 = vld [vmem:[%s5862 + $0xc8] sm:$0xff]
    %v7358 = vld [vmem:[%s5862 + $0xd8] sm:$0xff]
    %v7359 = vld [vmem:[%s5862 + $0xe0] sm:$0xff]
    %v7360 = vld [vmem:[%s5862 + $0xf0] sm:$0xff]
    %v7361 = vld [vmem:[%s5862 + $0xf8] sm:$0xff]
    %v7362 = vld [vmem:[%s5862 + $0x108] sm:$0xff]
    %v7363 = vld [vmem:[%s5862 + $0x110] sm:$0xff]
    %v7364 = vld [vmem:[%s5862 + $0x120] sm:$0xff]
    %v7365 = vld [vmem:[%s5862 + $0x128] sm:$0xff]
    %v7366 = vld [vmem:[%s5862 + $0x138] sm:$0xff]
    %v7367 = vld [vmem:[%s5862 + $0x140] sm:$0xff]
    %v7368 = vld [vmem:[%s5862 + $0x150] sm:$0xff]
    %v7369 = vld [vmem:[%s5862 + $0x158] sm:$0xff]
    %v7370 = vld [vmem:[%s5862 + $0x168] sm:$0xff]
    %v7371 = vld [vmem:[%s5862 + $0x170] sm:$0xff]
    %v7372 = vld [vmem:[%s5862 + $0x1b0] sm:$0xff]
    %v7373 = vld [vmem:[%s5862 + $0x1b8] sm:$0xff]
    %v7374 = vld [vmem:[%s5862 + $0x1c8] sm:$0xff]
    %v7375 = vld [vmem:[%s5862 + $0x1d0] sm:$0xff]
    %v7376 = vld [vmem:[%s5862 + $0x1e0] sm:$0xff]
    %v7377 = vld [vmem:[%s5862 + $0x1e8] sm:$0xff]
    %v7378 = vld [vmem:[%s5862 + $0x1f8] sm:$0xff]
    %v7379 = vld [vmem:[%s5862 + $0x200] sm:$0xff]
    %v7380 = vld [vmem:[%s5862 + $0x210] sm:$0xff]
    %v7381 = vld [vmem:[%s5862 + $0x218] sm:$0xff]
    %v7382 = vld [vmem:[%s5862 + $0x228] sm:$0xff]
    %v7383 = vld [vmem:[%s5862 + $0x230] sm:$0xff]
    %v7384 = vld [vmem:[%s5862 + $0x240] sm:$0xff]
    %v7385 = vld [vmem:[%s5862 + $0x248] sm:$0xff]
    %v7386 = vld [vmem:[%s5862 + $0x258] sm:$0xff]
    %v7387 = vld [vmem:[%s5862 + $0x260] sm:$0xff]
    %v7388 = vld [vmem:[%s5862 + $0x270] sm:$0xff]
    %v7389 = vld [vmem:[%s5862 + $0x278] sm:$0xff]
    %v7390 = vld [vmem:[%s5862 + $0x288] sm:$0xff]
    %v7391 = vld [vmem:[%s5862 + $0x290] sm:$0xff]
    %v7392 = vld [vmem:[%s5862 + $0x2a0] sm:$0xff]
    %v7393 = vld [vmem:[%s5862 + $0x2a8] sm:$0xff]
    %v7394 = vld [vmem:[%s5862 + $0x2b8] sm:$0xff]
    %v7395 = vld [vmem:[%s5862 + $0x2c0] sm:$0xff]
    %v7396 = vld [vmem:[%s5862 + $0x2d0] sm:$0xff]
    %v7397 = vld [vmem:[%s5862 + $0x2d8] sm:$0xff]
    %v7398 = vld [vmem:[%s5862 + $0x2e8] sm:$0xff]
    %v7399 = vld [vmem:[%s5862 + $0x2f0] sm:$0xff]
    %v7400 = vld [vmem:[%s5862 + $0x300] sm:$0xff]
    %v7401 = vld [vmem:[%s5862 + $0x308] sm:$0xff]
    %v7402 = vld [vmem:[%s5862 + $0x318] sm:$0xff]
    %v7403 = vld [vmem:[%s5862 + $0x320] sm:$0xff]
    %v7404 = vpack.c.bf16 %v7341, %v7340
    %v7405 = vpack.c.bf16 %v7343, %v7342
    %v7406 = vpack.c.bf16 %v7345, %v7344
    %v7407 = vpack.c.bf16 %v7347, %v7346
    %v7408 = vpack.c.bf16 %v7349, %v7348
    %v7409 = vpack.c.bf16 %v7351, %v7350
    %v7410 = vpack.c.bf16 %v7353, %v7352
    %v7411 = vpack.c.bf16 %v7355, %v7354
    %v7412 = vpack.c.bf16 %v7357, %v7356
    %v7413 = vpack.c.bf16 %v7359, %v7358
    %v7414 = vpack.c.bf16 %v7361, %v7360
    %v7415 = vpack.c.bf16 %v7363, %v7362
    %v7416 = vpack.c.bf16 %v7365, %v7364
    %v7417 = vpack.c.bf16 %v7367, %v7366
    %v7418 = vpack.c.bf16 %v7369, %v7368
    %v7419 = vpack.c.bf16 %v7371, %v7370
    %v7420 = vpack.c.bf16 %v7373, %v7372
    %v7421 = vpack.c.bf16 %v7375, %v7374
    %v7422 = vpack.c.bf16 %v7377, %v7376
    %v7423 = vpack.c.bf16 %v7379, %v7378
    %v7424 = vpack.c.bf16 %v7381, %v7380
    %v7425 = vpack.c.bf16 %v7383, %v7382
    %v7426 = vpack.c.bf16 %v7385, %v7384
    %v7427 = vpack.c.bf16 %v7387, %v7386
    %v7428 = vpack.c.bf16 %v7389, %v7388
    %v7429 = vpack.c.bf16 %v7391, %v7390
    %v7430 = vpack.c.bf16 %v7393, %v7392
    %v7431 = vpack.c.bf16 %v7395, %v7394
    %v7432 = vpack.c.bf16 %v7397, %v7396
    %v7433 = vpack.c.bf16 %v7399, %v7398
    %v7434 = vpack.c.bf16 %v7401, %v7400
    %v7435 = vpack.c.bf16 %v7403, %v7402
    %s7436 = scalar_lea.vmem [#allocation3], 192
    %v7437 = vld [vmem:[%s7436] sm:$0xf]
    %v7438 = vld [vmem:[%s7436 + $0x4] sm:$0xf]
    %v7439 = vld [vmem:[%s7436 + $0x8] sm:$0xf]
    %v7440 = vld [vmem:[%s7436 + $0xc] sm:$0xf]
    %v7441 = vld [vmem:[%s7436 + $0x10] sm:$0xf]
    %v7442 = vld [vmem:[%s7436 + $0x14] sm:$0xf]
    %v7443 = vld [vmem:[%s7436 + $0x18] sm:$0xf]
    %v7444 = vld [vmem:[%s7436 + $0x1c] sm:$0xf]
    %v7445 = vld [vmem:[%s7436 + $0x20] sm:$0xf]
    %v7446 = vld [vmem:[%s7436 + $0x24] sm:$0xf]
    %v7447 = vld [vmem:[%s7436 + $0x28] sm:$0xf]
    %v7448 = vld [vmem:[%s7436 + $0x2c] sm:$0xf]
    %v7449 = vld [vmem:[%s7436 + $0x30] sm:$0xf]
    %v7450 = vld [vmem:[%s7436 + $0x34] sm:$0xf]
    %v7451 = vld [vmem:[%s7436 + $0x38] sm:$0xf]
    %v7452 = vld [vmem:[%s7436 + $0x3c] sm:$0xf]
    %v7469 = vunpack.c.l.b16 %v7437
    %v7470 = vunpack.c.l.b16 %v7438
    %v7471 = vunpack.c.l.b16 %v7439
    %v7472 = vunpack.c.l.b16 %v7440
    %v7473 = vunpack.c.l.b16 %v7441
    %v7474 = vunpack.c.l.b16 %v7442
    %v7475 = vunpack.c.l.b16 %v7443
    %v7476 = vunpack.c.l.b16 %v7444
    %v7477 = vunpack.c.l.b16 %v7445
    %v7478 = vunpack.c.l.b16 %v7446
    %v7479 = vunpack.c.l.b16 %v7447
    %v7480 = vunpack.c.l.b16 %v7448
    %v7481 = vunpack.c.l.b16 %v7449
    %v7482 = vunpack.c.l.b16 %v7450
    %v7483 = vunpack.c.l.b16 %v7451
    %v7484 = vunpack.c.l.b16 %v7452
    %v7485 = vpack.c.b16 %v7470, %v7469
    %v7486 = vpack.c.b16 %v7472, %v7471
    %v7487 = vpack.c.b16 %v7474, %v7473
    %v7488 = vpack.c.b16 %v7476, %v7475
    %v7489 = vpack.c.b16 %v7478, %v7477
    %v7490 = vpack.c.b16 %v7480, %v7479
    %v7491 = vpack.c.b16 %v7482, %v7481
    %v7492 = vpack.c.b16 %v7484, %v7483
    %7501 = vmatprep.subr.bf16.mxu0 0
    %7502 = vmatpush1.bf16.msra.mxu0 %v7485
    %7503 = vmatprep.subr.bf16.mxu0 0
    %7504 = vmatpush1.bf16.msra.mxu0 %v7486
    %7505 = vmatprep.subr.bf16.mxu0 0
    %7506 = vmatpush1.bf16.msra.mxu0 %v7487
    %7507 = vmatprep.subr.bf16.mxu0 0
    %7508 = vmatpush1.bf16.msra.mxu0 %v7488
    %7509 = vmatprep.subr.bf16.mxu0 0
    %7510 = vmatpush1.bf16.msra.mxu0 %v7489
    %7511 = vmatprep.subr.bf16.mxu0 0
    %7512 = vmatpush1.bf16.msra.mxu0 %v7490
    %7513 = vmatprep.subr.bf16.mxu0 0
    %7514 = vmatpush1.bf16.msra.mxu0 %v7491
    %7515 = vmatprep.subr.bf16.mxu0 0
    %7516 = vmatpush1.bf16.msra.mxu0 %v7492
    %7517 = vmatprep.subr.bf16.mxu0 0
    %7518 = vmatpush1.bf16.msra.mxu0 0
    %7519 = vmatprep.subr.bf16.mxu0 0
    %7520 = vmatpush1.bf16.msra.mxu0 0
    %7521 = vmatprep.subr.bf16.mxu0 0
    %7522 = vmatpush1.bf16.msra.mxu0 0
    %7523 = vmatprep.subr.bf16.mxu0 0
    %7524 = vmatpush1.bf16.msra.mxu0 0
    %7525 = vmatprep.subr.bf16.mxu0 0
    %7526 = vmatpush1.bf16.msra.mxu0 0
    %7527 = vmatprep.subr.bf16.mxu0 0
    %7528 = vmatpush1.bf16.msra.mxu0 0
    %7529 = vmatprep.subr.bf16.mxu0 0
    %7530 = vmatpush1.bf16.msra.mxu0 0
    %7531 = vmatprep.subr.bf16.mxu0 0
    %7532 = vmatpush1.bf16.msra.mxu0 0
    %7533 = vmatprep.mubr.bf16.mxu0 0
    %7534 = vmatmul.mubr.bf16.gmra.mrb[0].mxu0 %v7404
    %v7535 = vpop.f32.mrb[0].mxu0
    %v7536 = vadd.f32 0.0, %v7535
    %v7537 = vpop.f32.mrb[0].mxu0
    %v7538 = vpop.f32.mrb[0].mxu0
    %v7539 = vadd.f32 0.0, %v7538
    %v7540 = vpop.f32.mrb[0].mxu0
    %7541 = vmatprep.mubr.bf16.mxu0 0
    %7542 = vmatmul.mubr.bf16.gmra.mrb[0].mxu0 %v7405
    %v7543 = vpop.f32.mrb[0].mxu0
    %v7544 = vadd.f32 0.0, %v7543
    %v7545 = vpop.f32.mrb[0].mxu0
    %v7546 = vpop.f32.mrb[0].mxu0
    %v7547 = vadd.f32 0.0, %v7546
    %v7548 = vpop.f32.mrb[0].mxu0
    %7549 = vmatprep.mubr.bf16.mxu0 0
    %7550 = vmatmul.mubr.bf16.gmra.mrb[0].mxu0 %v7406
    %v7551 = vpop.f32.mrb[0].mxu0
    %v7552 = vadd.f32 0.0, %v7551
    %v7553 = vpop.f32.mrb[0].mxu0
    %v7554 = vpop.f32.mrb[0].mxu0
    %v7555 = vadd.f32 0.0, %v7554
    %v7556 = vpop.f32.mrb[0].mxu0
    %7557 = vmatprep.mubr.bf16.mxu0 0
    %7558 = vmatmul.mubr.bf16.gmra.mrb[0].mxu0 %v7407
    %v7559 = vpop.f32.mrb[0].mxu0
    %v7560 = vadd.f32 0.0, %v7559
    %v7561 = vpop.f32.mrb[0].mxu0
    %v7562 = vpop.f32.mrb[0].mxu0
    %v7563 = vadd.f32 0.0, %v7562
    %v7564 = vpop.f32.mrb[0].mxu0
    %7565 = vmatprep.mubr.bf16.mxu0 0
    %7566 = vmatmul.mubr.bf16.gmra.mrb[0].mxu0 %v7408
    %v7567 = vpop.f32.mrb[0].mxu0
    %v7568 = vadd.f32 0.0, %v7567
    %v7569 = vpop.f32.mrb[0].mxu0
    %v7570 = vpop.f32.mrb[0].mxu0
    %v7571 = vadd.f32 0.0, %v7570
    %v7572 = vpop.f32.mrb[0].mxu0
    %7573 = vmatprep.mubr.bf16.mxu0 0
    %7574 = vmatmul.mubr.bf16.gmra.mrb[0].mxu0 %v7409
    %v7575 = vpop.f32.mrb[0].mxu0
    %v7576 = vadd.f32 0.0, %v7575
    %v7577 = vpop.f32.mrb[0].mxu0
    %v7578 = vpop.f32.mrb[0].mxu0
    %v7579 = vadd.f32 0.0, %v7578
    %v7580 = vpop.f32.mrb[0].mxu0
    %7581 = vmatprep.mubr.bf16.mxu0 0
    %7582 = vmatmul.mubr.bf16.gmra.mrb[0].mxu0 %v7410
    %v7583 = vpop.f32.mrb[0].mxu0
    %v7584 = vadd.f32 0.0, %v7583
    %v7585 = vpop.f32.mrb[0].mxu0
    %v7586 = vpop.f32.mrb[0].mxu0
    %v7587 = vadd.f32 0.0, %v7586
    %v7588 = vpop.f32.mrb[0].mxu0
    %7589 = vmatprep.mubr.bf16.mxu0 0
    %7590 = vmatmul.mubr.bf16.gmra.mrb[0].mxu0 %v7411
    %v7591 = vpop.f32.mrb[0].mxu0
    %v7592 = vadd.f32 0.0, %v7591
    %v7593 = vpop.f32.mrb[0].mxu0
    %v7594 = vpop.f32.mrb[0].mxu0
    %v7595 = vadd.f32 0.0, %v7594
    %v7596 = vpop.f32.mrb[0].mxu0
    %7597 = vmatprep.mubr.bf16.mxu0 0
    %7598 = vmatmul.mubr.bf16.gmra.mrb[0].mxu0 %v7412
    %v7599 = vpop.f32.mrb[0].mxu0
    %v7600 = vadd.f32 0.0, %v7599
    %v7601 = vpop.f32.mrb[0].mxu0
    %v7602 = vpop.f32.mrb[0].mxu0
    %v7603 = vadd.f32 0.0, %v7602
    %v7604 = vpop.f32.mrb[0].mxu0
    %7605 = vmatprep.mubr.bf16.mxu0 0
    %7606 = vmatmul.mubr.bf16.gmra.mrb[0].mxu0 %v7413
    %v7607 = vpop.f32.mrb[0].mxu0
    %v7608 = vadd.f32 0.0, %v7607
    %v7609 = vpop.f32.mrb[0].mxu0
    %v7610 = vpop.f32.mrb[0].mxu0
    %v7611 = vadd.f32 0.0, %v7610
    %v7612 = vpop.f32.mrb[0].mxu0
    %7613 = vmatprep.mubr.bf16.mxu0 0
    %7614 = vmatmul.mubr.bf16.gmra.mrb[0].mxu0 %v7414
    %v7615 = vpop.f32.mrb[0].mxu0
    %v7616 = vadd.f32 0.0, %v7615
    %v7617 = vpop.f32.mrb[0].mxu0
    %v7618 = vpop.f32.mrb[0].mxu0
    %v7619 = vadd.f32 0.0, %v7618
    %v7620 = vpop.f32.mrb[0].mxu0
    %7621 = vmatprep.mubr.bf16.mxu0 0
    %7622 = vmatmul.mubr.bf16.gmra.mrb[0].mxu0 %v7415
    %v7623 = vpop.f32.mrb[0].mxu0
    %v7624 = vadd.f32 0.0, %v7623
    %v7625 = vpop.f32.mrb[0].mxu0
    %v7626 = vpop.f32.mrb[0].mxu0
    %v7627 = vadd.f32 0.0, %v7626
    %v7628 = vpop.f32.mrb[0].mxu0
    %7629 = vmatprep.mubr.bf16.mxu0 0
    %7630 = vmatmul.mubr.bf16.gmra.mrb[0].mxu0 %v7416
    %v7631 = vpop.f32.mrb[0].mxu0
    %v7632 = vadd.f32 0.0, %v7631
    %v7633 = vpop.f32.mrb[0].mxu0
    %v7634 = vpop.f32.mrb[0].mxu0
    %v7635 = vadd.f32 0.0, %v7634
    %v7636 = vpop.f32.mrb[0].mxu0
    %7637 = vmatprep.mubr.bf16.mxu0 0
    %7638 = vmatmul.mubr.bf16.gmra.mrb[0].mxu0 %v7417
    %v7639 = vpop.f32.mrb[0].mxu0
    %v7640 = vadd.f32 0.0, %v7639
    %v7641 = vpop.f32.mrb[0].mxu0
    %v7642 = vpop.f32.mrb[0].mxu0
    %v7643 = vadd.f32 0.0, %v7642
    %v7644 = vpop.f32.mrb[0].mxu0
    %7645 = vmatprep.mubr.bf16.mxu0 0
    %7646 = vmatmul.mubr.bf16.gmra.mrb[0].mxu0 %v7418
    %v7647 = vpop.f32.mrb[0].mxu0
    %v7648 = vadd.f32 0.0, %v7647
    %v7649 = vpop.f32.mrb[0].mxu0
    %v7650 = vpop.f32.mrb[0].mxu0
    %v7651 = vadd.f32 0.0, %v7650
    %v7652 = vpop.f32.mrb[0].mxu0
    %7653 = vmatprep.mubr.bf16.mxu0 0
    %7654 = vmatmul.mubr.bf16.gmra.mrb[0].mxu0 %v7419
    %v7655 = vpop.f32.mrb[0].mxu0
    %v7656 = vadd.f32 0.0, %v7655
    %v7657 = vpop.f32.mrb[0].mxu0
    %v7658 = vpop.f32.mrb[0].mxu0
    %v7659 = vadd.f32 0.0, %v7658
    %v7660 = vpop.f32.mrb[0].mxu0
    %7661 = vmatprep.mubr.bf16.mxu0 0
    %7662 = vmatmul.mubr.bf16.gmra.mrb[0].mxu0 %v7420
    %v7663 = vpop.f32.mrb[0].mxu0
    %v7664 = vadd.f32 0.0, %v7663
    %v7665 = vpop.f32.mrb[0].mxu0
    %v7666 = vpop.f32.mrb[0].mxu0
    %v7667 = vadd.f32 0.0, %v7666
    %v7668 = vpop.f32.mrb[0].mxu0
    %7669 = vmatprep.mubr.bf16.mxu0 0
    %7670 = vmatmul.mubr.bf16.gmra.mrb[0].mxu0 %v7421
    %v7671 = vpop.f32.mrb[0].mxu0
    %v7672 = vadd.f32 0.0, %v7671
    %v7673 = vpop.f32.mrb[0].mxu0
    %v7674 = vpop.f32.mrb[0].mxu0
    %v7675 = vadd.f32 0.0, %v7674
    %v7676 = vpop.f32.mrb[0].mxu0
    %7677 = vmatprep.mubr.bf16.mxu0 0
    %7678 = vmatmul.mubr.bf16.gmra.mrb[0].mxu0 %v7422
    %v7679 = vpop.f32.mrb[0].mxu0
    %v7680 = vadd.f32 0.0, %v7679
    %v7681 = vpop.f32.mrb[0].mxu0
    %v7682 = vpop.f32.mrb[0].mxu0
    %v7683 = vadd.f32 0.0, %v7682
    %v7684 = vpop.f32.mrb[0].mxu0
    %7685 = vmatprep.mubr.bf16.mxu0 0
    %7686 = vmatmul.mubr.bf16.gmra.mrb[0].mxu0 %v7423
    %v7687 = vpop.f32.mrb[0].mxu0
    %v7688 = vadd.f32 0.0, %v7687
    %v7689 = vpop.f32.mrb[0].mxu0
    %v7690 = vpop.f32.mrb[0].mxu0
    %v7691 = vadd.f32 0.0, %v7690
    %v7692 = vpop.f32.mrb[0].mxu0
    %7693 = vmatprep.mubr.bf16.mxu0 0
    %7694 = vmatmul.mubr.bf16.gmra.mrb[0].mxu0 %v7424
    %v7695 = vpop.f32.mrb[0].mxu0
    %v7696 = vadd.f32 0.0, %v7695
    %v7697 = vpop.f32.mrb[0].mxu0
    %v7698 = vpop.f32.mrb[0].mxu0
    %v7699 = vadd.f32 0.0, %v7698
    %v7700 = vpop.f32.mrb[0].mxu0
    %7701 = vmatprep.mubr.bf16.mxu0 0
    %7702 = vmatmul.mubr.bf16.gmra.mrb[0].mxu0 %v7425
    %v7703 = vpop.f32.mrb[0].mxu0
    %v7704 = vadd.f32 0.0, %v7703
    %v7705 = vpop.f32.mrb[0].mxu0
    %v7706 = vpop.f32.mrb[0].mxu0
    %v7707 = vadd.f32 0.0, %v7706
    %v7708 = vpop.f32.mrb[0].mxu0
    %7709 = vmatprep.mubr.bf16.mxu0 0
    %7710 = vmatmul.mubr.bf16.gmra.mrb[0].mxu0 %v7426
    %v7711 = vpop.f32.mrb[0].mxu0
    %v7712 = vadd.f32 0.0, %v7711
    %v7713 = vpop.f32.mrb[0].mxu0
    %v7714 = vpop.f32.mrb[0].mxu0
    %v7715 = vadd.f32 0.0, %v7714
    %v7716 = vpop.f32.mrb[0].mxu0
    %7717 = vmatprep.mubr.bf16.mxu0 0
    %7718 = vmatmul.mubr.bf16.gmra.mrb[0].mxu0 %v7427
    %v7719 = vpop.f32.mrb[0].mxu0
    %v7720 = vadd.f32 0.0, %v7719
    %v7721 = vpop.f32.mrb[0].mxu0
    %v7722 = vpop.f32.mrb[0].mxu0
    %v7723 = vadd.f32 0.0, %v7722
    %v7724 = vpop.f32.mrb[0].mxu0
    %7725 = vmatprep.mubr.bf16.mxu0 0
    %7726 = vmatmul.mubr.bf16.gmra.mrb[0].mxu0 %v7428
    %v7727 = vpop.f32.mrb[0].mxu0
    %v7728 = vadd.f32 0.0, %v7727
    %v7729 = vpop.f32.mrb[0].mxu0
    %v7730 = vpop.f32.mrb[0].mxu0
    %v7731 = vadd.f32 0.0, %v7730
    %v7732 = vpop.f32.mrb[0].mxu0
    %7733 = vmatprep.mubr.bf16.mxu0 0
    %7734 = vmatmul.mubr.bf16.gmra.mrb[0].mxu0 %v7429
    %v7735 = vpop.f32.mrb[0].mxu0
    %v7736 = vadd.f32 0.0, %v7735
    %v7737 = vpop.f32.mrb[0].mxu0
    %v7738 = vpop.f32.mrb[0].mxu0
    %v7739 = vadd.f32 0.0, %v7738
    %v7740 = vpop.f32.mrb[0].mxu0
    %7741 = vmatprep.mubr.bf16.mxu0 0
    %7742 = vmatmul.mubr.bf16.gmra.mrb[0].mxu0 %v7430
    %v7743 = vpop.f32.mrb[0].mxu0
    %v7744 = vadd.f32 0.0, %v7743
    %v7745 = vpop.f32.mrb[0].mxu0
    %v7746 = vpop.f32.mrb[0].mxu0
    %v7747 = vadd.f32 0.0, %v7746
    %v7748 = vpop.f32.mrb[0].mxu0
    %7749 = vmatprep.mubr.bf16.mxu0 0
    %7750 = vmatmul.mubr.bf16.gmra.mrb[0].mxu0 %v7431
    %v7751 = vpop.f32.mrb[0].mxu0
    %v7752 = vadd.f32 0.0, %v7751
    %v7753 = vpop.f32.mrb[0].mxu0
    %v7754 = vpop.f32.mrb[0].mxu0
    %v7755 = vadd.f32 0.0, %v7754
    %v7756 = vpop.f32.mrb[0].mxu0
    %7757 = vmatprep.mubr.bf16.mxu0 0
    %7758 = vmatmul.mubr.bf16.gmra.mrb[0].mxu0 %v7432
    %v7759 = vpop.f32.mrb[0].mxu0
    %v7760 = vadd.f32 0.0, %v7759
    %v7761 = vpop.f32.mrb[0].mxu0
    %v7762 = vpop.f32.mrb[0].mxu0
    %v7763 = vadd.f32 0.0, %v7762
    %v7764 = vpop.f32.mrb[0].mxu0
    %7765 = vmatprep.mubr.bf16.mxu0 0
    %7766 = vmatmul.mubr.bf16.gmra.mrb[0].mxu0 %v7433
    %v7767 = vpop.f32.mrb[0].mxu0
    %v7768 = vadd.f32 0.0, %v7767
    %v7769 = vpop.f32.mrb[0].mxu0
    %v7770 = vpop.f32.mrb[0].mxu0
    %v7771 = vadd.f32 0.0, %v7770
    %v7772 = vpop.f32.mrb[0].mxu0
    %7773 = vmatprep.mubr.bf16.mxu0 0
    %7774 = vmatmul.mubr.bf16.gmra.mrb[0].mxu0 %v7434
    %v7775 = vpop.f32.mrb[0].mxu0
    %v7776 = vadd.f32 0.0, %v7775
    %v7777 = vpop.f32.mrb[0].mxu0
    %v7778 = vpop.f32.mrb[0].mxu0
    %v7779 = vadd.f32 0.0, %v7778
    %v7780 = vpop.f32.mrb[0].mxu0
    %7781 = vmatprep.mubr.bf16.mxu0 0
    %7782 = vmatmul.mubr.bf16.gmra.mrb[0].mxu0 %v7435
    %v7783 = vpop.f32.mrb[0].mxu0
    %v7784 = vadd.f32 0.0, %v7783
    %v7785 = vpop.f32.mrb[0].mxu0
    %v7786 = vpop.f32.mrb[0].mxu0
    %v7787 = vadd.f32 0.0, %v7786
    %v7788 = vpop.f32.mrb[0].mxu0
    %7789 = vdwg.mxu0
    %v7790 = vadd.f32 %v7276, %v7536
    %v7791 = vadd.f32 %v7277, %v7539
    %v7792 = vadd.f32 %v7278, %v7544
    %v7793 = vadd.f32 %v7279, %v7547
    %v7794 = vadd.f32 %v7280, %v7552
    %v7795 = vadd.f32 %v7281, %v7555
    %v7796 = vadd.f32 %v7282, %v7560
    %v7797 = vadd.f32 %v7283, %v7563
    %v7798 = vadd.f32 %v7284, %v7568
    %v7799 = vadd.f32 %v7285, %v7571
    %v7800 = vadd.f32 %v7286, %v7576
    %v7801 = vadd.f32 %v7287, %v7579
    %v7802 = vadd.f32 %v7288, %v7584
    %v7803 = vadd.f32 %v7289, %v7587
    %v7804 = vadd.f32 %v7290, %v7592
    %v7805 = vadd.f32 %v7291, %v7595
    %v7806 = vadd.f32 %v7292, %v7600
    %v7807 = vadd.f32 %v7293, %v7603
    %v7808 = vadd.f32 %v7294, %v7608
    %v7809 = vadd.f32 %v7295, %v7611
    %v7810 = vadd.f32 %v7296, %v7616
    %v7811 = vadd.f32 %v7297, %v7619
    %v7812 = vadd.f32 %v7298, %v7624
    %v7813 = vadd.f32 %v7299, %v7627
    %v7814 = vadd.f32 %v7300, %v7632
    %v7815 = vadd.f32 %v7301, %v7635
    %v7816 = vadd.f32 %v7302, %v7640
    %v7817 = vadd.f32 %v7303, %v7643
    %v7818 = vadd.f32 %v7304, %v7648
    %v7819 = vadd.f32 %v7305, %v7651
    %v7820 = vadd.f32 %v7306, %v7656
    %v7821 = vadd.f32 %v7307, %v7659
    %v7822 = vadd.f32 %v7308, %v7664
    %v7823 = vadd.f32 %v7309, %v7667
    %v7824 = vadd.f32 %v7310, %v7672
    %v7825 = vadd.f32 %v7311, %v7675
    %v7826 = vadd.f32 %v7312, %v7680
    %v7827 = vadd.f32 %v7313, %v7683
    %v7828 = vadd.f32 %v7314, %v7688
    %v7829 = vadd.f32 %v7315, %v7691
    %v7830 = vadd.f32 %v7316, %v7696
    %v7831 = vadd.f32 %v7317, %v7699
    %v7832 = vadd.f32 %v7318, %v7704
    %v7833 = vadd.f32 %v7319, %v7707
    %v7834 = vadd.f32 %v7320, %v7712
    %v7835 = vadd.f32 %v7321, %v7715
    %v7836 = vadd.f32 %v7322, %v7720
    %v7837 = vadd.f32 %v7323, %v7723
    %v7838 = vadd.f32 %v7324, %v7728
    %v7839 = vadd.f32 %v7325, %v7731
    %v7840 = vadd.f32 %v7326, %v7736
    %v7841 = vadd.f32 %v7327, %v7739
    %v7842 = vadd.f32 %v7328, %v7744
    %v7843 = vadd.f32 %v7329, %v7747
    %v7844 = vadd.f32 %v7330, %v7752
    %v7845 = vadd.f32 %v7331, %v7755
    %v7846 = vadd.f32 %v7332, %v7760
    %v7847 = vadd.f32 %v7333, %v7763
    %v7848 = vadd.f32 %v7334, %v7768
    %v7849 = vadd.f32 %v7335, %v7771
    %v7850 = vadd.f32 %v7336, %v7776
    %v7851 = vadd.f32 %v7337, %v7779
    %v7852 = vadd.f32 %v7338, %v7784
    %v7853 = vadd.f32 %v7339, %v7787
    %v7854 = vld [vmem:[%s5862 + $0x1] sm:$0xff]
    %v7855 = vld [vmem:[%s5862 + $0x9] sm:$0xff]
    %v7856 = vld [vmem:[%s5862 + $0x19] sm:$0xff]
    %v7857 = vld [vmem:[%s5862 + $0x21] sm:$0xff]
    %v7858 = vld [vmem:[%s5862 + $0x31] sm:$0xff]
    %v7859 = vld [vmem:[%s5862 + $0x39] sm:$0xff]
    %v7860 = vld [vmem:[%s5862 + $0x49] sm:$0xff]
    %v7861 = vld [vmem:[%s5862 + $0x51] sm:$0xff]
    %v7862 = vld [vmem:[%s5862 + $0x61] sm:$0xff]
    %v7863 = vld [vmem:[%s5862 + $0x69] sm:$0xff]
    %v7864 = vld [vmem:[%s5862 + $0x79] sm:$0xff]
    %v7865 = vld [vmem:[%s5862 + $0x81] sm:$0xff]
    %v7866 = vld [vmem:[%s5862 + $0x91] sm:$0xff]
    %v7867 = vld [vmem:[%s5862 + $0x99] sm:$0xff]
    %v7868 = vld [vmem:[%s5862 + $0xa9] sm:$0xff]
    %v7869 = vld [vmem:[%s5862 + $0xb1] sm:$0xff]
    %v7870 = vld [vmem:[%s5862 + $0xc1] sm:$0xff]
    %v7871 = vld [vmem:[%s5862 + $0xc9] sm:$0xff]
    %v7872 = vld [vmem:[%s5862 + $0xd9] sm:$0xff]
    %v7873 = vld [vmem:[%s5862 + $0xe1] sm:$0xff]
    %v7874 = vld [vmem:[%s5862 + $0xf1] sm:$0xff]
    %v7875 = vld [vmem:[%s5862 + $0xf9] sm:$0xff]
    %v7876 = vld [vmem:[%s5862 + $0x109] sm:$0xff]
    %v7877 = vld [vmem:[%s5862 + $0x111] sm:$0xff]
    %v7878 = vld [vmem:[%s5862 + $0x121] sm:$0xff]
    %v7879 = vld [vmem:[%s5862 + $0x129] sm:$0xff]
    %v7880 = vld [vmem:[%s5862 + $0x139] sm:$0xff]
    %v7881 = vld [vmem:[%s5862 + $0x141] sm:$0xff]
    %v7882 = vld [vmem:[%s5862 + $0x151] sm:$0xff]
    %v7883 = vld [vmem:[%s5862 + $0x159] sm:$0xff]
    %v7884 = vld [vmem:[%s5862 + $0x169] sm:$0xff]
    %v7885 = vld [vmem:[%s5862 + $0x171] sm:$0xff]
    %v7886 = vld [vmem:[%s5862 + $0x1b1] sm:$0xff]
    %v7887 = vld [vmem:[%s5862 + $0x1b9] sm:$0xff]
    %v7888 = vld [vmem:[%s5862 + $0x1c9] sm:$0xff]
    %v7889 = vld [vmem:[%s5862 + $0x1d1] sm:$0xff]
    %v7890 = vld [vmem:[%s5862 + $0x1e1] sm:$0xff]
    %v7891 = vld [vmem:[%s5862 + $0x1e9] sm:$0xff]
    %v7892 = vld [vmem:[%s5862 + $0x1f9] sm:$0xff]
    %v7893 = vld [vmem:[%s5862 + $0x201] sm:$0xff]
    %v7894 = vld [vmem:[%s5862 + $0x211] sm:$0xff]
    %v7895 = vld [vmem:[%s5862 + $0x219] sm:$0xff]
    %v7896 = vld [vmem:[%s5862 + $0x229] sm:$0xff]
    %v7897 = vld [vmem:[%s5862 + $0x231] sm:$0xff]
    %v7898 = vld [vmem:[%s5862 + $0x241] sm:$0xff]
    %v7899 = vld [vmem:[%s5862 + $0x249] sm:$0xff]
    %v7900 = vld [vmem:[%s5862 + $0x259] sm:$0xff]
    %v7901 = vld [vmem:[%s5862 + $0x261] sm:$0xff]
    %v7902 = vld [vmem:[%s5862 + $0x271] sm:$0xff]
    %v7903 = vld [vmem:[%s5862 + $0x279] sm:$0xff]
    %v7904 = vld [vmem:[%s5862 + $0x289] sm:$0xff]
    %v7905 = vld [vmem:[%s5862 + $0x291] sm:$0xff]
    %v7906 = vld [vmem:[%s5862 + $0x2a1] sm:$0xff]
    %v7907 = vld [vmem:[%s5862 + $0x2a9] sm:$0xff]
    %v7908 = vld [vmem:[%s5862 + $0x2b9] sm:$0xff]
    %v7909 = vld [vmem:[%s5862 + $0x2c1] sm:$0xff]
    %v7910 = vld [vmem:[%s5862 + $0x2d1] sm:$0xff]
    %v7911 = vld [vmem:[%s5862 + $0x2d9] sm:$0xff]
    %v7912 = vld [vmem:[%s5862 + $0x2e9] sm:$0xff]
    %v7913 = vld [vmem:[%s5862 + $0x2f1] sm:$0xff]
    %v7914 = vld [vmem:[%s5862 + $0x301] sm:$0xff]
    %v7915 = vld [vmem:[%s5862 + $0x309] sm:$0xff]
    %v7916 = vld [vmem:[%s5862 + $0x319] sm:$0xff]
    %v7917 = vld [vmem:[%s5862 + $0x321] sm:$0xff]
    %v7918 = vpack.c.bf16 %v7855, %v7854
    %v7919 = vpack.c.bf16 %v7857, %v7856
    %v7920 = vpack.c.bf16 %v7859, %v7858
    %v7921 = vpack.c.bf16 %v7861, %v7860
    %v7922 = vpack.c.bf16 %v7863, %v7862
    %v7923 = vpack.c.bf16 %v7865, %v7864
    %v7924 = vpack.c.bf16 %v7867, %v7866
    %v7925 = vpack.c.bf16 %v7869, %v7868
    %v7926 = vpack.c.bf16 %v7871, %v7870
    %v7927 = vpack.c.bf16 %v7873, %v7872
    %v7928 = vpack.c.bf16 %v7875, %v7874
    %v7929 = vpack.c.bf16 %v7877, %v7876
    %v7930 = vpack.c.bf16 %v7879, %v7878
    %v7931 = vpack.c.bf16 %v7881, %v7880
    %v7932 = vpack.c.bf16 %v7883, %v7882
    %v7933 = vpack.c.bf16 %v7885, %v7884
    %v7934 = vpack.c.bf16 %v7887, %v7886
    %v7935 = vpack.c.bf16 %v7889, %v7888
    %v7936 = vpack.c.bf16 %v7891, %v7890
    %v7937 = vpack.c.bf16 %v7893, %v7892
    %v7938 = vpack.c.bf16 %v7895, %v7894
    %v7939 = vpack.c.bf16 %v7897, %v7896
    %v7940 = vpack.c.bf16 %v7899, %v7898
    %v7941 = vpack.c.bf16 %v7901, %v7900
    %v7942 = vpack.c.bf16 %v7903, %v7902
    %v7943 = vpack.c.bf16 %v7905, %v7904
    %v7944 = vpack.c.bf16 %v7907, %v7906
    %v7945 = vpack.c.bf16 %v7909, %v7908
    %v7946 = vpack.c.bf16 %v7911, %v7910
    %v7947 = vpack.c.bf16 %v7913, %v7912
    %v7948 = vpack.c.bf16 %v7915, %v7914
    %v7949 = vpack.c.bf16 %v7917, %v7916
    %s7950 = scalar_lea.vmem [#allocation3], 256
    %v7951 = vld [vmem:[%s7950] sm:$0xf]
    %v7952 = vld [vmem:[%s7950 + $0x4] sm:$0xf]
    %v7953 = vld [vmem:[%s7950 + $0x8] sm:$0xf]
    %v7954 = vld [vmem:[%s7950 + $0xc] sm:$0xf]
    %v7955 = vld [vmem:[%s7950 + $0x10] sm:$0xf]
    %v7956 = vld [vmem:[%s7950 + $0x14] sm:$0xf]
    %v7957 = vld [vmem:[%s7950 + $0x18] sm:$0xf]
    %v7958 = vld [vmem:[%s7950 + $0x1c] sm:$0xf]
    %v7959 = vld [vmem:[%s7950 + $0x20] sm:$0xf]
    %v7960 = vld [vmem:[%s7950 + $0x24] sm:$0xf]
    %v7961 = vld [vmem:[%s7950 + $0x28] sm:$0xf]
    %v7962 = vld [vmem:[%s7950 + $0x2c] sm:$0xf]
    %v7963 = vld [vmem:[%s7950 + $0x30] sm:$0xf]
    %v7964 = vld [vmem:[%s7950 + $0x34] sm:$0xf]
    %v7965 = vld [vmem:[%s7950 + $0x38] sm:$0xf]
    %v7966 = vld [vmem:[%s7950 + $0x3c] sm:$0xf]
    %v7983 = vunpack.c.l.b16 %v7951
    %v7984 = vunpack.c.l.b16 %v7952
    %v7985 = vunpack.c.l.b16 %v7953
    %v7986 = vunpack.c.l.b16 %v7954
    %v7987 = vunpack.c.l.b16 %v7955
    %v7988 = vunpack.c.l.b16 %v7956
    %v7989 = vunpack.c.l.b16 %v7957
    %v7990 = vunpack.c.l.b16 %v7958
    %v7991 = vunpack.c.l.b16 %v7959
    %v7992 = vunpack.c.l.b16 %v7960
    %v7993 = vunpack.c.l.b16 %v7961
    %v7994 = vunpack.c.l.b16 %v7962
    %v7995 = vunpack.c.l.b16 %v7963
    %v7996 = vunpack.c.l.b16 %v7964
    %v7997 = vunpack.c.l.b16 %v7965
    %v7998 = vunpack.c.l.b16 %v7966
    %v7999 = vpack.c.b16 %v7984, %v7983
    %v8000 = vpack.c.b16 %v7986, %v7985
    %v8001 = vpack.c.b16 %v7988, %v7987
    %v8002 = vpack.c.b16 %v7990, %v7989
    %v8003 = vpack.c.b16 %v7992, %v7991
    %v8004 = vpack.c.b16 %v7994, %v7993
    %v8005 = vpack.c.b16 %v7996, %v7995
    %v8006 = vpack.c.b16 %v7998, %v7997
    %8015 = vmatprep.subr.bf16.mxu0 0
    %8016 = vmatpush1.bf16.msra.mxu0 %v7999
    %8017 = vmatprep.subr.bf16.mxu0 0
    %8018 = vmatpush1.bf16.msra.mxu0 %v8000
    %8019 = vmatprep.subr.bf16.mxu0 0
    %8020 = vmatpush1.bf16.msra.mxu0 %v8001
    %8021 = vmatprep.subr.bf16.mxu0 0
    %8022 = vmatpush1.bf16.msra.mxu0 %v8002
    %8023 = vmatprep.subr.bf16.mxu0 0
    %8024 = vmatpush1.bf16.msra.mxu0 %v8003
    %8025 = vmatprep.subr.bf16.mxu0 0
    %8026 = vmatpush1.bf16.msra.mxu0 %v8004
    %8027 = vmatprep.subr.bf16.mxu0 0
    %8028 = vmatpush1.bf16.msra.mxu0 %v8005
    %8029 = vmatprep.subr.bf16.mxu0 0
    %8030 = vmatpush1.bf16.msra.mxu0 %v8006
    %8031 = vmatprep.subr.bf16.mxu0 0
    %8032 = vmatpush1.bf16.msra.mxu0 0
    %8033 = vmatprep.subr.bf16.mxu0 0
    %8034 = vmatpush1.bf16.msra.mxu0 0
    %8035 = vmatprep.subr.bf16.mxu0 0
    %8036 = vmatpush1.bf16.msra.mxu0 0
    %8037 = vmatprep.subr.bf16.mxu0 0
    %8038 = vmatpush1.bf16.msra.mxu0 0
    %8039 = vmatprep.subr.bf16.mxu0 0
    %8040 = vmatpush1.bf16.msra.mxu0 0
    %8041 = vmatprep.subr.bf16.mxu0 0
    %8042 = vmatpush1.bf16.msra.mxu0 0
    %8043 = vmatprep.subr.bf16.mxu0 0
    %8044 = vmatpush1.bf16.msra.mxu0 0
    %8045 = vmatprep.subr.bf16.mxu0 0
    %8046 = vmatpush1.bf16.msra.mxu0 0
    %8047 = vmatprep.mubr.bf16.mxu0 0
    %8048 = vmatmul.mubr.bf16.gmra.mrb[0].mxu0 %v7918
    %v8049 = vpop.f32.mrb[0].mxu0
    %v8050 = vadd.f32 0.0, %v8049
    %v8051 = vpop.f32.mrb[0].mxu0
    %v8052 = vpop.f32.mrb[0].mxu0
    %v8053 = vadd.f32 0.0, %v8052
    %v8054 = vpop.f32.mrb[0].mxu0
    %8055 = vmatprep.mubr.bf16.mxu0 0
    %8056 = vmatmul.mubr.bf16.gmra.mrb[0].mxu0 %v7919
    %v8057 = vpop.f32.mrb[0].mxu0
    %v8058 = vadd.f32 0.0, %v8057
    %v8059 = vpop.f32.mrb[0].mxu0
    %v8060 = vpop.f32.mrb[0].mxu0
    %v8061 = vadd.f32 0.0, %v8060
    %v8062 = vpop.f32.mrb[0].mxu0
    %8063 = vmatprep.mubr.bf16.mxu0 0
    %8064 = vmatmul.mubr.bf16.gmra.mrb[0].mxu0 %v7920
    %v8065 = vpop.f32.mrb[0].mxu0
    %v8066 = vadd.f32 0.0, %v8065
    %v8067 = vpop.f32.mrb[0].mxu0
    %v8068 = vpop.f32.mrb[0].mxu0
    %v8069 = vadd.f32 0.0, %v8068
    %v8070 = vpop.f32.mrb[0].mxu0
    %8071 = vmatprep.mubr.bf16.mxu0 0
    %8072 = vmatmul.mubr.bf16.gmra.mrb[0].mxu0 %v7921
    %v8073 = vpop.f32.mrb[0].mxu0
    %v8074 = vadd.f32 0.0, %v8073
    %v8075 = vpop.f32.mrb[0].mxu0
    %v8076 = vpop.f32.mrb[0].mxu0
    %v8077 = vadd.f32 0.0, %v8076
    %v8078 = vpop.f32.mrb[0].mxu0
    %8079 = vmatprep.mubr.bf16.mxu0 0
    %8080 = vmatmul.mubr.bf16.gmra.mrb[0].mxu0 %v7922
    %v8081 = vpop.f32.mrb[0].mxu0
    %v8082 = vadd.f32 0.0, %v8081
    %v8083 = vpop.f32.mrb[0].mxu0
    %v8084 = vpop.f32.mrb[0].mxu0
    %v8085 = vadd.f32 0.0, %v8084
    %v8086 = vpop.f32.mrb[0].mxu0
    %8087 = vmatprep.mubr.bf16.mxu0 0
    %8088 = vmatmul.mubr.bf16.gmra.mrb[0].mxu0 %v7923
    %v8089 = vpop.f32.mrb[0].mxu0
    %v8090 = vadd.f32 0.0, %v8089
    %v8091 = vpop.f32.mrb[0].mxu0
    %v8092 = vpop.f32.mrb[0].mxu0
    %v8093 = vadd.f32 0.0, %v8092
    %v8094 = vpop.f32.mrb[0].mxu0
    %8095 = vmatprep.mubr.bf16.mxu0 0
    %8096 = vmatmul.mubr.bf16.gmra.mrb[0].mxu0 %v7924
    %v8097 = vpop.f32.mrb[0].mxu0
    %v8098 = vadd.f32 0.0, %v8097
    %v8099 = vpop.f32.mrb[0].mxu0
    %v8100 = vpop.f32.mrb[0].mxu0
    %v8101 = vadd.f32 0.0, %v8100
    %v8102 = vpop.f32.mrb[0].mxu0
    %8103 = vmatprep.mubr.bf16.mxu0 0
    %8104 = vmatmul.mubr.bf16.gmra.mrb[0].mxu0 %v7925
    %v8105 = vpop.f32.mrb[0].mxu0
    %v8106 = vadd.f32 0.0, %v8105
    %v8107 = vpop.f32.mrb[0].mxu0
    %v8108 = vpop.f32.mrb[0].mxu0
    %v8109 = vadd.f32 0.0, %v8108
    %v8110 = vpop.f32.mrb[0].mxu0
    %8111 = vmatprep.mubr.bf16.mxu0 0
    %8112 = vmatmul.mubr.bf16.gmra.mrb[0].mxu0 %v7926
    %v8113 = vpop.f32.mrb[0].mxu0
    %v8114 = vadd.f32 0.0, %v8113
    %v8115 = vpop.f32.mrb[0].mxu0
    %v8116 = vpop.f32.mrb[0].mxu0
    %v8117 = vadd.f32 0.0, %v8116
    %v8118 = vpop.f32.mrb[0].mxu0
    %8119 = vmatprep.mubr.bf16.mxu0 0
    %8120 = vmatmul.mubr.bf16.gmra.mrb[0].mxu0 %v7927
    %v8121 = vpop.f32.mrb[0].mxu0
    %v8122 = vadd.f32 0.0, %v8121
    %v8123 = vpop.f32.mrb[0].mxu0
    %v8124 = vpop.f32.mrb[0].mxu0
    %v8125 = vadd.f32 0.0, %v8124
    %v8126 = vpop.f32.mrb[0].mxu0
    %8127 = vmatprep.mubr.bf16.mxu0 0
    %8128 = vmatmul.mubr.bf16.gmra.mrb[0].mxu0 %v7928
    %v8129 = vpop.f32.mrb[0].mxu0
    %v8130 = vadd.f32 0.0, %v8129
    %v8131 = vpop.f32.mrb[0].mxu0
    %v8132 = vpop.f32.mrb[0].mxu0
    %v8133 = vadd.f32 0.0, %v8132
    %v8134 = vpop.f32.mrb[0].mxu0
    %8135 = vmatprep.mubr.bf16.mxu0 0
    %8136 = vmatmul.mubr.bf16.gmra.mrb[0].mxu0 %v7929
    %v8137 = vpop.f32.mrb[0].mxu0
    %v8138 = vadd.f32 0.0, %v8137
    %v8139 = vpop.f32.mrb[0].mxu0
    %v8140 = vpop.f32.mrb[0].mxu0
    %v8141 = vadd.f32 0.0, %v8140
    %v8142 = vpop.f32.mrb[0].mxu0
    %8143 = vmatprep.mubr.bf16.mxu0 0
    %8144 = vmatmul.mubr.bf16.gmra.mrb[0].mxu0 %v7930
    %v8145 = vpop.f32.mrb[0].mxu0
    %v8146 = vadd.f32 0.0, %v8145
    %v8147 = vpop.f32.mrb[0].mxu0
    %v8148 = vpop.f32.mrb[0].mxu0
    %v8149 = vadd.f32 0.0, %v8148
    %v8150 = vpop.f32.mrb[0].mxu0
    %8151 = vmatprep.mubr.bf16.mxu0 0
    %8152 = vmatmul.mubr.bf16.gmra.mrb[0].mxu0 %v7931
    %v8153 = vpop.f32.mrb[0].mxu0
    %v8154 = vadd.f32 0.0, %v8153
    %v8155 = vpop.f32.mrb[0].mxu0
    %v8156 = vpop.f32.mrb[0].mxu0
    %v8157 = vadd.f32 0.0, %v8156
    %v8158 = vpop.f32.mrb[0].mxu0
    %8159 = vmatprep.mubr.bf16.mxu0 0
    %8160 = vmatmul.mubr.bf16.gmra.mrb[0].mxu0 %v7932
    %v8161 = vpop.f32.mrb[0].mxu0
    %v8162 = vadd.f32 0.0, %v8161
    %v8163 = vpop.f32.mrb[0].mxu0
    %v8164 = vpop.f32.mrb[0].mxu0
    %v8165 = vadd.f32 0.0, %v8164
    %v8166 = vpop.f32.mrb[0].mxu0
    %8167 = vmatprep.mubr.bf16.mxu0 0
    %8168 = vmatmul.mubr.bf16.gmra.mrb[0].mxu0 %v7933
    %v8169 = vpop.f32.mrb[0].mxu0
    %v8170 = vadd.f32 0.0, %v8169
    %v8171 = vpop.f32.mrb[0].mxu0
    %v8172 = vpop.f32.mrb[0].mxu0
    %v8173 = vadd.f32 0.0, %v8172
    %v8174 = vpop.f32.mrb[0].mxu0
    %8175 = vmatprep.mubr.bf16.mxu0 0
    %8176 = vmatmul.mubr.bf16.gmra.mrb[0].mxu0 %v7934
    %v8177 = vpop.f32.mrb[0].mxu0
    %v8178 = vadd.f32 0.0, %v8177
    %v8179 = vpop.f32.mrb[0].mxu0
    %v8180 = vpop.f32.mrb[0].mxu0
    %v8181 = vadd.f32 0.0, %v8180
    %v8182 = vpop.f32.mrb[0].mxu0
    %8183 = vmatprep.mubr.bf16.mxu0 0
    %8184 = vmatmul.mubr.bf16.gmra.mrb[0].mxu0 %v7935
    %v8185 = vpop.f32.mrb[0].mxu0
    %v8186 = vadd.f32 0.0, %v8185
    %v8187 = vpop.f32.mrb[0].mxu0
    %v8188 = vpop.f32.mrb[0].mxu0
    %v8189 = vadd.f32 0.0, %v8188
    %v8190 = vpop.f32.mrb[0].mxu0
    %8191 = vmatprep.mubr.bf16.mxu0 0
    %8192 = vmatmul.mubr.bf16.gmra.mrb[0].mxu0 %v7936
    %v8193 = vpop.f32.mrb[0].mxu0
    %v8194 = vadd.f32 0.0, %v8193
    %v8195 = vpop.f32.mrb[0].mxu0
    %v8196 = vpop.f32.mrb[0].mxu0
    %v8197 = vadd.f32 0.0, %v8196
    %v8198 = vpop.f32.mrb[0].mxu0
    %8199 = vmatprep.mubr.bf16.mxu0 0
    %8200 = vmatmul.mubr.bf16.gmra.mrb[0].mxu0 %v7937
    %v8201 = vpop.f32.mrb[0].mxu0
    %v8202 = vadd.f32 0.0, %v8201
    %v8203 = vpop.f32.mrb[0].mxu0
    %v8204 = vpop.f32.mrb[0].mxu0
    %v8205 = vadd.f32 0.0, %v8204
    %v8206 = vpop.f32.mrb[0].mxu0
    %8207 = vmatprep.mubr.bf16.mxu0 0
    %8208 = vmatmul.mubr.bf16.gmra.mrb[0].mxu0 %v7938
    %v8209 = vpop.f32.mrb[0].mxu0
    %v8210 = vadd.f32 0.0, %v8209
    %v8211 = vpop.f32.mrb[0].mxu0
    %v8212 = vpop.f32.mrb[0].mxu0
    %v8213 = vadd.f32 0.0, %v8212
    %v8214 = vpop.f32.mrb[0].mxu0
    %8215 = vmatprep.mubr.bf16.mxu0 0
    %8216 = vmatmul.mubr.bf16.gmra.mrb[0].mxu0 %v7939
    %v8217 = vpop.f32.mrb[0].mxu0
    %v8218 = vadd.f32 0.0, %v8217
    %v8219 = vpop.f32.mrb[0].mxu0
    %v8220 = vpop.f32.mrb[0].mxu0
    %v8221 = vadd.f32 0.0, %v8220
    %v8222 = vpop.f32.mrb[0].mxu0
    %8223 = vmatprep.mubr.bf16.mxu0 0
    %8224 = vmatmul.mubr.bf16.gmra.mrb[0].mxu0 %v7940
    %v8225 = vpop.f32.mrb[0].mxu0
    %v8226 = vadd.f32 0.0, %v8225
    %v8227 = vpop.f32.mrb[0].mxu0
    %v8228 = vpop.f32.mrb[0].mxu0
    %v8229 = vadd.f32 0.0, %v8228
    %v8230 = vpop.f32.mrb[0].mxu0
    %8231 = vmatprep.mubr.bf16.mxu0 0
    %8232 = vmatmul.mubr.bf16.gmra.mrb[0].mxu0 %v7941
    %v8233 = vpop.f32.mrb[0].mxu0
    %v8234 = vadd.f32 0.0, %v8233
    %v8235 = vpop.f32.mrb[0].mxu0
    %v8236 = vpop.f32.mrb[0].mxu0
    %v8237 = vadd.f32 0.0, %v8236
    %v8238 = vpop.f32.mrb[0].mxu0
    %8239 = vmatprep.mubr.bf16.mxu0 0
    %8240 = vmatmul.mubr.bf16.gmra.mrb[0].mxu0 %v7942
    %v8241 = vpop.f32.mrb[0].mxu0
    %v8242 = vadd.f32 0.0, %v8241
    %v8243 = vpop.f32.mrb[0].mxu0
    %v8244 = vpop.f32.mrb[0].mxu0
    %v8245 = vadd.f32 0.0, %v8244
    %v8246 = vpop.f32.mrb[0].mxu0
    %8247 = vmatprep.mubr.bf16.mxu0 0
    %8248 = vmatmul.mubr.bf16.gmra.mrb[0].mxu0 %v7943
    %v8249 = vpop.f32.mrb[0].mxu0
    %v8250 = vadd.f32 0.0, %v8249
    %v8251 = vpop.f32.mrb[0].mxu0
    %v8252 = vpop.f32.mrb[0].mxu0
    %v8253 = vadd.f32 0.0, %v8252
    %v8254 = vpop.f32.mrb[0].mxu0
    %8255 = vmatprep.mubr.bf16.mxu0 0
    %8256 = vmatmul.mubr.bf16.gmra.mrb[0].mxu0 %v7944
    %v8257 = vpop.f32.mrb[0].mxu0
    %v8258 = vadd.f32 0.0, %v8257
    %v8259 = vpop.f32.mrb[0].mxu0
    %v8260 = vpop.f32.mrb[0].mxu0
    %v8261 = vadd.f32 0.0, %v8260
    %v8262 = vpop.f32.mrb[0].mxu0
    %8263 = vmatprep.mubr.bf16.mxu0 0
    %8264 = vmatmul.mubr.bf16.gmra.mrb[0].mxu0 %v7945
    %v8265 = vpop.f32.mrb[0].mxu0
    %v8266 = vadd.f32 0.0, %v8265
    %v8267 = vpop.f32.mrb[0].mxu0
    %v8268 = vpop.f32.mrb[0].mxu0
    %v8269 = vadd.f32 0.0, %v8268
    %v8270 = vpop.f32.mrb[0].mxu0
    %8271 = vmatprep.mubr.bf16.mxu0 0
    %8272 = vmatmul.mubr.bf16.gmra.mrb[0].mxu0 %v7946
    %v8273 = vpop.f32.mrb[0].mxu0
    %v8274 = vadd.f32 0.0, %v8273
    %v8275 = vpop.f32.mrb[0].mxu0
    %v8276 = vpop.f32.mrb[0].mxu0
    %v8277 = vadd.f32 0.0, %v8276
    %v8278 = vpop.f32.mrb[0].mxu0
    %8279 = vmatprep.mubr.bf16.mxu0 0
    %8280 = vmatmul.mubr.bf16.gmra.mrb[0].mxu0 %v7947
    %v8281 = vpop.f32.mrb[0].mxu0
    %v8282 = vadd.f32 0.0, %v8281
    %v8283 = vpop.f32.mrb[0].mxu0
    %v8284 = vpop.f32.mrb[0].mxu0
    %v8285 = vadd.f32 0.0, %v8284
    %v8286 = vpop.f32.mrb[0].mxu0
    %8287 = vmatprep.mubr.bf16.mxu0 0
    %8288 = vmatmul.mubr.bf16.gmra.mrb[0].mxu0 %v7948
    %v8289 = vpop.f32.mrb[0].mxu0
    %v8290 = vadd.f32 0.0, %v8289
    %v8291 = vpop.f32.mrb[0].mxu0
    %v8292 = vpop.f32.mrb[0].mxu0
    %v8293 = vadd.f32 0.0, %v8292
    %v8294 = vpop.f32.mrb[0].mxu0
    %8295 = vmatprep.mubr.bf16.mxu0 0
    %8296 = vmatmul.mubr.bf16.gmra.mrb[0].mxu0 %v7949
    %v8297 = vpop.f32.mrb[0].mxu0
    %v8298 = vadd.f32 0.0, %v8297
    %v8299 = vpop.f32.mrb[0].mxu0
    %v8300 = vpop.f32.mrb[0].mxu0
    %v8301 = vadd.f32 0.0, %v8300
    %v8302 = vpop.f32.mrb[0].mxu0
    %8303 = vdwg.mxu0
    %v8304 = vadd.f32 %v7790, %v8050
    %v8305 = vadd.f32 %v7791, %v8053
    %v8306 = vadd.f32 %v7792, %v8058
    %v8307 = vadd.f32 %v7793, %v8061
    %v8308 = vadd.f32 %v7794, %v8066
    %v8309 = vadd.f32 %v7795, %v8069
    %v8310 = vadd.f32 %v7796, %v8074
    %v8311 = vadd.f32 %v7797, %v8077
    %v8312 = vadd.f32 %v7798, %v8082
    %v8313 = vadd.f32 %v7799, %v8085
    %v8314 = vadd.f32 %v7800, %v8090
    %v8315 = vadd.f32 %v7801, %v8093
    %v8316 = vadd.f32 %v7802, %v8098
    %v8317 = vadd.f32 %v7803, %v8101
    %v8318 = vadd.f32 %v7804, %v8106
    %v8319 = vadd.f32 %v7805, %v8109
    %v8320 = vadd.f32 %v7806, %v8114
    %v8321 = vadd.f32 %v7807, %v8117
    %v8322 = vadd.f32 %v7808, %v8122
    %v8323 = vadd.f32 %v7809, %v8125
    %v8324 = vadd.f32 %v7810, %v8130
    %v8325 = vadd.f32 %v7811, %v8133
    %v8326 = vadd.f32 %v7812, %v8138
    %v8327 = vadd.f32 %v7813, %v8141
    %v8328 = vadd.f32 %v7814, %v8146
    %v8329 = vadd.f32 %v7815, %v8149
    %v8330 = vadd.f32 %v7816, %v8154
    %v8331 = vadd.f32 %v7817, %v8157
    %v8332 = vadd.f32 %v7818, %v8162
    %v8333 = vadd.f32 %v7819, %v8165
    %v8334 = vadd.f32 %v7820, %v8170
    %v8335 = vadd.f32 %v7821, %v8173
    %v8336 = vadd.f32 %v7822, %v8178
    %v8337 = vadd.f32 %v7823, %v8181
    %v8338 = vadd.f32 %v7824, %v8186
    %v8339 = vadd.f32 %v7825, %v8189
    %v8340 = vadd.f32 %v7826, %v8194
    %v8341 = vadd.f32 %v7827, %v8197
    %v8342 = vadd.f32 %v7828, %v8202
    %v8343 = vadd.f32 %v7829, %v8205
    %v8344 = vadd.f32 %v7830, %v8210
    %v8345 = vadd.f32 %v7831, %v8213
    %v8346 = vadd.f32 %v7832, %v8218
    %v8347 = vadd.f32 %v7833, %v8221
    %v8348 = vadd.f32 %v7834, %v8226
    %v8349 = vadd.f32 %v7835, %v8229
    %v8350 = vadd.f32 %v7836, %v8234
    %v8351 = vadd.f32 %v7837, %v8237
    %v8352 = vadd.f32 %v7838, %v8242
    %v8353 = vadd.f32 %v7839, %v8245
    %v8354 = vadd.f32 %v7840, %v8250
    %v8355 = vadd.f32 %v7841, %v8253
    %v8356 = vadd.f32 %v7842, %v8258
    %v8357 = vadd.f32 %v7843, %v8261
    %v8358 = vadd.f32 %v7844, %v8266
    %v8359 = vadd.f32 %v7845, %v8269
    %v8360 = vadd.f32 %v7846, %v8274
    %v8361 = vadd.f32 %v7847, %v8277
    %v8362 = vadd.f32 %v7848, %v8282
    %v8363 = vadd.f32 %v7849, %v8285
    %v8364 = vadd.f32 %v7850, %v8290
    %v8365 = vadd.f32 %v7851, %v8293
    %v8366 = vadd.f32 %v7852, %v8298
    %v8367 = vadd.f32 %v7853, %v8301
    %v8368 = vld [vmem:[%s5862 + $0x2] sm:$0xff]
    %v8369 = vld [vmem:[%s5862 + $0xa] sm:$0xff]
    %v8370 = vld [vmem:[%s5862 + $0x1a] sm:$0xff]
    %v8371 = vld [vmem:[%s5862 + $0x22] sm:$0xff]
    %v8372 = vld [vmem:[%s5862 + $0x32] sm:$0xff]
    %v8373 = vld [vmem:[%s5862 + $0x3a] sm:$0xff]
    %v8374 = vld [vmem:[%s5862 + $0x4a] sm:$0xff]
    %v8375 = vld [vmem:[%s5862 + $0x52] sm:$0xff]
    %v8376 = vld [vmem:[%s5862 + $0x62] sm:$0xff]
    %v8377 = vld [vmem:[%s5862 + $0x6a] sm:$0xff]
    %v8378 = vld [vmem:[%s5862 + $0x7a] sm:$0xff]
    %v8379 = vld [vmem:[%s5862 + $0x82] sm:$0xff]
    %v8380 = vld [vmem:[%s5862 + $0x92] sm:$0xff]
    %v8381 = vld [vmem:[%s5862 + $0x9a] sm:$0xff]
    %v8382 = vld [vmem:[%s5862 + $0xaa] sm:$0xff]
    %v8383 = vld [vmem:[%s5862 + $0xb2] sm:$0xff]
    %v8384 = vld [vmem:[%s5862 + $0xc2] sm:$0xff]
    %v8385 = vld [vmem:[%s5862 + $0xca] sm:$0xff]
    %v8386 = vld [vmem:[%s5862 + $0xda] sm:$0xff]
    %v8387 = vld [vmem:[%s5862 + $0xe2] sm:$0xff]
    %v8388 = vld [vmem:[%s5862 + $0xf2] sm:$0xff]
    %v8389 = vld [vmem:[%s5862 + $0xfa] sm:$0xff]
    %v8390 = vld [vmem:[%s5862 + $0x10a] sm:$0xff]
    %v8391 = vld [vmem:[%s5862 + $0x112] sm:$0xff]
    %v8392 = vld [vmem:[%s5862 + $0x122] sm:$0xff]
    %v8393 = vld [vmem:[%s5862 + $0x12a] sm:$0xff]
    %v8394 = vld [vmem:[%s5862 + $0x13a] sm:$0xff]
    %v8395 = vld [vmem:[%s5862 + $0x142] sm:$0xff]
    %v8396 = vld [vmem:[%s5862 + $0x152] sm:$0xff]
    %v8397 = vld [vmem:[%s5862 + $0x15a] sm:$0xff]
    %v8398 = vld [vmem:[%s5862 + $0x16a] sm:$0xff]
    %v8399 = vld [vmem:[%s5862 + $0x172] sm:$0xff]
    %v8400 = vld [vmem:[%s5862 + $0x1b2] sm:$0xff]
    %v8401 = vld [vmem:[%s5862 + $0x1ba] sm:$0xff]
    %v8402 = vld [vmem:[%s5862 + $0x1ca] sm:$0xff]
    %v8403 = vld [vmem:[%s5862 + $0x1d2] sm:$0xff]
    %v8404 = vld [vmem:[%s5862 + $0x1e2] sm:$0xff]
    %v8405 = vld [vmem:[%s5862 + $0x1ea] sm:$0xff]
    %v8406 = vld [vmem:[%s5862 + $0x1fa] sm:$0xff]
    %v8407 = vld [vmem:[%s5862 + $0x202] sm:$0xff]
    %v8408 = vld [vmem:[%s5862 + $0x212] sm:$0xff]
    %v8409 = vld [vmem:[%s5862 + $0x21a] sm:$0xff]
    %v8410 = vld [vmem:[%s5862 + $0x22a] sm:$0xff]
    %v8411 = vld [vmem:[%s5862 + $0x232] sm:$0xff]
    %v8412 = vld [vmem:[%s5862 + $0x242] sm:$0xff]
    %v8413 = vld [vmem:[%s5862 + $0x24a] sm:$0xff]
    %v8414 = vld [vmem:[%s5862 + $0x25a] sm:$0xff]
    %v8415 = vld [vmem:[%s5862 + $0x262] sm:$0xff]
    %v8416 = vld [vmem:[%s5862 + $0x272] sm:$0xff]
    %v8417 = vld [vmem:[%s5862 + $0x27a] sm:$0xff]
    %v8418 = vld [vmem:[%s5862 + $0x28a] sm:$0xff]
    %v8419 = vld [vmem:[%s5862 + $0x292] sm:$0xff]
    %v8420 = vld [vmem:[%s5862 + $0x2a2] sm:$0xff]
    %v8421 = vld [vmem:[%s5862 + $0x2aa] sm:$0xff]
    %v8422 = vld [vmem:[%s5862 + $0x2ba] sm:$0xff]
    %v8423 = vld [vmem:[%s5862 + $0x2c2] sm:$0xff]
    %v8424 = vld [vmem:[%s5862 + $0x2d2] sm:$0xff]
    %v8425 = vld [vmem:[%s5862 + $0x2da] sm:$0xff]
    %v8426 = vld [vmem:[%s5862 + $0x2ea] sm:$0xff]
    %v8427 = vld [vmem:[%s5862 + $0x2f2] sm:$0xff]
    %v8428 = vld [vmem:[%s5862 + $0x302] sm:$0xff]
    %v8429 = vld [vmem:[%s5862 + $0x30a] sm:$0xff]
    %v8430 = vld [vmem:[%s5862 + $0x31a] sm:$0xff]
    %v8431 = vld [vmem:[%s5862 + $0x322] sm:$0xff]
    %v8432 = vpack.c.bf16 %v8369, %v8368
    %v8433 = vpack.c.bf16 %v8371, %v8370
    %v8434 = vpack.c.bf16 %v8373, %v8372
    %v8435 = vpack.c.bf16 %v8375, %v8374
    %v8436 = vpack.c.bf16 %v8377, %v8376
    %v8437 = vpack.c.bf16 %v8379, %v8378
    %v8438 = vpack.c.bf16 %v8381, %v8380
    %v8439 = vpack.c.bf16 %v8383, %v8382
    %v8440 = vpack.c.bf16 %v8385, %v8384
    %v8441 = vpack.c.bf16 %v8387, %v8386
    %v8442 = vpack.c.bf16 %v8389, %v8388
    %v8443 = vpack.c.bf16 %v8391, %v8390
    %v8444 = vpack.c.bf16 %v8393, %v8392
    %v8445 = vpack.c.bf16 %v8395, %v8394
    %v8446 = vpack.c.bf16 %v8397, %v8396
    %v8447 = vpack.c.bf16 %v8399, %v8398
    %v8448 = vpack.c.bf16 %v8401, %v8400
    %v8449 = vpack.c.bf16 %v8403, %v8402
    %v8450 = vpack.c.bf16 %v8405, %v8404
    %v8451 = vpack.c.bf16 %v8407, %v8406
    %v8452 = vpack.c.bf16 %v8409, %v8408
    %v8453 = vpack.c.bf16 %v8411, %v8410
    %v8454 = vpack.c.bf16 %v8413, %v8412
    %v8455 = vpack.c.bf16 %v8415, %v8414
    %v8456 = vpack.c.bf16 %v8417, %v8416
    %v8457 = vpack.c.bf16 %v8419, %v8418
    %v8458 = vpack.c.bf16 %v8421, %v8420
    %v8459 = vpack.c.bf16 %v8423, %v8422
    %v8460 = vpack.c.bf16 %v8425, %v8424
    %v8461 = vpack.c.bf16 %v8427, %v8426
    %v8462 = vpack.c.bf16 %v8429, %v8428
    %v8463 = vpack.c.bf16 %v8431, %v8430
    %s8464 = scalar_lea.vmem [#allocation3], 320
    %v8465 = vld [vmem:[%s8464] sm:$0xf]
    %v8466 = vld [vmem:[%s8464 + $0x4] sm:$0xf]
    %v8467 = vld [vmem:[%s8464 + $0x8] sm:$0xf]
    %v8468 = vld [vmem:[%s8464 + $0xc] sm:$0xf]
    %v8469 = vld [vmem:[%s8464 + $0x10] sm:$0xf]
    %v8470 = vld [vmem:[%s8464 + $0x14] sm:$0xf]
    %v8471 = vld [vmem:[%s8464 + $0x18] sm:$0xf]
    %v8472 = vld [vmem:[%s8464 + $0x1c] sm:$0xf]
    %v8473 = vld [vmem:[%s8464 + $0x20] sm:$0xf]
    %v8474 = vld [vmem:[%s8464 + $0x24] sm:$0xf]
    %v8475 = vld [vmem:[%s8464 + $0x28] sm:$0xf]
    %v8476 = vld [vmem:[%s8464 + $0x2c] sm:$0xf]
    %v8477 = vld [vmem:[%s8464 + $0x30] sm:$0xf]
    %v8478 = vld [vmem:[%s8464 + $0x34] sm:$0xf]
    %v8479 = vld [vmem:[%s8464 + $0x38] sm:$0xf]
    %v8480 = vld [vmem:[%s8464 + $0x3c] sm:$0xf]
    %v8497 = vunpack.c.l.b16 %v8465
    %v8498 = vunpack.c.l.b16 %v8466
    %v8499 = vunpack.c.l.b16 %v8467
    %v8500 = vunpack.c.l.b16 %v8468
    %v8501 = vunpack.c.l.b16 %v8469
    %v8502 = vunpack.c.l.b16 %v8470
    %v8503 = vunpack.c.l.b16 %v8471
    %v8504 = vunpack.c.l.b16 %v8472
    %v8505 = vunpack.c.l.b16 %v8473
    %v8506 = vunpack.c.l.b16 %v8474
    %v8507 = vunpack.c.l.b16 %v8475
    %v8508 = vunpack.c.l.b16 %v8476
    %v8509 = vunpack.c.l.b16 %v8477
    %v8510 = vunpack.c.l.b16 %v8478
    %v8511 = vunpack.c.l.b16 %v8479
    %v8512 = vunpack.c.l.b16 %v8480
    %v8513 = vpack.c.b16 %v8498, %v8497
    %v8514 = vpack.c.b16 %v8500, %v8499
    %v8515 = vpack.c.b16 %v8502, %v8501
    %v8516 = vpack.c.b16 %v8504, %v8503
    %v8517 = vpack.c.b16 %v8506, %v8505
    %v8518 = vpack.c.b16 %v8508, %v8507
    %v8519 = vpack.c.b16 %v8510, %v8509
    %v8520 = vpack.c.b16 %v8512, %v8511
    %8529 = vmatprep.subr.bf16.mxu0 0
    %8530 = vmatpush1.bf16.msra.mxu0 %v8513
    %8531 = vmatprep.subr.bf16.mxu0 0
    %8532 = vmatpush1.bf16.msra.mxu0 %v8514
    %8533 = vmatprep.subr.bf16.mxu0 0
    %8534 = vmatpush1.bf16.msra.mxu0 %v8515
    %8535 = vmatprep.subr.bf16.mxu0 0
    %8536 = vmatpush1.bf16.msra.mxu0 %v8516
    %8537 = vmatprep.subr.bf16.mxu0 0
    %8538 = vmatpush1.bf16.msra.mxu0 %v8517
    %8539 = vmatprep.subr.bf16.mxu0 0
    %8540 = vmatpush1.bf16.msra.mxu0 %v8518
    %8541 = vmatprep.subr.bf16.mxu0 0
    %8542 = vmatpush1.bf16.msra.mxu0 %v8519
    %8543 = vmatprep.subr.bf16.mxu0 0
    %8544 = vmatpush1.bf16.msra.mxu0 %v8520
    %8545 = vmatprep.subr.bf16.mxu0 0
    %8546 = vmatpush1.bf16.msra.mxu0 0
    %8547 = vmatprep.subr.bf16.mxu0 0
    %8548 = vmatpush1.bf16.msra.mxu0 0
    %8549 = vmatprep.subr.bf16.mxu0 0
    %8550 = vmatpush1.bf16.msra.mxu0 0
    %8551 = vmatprep.subr.bf16.mxu0 0
    %8552 = vmatpush1.bf16.msra.mxu0 0
    %8553 = vmatprep.subr.bf16.mxu0 0
    %8554 = vmatpush1.bf16.msra.mxu0 0
    %8555 = vmatprep.subr.bf16.mxu0 0
    %8556 = vmatpush1.bf16.msra.mxu0 0
    %8557 = vmatprep.subr.bf16.mxu0 0
    %8558 = vmatpush1.bf16.msra.mxu0 0
    %8559 = vmatprep.subr.bf16.mxu0 0
    %8560 = vmatpush1.bf16.msra.mxu0 0
    %8561 = vmatprep.mubr.bf16.mxu0 0
    %8562 = vmatmul.mubr.bf16.gmra.mrb[0].mxu0 %v8432
    %v8563 = vpop.f32.mrb[0].mxu0
    %v8564 = vadd.f32 0.0, %v8563
    %v8565 = vpop.f32.mrb[0].mxu0
    %v8566 = vpop.f32.mrb[0].mxu0
    %v8567 = vadd.f32 0.0, %v8566
    %v8568 = vpop.f32.mrb[0].mxu0
    %8569 = vmatprep.mubr.bf16.mxu0 0
    %8570 = vmatmul.mubr.bf16.gmra.mrb[0].mxu0 %v8433
    %v8571 = vpop.f32.mrb[0].mxu0
    %v8572 = vadd.f32 0.0, %v8571
    %v8573 = vpop.f32.mrb[0].mxu0
    %v8574 = vpop.f32.mrb[0].mxu0
    %v8575 = vadd.f32 0.0, %v8574
    %v8576 = vpop.f32.mrb[0].mxu0
    %8577 = vmatprep.mubr.bf16.mxu0 0
    %8578 = vmatmul.mubr.bf16.gmra.mrb[0].mxu0 %v8434
    %v8579 = vpop.f32.mrb[0].mxu0
    %v8580 = vadd.f32 0.0, %v8579
    %v8581 = vpop.f32.mrb[0].mxu0
    %v8582 = vpop.f32.mrb[0].mxu0
    %v8583 = vadd.f32 0.0, %v8582
    %v8584 = vpop.f32.mrb[0].mxu0
    %8585 = vmatprep.mubr.bf16.mxu0 0
    %8586 = vmatmul.mubr.bf16.gmra.mrb[0].mxu0 %v8435
    %v8587 = vpop.f32.mrb[0].mxu0
    %v8588 = vadd.f32 0.0, %v8587
    %v8589 = vpop.f32.mrb[0].mxu0
    %v8590 = vpop.f32.mrb[0].mxu0
    %v8591 = vadd.f32 0.0, %v8590
    %v8592 = vpop.f32.mrb[0].mxu0
    %8593 = vmatprep.mubr.bf16.mxu0 0
    %8594 = vmatmul.mubr.bf16.gmra.mrb[0].mxu0 %v8436
    %v8595 = vpop.f32.mrb[0].mxu0
    %v8596 = vadd.f32 0.0, %v8595
    %v8597 = vpop.f32.mrb[0].mxu0
    %v8598 = vpop.f32.mrb[0].mxu0
    %v8599 = vadd.f32 0.0, %v8598
    %v8600 = vpop.f32.mrb[0].mxu0
    %8601 = vmatprep.mubr.bf16.mxu0 0
    %8602 = vmatmul.mubr.bf16.gmra.mrb[0].mxu0 %v8437
    %v8603 = vpop.f32.mrb[0].mxu0
    %v8604 = vadd.f32 0.0, %v8603
    %v8605 = vpop.f32.mrb[0].mxu0
    %v8606 = vpop.f32.mrb[0].mxu0
    %v8607 = vadd.f32 0.0, %v8606
    %v8608 = vpop.f32.mrb[0].mxu0
    %8609 = vmatprep.mubr.bf16.mxu0 0
    %8610 = vmatmul.mubr.bf16.gmra.mrb[0].mxu0 %v8438
    %v8611 = vpop.f32.mrb[0].mxu0
    %v8612 = vadd.f32 0.0, %v8611
    %v8613 = vpop.f32.mrb[0].mxu0
    %v8614 = vpop.f32.mrb[0].mxu0
    %v8615 = vadd.f32 0.0, %v8614
    %v8616 = vpop.f32.mrb[0].mxu0
    %8617 = vmatprep.mubr.bf16.mxu0 0
    %8618 = vmatmul.mubr.bf16.gmra.mrb[0].mxu0 %v8439
    %v8619 = vpop.f32.mrb[0].mxu0
    %v8620 = vadd.f32 0.0, %v8619
    %v8621 = vpop.f32.mrb[0].mxu0
    %v8622 = vpop.f32.mrb[0].mxu0
    %v8623 = vadd.f32 0.0, %v8622
    %v8624 = vpop.f32.mrb[0].mxu0
    %8625 = vmatprep.mubr.bf16.mxu0 0
    %8626 = vmatmul.mubr.bf16.gmra.mrb[0].mxu0 %v8440
    %v8627 = vpop.f32.mrb[0].mxu0
    %v8628 = vadd.f32 0.0, %v8627
    %v8629 = vpop.f32.mrb[0].mxu0
    %v8630 = vpop.f32.mrb[0].mxu0
    %v8631 = vadd.f32 0.0, %v8630
    %v8632 = vpop.f32.mrb[0].mxu0
    %8633 = vmatprep.mubr.bf16.mxu0 0
    %8634 = vmatmul.mubr.bf16.gmra.mrb[0].mxu0 %v8441
    %v8635 = vpop.f32.mrb[0].mxu0
    %v8636 = vadd.f32 0.0, %v8635
    %v8637 = vpop.f32.mrb[0].mxu0
    %v8638 = vpop.f32.mrb[0].mxu0
    %v8639 = vadd.f32 0.0, %v8638
    %v8640 = vpop.f32.mrb[0].mxu0
    %8641 = vmatprep.mubr.bf16.mxu0 0
    %8642 = vmatmul.mubr.bf16.gmra.mrb[0].mxu0 %v8442
    %v8643 = vpop.f32.mrb[0].mxu0
    %v8644 = vadd.f32 0.0, %v8643
    %v8645 = vpop.f32.mrb[0].mxu0
    %v8646 = vpop.f32.mrb[0].mxu0
    %v8647 = vadd.f32 0.0, %v8646
    %v8648 = vpop.f32.mrb[0].mxu0
    %8649 = vmatprep.mubr.bf16.mxu0 0
    %8650 = vmatmul.mubr.bf16.gmra.mrb[0].mxu0 %v8443
    %v8651 = vpop.f32.mrb[0].mxu0
    %v8652 = vadd.f32 0.0, %v8651
    %v8653 = vpop.f32.mrb[0].mxu0
    %v8654 = vpop.f32.mrb[0].mxu0
    %v8655 = vadd.f32 0.0, %v8654
    %v8656 = vpop.f32.mrb[0].mxu0
    %8657 = vmatprep.mubr.bf16.mxu0 0
    %8658 = vmatmul.mubr.bf16.gmra.mrb[0].mxu0 %v8444
    %v8659 = vpop.f32.mrb[0].mxu0
    %v8660 = vadd.f32 0.0, %v8659
    %v8661 = vpop.f32.mrb[0].mxu0
    %v8662 = vpop.f32.mrb[0].mxu0
    %v8663 = vadd.f32 0.0, %v8662
    %v8664 = vpop.f32.mrb[0].mxu0
    %8665 = vmatprep.mubr.bf16.mxu0 0
    %8666 = vmatmul.mubr.bf16.gmra.mrb[0].mxu0 %v8445
    %v8667 = vpop.f32.mrb[0].mxu0
    %v8668 = vadd.f32 0.0, %v8667
    %v8669 = vpop.f32.mrb[0].mxu0
    %v8670 = vpop.f32.mrb[0].mxu0
    %v8671 = vadd.f32 0.0, %v8670
    %v8672 = vpop.f32.mrb[0].mxu0
    %8673 = vmatprep.mubr.bf16.mxu0 0
    %8674 = vmatmul.mubr.bf16.gmra.mrb[0].mxu0 %v8446
    %v8675 = vpop.f32.mrb[0].mxu0
    %v8676 = vadd.f32 0.0, %v8675
    %v8677 = vpop.f32.mrb[0].mxu0
    %v8678 = vpop.f32.mrb[0].mxu0
    %v8679 = vadd.f32 0.0, %v8678
    %v8680 = vpop.f32.mrb[0].mxu0
    %8681 = vmatprep.mubr.bf16.mxu0 0
    %8682 = vmatmul.mubr.bf16.gmra.mrb[0].mxu0 %v8447
    %v8683 = vpop.f32.mrb[0].mxu0
    %v8684 = vadd.f32 0.0, %v8683
    %v8685 = vpop.f32.mrb[0].mxu0
    %v8686 = vpop.f32.mrb[0].mxu0
    %v8687 = vadd.f32 0.0, %v8686
    %v8688 = vpop.f32.mrb[0].mxu0
    %8689 = vmatprep.mubr.bf16.mxu0 0
    %8690 = vmatmul.mubr.bf16.gmra.mrb[0].mxu0 %v8448
    %v8691 = vpop.f32.mrb[0].mxu0
    %v8692 = vadd.f32 0.0, %v8691
    %v8693 = vpop.f32.mrb[0].mxu0
    %v8694 = vpop.f32.mrb[0].mxu0
    %v8695 = vadd.f32 0.0, %v8694
    %v8696 = vpop.f32.mrb[0].mxu0
    %8697 = vmatprep.mubr.bf16.mxu0 0
    %8698 = vmatmul.mubr.bf16.gmra.mrb[0].mxu0 %v8449
    %v8699 = vpop.f32.mrb[0].mxu0
    %v8700 = vadd.f32 0.0, %v8699
    %v8701 = vpop.f32.mrb[0].mxu0
    %v8702 = vpop.f32.mrb[0].mxu0
    %v8703 = vadd.f32 0.0, %v8702
    %v8704 = vpop.f32.mrb[0].mxu0
    %8705 = vmatprep.mubr.bf16.mxu0 0
    %8706 = vmatmul.mubr.bf16.gmra.mrb[0].mxu0 %v8450
    %v8707 = vpop.f32.mrb[0].mxu0
    %v8708 = vadd.f32 0.0, %v8707
    %v8709 = vpop.f32.mrb[0].mxu0
    %v8710 = vpop.f32.mrb[0].mxu0
    %v8711 = vadd.f32 0.0, %v8710
    %v8712 = vpop.f32.mrb[0].mxu0
    %8713 = vmatprep.mubr.bf16.mxu0 0
    %8714 = vmatmul.mubr.bf16.gmra.mrb[0].mxu0 %v8451
    %v8715 = vpop.f32.mrb[0].mxu0
    %v8716 = vadd.f32 0.0, %v8715
    %v8717 = vpop.f32.mrb[0].mxu0
    %v8718 = vpop.f32.mrb[0].mxu0
    %v8719 = vadd.f32 0.0, %v8718
    %v8720 = vpop.f32.mrb[0].mxu0
    %8721 = vmatprep.mubr.bf16.mxu0 0
    %8722 = vmatmul.mubr.bf16.gmra.mrb[0].mxu0 %v8452
    %v8723 = vpop.f32.mrb[0].mxu0
    %v8724 = vadd.f32 0.0, %v8723
    %v8725 = vpop.f32.mrb[0].mxu0
    %v8726 = vpop.f32.mrb[0].mxu0
    %v8727 = vadd.f32 0.0, %v8726
    %v8728 = vpop.f32.mrb[0].mxu0
    %8729 = vmatprep.mubr.bf16.mxu0 0
    %8730 = vmatmul.mubr.bf16.gmra.mrb[0].mxu0 %v8453
    %v8731 = vpop.f32.mrb[0].mxu0
    %v8732 = vadd.f32 0.0, %v8731
    %v8733 = vpop.f32.mrb[0].mxu0
    %v8734 = vpop.f32.mrb[0].mxu0
    %v8735 = vadd.f32 0.0, %v8734
    %v8736 = vpop.f32.mrb[0].mxu0
    %8737 = vmatprep.mubr.bf16.mxu0 0
    %8738 = vmatmul.mubr.bf16.gmra.mrb[0].mxu0 %v8454
    %v8739 = vpop.f32.mrb[0].mxu0
    %v8740 = vadd.f32 0.0, %v8739
    %v8741 = vpop.f32.mrb[0].mxu0
    %v8742 = vpop.f32.mrb[0].mxu0
    %v8743 = vadd.f32 0.0, %v8742
    %v8744 = vpop.f32.mrb[0].mxu0
    %8745 = vmatprep.mubr.bf16.mxu0 0
    %8746 = vmatmul.mubr.bf16.gmra.mrb[0].mxu0 %v8455
    %v8747 = vpop.f32.mrb[0].mxu0
    %v8748 = vadd.f32 0.0, %v8747
    %v8749 = vpop.f32.mrb[0].mxu0
    %v8750 = vpop.f32.mrb[0].mxu0
    %v8751 = vadd.f32 0.0, %v8750
    %v8752 = vpop.f32.mrb[0].mxu0
    %8753 = vmatprep.mubr.bf16.mxu0 0
    %8754 = vmatmul.mubr.bf16.gmra.mrb[0].mxu0 %v8456
    %v8755 = vpop.f32.mrb[0].mxu0
    %v8756 = vadd.f32 0.0, %v8755
    %v8757 = vpop.f32.mrb[0].mxu0
    %v8758 = vpop.f32.mrb[0].mxu0
    %v8759 = vadd.f32 0.0, %v8758
    %v8760 = vpop.f32.mrb[0].mxu0
    %8761 = vmatprep.mubr.bf16.mxu0 0
    %8762 = vmatmul.mubr.bf16.gmra.mrb[0].mxu0 %v8457
    %v8763 = vpop.f32.mrb[0].mxu0
    %v8764 = vadd.f32 0.0, %v8763
    %v8765 = vpop.f32.mrb[0].mxu0
    %v8766 = vpop.f32.mrb[0].mxu0
    %v8767 = vadd.f32 0.0, %v8766
    %v8768 = vpop.f32.mrb[0].mxu0
    %8769 = vmatprep.mubr.bf16.mxu0 0
    %8770 = vmatmul.mubr.bf16.gmra.mrb[0].mxu0 %v8458
    %v8771 = vpop.f32.mrb[0].mxu0
    %v8772 = vadd.f32 0.0, %v8771
    %v8773 = vpop.f32.mrb[0].mxu0
    %v8774 = vpop.f32.mrb[0].mxu0
    %v8775 = vadd.f32 0.0, %v8774
    %v8776 = vpop.f32.mrb[0].mxu0
    %8777 = vmatprep.mubr.bf16.mxu0 0
    %8778 = vmatmul.mubr.bf16.gmra.mrb[0].mxu0 %v8459
    %v8779 = vpop.f32.mrb[0].mxu0
    %v8780 = vadd.f32 0.0, %v8779
    %v8781 = vpop.f32.mrb[0].mxu0
    %v8782 = vpop.f32.mrb[0].mxu0
    %v8783 = vadd.f32 0.0, %v8782
    %v8784 = vpop.f32.mrb[0].mxu0
    %8785 = vmatprep.mubr.bf16.mxu0 0
    %8786 = vmatmul.mubr.bf16.gmra.mrb[0].mxu0 %v8460
    %v8787 = vpop.f32.mrb[0].mxu0
    %v8788 = vadd.f32 0.0, %v8787
    %v8789 = vpop.f32.mrb[0].mxu0
    %v8790 = vpop.f32.mrb[0].mxu0
    %v8791 = vadd.f32 0.0, %v8790
    %v8792 = vpop.f32.mrb[0].mxu0
    %8793 = vmatprep.mubr.bf16.mxu0 0
    %8794 = vmatmul.mubr.bf16.gmra.mrb[0].mxu0 %v8461
    %v8795 = vpop.f32.mrb[0].mxu0
    %v8796 = vadd.f32 0.0, %v8795
    %v8797 = vpop.f32.mrb[0].mxu0
    %v8798 = vpop.f32.mrb[0].mxu0
    %v8799 = vadd.f32 0.0, %v8798
    %v8800 = vpop.f32.mrb[0].mxu0
    %8801 = vmatprep.mubr.bf16.mxu0 0
    %8802 = vmatmul.mubr.bf16.gmra.mrb[0].mxu0 %v8462
    %v8803 = vpop.f32.mrb[0].mxu0
    %v8804 = vadd.f32 0.0, %v8803
    %v8805 = vpop.f32.mrb[0].mxu0
    %v8806 = vpop.f32.mrb[0].mxu0
    %v8807 = vadd.f32 0.0, %v8806
    %v8808 = vpop.f32.mrb[0].mxu0
    %8809 = vmatprep.mubr.bf16.mxu0 0
    %8810 = vmatmul.mubr.bf16.gmra.mrb[0].mxu0 %v8463
    %v8811 = vpop.f32.mrb[0].mxu0
    %v8812 = vadd.f32 0.0, %v8811
    %v8813 = vpop.f32.mrb[0].mxu0
    %v8814 = vpop.f32.mrb[0].mxu0
    %v8815 = vadd.f32 0.0, %v8814
    %v8816 = vpop.f32.mrb[0].mxu0
    %8817 = vdwg.mxu0
    %v8818 = vadd.f32 %v8304, %v8564
    %v8819 = vadd.f32 %v8305, %v8567
    %v8820 = vadd.f32 %v8306, %v8572
    %v8821 = vadd.f32 %v8307, %v8575
    %v8822 = vadd.f32 %v8308, %v8580
    %v8823 = vadd.f32 %v8309, %v8583
    %v8824 = vadd.f32 %v8310, %v8588
    %v8825 = vadd.f32 %v8311, %v8591
    %v8826 = vadd.f32 %v8312, %v8596
    %v8827 = vadd.f32 %v8313, %v8599
    %v8828 = vadd.f32 %v8314, %v8604
    %v8829 = vadd.f32 %v8315, %v8607
    %v8830 = vadd.f32 %v8316, %v8612
    %v8831 = vadd.f32 %v8317, %v8615
    %v8832 = vadd.f32 %v8318, %v8620
    %v8833 = vadd.f32 %v8319, %v8623
    %v8834 = vadd.f32 %v8320, %v8628
    %v8835 = vadd.f32 %v8321, %v8631
    %v8836 = vadd.f32 %v8322, %v8636
    %v8837 = vadd.f32 %v8323, %v8639
    %v8838 = vadd.f32 %v8324, %v8644
    %v8839 = vadd.f32 %v8325, %v8647
    %v8840 = vadd.f32 %v8326, %v8652
    %v8841 = vadd.f32 %v8327, %v8655
    %v8842 = vadd.f32 %v8328, %v8660
    %v8843 = vadd.f32 %v8329, %v8663
    %v8844 = vadd.f32 %v8330, %v8668
    %v8845 = vadd.f32 %v8331, %v8671
    %v8846 = vadd.f32 %v8332, %v8676
    %v8847 = vadd.f32 %v8333, %v8679
    %v8848 = vadd.f32 %v8334, %v8684
    %v8849 = vadd.f32 %v8335, %v8687
    %v8850 = vadd.f32 %v8336, %v8692
    %v8851 = vadd.f32 %v8337, %v8695
    %v8852 = vadd.f32 %v8338, %v8700
    %v8853 = vadd.f32 %v8339, %v8703
    %v8854 = vadd.f32 %v8340, %v8708
    %v8855 = vadd.f32 %v8341, %v8711
    %v8856 = vadd.f32 %v8342, %v8716
    %v8857 = vadd.f32 %v8343, %v8719
    %v8858 = vadd.f32 %v8344, %v8724
    %v8859 = vadd.f32 %v8345, %v8727
    %v8860 = vadd.f32 %v8346, %v8732
    %v8861 = vadd.f32 %v8347, %v8735
    %v8862 = vadd.f32 %v8348, %v8740
    %v8863 = vadd.f32 %v8349, %v8743
    %v8864 = vadd.f32 %v8350, %v8748
    %v8865 = vadd.f32 %v8351, %v8751
    %v8866 = vadd.f32 %v8352, %v8756
    %v8867 = vadd.f32 %v8353, %v8759
    %v8868 = vadd.f32 %v8354, %v8764
    %v8869 = vadd.f32 %v8355, %v8767
    %v8870 = vadd.f32 %v8356, %v8772
    %v8871 = vadd.f32 %v8357, %v8775
    %v8872 = vadd.f32 %v8358, %v8780
    %v8873 = vadd.f32 %v8359, %v8783
    %v8874 = vadd.f32 %v8360, %v8788
    %v8875 = vadd.f32 %v8361, %v8791
    %v8876 = vadd.f32 %v8362, %v8796
    %v8877 = vadd.f32 %v8363, %v8799
    %v8878 = vadd.f32 %v8364, %v8804
    %v8879 = vadd.f32 %v8365, %v8807
    %v8880 = vadd.f32 %v8366, %v8812
    %v8881 = vadd.f32 %v8367, %v8815
    %s8882 = scalar_lea.vmem [#allocation2], 48
    %v8883 = vld [vmem:[%s8882] sm:$0xff]
    %v8884 = vld [vmem:[%s8882 + $0x8] sm:$0xff]
    %v8885 = vld [vmem:[%s8882 + $0x18] sm:$0xff]
    %v8886 = vld [vmem:[%s8882 + $0x20] sm:$0xff]
    %v8887 = vld [vmem:[%s8882 + $0x30] sm:$0xff]
    %v8888 = vld [vmem:[%s8882 + $0x38] sm:$0xff]
    %v8889 = vld [vmem:[%s8882 + $0x48] sm:$0xff]
    %v8890 = vld [vmem:[%s8882 + $0x50] sm:$0xff]
    %v8891 = vld [vmem:[%s8882 + $0x60] sm:$0xff]
    %v8892 = vld [vmem:[%s8882 + $0x68] sm:$0xff]
    %v8893 = vld [vmem:[%s8882 + $0x78] sm:$0xff]
    %v8894 = vld [vmem:[%s8882 + $0x80] sm:$0xff]
    %v8895 = vld [vmem:[%s8882 + $0x90] sm:$0xff]
    %v8896 = vld [vmem:[%s8882 + $0x98] sm:$0xff]
    %v8897 = vld [vmem:[%s8882 + $0xa8] sm:$0xff]
    %v8898 = vld [vmem:[%s8882 + $0xb0] sm:$0xff]
    %v8899 = vld [vmem:[%s8882 + $0xc0] sm:$0xff]
    %v8900 = vld [vmem:[%s8882 + $0xc8] sm:$0xff]
    %v8901 = vld [vmem:[%s8882 + $0xd8] sm:$0xff]
    %v8902 = vld [vmem:[%s8882 + $0xe0] sm:$0xff]
    %v8903 = vld [vmem:[%s8882 + $0xf0] sm:$0xff]
    %v8904 = vld [vmem:[%s8882 + $0xf8] sm:$0xff]
    %v8905 = vld [vmem:[%s8882 + $0x108] sm:$0xff]
    %v8906 = vld [vmem:[%s8882 + $0x110] sm:$0xff]
    %v8907 = vld [vmem:[%s8882 + $0x120] sm:$0xff]
    %v8908 = vld [vmem:[%s8882 + $0x128] sm:$0xff]
    %v8909 = vld [vmem:[%s8882 + $0x138] sm:$0xff]
    %v8910 = vld [vmem:[%s8882 + $0x140] sm:$0xff]
    %v8911 = vld [vmem:[%s8882 + $0x150] sm:$0xff]
    %v8912 = vld [vmem:[%s8882 + $0x158] sm:$0xff]
    %v8913 = vld [vmem:[%s8882 + $0x168] sm:$0xff]
    %v8914 = vld [vmem:[%s8882 + $0x170] sm:$0xff]
    %v8915 = vld [vmem:[%s8882 + $0x1b0] sm:$0xff]
    %v8916 = vld [vmem:[%s8882 + $0x1b8] sm:$0xff]
    %v8917 = vld [vmem:[%s8882 + $0x1c8] sm:$0xff]
    %v8918 = vld [vmem:[%s8882 + $0x1d0] sm:$0xff]
    %v8919 = vld [vmem:[%s8882 + $0x1e0] sm:$0xff]
    %v8920 = vld [vmem:[%s8882 + $0x1e8] sm:$0xff]
    %v8921 = vld [vmem:[%s8882 + $0x1f8] sm:$0xff]
    %v8922 = vld [vmem:[%s8882 + $0x200] sm:$0xff]
    %v8923 = vld [vmem:[%s8882 + $0x210] sm:$0xff]
    %v8924 = vld [vmem:[%s8882 + $0x218] sm:$0xff]
    %v8925 = vld [vmem:[%s8882 + $0x228] sm:$0xff]
    %v8926 = vld [vmem:[%s8882 + $0x230] sm:$0xff]
    %v8927 = vld [vmem:[%s8882 + $0x240] sm:$0xff]
    %v8928 = vld [vmem:[%s8882 + $0x248] sm:$0xff]
    %v8929 = vld [vmem:[%s8882 + $0x258] sm:$0xff]
    %v8930 = vld [vmem:[%s8882 + $0x260] sm:$0xff]
    %v8931 = vld [vmem:[%s8882 + $0x270] sm:$0xff]
    %v8932 = vld [vmem:[%s8882 + $0x278] sm:$0xff]
    %v8933 = vld [vmem:[%s8882 + $0x288] sm:$0xff]
    %v8934 = vld [vmem:[%s8882 + $0x290] sm:$0xff]
    %v8935 = vld [vmem:[%s8882 + $0x2a0] sm:$0xff]
    %v8936 = vld [vmem:[%s8882 + $0x2a8] sm:$0xff]
    %v8937 = vld [vmem:[%s8882 + $0x2b8] sm:$0xff]
    %v8938 = vld [vmem:[%s8882 + $0x2c0] sm:$0xff]
    %v8939 = vld [vmem:[%s8882 + $0x2d0] sm:$0xff]
    %v8940 = vld [vmem:[%s8882 + $0x2d8] sm:$0xff]
    %v8941 = vld [vmem:[%s8882 + $0x2e8] sm:$0xff]
    %v8942 = vld [vmem:[%s8882 + $0x2f0] sm:$0xff]
    %v8943 = vld [vmem:[%s8882 + $0x300] sm:$0xff]
    %v8944 = vld [vmem:[%s8882 + $0x308] sm:$0xff]
    %v8945 = vld [vmem:[%s8882 + $0x318] sm:$0xff]
    %v8946 = vld [vmem:[%s8882 + $0x320] sm:$0xff]
    %v8947 = vpack.c.bf16 %v8884, %v8883
    %v8948 = vpack.c.bf16 %v8886, %v8885
    %v8949 = vpack.c.bf16 %v8888, %v8887
    %v8950 = vpack.c.bf16 %v8890, %v8889
    %v8951 = vpack.c.bf16 %v8892, %v8891
    %v8952 = vpack.c.bf16 %v8894, %v8893
    %v8953 = vpack.c.bf16 %v8896, %v8895
    %v8954 = vpack.c.bf16 %v8898, %v8897
    %v8955 = vpack.c.bf16 %v8900, %v8899
    %v8956 = vpack.c.bf16 %v8902, %v8901
    %v8957 = vpack.c.bf16 %v8904, %v8903
    %v8958 = vpack.c.bf16 %v8906, %v8905
    %v8959 = vpack.c.bf16 %v8908, %v8907
    %v8960 = vpack.c.bf16 %v8910, %v8909
    %v8961 = vpack.c.bf16 %v8912, %v8911
    %v8962 = vpack.c.bf16 %v8914, %v8913
    %v8963 = vpack.c.bf16 %v8916, %v8915
    %v8964 = vpack.c.bf16 %v8918, %v8917
    %v8965 = vpack.c.bf16 %v8920, %v8919
    %v8966 = vpack.c.bf16 %v8922, %v8921
    %v8967 = vpack.c.bf16 %v8924, %v8923
    %v8968 = vpack.c.bf16 %v8926, %v8925
    %v8969 = vpack.c.bf16 %v8928, %v8927
    %v8970 = vpack.c.bf16 %v8930, %v8929
    %v8971 = vpack.c.bf16 %v8932, %v8931
    %v8972 = vpack.c.bf16 %v8934, %v8933
    %v8973 = vpack.c.bf16 %v8936, %v8935
    %v8974 = vpack.c.bf16 %v8938, %v8937
    %v8975 = vpack.c.bf16 %v8940, %v8939
    %v8976 = vpack.c.bf16 %v8942, %v8941
    %v8977 = vpack.c.bf16 %v8944, %v8943
    %v8978 = vpack.c.bf16 %v8946, %v8945
    %s8979 = scalar_lea.vmem [#allocation3], 384
    %v8980 = vld [vmem:[%s8979] sm:$0xf]
    %v8981 = vld [vmem:[%s8979 + $0x4] sm:$0xf]
    %v8982 = vld [vmem:[%s8979 + $0x8] sm:$0xf]
    %v8983 = vld [vmem:[%s8979 + $0xc] sm:$0xf]
    %v8984 = vld [vmem:[%s8979 + $0x10] sm:$0xf]
    %v8985 = vld [vmem:[%s8979 + $0x14] sm:$0xf]
    %v8986 = vld [vmem:[%s8979 + $0x18] sm:$0xf]
    %v8987 = vld [vmem:[%s8979 + $0x1c] sm:$0xf]
    %v8988 = vld [vmem:[%s8979 + $0x20] sm:$0xf]
    %v8989 = vld [vmem:[%s8979 + $0x24] sm:$0xf]
    %v8990 = vld [vmem:[%s8979 + $0x28] sm:$0xf]
    %v8991 = vld [vmem:[%s8979 + $0x2c] sm:$0xf]
    %v8992 = vld [vmem:[%s8979 + $0x30] sm:$0xf]
    %v8993 = vld [vmem:[%s8979 + $0x34] sm:$0xf]
    %v8994 = vld [vmem:[%s8979 + $0x38] sm:$0xf]
    %v8995 = vld [vmem:[%s8979 + $0x3c] sm:$0xf]
    %v9012 = vunpack.c.l.b16 %v8980
    %v9013 = vunpack.c.l.b16 %v8981
    %v9014 = vunpack.c.l.b16 %v8982
    %v9015 = vunpack.c.l.b16 %v8983
    %v9016 = vunpack.c.l.b16 %v8984
    %v9017 = vunpack.c.l.b16 %v8985
    %v9018 = vunpack.c.l.b16 %v8986
    %v9019 = vunpack.c.l.b16 %v8987
    %v9020 = vunpack.c.l.b16 %v8988
    %v9021 = vunpack.c.l.b16 %v8989
    %v9022 = vunpack.c.l.b16 %v8990
    %v9023 = vunpack.c.l.b16 %v8991
    %v9024 = vunpack.c.l.b16 %v8992
    %v9025 = vunpack.c.l.b16 %v8993
    %v9026 = vunpack.c.l.b16 %v8994
    %v9027 = vunpack.c.l.b16 %v8995
    %v9028 = vpack.c.b16 %v9013, %v9012
    %v9029 = vpack.c.b16 %v9015, %v9014
    %v9030 = vpack.c.b16 %v9017, %v9016
    %v9031 = vpack.c.b16 %v9019, %v9018
    %v9032 = vpack.c.b16 %v9021, %v9020
    %v9033 = vpack.c.b16 %v9023, %v9022
    %v9034 = vpack.c.b16 %v9025, %v9024
    %v9035 = vpack.c.b16 %v9027, %v9026
    %9044 = vmatprep.subr.bf16.mxu0 0
    %9045 = vmatpush1.bf16.msra.mxu0 %v9028
    %9046 = vmatprep.subr.bf16.mxu0 0
    %9047 = vmatpush1.bf16.msra.mxu0 %v9029
    %9048 = vmatprep.subr.bf16.mxu0 0
    %9049 = vmatpush1.bf16.msra.mxu0 %v9030
    %9050 = vmatprep.subr.bf16.mxu0 0
    %9051 = vmatpush1.bf16.msra.mxu0 %v9031
    %9052 = vmatprep.subr.bf16.mxu0 0
    %9053 = vmatpush1.bf16.msra.mxu0 %v9032
    %9054 = vmatprep.subr.bf16.mxu0 0
    %9055 = vmatpush1.bf16.msra.mxu0 %v9033
    %9056 = vmatprep.subr.bf16.mxu0 0
    %9057 = vmatpush1.bf16.msra.mxu0 %v9034
    %9058 = vmatprep.subr.bf16.mxu0 0
    %9059 = vmatpush1.bf16.msra.mxu0 %v9035
    %9060 = vmatprep.subr.bf16.mxu0 0
    %9061 = vmatpush1.bf16.msra.mxu0 0
    %9062 = vmatprep.subr.bf16.mxu0 0
    %9063 = vmatpush1.bf16.msra.mxu0 0
    %9064 = vmatprep.subr.bf16.mxu0 0
    %9065 = vmatpush1.bf16.msra.mxu0 0
    %9066 = vmatprep.subr.bf16.mxu0 0
    %9067 = vmatpush1.bf16.msra.mxu0 0
    %9068 = vmatprep.subr.bf16.mxu0 0
    %9069 = vmatpush1.bf16.msra.mxu0 0
    %9070 = vmatprep.subr.bf16.mxu0 0
    %9071 = vmatpush1.bf16.msra.mxu0 0
    %9072 = vmatprep.subr.bf16.mxu0 0
    %9073 = vmatpush1.bf16.msra.mxu0 0
    %9074 = vmatprep.subr.bf16.mxu0 0
    %9075 = vmatpush1.bf16.msra.mxu0 0
    %9076 = vmatprep.mubr.bf16.mxu0 0
    %9077 = vmatmul.mubr.bf16.gmra.mrb[0].mxu0 %v8947
    %v9078 = vpop.f32.mrb[0].mxu0
    %v9079 = vadd.f32 0.0, %v9078
    %v9080 = vpop.f32.mrb[0].mxu0
    %v9081 = vpop.f32.mrb[0].mxu0
    %v9082 = vadd.f32 0.0, %v9081
    %v9083 = vpop.f32.mrb[0].mxu0
    %9084 = vmatprep.mubr.bf16.mxu0 0
    %9085 = vmatmul.mubr.bf16.gmra.mrb[0].mxu0 %v8948
    %v9086 = vpop.f32.mrb[0].mxu0
    %v9087 = vadd.f32 0.0, %v9086
    %v9088 = vpop.f32.mrb[0].mxu0
    %v9089 = vpop.f32.mrb[0].mxu0
    %v9090 = vadd.f32 0.0, %v9089
    %v9091 = vpop.f32.mrb[0].mxu0
    %9092 = vmatprep.mubr.bf16.mxu0 0
    %9093 = vmatmul.mubr.bf16.gmra.mrb[0].mxu0 %v8949
    %v9094 = vpop.f32.mrb[0].mxu0
    %v9095 = vadd.f32 0.0, %v9094
    %v9096 = vpop.f32.mrb[0].mxu0
    %v9097 = vpop.f32.mrb[0].mxu0
    %v9098 = vadd.f32 0.0, %v9097
    %v9099 = vpop.f32.mrb[0].mxu0
    %9100 = vmatprep.mubr.bf16.mxu0 0
    %9101 = vmatmul.mubr.bf16.gmra.mrb[0].mxu0 %v8950
    %v9102 = vpop.f32.mrb[0].mxu0
    %v9103 = vadd.f32 0.0, %v9102
    %v9104 = vpop.f32.mrb[0].mxu0
    %v9105 = vpop.f32.mrb[0].mxu0
    %v9106 = vadd.f32 0.0, %v9105
    %v9107 = vpop.f32.mrb[0].mxu0
    %9108 = vmatprep.mubr.bf16.mxu0 0
    %9109 = vmatmul.mubr.bf16.gmra.mrb[0].mxu0 %v8951
    %v9110 = vpop.f32.mrb[0].mxu0
    %v9111 = vadd.f32 0.0, %v9110
    %v9112 = vpop.f32.mrb[0].mxu0
    %v9113 = vpop.f32.mrb[0].mxu0
    %v9114 = vadd.f32 0.0, %v9113
    %v9115 = vpop.f32.mrb[0].mxu0
    %9116 = vmatprep.mubr.bf16.mxu0 0
    %9117 = vmatmul.mubr.bf16.gmra.mrb[0].mxu0 %v8952
    %v9118 = vpop.f32.mrb[0].mxu0
    %v9119 = vadd.f32 0.0, %v9118
    %v9120 = vpop.f32.mrb[0].mxu0
    %v9121 = vpop.f32.mrb[0].mxu0
    %v9122 = vadd.f32 0.0, %v9121
    %v9123 = vpop.f32.mrb[0].mxu0
    %9124 = vmatprep.mubr.bf16.mxu0 0
    %9125 = vmatmul.mubr.bf16.gmra.mrb[0].mxu0 %v8953
    %v9126 = vpop.f32.mrb[0].mxu0
    %v9127 = vadd.f32 0.0, %v9126
    %v9128 = vpop.f32.mrb[0].mxu0
    %v9129 = vpop.f32.mrb[0].mxu0
    %v9130 = vadd.f32 0.0, %v9129
    %v9131 = vpop.f32.mrb[0].mxu0
    %9132 = vmatprep.mubr.bf16.mxu0 0
    %9133 = vmatmul.mubr.bf16.gmra.mrb[0].mxu0 %v8954
    %v9134 = vpop.f32.mrb[0].mxu0
    %v9135 = vadd.f32 0.0, %v9134
    %v9136 = vpop.f32.mrb[0].mxu0
    %v9137 = vpop.f32.mrb[0].mxu0
    %v9138 = vadd.f32 0.0, %v9137
    %v9139 = vpop.f32.mrb[0].mxu0
    %9140 = vmatprep.mubr.bf16.mxu0 0
    %9141 = vmatmul.mubr.bf16.gmra.mrb[0].mxu0 %v8955
    %v9142 = vpop.f32.mrb[0].mxu0
    %v9143 = vadd.f32 0.0, %v9142
    %v9144 = vpop.f32.mrb[0].mxu0
    %v9145 = vpop.f32.mrb[0].mxu0
    %v9146 = vadd.f32 0.0, %v9145
    %v9147 = vpop.f32.mrb[0].mxu0
    %9148 = vmatprep.mubr.bf16.mxu0 0
    %9149 = vmatmul.mubr.bf16.gmra.mrb[0].mxu0 %v8956
    %v9150 = vpop.f32.mrb[0].mxu0
    %v9151 = vadd.f32 0.0, %v9150
    %v9152 = vpop.f32.mrb[0].mxu0
    %v9153 = vpop.f32.mrb[0].mxu0
    %v9154 = vadd.f32 0.0, %v9153
    %v9155 = vpop.f32.mrb[0].mxu0
    %9156 = vmatprep.mubr.bf16.mxu0 0
    %9157 = vmatmul.mubr.bf16.gmra.mrb[0].mxu0 %v8957
    %v9158 = vpop.f32.mrb[0].mxu0
    %v9159 = vadd.f32 0.0, %v9158
    %v9160 = vpop.f32.mrb[0].mxu0
    %v9161 = vpop.f32.mrb[0].mxu0
    %v9162 = vadd.f32 0.0, %v9161
    %v9163 = vpop.f32.mrb[0].mxu0
    %9164 = vmatprep.mubr.bf16.mxu0 0
    %9165 = vmatmul.mubr.bf16.gmra.mrb[0].mxu0 %v8958
    %v9166 = vpop.f32.mrb[0].mxu0
    %v9167 = vadd.f32 0.0, %v9166
    %v9168 = vpop.f32.mrb[0].mxu0
    %v9169 = vpop.f32.mrb[0].mxu0
    %v9170 = vadd.f32 0.0, %v9169
    %v9171 = vpop.f32.mrb[0].mxu0
    %9172 = vmatprep.mubr.bf16.mxu0 0
    %9173 = vmatmul.mubr.bf16.gmra.mrb[0].mxu0 %v8959
    %v9174 = vpop.f32.mrb[0].mxu0
    %v9175 = vadd.f32 0.0, %v9174
    %v9176 = vpop.f32.mrb[0].mxu0
    %v9177 = vpop.f32.mrb[0].mxu0
    %v9178 = vadd.f32 0.0, %v9177
    %v9179 = vpop.f32.mrb[0].mxu0
    %9180 = vmatprep.mubr.bf16.mxu0 0
    %9181 = vmatmul.mubr.bf16.gmra.mrb[0].mxu0 %v8960
    %v9182 = vpop.f32.mrb[0].mxu0
    %v9183 = vadd.f32 0.0, %v9182
    %v9184 = vpop.f32.mrb[0].mxu0
    %v9185 = vpop.f32.mrb[0].mxu0
    %v9186 = vadd.f32 0.0, %v9185
    %v9187 = vpop.f32.mrb[0].mxu0
    %9188 = vmatprep.mubr.bf16.mxu0 0
    %9189 = vmatmul.mubr.bf16.gmra.mrb[0].mxu0 %v8961
    %v9190 = vpop.f32.mrb[0].mxu0
    %v9191 = vadd.f32 0.0, %v9190
    %v9192 = vpop.f32.mrb[0].mxu0
    %v9193 = vpop.f32.mrb[0].mxu0
    %v9194 = vadd.f32 0.0, %v9193
    %v9195 = vpop.f32.mrb[0].mxu0
    %9196 = vmatprep.mubr.bf16.mxu0 0
    %9197 = vmatmul.mubr.bf16.gmra.mrb[0].mxu0 %v8962
    %v9198 = vpop.f32.mrb[0].mxu0
    %v9199 = vadd.f32 0.0, %v9198
    %v9200 = vpop.f32.mrb[0].mxu0
    %v9201 = vpop.f32.mrb[0].mxu0
    %v9202 = vadd.f32 0.0, %v9201
    %v9203 = vpop.f32.mrb[0].mxu0
    %9204 = vmatprep.mubr.bf16.mxu0 0
    %9205 = vmatmul.mubr.bf16.gmra.mrb[0].mxu0 %v8963
    %v9206 = vpop.f32.mrb[0].mxu0
    %v9207 = vadd.f32 0.0, %v9206
    %v9208 = vpop.f32.mrb[0].mxu0
    %v9209 = vpop.f32.mrb[0].mxu0
    %v9210 = vadd.f32 0.0, %v9209
    %v9211 = vpop.f32.mrb[0].mxu0
    %9212 = vmatprep.mubr.bf16.mxu0 0
    %9213 = vmatmul.mubr.bf16.gmra.mrb[0].mxu0 %v8964
    %v9214 = vpop.f32.mrb[0].mxu0
    %v9215 = vadd.f32 0.0, %v9214
    %v9216 = vpop.f32.mrb[0].mxu0
    %v9217 = vpop.f32.mrb[0].mxu0
    %v9218 = vadd.f32 0.0, %v9217
    %v9219 = vpop.f32.mrb[0].mxu0
    %9220 = vmatprep.mubr.bf16.mxu0 0
    %9221 = vmatmul.mubr.bf16.gmra.mrb[0].mxu0 %v8965
    %v9222 = vpop.f32.mrb[0].mxu0
    %v9223 = vadd.f32 0.0, %v9222
    %v9224 = vpop.f32.mrb[0].mxu0
    %v9225 = vpop.f32.mrb[0].mxu0
    %v9226 = vadd.f32 0.0, %v9225
    %v9227 = vpop.f32.mrb[0].mxu0
    %9228 = vmatprep.mubr.bf16.mxu0 0
    %9229 = vmatmul.mubr.bf16.gmra.mrb[0].mxu0 %v8966
    %v9230 = vpop.f32.mrb[0].mxu0
    %v9231 = vadd.f32 0.0, %v9230
    %v9232 = vpop.f32.mrb[0].mxu0
    %v9233 = vpop.f32.mrb[0].mxu0
    %v9234 = vadd.f32 0.0, %v9233
    %v9235 = vpop.f32.mrb[0].mxu0
    %9236 = vmatprep.mubr.bf16.mxu0 0
    %9237 = vmatmul.mubr.bf16.gmra.mrb[0].mxu0 %v8967
    %v9238 = vpop.f32.mrb[0].mxu0
    %v9239 = vadd.f32 0.0, %v9238
    %v9240 = vpop.f32.mrb[0].mxu0
    %v9241 = vpop.f32.mrb[0].mxu0
    %v9242 = vadd.f32 0.0, %v9241
    %v9243 = vpop.f32.mrb[0].mxu0
    %9244 = vmatprep.mubr.bf16.mxu0 0
    %9245 = vmatmul.mubr.bf16.gmra.mrb[0].mxu0 %v8968
    %v9246 = vpop.f32.mrb[0].mxu0
    %v9247 = vadd.f32 0.0, %v9246
    %v9248 = vpop.f32.mrb[0].mxu0
    %v9249 = vpop.f32.mrb[0].mxu0
    %v9250 = vadd.f32 0.0, %v9249
    %v9251 = vpop.f32.mrb[0].mxu0
    %9252 = vmatprep.mubr.bf16.mxu0 0
    %9253 = vmatmul.mubr.bf16.gmra.mrb[0].mxu0 %v8969
    %v9254 = vpop.f32.mrb[0].mxu0
    %v9255 = vadd.f32 0.0, %v9254
    %v9256 = vpop.f32.mrb[0].mxu0
    %v9257 = vpop.f32.mrb[0].mxu0
    %v9258 = vadd.f32 0.0, %v9257
    %v9259 = vpop.f32.mrb[0].mxu0
    %9260 = vmatprep.mubr.bf16.mxu0 0
    %9261 = vmatmul.mubr.bf16.gmra.mrb[0].mxu0 %v8970
    %v9262 = vpop.f32.mrb[0].mxu0
    %v9263 = vadd.f32 0.0, %v9262
    %v9264 = vpop.f32.mrb[0].mxu0
    %v9265 = vpop.f32.mrb[0].mxu0
    %v9266 = vadd.f32 0.0, %v9265
    %v9267 = vpop.f32.mrb[0].mxu0
    %9268 = vmatprep.mubr.bf16.mxu0 0
    %9269 = vmatmul.mubr.bf16.gmra.mrb[0].mxu0 %v8971
    %v9270 = vpop.f32.mrb[0].mxu0
    %v9271 = vadd.f32 0.0, %v9270
    %v9272 = vpop.f32.mrb[0].mxu0
    %v9273 = vpop.f32.mrb[0].mxu0
    %v9274 = vadd.f32 0.0, %v9273
    %v9275 = vpop.f32.mrb[0].mxu0
    %9276 = vmatprep.mubr.bf16.mxu0 0
    %9277 = vmatmul.mubr.bf16.gmra.mrb[0].mxu0 %v8972
    %v9278 = vpop.f32.mrb[0].mxu0
    %v9279 = vadd.f32 0.0, %v9278
    %v9280 = vpop.f32.mrb[0].mxu0
    %v9281 = vpop.f32.mrb[0].mxu0
    %v9282 = vadd.f32 0.0, %v9281
    %v9283 = vpop.f32.mrb[0].mxu0
    %9284 = vmatprep.mubr.bf16.mxu0 0
    %9285 = vmatmul.mubr.bf16.gmra.mrb[0].mxu0 %v8973
    %v9286 = vpop.f32.mrb[0].mxu0
    %v9287 = vadd.f32 0.0, %v9286
    %v9288 = vpop.f32.mrb[0].mxu0
    %v9289 = vpop.f32.mrb[0].mxu0
    %v9290 = vadd.f32 0.0, %v9289
    %v9291 = vpop.f32.mrb[0].mxu0
    %9292 = vmatprep.mubr.bf16.mxu0 0
    %9293 = vmatmul.mubr.bf16.gmra.mrb[0].mxu0 %v8974
    %v9294 = vpop.f32.mrb[0].mxu0
    %v9295 = vadd.f32 0.0, %v9294
    %v9296 = vpop.f32.mrb[0].mxu0
    %v9297 = vpop.f32.mrb[0].mxu0
    %v9298 = vadd.f32 0.0, %v9297
    %v9299 = vpop.f32.mrb[0].mxu0
    %9300 = vmatprep.mubr.bf16.mxu0 0
    %9301 = vmatmul.mubr.bf16.gmra.mrb[0].mxu0 %v8975
    %v9302 = vpop.f32.mrb[0].mxu0
    %v9303 = vadd.f32 0.0, %v9302
    %v9304 = vpop.f32.mrb[0].mxu0
    %v9305 = vpop.f32.mrb[0].mxu0
    %v9306 = vadd.f32 0.0, %v9305
    %v9307 = vpop.f32.mrb[0].mxu0
    %9308 = vmatprep.mubr.bf16.mxu0 0
    %9309 = vmatmul.mubr.bf16.gmra.mrb[0].mxu0 %v8976
    %v9310 = vpop.f32.mrb[0].mxu0
    %v9311 = vadd.f32 0.0, %v9310
    %v9312 = vpop.f32.mrb[0].mxu0
    %v9313 = vpop.f32.mrb[0].mxu0
    %v9314 = vadd.f32 0.0, %v9313
    %v9315 = vpop.f32.mrb[0].mxu0
    %9316 = vmatprep.mubr.bf16.mxu0 0
    %9317 = vmatmul.mubr.bf16.gmra.mrb[0].mxu0 %v8977
    %v9318 = vpop.f32.mrb[0].mxu0
    %v9319 = vadd.f32 0.0, %v9318
    %v9320 = vpop.f32.mrb[0].mxu0
    %v9321 = vpop.f32.mrb[0].mxu0
    %v9322 = vadd.f32 0.0, %v9321
    %v9323 = vpop.f32.mrb[0].mxu0
    %9324 = vmatprep.mubr.bf16.mxu0 0
    %9325 = vmatmul.mubr.bf16.gmra.mrb[0].mxu0 %v8978
    %v9326 = vpop.f32.mrb[0].mxu0
    %v9327 = vadd.f32 0.0, %v9326
    %v9328 = vpop.f32.mrb[0].mxu0
    %v9329 = vpop.f32.mrb[0].mxu0
    %v9330 = vadd.f32 0.0, %v9329
    %v9331 = vpop.f32.mrb[0].mxu0
    %9332 = vdwg.mxu0
    %v9333 = vadd.f32 %v8818, %v9079
    %v9334 = vadd.f32 %v8819, %v9082
    %v9335 = vadd.f32 %v8820, %v9087
    %v9336 = vadd.f32 %v8821, %v9090
    %v9337 = vadd.f32 %v8822, %v9095
    %v9338 = vadd.f32 %v8823, %v9098
    %v9339 = vadd.f32 %v8824, %v9103
    %v9340 = vadd.f32 %v8825, %v9106
    %v9341 = vadd.f32 %v8826, %v9111
    %v9342 = vadd.f32 %v8827, %v9114
    %v9343 = vadd.f32 %v8828, %v9119
    %v9344 = vadd.f32 %v8829, %v9122
    %v9345 = vadd.f32 %v8830, %v9127
    %v9346 = vadd.f32 %v8831, %v9130
    %v9347 = vadd.f32 %v8832, %v9135
    %v9348 = vadd.f32 %v8833, %v9138
    %v9349 = vadd.f32 %v8834, %v9143
    %v9350 = vadd.f32 %v8835, %v9146
    %v9351 = vadd.f32 %v8836, %v9151
    %v9352 = vadd.f32 %v8837, %v9154
    %v9353 = vadd.f32 %v8838, %v9159
    %v9354 = vadd.f32 %v8839, %v9162
    %v9355 = vadd.f32 %v8840, %v9167
    %v9356 = vadd.f32 %v8841, %v9170
    %v9357 = vadd.f32 %v8842, %v9175
    %v9358 = vadd.f32 %v8843, %v9178
    %v9359 = vadd.f32 %v8844, %v9183
    %v9360 = vadd.f32 %v8845, %v9186
    %v9361 = vadd.f32 %v8846, %v9191
    %v9362 = vadd.f32 %v8847, %v9194
    %v9363 = vadd.f32 %v8848, %v9199
    %v9364 = vadd.f32 %v8849, %v9202
    %v9365 = vadd.f32 %v8850, %v9207
    %v9366 = vadd.f32 %v8851, %v9210
    %v9367 = vadd.f32 %v8852, %v9215
    %v9368 = vadd.f32 %v8853, %v9218
    %v9369 = vadd.f32 %v8854, %v9223
    %v9370 = vadd.f32 %v8855, %v9226
    %v9371 = vadd.f32 %v8856, %v9231
    %v9372 = vadd.f32 %v8857, %v9234
    %v9373 = vadd.f32 %v8858, %v9239
    %v9374 = vadd.f32 %v8859, %v9242
    %v9375 = vadd.f32 %v8860, %v9247
    %v9376 = vadd.f32 %v8861, %v9250
    %v9377 = vadd.f32 %v8862, %v9255
    %v9378 = vadd.f32 %v8863, %v9258
    %v9379 = vadd.f32 %v8864, %v9263
    %v9380 = vadd.f32 %v8865, %v9266
    %v9381 = vadd.f32 %v8866, %v9271
    %v9382 = vadd.f32 %v8867, %v9274
    %v9383 = vadd.f32 %v8868, %v9279
    %v9384 = vadd.f32 %v8869, %v9282
    %v9385 = vadd.f32 %v8870, %v9287
    %v9386 = vadd.f32 %v8871, %v9290
    %v9387 = vadd.f32 %v8872, %v9295
    %v9388 = vadd.f32 %v8873, %v9298
    %v9389 = vadd.f32 %v8874, %v9303
    %v9390 = vadd.f32 %v8875, %v9306
    %v9391 = vadd.f32 %v8876, %v9311
    %v9392 = vadd.f32 %v8877, %v9314
    %v9393 = vadd.f32 %v8878, %v9319
    %v9394 = vadd.f32 %v8879, %v9322
    %v9395 = vadd.f32 %v8880, %v9327
    %v9396 = vadd.f32 %v8881, %v9330
    %v9397 = vld [vmem:[%s8882 + $0x1] sm:$0xff]
    %v9398 = vld [vmem:[%s8882 + $0x9] sm:$0xff]
    %v9399 = vld [vmem:[%s8882 + $0x19] sm:$0xff]
    %v9400 = vld [vmem:[%s8882 + $0x21] sm:$0xff]
    %v9401 = vld [vmem:[%s8882 + $0x31] sm:$0xff]
    %v9402 = vld [vmem:[%s8882 + $0x39] sm:$0xff]
    %v9403 = vld [vmem:[%s8882 + $0x49] sm:$0xff]
    %v9404 = vld [vmem:[%s8882 + $0x51] sm:$0xff]
    %v9405 = vld [vmem:[%s8882 + $0x61] sm:$0xff]
    %v9406 = vld [vmem:[%s8882 + $0x69] sm:$0xff]
    %v9407 = vld [vmem:[%s8882 + $0x79] sm:$0xff]
    %v9408 = vld [vmem:[%s8882 + $0x81] sm:$0xff]
    %v9409 = vld [vmem:[%s8882 + $0x91] sm:$0xff]
    %v9410 = vld [vmem:[%s8882 + $0x99] sm:$0xff]
    %v9411 = vld [vmem:[%s8882 + $0xa9] sm:$0xff]
    %v9412 = vld [vmem:[%s8882 + $0xb1] sm:$0xff]
    %v9413 = vld [vmem:[%s8882 + $0xc1] sm:$0xff]
    %v9414 = vld [vmem:[%s8882 + $0xc9] sm:$0xff]
    %v9415 = vld [vmem:[%s8882 + $0xd9] sm:$0xff]
    %v9416 = vld [vmem:[%s8882 + $0xe1] sm:$0xff]
    %v9417 = vld [vmem:[%s8882 + $0xf1] sm:$0xff]
    %v9418 = vld [vmem:[%s8882 + $0xf9] sm:$0xff]
    %v9419 = vld [vmem:[%s8882 + $0x109] sm:$0xff]
    %v9420 = vld [vmem:[%s8882 + $0x111] sm:$0xff]
    %v9421 = vld [vmem:[%s8882 + $0x121] sm:$0xff]
    %v9422 = vld [vmem:[%s8882 + $0x129] sm:$0xff]
    %v9423 = vld [vmem:[%s8882 + $0x139] sm:$0xff]
    %v9424 = vld [vmem:[%s8882 + $0x141] sm:$0xff]
    %v9425 = vld [vmem:[%s8882 + $0x151] sm:$0xff]
    %v9426 = vld [vmem:[%s8882 + $0x159] sm:$0xff]
    %v9427 = vld [vmem:[%s8882 + $0x169] sm:$0xff]
    %v9428 = vld [vmem:[%s8882 + $0x171] sm:$0xff]
    %v9429 = vld [vmem:[%s8882 + $0x1b1] sm:$0xff]
    %v9430 = vld [vmem:[%s8882 + $0x1b9] sm:$0xff]
    %v9431 = vld [vmem:[%s8882 + $0x1c9] sm:$0xff]
    %v9432 = vld [vmem:[%s8882 + $0x1d1] sm:$0xff]
    %v9433 = vld [vmem:[%s8882 + $0x1e1] sm:$0xff]
    %v9434 = vld [vmem:[%s8882 + $0x1e9] sm:$0xff]
    %v9435 = vld [vmem:[%s8882 + $0x1f9] sm:$0xff]
    %v9436 = vld [vmem:[%s8882 + $0x201] sm:$0xff]
    %v9437 = vld [vmem:[%s8882 + $0x211] sm:$0xff]
    %v9438 = vld [vmem:[%s8882 + $0x219] sm:$0xff]
    %v9439 = vld [vmem:[%s8882 + $0x229] sm:$0xff]
    %v9440 = vld [vmem:[%s8882 + $0x231] sm:$0xff]
    %v9441 = vld [vmem:[%s8882 + $0x241] sm:$0xff]
    %v9442 = vld [vmem:[%s8882 + $0x249] sm:$0xff]
    %v9443 = vld [vmem:[%s8882 + $0x259] sm:$0xff]
    %v9444 = vld [vmem:[%s8882 + $0x261] sm:$0xff]
    %v9445 = vld [vmem:[%s8882 + $0x271] sm:$0xff]
    %v9446 = vld [vmem:[%s8882 + $0x279] sm:$0xff]
    %v9447 = vld [vmem:[%s8882 + $0x289] sm:$0xff]
    %v9448 = vld [vmem:[%s8882 + $0x291] sm:$0xff]
    %v9449 = vld [vmem:[%s8882 + $0x2a1] sm:$0xff]
    %v9450 = vld [vmem:[%s8882 + $0x2a9] sm:$0xff]
    %v9451 = vld [vmem:[%s8882 + $0x2b9] sm:$0xff]
    %v9452 = vld [vmem:[%s8882 + $0x2c1] sm:$0xff]
    %v9453 = vld [vmem:[%s8882 + $0x2d1] sm:$0xff]
    %v9454 = vld [vmem:[%s8882 + $0x2d9] sm:$0xff]
    %v9455 = vld [vmem:[%s8882 + $0x2e9] sm:$0xff]
    %v9456 = vld [vmem:[%s8882 + $0x2f1] sm:$0xff]
    %v9457 = vld [vmem:[%s8882 + $0x301] sm:$0xff]
    %v9458 = vld [vmem:[%s8882 + $0x309] sm:$0xff]
    %v9459 = vld [vmem:[%s8882 + $0x319] sm:$0xff]
    %v9460 = vld [vmem:[%s8882 + $0x321] sm:$0xff]
    %v9461 = vpack.c.bf16 %v9398, %v9397
    %v9462 = vpack.c.bf16 %v9400, %v9399
    %v9463 = vpack.c.bf16 %v9402, %v9401
    %v9464 = vpack.c.bf16 %v9404, %v9403
    %v9465 = vpack.c.bf16 %v9406, %v9405
    %v9466 = vpack.c.bf16 %v9408, %v9407
    %v9467 = vpack.c.bf16 %v9410, %v9409
    %v9468 = vpack.c.bf16 %v9412, %v9411
    %v9469 = vpack.c.bf16 %v9414, %v9413
    %v9470 = vpack.c.bf16 %v9416, %v9415
    %v9471 = vpack.c.bf16 %v9418, %v9417
    %v9472 = vpack.c.bf16 %v9420, %v9419
    %v9473 = vpack.c.bf16 %v9422, %v9421
    %v9474 = vpack.c.bf16 %v9424, %v9423
    %v9475 = vpack.c.bf16 %v9426, %v9425
    %v9476 = vpack.c.bf16 %v9428, %v9427
    %v9477 = vpack.c.bf16 %v9430, %v9429
    %v9478 = vpack.c.bf16 %v9432, %v9431
    %v9479 = vpack.c.bf16 %v9434, %v9433
    %v9480 = vpack.c.bf16 %v9436, %v9435
    %v9481 = vpack.c.bf16 %v9438, %v9437
    %v9482 = vpack.c.bf16 %v9440, %v9439
    %v9483 = vpack.c.bf16 %v9442, %v9441
    %v9484 = vpack.c.bf16 %v9444, %v9443
    %v9485 = vpack.c.bf16 %v9446, %v9445
    %v9486 = vpack.c.bf16 %v9448, %v9447
    %v9487 = vpack.c.bf16 %v9450, %v9449
    %v9488 = vpack.c.bf16 %v9452, %v9451
    %v9489 = vpack.c.bf16 %v9454, %v9453
    %v9490 = vpack.c.bf16 %v9456, %v9455
    %v9491 = vpack.c.bf16 %v9458, %v9457
    %v9492 = vpack.c.bf16 %v9460, %v9459
    %s9493 = scalar_lea.vmem [#allocation3], 448
    %v9494 = vld [vmem:[%s9493] sm:$0xf]
    %v9495 = vld [vmem:[%s9493 + $0x4] sm:$0xf]
    %v9496 = vld [vmem:[%s9493 + $0x8] sm:$0xf]
    %v9497 = vld [vmem:[%s9493 + $0xc] sm:$0xf]
    %v9498 = vld [vmem:[%s9493 + $0x10] sm:$0xf]
    %v9499 = vld [vmem:[%s9493 + $0x14] sm:$0xf]
    %v9500 = vld [vmem:[%s9493 + $0x18] sm:$0xf]
    %v9501 = vld [vmem:[%s9493 + $0x1c] sm:$0xf]
    %v9502 = vld [vmem:[%s9493 + $0x20] sm:$0xf]
    %v9503 = vld [vmem:[%s9493 + $0x24] sm:$0xf]
    %v9504 = vld [vmem:[%s9493 + $0x28] sm:$0xf]
    %v9505 = vld [vmem:[%s9493 + $0x2c] sm:$0xf]
    %v9506 = vld [vmem:[%s9493 + $0x30] sm:$0xf]
    %v9507 = vld [vmem:[%s9493 + $0x34] sm:$0xf]
    %v9508 = vld [vmem:[%s9493 + $0x38] sm:$0xf]
    %v9509 = vld [vmem:[%s9493 + $0x3c] sm:$0xf]
    %v9526 = vunpack.c.l.b16 %v9494
    %v9527 = vunpack.c.l.b16 %v9495
    %v9528 = vunpack.c.l.b16 %v9496
    %v9529 = vunpack.c.l.b16 %v9497
    %v9530 = vunpack.c.l.b16 %v9498
    %v9531 = vunpack.c.l.b16 %v9499
    %v9532 = vunpack.c.l.b16 %v9500
    %v9533 = vunpack.c.l.b16 %v9501
    %v9534 = vunpack.c.l.b16 %v9502
    %v9535 = vunpack.c.l.b16 %v9503
    %v9536 = vunpack.c.l.b16 %v9504
    %v9537 = vunpack.c.l.b16 %v9505
    %v9538 = vunpack.c.l.b16 %v9506
    %v9539 = vunpack.c.l.b16 %v9507
    %v9540 = vunpack.c.l.b16 %v9508
    %v9541 = vunpack.c.l.b16 %v9509
    %v9542 = vpack.c.b16 %v9527, %v9526
    %v9543 = vpack.c.b16 %v9529, %v9528
    %v9544 = vpack.c.b16 %v9531, %v9530
    %v9545 = vpack.c.b16 %v9533, %v9532
    %v9546 = vpack.c.b16 %v9535, %v9534
    %v9547 = vpack.c.b16 %v9537, %v9536
    %v9548 = vpack.c.b16 %v9539, %v9538
    %v9549 = vpack.c.b16 %v9541, %v9540
    %9558 = vmatprep.subr.bf16.mxu0 0
    %9559 = vmatpush1.bf16.msra.mxu0 %v9542
    %9560 = vmatprep.subr.bf16.mxu0 0
    %9561 = vmatpush1.bf16.msra.mxu0 %v9543
    %9562 = vmatprep.subr.bf16.mxu0 0
    %9563 = vmatpush1.bf16.msra.mxu0 %v9544
    %9564 = vmatprep.subr.bf16.mxu0 0
    %9565 = vmatpush1.bf16.msra.mxu0 %v9545
    %9566 = vmatprep.subr.bf16.mxu0 0
    %9567 = vmatpush1.bf16.msra.mxu0 %v9546
    %9568 = vmatprep.subr.bf16.mxu0 0
    %9569 = vmatpush1.bf16.msra.mxu0 %v9547
    %9570 = vmatprep.subr.bf16.mxu0 0
    %9571 = vmatpush1.bf16.msra.mxu0 %v9548
    %9572 = vmatprep.subr.bf16.mxu0 0
    %9573 = vmatpush1.bf16.msra.mxu0 %v9549
    %9574 = vmatprep.subr.bf16.mxu0 0
    %9575 = vmatpush1.bf16.msra.mxu0 0
    %9576 = vmatprep.subr.bf16.mxu0 0
    %9577 = vmatpush1.bf16.msra.mxu0 0
    %9578 = vmatprep.subr.bf16.mxu0 0
    %9579 = vmatpush1.bf16.msra.mxu0 0
    %9580 = vmatprep.subr.bf16.mxu0 0
    %9581 = vmatpush1.bf16.msra.mxu0 0
    %9582 = vmatprep.subr.bf16.mxu0 0
    %9583 = vmatpush1.bf16.msra.mxu0 0
    %9584 = vmatprep.subr.bf16.mxu0 0
    %9585 = vmatpush1.bf16.msra.mxu0 0
    %9586 = vmatprep.subr.bf16.mxu0 0
    %9587 = vmatpush1.bf16.msra.mxu0 0
    %9588 = vmatprep.subr.bf16.mxu0 0
    %9589 = vmatpush1.bf16.msra.mxu0 0
    %9590 = vmatprep.mubr.bf16.mxu0 0
    %9591 = vmatmul.mubr.bf16.gmra.mrb[0].mxu0 %v9461
    %v9592 = vpop.f32.mrb[0].mxu0
    %v9593 = vadd.f32 0.0, %v9592
    %v9594 = vpop.f32.mrb[0].mxu0
    %v9595 = vpop.f32.mrb[0].mxu0
    %v9596 = vadd.f32 0.0, %v9595
    %v9597 = vpop.f32.mrb[0].mxu0
    %9598 = vmatprep.mubr.bf16.mxu0 0
    %9599 = vmatmul.mubr.bf16.gmra.mrb[0].mxu0 %v9462
    %v9600 = vpop.f32.mrb[0].mxu0
    %v9601 = vadd.f32 0.0, %v9600
    %v9602 = vpop.f32.mrb[0].mxu0
    %v9603 = vpop.f32.mrb[0].mxu0
    %v9604 = vadd.f32 0.0, %v9603
    %v9605 = vpop.f32.mrb[0].mxu0
    %9606 = vmatprep.mubr.bf16.mxu0 0
    %9607 = vmatmul.mubr.bf16.gmra.mrb[0].mxu0 %v9463
    %v9608 = vpop.f32.mrb[0].mxu0
    %v9609 = vadd.f32 0.0, %v9608
    %v9610 = vpop.f32.mrb[0].mxu0
    %v9611 = vpop.f32.mrb[0].mxu0
    %v9612 = vadd.f32 0.0, %v9611
    %v9613 = vpop.f32.mrb[0].mxu0
    %9614 = vmatprep.mubr.bf16.mxu0 0
    %9615 = vmatmul.mubr.bf16.gmra.mrb[0].mxu0 %v9464
    %v9616 = vpop.f32.mrb[0].mxu0
    %v9617 = vadd.f32 0.0, %v9616
    %v9618 = vpop.f32.mrb[0].mxu0
    %v9619 = vpop.f32.mrb[0].mxu0
    %v9620 = vadd.f32 0.0, %v9619
    %v9621 = vpop.f32.mrb[0].mxu0
    %9622 = vmatprep.mubr.bf16.mxu0 0
    %9623 = vmatmul.mubr.bf16.gmra.mrb[0].mxu0 %v9465
    %v9624 = vpop.f32.mrb[0].mxu0
    %v9625 = vadd.f32 0.0, %v9624
    %v9626 = vpop.f32.mrb[0].mxu0
    %v9627 = vpop.f32.mrb[0].mxu0
    %v9628 = vadd.f32 0.0, %v9627
    %v9629 = vpop.f32.mrb[0].mxu0
    %9630 = vmatprep.mubr.bf16.mxu0 0
    %9631 = vmatmul.mubr.bf16.gmra.mrb[0].mxu0 %v9466
    %v9632 = vpop.f32.mrb[0].mxu0
    %v9633 = vadd.f32 0.0, %v9632
    %v9634 = vpop.f32.mrb[0].mxu0
    %v9635 = vpop.f32.mrb[0].mxu0
    %v9636 = vadd.f32 0.0, %v9635
    %v9637 = vpop.f32.mrb[0].mxu0
    %9638 = vmatprep.mubr.bf16.mxu0 0
    %9639 = vmatmul.mubr.bf16.gmra.mrb[0].mxu0 %v9467
    %v9640 = vpop.f32.mrb[0].mxu0
    %v9641 = vadd.f32 0.0, %v9640
    %v9642 = vpop.f32.mrb[0].mxu0
    %v9643 = vpop.f32.mrb[0].mxu0
    %v9644 = vadd.f32 0.0, %v9643
    %v9645 = vpop.f32.mrb[0].mxu0
    %9646 = vmatprep.mubr.bf16.mxu0 0
    %9647 = vmatmul.mubr.bf16.gmra.mrb[0].mxu0 %v9468
    %v9648 = vpop.f32.mrb[0].mxu0
    %v9649 = vadd.f32 0.0, %v9648
    %v9650 = vpop.f32.mrb[0].mxu0
    %v9651 = vpop.f32.mrb[0].mxu0
    %v9652 = vadd.f32 0.0, %v9651
    %v9653 = vpop.f32.mrb[0].mxu0
    %9654 = vmatprep.mubr.bf16.mxu0 0
    %9655 = vmatmul.mubr.bf16.gmra.mrb[0].mxu0 %v9469
    %v9656 = vpop.f32.mrb[0].mxu0
    %v9657 = vadd.f32 0.0, %v9656
    %v9658 = vpop.f32.mrb[0].mxu0
    %v9659 = vpop.f32.mrb[0].mxu0
    %v9660 = vadd.f32 0.0, %v9659
    %v9661 = vpop.f32.mrb[0].mxu0
    %9662 = vmatprep.mubr.bf16.mxu0 0
    %9663 = vmatmul.mubr.bf16.gmra.mrb[0].mxu0 %v9470
    %v9664 = vpop.f32.mrb[0].mxu0
    %v9665 = vadd.f32 0.0, %v9664
    %v9666 = vpop.f32.mrb[0].mxu0
    %v9667 = vpop.f32.mrb[0].mxu0
    %v9668 = vadd.f32 0.0, %v9667
    %v9669 = vpop.f32.mrb[0].mxu0
    %9670 = vmatprep.mubr.bf16.mxu0 0
    %9671 = vmatmul.mubr.bf16.gmra.mrb[0].mxu0 %v9471
    %v9672 = vpop.f32.mrb[0].mxu0
    %v9673 = vadd.f32 0.0, %v9672
    %v9674 = vpop.f32.mrb[0].mxu0
    %v9675 = vpop.f32.mrb[0].mxu0
    %v9676 = vadd.f32 0.0, %v9675
    %v9677 = vpop.f32.mrb[0].mxu0
    %9678 = vmatprep.mubr.bf16.mxu0 0
    %9679 = vmatmul.mubr.bf16.gmra.mrb[0].mxu0 %v9472
    %v9680 = vpop.f32.mrb[0].mxu0
    %v9681 = vadd.f32 0.0, %v9680
    %v9682 = vpop.f32.mrb[0].mxu0
    %v9683 = vpop.f32.mrb[0].mxu0
    %v9684 = vadd.f32 0.0, %v9683
    %v9685 = vpop.f32.mrb[0].mxu0
    %9686 = vmatprep.mubr.bf16.mxu0 0
    %9687 = vmatmul.mubr.bf16.gmra.mrb[0].mxu0 %v9473
    %v9688 = vpop.f32.mrb[0].mxu0
    %v9689 = vadd.f32 0.0, %v9688
    %v9690 = vpop.f32.mrb[0].mxu0
    %v9691 = vpop.f32.mrb[0].mxu0
    %v9692 = vadd.f32 0.0, %v9691
    %v9693 = vpop.f32.mrb[0].mxu0
    %9694 = vmatprep.mubr.bf16.mxu0 0
    %9695 = vmatmul.mubr.bf16.gmra.mrb[0].mxu0 %v9474
    %v9696 = vpop.f32.mrb[0].mxu0
    %v9697 = vadd.f32 0.0, %v9696
    %v9698 = vpop.f32.mrb[0].mxu0
    %v9699 = vpop.f32.mrb[0].mxu0
    %v9700 = vadd.f32 0.0, %v9699
    %v9701 = vpop.f32.mrb[0].mxu0
    %9702 = vmatprep.mubr.bf16.mxu0 0
    %9703 = vmatmul.mubr.bf16.gmra.mrb[0].mxu0 %v9475
    %v9704 = vpop.f32.mrb[0].mxu0
    %v9705 = vadd.f32 0.0, %v9704
    %v9706 = vpop.f32.mrb[0].mxu0
    %v9707 = vpop.f32.mrb[0].mxu0
    %v9708 = vadd.f32 0.0, %v9707
    %v9709 = vpop.f32.mrb[0].mxu0
    %9710 = vmatprep.mubr.bf16.mxu0 0
    %9711 = vmatmul.mubr.bf16.gmra.mrb[0].mxu0 %v9476
    %v9712 = vpop.f32.mrb[0].mxu0
    %v9713 = vadd.f32 0.0, %v9712
    %v9714 = vpop.f32.mrb[0].mxu0
    %v9715 = vpop.f32.mrb[0].mxu0
    %v9716 = vadd.f32 0.0, %v9715
    %v9717 = vpop.f32.mrb[0].mxu0
    %9718 = vmatprep.mubr.bf16.mxu0 0
    %9719 = vmatmul.mubr.bf16.gmra.mrb[0].mxu0 %v9477
    %v9720 = vpop.f32.mrb[0].mxu0
    %v9721 = vadd.f32 0.0, %v9720
    %v9722 = vpop.f32.mrb[0].mxu0
    %v9723 = vpop.f32.mrb[0].mxu0
    %v9724 = vadd.f32 0.0, %v9723
    %v9725 = vpop.f32.mrb[0].mxu0
    %9726 = vmatprep.mubr.bf16.mxu0 0
    %9727 = vmatmul.mubr.bf16.gmra.mrb[0].mxu0 %v9478
    %v9728 = vpop.f32.mrb[0].mxu0
    %v9729 = vadd.f32 0.0, %v9728
    %v9730 = vpop.f32.mrb[0].mxu0
    %v9731 = vpop.f32.mrb[0].mxu0
    %v9732 = vadd.f32 0.0, %v9731
    %v9733 = vpop.f32.mrb[0].mxu0
    %9734 = vmatprep.mubr.bf16.mxu0 0
    %9735 = vmatmul.mubr.bf16.gmra.mrb[0].mxu0 %v9479
    %v9736 = vpop.f32.mrb[0].mxu0
    %v9737 = vadd.f32 0.0, %v9736
    %v9738 = vpop.f32.mrb[0].mxu0
    %v9739 = vpop.f32.mrb[0].mxu0
    %v9740 = vadd.f32 0.0, %v9739
    %v9741 = vpop.f32.mrb[0].mxu0
    %9742 = vmatprep.mubr.bf16.mxu0 0
    %9743 = vmatmul.mubr.bf16.gmra.mrb[0].mxu0 %v9480
    %v9744 = vpop.f32.mrb[0].mxu0
    %v9745 = vadd.f32 0.0, %v9744
    %v9746 = vpop.f32.mrb[0].mxu0
    %v9747 = vpop.f32.mrb[0].mxu0
    %v9748 = vadd.f32 0.0, %v9747
    %v9749 = vpop.f32.mrb[0].mxu0
    %9750 = vmatprep.mubr.bf16.mxu0 0
    %9751 = vmatmul.mubr.bf16.gmra.mrb[0].mxu0 %v9481
    %v9752 = vpop.f32.mrb[0].mxu0
    %v9753 = vadd.f32 0.0, %v9752
    %v9754 = vpop.f32.mrb[0].mxu0
    %v9755 = vpop.f32.mrb[0].mxu0
    %v9756 = vadd.f32 0.0, %v9755
    %v9757 = vpop.f32.mrb[0].mxu0
    %9758 = vmatprep.mubr.bf16.mxu0 0
    %9759 = vmatmul.mubr.bf16.gmra.mrb[0].mxu0 %v9482
    %v9760 = vpop.f32.mrb[0].mxu0
    %v9761 = vadd.f32 0.0, %v9760
    %v9762 = vpop.f32.mrb[0].mxu0
    %v9763 = vpop.f32.mrb[0].mxu0
    %v9764 = vadd.f32 0.0, %v9763
    %v9765 = vpop.f32.mrb[0].mxu0
    %9766 = vmatprep.mubr.bf16.mxu0 0
    %9767 = vmatmul.mubr.bf16.gmra.mrb[0].mxu0 %v9483
    %v9768 = vpop.f32.mrb[0].mxu0
    %v9769 = vadd.f32 0.0, %v9768
    %v9770 = vpop.f32.mrb[0].mxu0
    %v9771 = vpop.f32.mrb[0].mxu0
    %v9772 = vadd.f32 0.0, %v9771
    %v9773 = vpop.f32.mrb[0].mxu0
    %9774 = vmatprep.mubr.bf16.mxu0 0
    %9775 = vmatmul.mubr.bf16.gmra.mrb[0].mxu0 %v9484
    %v9776 = vpop.f32.mrb[0].mxu0
    %v9777 = vadd.f32 0.0, %v9776
    %v9778 = vpop.f32.mrb[0].mxu0
    %v9779 = vpop.f32.mrb[0].mxu0
    %v9780 = vadd.f32 0.0, %v9779
    %v9781 = vpop.f32.mrb[0].mxu0
    %9782 = vmatprep.mubr.bf16.mxu0 0
    %9783 = vmatmul.mubr.bf16.gmra.mrb[0].mxu0 %v9485
    %v9784 = vpop.f32.mrb[0].mxu0
    %v9785 = vadd.f32 0.0, %v9784
    %v9786 = vpop.f32.mrb[0].mxu0
    %v9787 = vpop.f32.mrb[0].mxu0
    %v9788 = vadd.f32 0.0, %v9787
    %v9789 = vpop.f32.mrb[0].mxu0
    %9790 = vmatprep.mubr.bf16.mxu0 0
    %9791 = vmatmul.mubr.bf16.gmra.mrb[0].mxu0 %v9486
    %v9792 = vpop.f32.mrb[0].mxu0
    %v9793 = vadd.f32 0.0, %v9792
    %v9794 = vpop.f32.mrb[0].mxu0
    %v9795 = vpop.f32.mrb[0].mxu0
    %v9796 = vadd.f32 0.0, %v9795
    %v9797 = vpop.f32.mrb[0].mxu0
    %9798 = vmatprep.mubr.bf16.mxu0 0
    %9799 = vmatmul.mubr.bf16.gmra.mrb[0].mxu0 %v9487
    %v9800 = vpop.f32.mrb[0].mxu0
    %v9801 = vadd.f32 0.0, %v9800
    %v9802 = vpop.f32.mrb[0].mxu0
    %v9803 = vpop.f32.mrb[0].mxu0
    %v9804 = vadd.f32 0.0, %v9803
    %v9805 = vpop.f32.mrb[0].mxu0
    %9806 = vmatprep.mubr.bf16.mxu0 0
    %9807 = vmatmul.mubr.bf16.gmra.mrb[0].mxu0 %v9488
    %v9808 = vpop.f32.mrb[0].mxu0
    %v9809 = vadd.f32 0.0, %v9808
    %v9810 = vpop.f32.mrb[0].mxu0
    %v9811 = vpop.f32.mrb[0].mxu0
    %v9812 = vadd.f32 0.0, %v9811
    %v9813 = vpop.f32.mrb[0].mxu0
    %9814 = vmatprep.mubr.bf16.mxu0 0
    %9815 = vmatmul.mubr.bf16.gmra.mrb[0].mxu0 %v9489
    %v9816 = vpop.f32.mrb[0].mxu0
    %v9817 = vadd.f32 0.0, %v9816
    %v9818 = vpop.f32.mrb[0].mxu0
    %v9819 = vpop.f32.mrb[0].mxu0
    %v9820 = vadd.f32 0.0, %v9819
    %v9821 = vpop.f32.mrb[0].mxu0
    %9822 = vmatprep.mubr.bf16.mxu0 0
    %9823 = vmatmul.mubr.bf16.gmra.mrb[0].mxu0 %v9490
    %v9824 = vpop.f32.mrb[0].mxu0
    %v9825 = vadd.f32 0.0, %v9824
    %v9826 = vpop.f32.mrb[0].mxu0
    %v9827 = vpop.f32.mrb[0].mxu0
    %v9828 = vadd.f32 0.0, %v9827
    %v9829 = vpop.f32.mrb[0].mxu0
    %9830 = vmatprep.mubr.bf16.mxu0 0
    %9831 = vmatmul.mubr.bf16.gmra.mrb[0].mxu0 %v9491
    %v9832 = vpop.f32.mrb[0].mxu0
    %v9833 = vadd.f32 0.0, %v9832
    %v9834 = vpop.f32.mrb[0].mxu0
    %v9835 = vpop.f32.mrb[0].mxu0
    %v9836 = vadd.f32 0.0, %v9835
    %v9837 = vpop.f32.mrb[0].mxu0
    %9838 = vmatprep.mubr.bf16.mxu0 0
    %9839 = vmatmul.mubr.bf16.gmra.mrb[0].mxu0 %v9492
    %v9840 = vpop.f32.mrb[0].mxu0
    %v9841 = vadd.f32 0.0, %v9840
    %v9842 = vpop.f32.mrb[0].mxu0
    %v9843 = vpop.f32.mrb[0].mxu0
    %v9844 = vadd.f32 0.0, %v9843
    %v9845 = vpop.f32.mrb[0].mxu0
    %9846 = vdwg.mxu0
    %v9847 = vadd.f32 %v9333, %v9593
    %v9848 = vadd.f32 %v9334, %v9596
    %v9849 = vadd.f32 %v9335, %v9601
    %v9850 = vadd.f32 %v9336, %v9604
    %v9851 = vadd.f32 %v9337, %v9609
    %v9852 = vadd.f32 %v9338, %v9612
    %v9853 = vadd.f32 %v9339, %v9617
    %v9854 = vadd.f32 %v9340, %v9620
    %v9855 = vadd.f32 %v9341, %v9625
    %v9856 = vadd.f32 %v9342, %v9628
    %v9857 = vadd.f32 %v9343, %v9633
    %v9858 = vadd.f32 %v9344, %v9636
    %v9859 = vadd.f32 %v9345, %v9641
    %v9860 = vadd.f32 %v9346, %v9644
    %v9861 = vadd.f32 %v9347, %v9649
    %v9862 = vadd.f32 %v9348, %v9652
    %v9863 = vadd.f32 %v9349, %v9657
    %v9864 = vadd.f32 %v9350, %v9660
    %v9865 = vadd.f32 %v9351, %v9665
    %v9866 = vadd.f32 %v9352, %v9668
    %v9867 = vadd.f32 %v9353, %v9673
    %v9868 = vadd.f32 %v9354, %v9676
    %v9869 = vadd.f32 %v9355, %v9681
    %v9870 = vadd.f32 %v9356, %v9684
    %v9871 = vadd.f32 %v9357, %v9689
    %v9872 = vadd.f32 %v9358, %v9692
    %v9873 = vadd.f32 %v9359, %v9697
    %v9874 = vadd.f32 %v9360, %v9700
    %v9875 = vadd.f32 %v9361, %v9705
    %v9876 = vadd.f32 %v9362, %v9708
    %v9877 = vadd.f32 %v9363, %v9713
    %v9878 = vadd.f32 %v9364, %v9716
    %v9879 = vadd.f32 %v9365, %v9721
    %v9880 = vadd.f32 %v9366, %v9724
    %v9881 = vadd.f32 %v9367, %v9729
    %v9882 = vadd.f32 %v9368, %v9732
    %v9883 = vadd.f32 %v9369, %v9737
    %v9884 = vadd.f32 %v9370, %v9740
    %v9885 = vadd.f32 %v9371, %v9745
    %v9886 = vadd.f32 %v9372, %v9748
    %v9887 = vadd.f32 %v9373, %v9753
    %v9888 = vadd.f32 %v9374, %v9756
    %v9889 = vadd.f32 %v9375, %v9761
    %v9890 = vadd.f32 %v9376, %v9764
    %v9891 = vadd.f32 %v9377, %v9769
    %v9892 = vadd.f32 %v9378, %v9772
    %v9893 = vadd.f32 %v9379, %v9777
    %v9894 = vadd.f32 %v9380, %v9780
    %v9895 = vadd.f32 %v9381, %v9785
    %v9896 = vadd.f32 %v9382, %v9788
    %v9897 = vadd.f32 %v9383, %v9793
    %v9898 = vadd.f32 %v9384, %v9796
    %v9899 = vadd.f32 %v9385, %v9801
    %v9900 = vadd.f32 %v9386, %v9804
    %v9901 = vadd.f32 %v9387, %v9809
    %v9902 = vadd.f32 %v9388, %v9812
    %v9903 = vadd.f32 %v9389, %v9817
    %v9904 = vadd.f32 %v9390, %v9820
    %v9905 = vadd.f32 %v9391, %v9825
    %v9906 = vadd.f32 %v9392, %v9828
    %v9907 = vadd.f32 %v9393, %v9833
    %v9908 = vadd.f32 %v9394, %v9836
    %v9909 = vadd.f32 %v9395, %v9841
    %v9910 = vadd.f32 %v9396, %v9844
    %v9911 = vld [vmem:[%s8882 + $0x2] sm:$0xff]
    %v9912 = vld [vmem:[%s8882 + $0xa] sm:$0xff]
    %v9913 = vld [vmem:[%s8882 + $0x1a] sm:$0xff]
    %v9914 = vld [vmem:[%s8882 + $0x22] sm:$0xff]
    %v9915 = vld [vmem:[%s8882 + $0x32] sm:$0xff]
    %v9916 = vld [vmem:[%s8882 + $0x3a] sm:$0xff]
    %v9917 = vld [vmem:[%s8882 + $0x4a] sm:$0xff]
    %v9918 = vld [vmem:[%s8882 + $0x52] sm:$0xff]
    %v9919 = vld [vmem:[%s8882 + $0x62] sm:$0xff]
    %v9920 = vld [vmem:[%s8882 + $0x6a] sm:$0xff]
    %v9921 = vld [vmem:[%s8882 + $0x7a] sm:$0xff]
    %v9922 = vld [vmem:[%s8882 + $0x82] sm:$0xff]
    %v9923 = vld [vmem:[%s8882 + $0x92] sm:$0xff]
    %v9924 = vld [vmem:[%s8882 + $0x9a] sm:$0xff]
    %v9925 = vld [vmem:[%s8882 + $0xaa] sm:$0xff]
    %v9926 = vld [vmem:[%s8882 + $0xb2] sm:$0xff]
    %v9927 = vld [vmem:[%s8882 + $0xc2] sm:$0xff]
    %v9928 = vld [vmem:[%s8882 + $0xca] sm:$0xff]
    %v9929 = vld [vmem:[%s8882 + $0xda] sm:$0xff]
    %v9930 = vld [vmem:[%s8882 + $0xe2] sm:$0xff]
    %v9931 = vld [vmem:[%s8882 + $0xf2] sm:$0xff]
    %v9932 = vld [vmem:[%s8882 + $0xfa] sm:$0xff]
    %v9933 = vld [vmem:[%s8882 + $0x10a] sm:$0xff]
    %v9934 = vld [vmem:[%s8882 + $0x112] sm:$0xff]
    %v9935 = vld [vmem:[%s8882 + $0x122] sm:$0xff]
    %v9936 = vld [vmem:[%s8882 + $0x12a] sm:$0xff]
    %v9937 = vld [vmem:[%s8882 + $0x13a] sm:$0xff]
    %v9938 = vld [vmem:[%s8882 + $0x142] sm:$0xff]
    %v9939 = vld [vmem:[%s8882 + $0x152] sm:$0xff]
    %v9940 = vld [vmem:[%s8882 + $0x15a] sm:$0xff]
    %v9941 = vld [vmem:[%s8882 + $0x16a] sm:$0xff]
    %v9942 = vld [vmem:[%s8882 + $0x172] sm:$0xff]
    %v9943 = vld [vmem:[%s8882 + $0x1b2] sm:$0xff]
    %v9944 = vld [vmem:[%s8882 + $0x1ba] sm:$0xff]
    %v9945 = vld [vmem:[%s8882 + $0x1ca] sm:$0xff]
    %v9946 = vld [vmem:[%s8882 + $0x1d2] sm:$0xff]
    %v9947 = vld [vmem:[%s8882 + $0x1e2] sm:$0xff]
    %v9948 = vld [vmem:[%s8882 + $0x1ea] sm:$0xff]
    %v9949 = vld [vmem:[%s8882 + $0x1fa] sm:$0xff]
    %v9950 = vld [vmem:[%s8882 + $0x202] sm:$0xff]
    %v9951 = vld [vmem:[%s8882 + $0x212] sm:$0xff]
    %v9952 = vld [vmem:[%s8882 + $0x21a] sm:$0xff]
    %v9953 = vld [vmem:[%s8882 + $0x22a] sm:$0xff]
    %v9954 = vld [vmem:[%s8882 + $0x232] sm:$0xff]
    %v9955 = vld [vmem:[%s8882 + $0x242] sm:$0xff]
    %v9956 = vld [vmem:[%s8882 + $0x24a] sm:$0xff]
    %v9957 = vld [vmem:[%s8882 + $0x25a] sm:$0xff]
    %v9958 = vld [vmem:[%s8882 + $0x262] sm:$0xff]
    %v9959 = vld [vmem:[%s8882 + $0x272] sm:$0xff]
    %v9960 = vld [vmem:[%s8882 + $0x27a] sm:$0xff]
    %v9961 = vld [vmem:[%s8882 + $0x28a] sm:$0xff]
    %v9962 = vld [vmem:[%s8882 + $0x292] sm:$0xff]
    %v9963 = vld [vmem:[%s8882 + $0x2a2] sm:$0xff]
    %v9964 = vld [vmem:[%s8882 + $0x2aa] sm:$0xff]
    %v9965 = vld [vmem:[%s8882 + $0x2ba] sm:$0xff]
    %v9966 = vld [vmem:[%s8882 + $0x2c2] sm:$0xff]
    %v9967 = vld [vmem:[%s8882 + $0x2d2] sm:$0xff]
    %v9968 = vld [vmem:[%s8882 + $0x2da] sm:$0xff]
    %v9969 = vld [vmem:[%s8882 + $0x2ea] sm:$0xff]
    %v9970 = vld [vmem:[%s8882 + $0x2f2] sm:$0xff]
    %v9971 = vld [vmem:[%s8882 + $0x302] sm:$0xff]
    %v9972 = vld [vmem:[%s8882 + $0x30a] sm:$0xff]
    %v9973 = vld [vmem:[%s8882 + $0x31a] sm:$0xff]
    %v9974 = vld [vmem:[%s8882 + $0x322] sm:$0xff]
    %v9975 = vpack.c.bf16 %v9912, %v9911
    %v9976 = vpack.c.bf16 %v9914, %v9913
    %v9977 = vpack.c.bf16 %v9916, %v9915
    %v9978 = vpack.c.bf16 %v9918, %v9917
    %v9979 = vpack.c.bf16 %v9920, %v9919
    %v9980 = vpack.c.bf16 %v9922, %v9921
    %v9981 = vpack.c.bf16 %v9924, %v9923
    %v9982 = vpack.c.bf16 %v9926, %v9925
    %v9983 = vpack.c.bf16 %v9928, %v9927
    %v9984 = vpack.c.bf16 %v9930, %v9929
    %v9985 = vpack.c.bf16 %v9932, %v9931
    %v9986 = vpack.c.bf16 %v9934, %v9933
    %v9987 = vpack.c.bf16 %v9936, %v9935
    %v9988 = vpack.c.bf16 %v9938, %v9937
    %v9989 = vpack.c.bf16 %v9940, %v9939
    %v9990 = vpack.c.bf16 %v9942, %v9941
    %v9991 = vpack.c.bf16 %v9944, %v9943
    %v9992 = vpack.c.bf16 %v9946, %v9945
    %v9993 = vpack.c.bf16 %v9948, %v9947
    %v9994 = vpack.c.bf16 %v9950, %v9949
    %v9995 = vpack.c.bf16 %v9952, %v9951
    %v9996 = vpack.c.bf16 %v9954, %v9953
    %v9997 = vpack.c.bf16 %v9956, %v9955
    %v9998 = vpack.c.bf16 %v9958, %v9957
    %v9999 = vpack.c.bf16 %v9960, %v9959
    %v10000 = vpack.c.bf16 %v9962, %v9961
    %v10001 = vpack.c.bf16 %v9964, %v9963
    %v10002 = vpack.c.bf16 %v9966, %v9965
    %v10003 = vpack.c.bf16 %v9968, %v9967
    %v10004 = vpack.c.bf16 %v9970, %v9969
    %v10005 = vpack.c.bf16 %v9972, %v9971
    %v10006 = vpack.c.bf16 %v9974, %v9973
    %s10007 = scalar_lea.vmem [#allocation3], 512
    %v10008 = vld [vmem:[%s10007] sm:$0xf]
    %v10009 = vld [vmem:[%s10007 + $0x4] sm:$0xf]
    %v10010 = vld [vmem:[%s10007 + $0x8] sm:$0xf]
    %v10011 = vld [vmem:[%s10007 + $0xc] sm:$0xf]
    %v10012 = vld [vmem:[%s10007 + $0x10] sm:$0xf]
    %v10013 = vld [vmem:[%s10007 + $0x14] sm:$0xf]
    %v10014 = vld [vmem:[%s10007 + $0x18] sm:$0xf]
    %v10015 = vld [vmem:[%s10007 + $0x1c] sm:$0xf]
    %v10016 = vld [vmem:[%s10007 + $0x20] sm:$0xf]
    %v10017 = vld [vmem:[%s10007 + $0x24] sm:$0xf]
    %v10018 = vld [vmem:[%s10007 + $0x28] sm:$0xf]
    %v10019 = vld [vmem:[%s10007 + $0x2c] sm:$0xf]
    %v10020 = vld [vmem:[%s10007 + $0x30] sm:$0xf]
    %v10021 = vld [vmem:[%s10007 + $0x34] sm:$0xf]
    %v10022 = vld [vmem:[%s10007 + $0x38] sm:$0xf]
    %v10023 = vld [vmem:[%s10007 + $0x3c] sm:$0xf]
    %v10040 = vunpack.c.l.b16 %v10008
    %v10041 = vunpack.c.l.b16 %v10009
    %v10042 = vunpack.c.l.b16 %v10010
    %v10043 = vunpack.c.l.b16 %v10011
    %v10044 = vunpack.c.l.b16 %v10012
    %v10045 = vunpack.c.l.b16 %v10013
    %v10046 = vunpack.c.l.b16 %v10014
    %v10047 = vunpack.c.l.b16 %v10015
    %v10048 = vunpack.c.l.b16 %v10016
    %v10049 = vunpack.c.l.b16 %v10017
    %v10050 = vunpack.c.l.b16 %v10018
    %v10051 = vunpack.c.l.b16 %v10019
    %v10052 = vunpack.c.l.b16 %v10020
    %v10053 = vunpack.c.l.b16 %v10021
    %v10054 = vunpack.c.l.b16 %v10022
    %v10055 = vunpack.c.l.b16 %v10023
    %v10056 = vpack.c.b16 %v10041, %v10040
    %v10057 = vpack.c.b16 %v10043, %v10042
    %v10058 = vpack.c.b16 %v10045, %v10044
    %v10059 = vpack.c.b16 %v10047, %v10046
    %v10060 = vpack.c.b16 %v10049, %v10048
    %v10061 = vpack.c.b16 %v10051, %v10050
    %v10062 = vpack.c.b16 %v10053, %v10052
    %v10063 = vpack.c.b16 %v10055, %v10054
    %10072 = vmatprep.subr.bf16.mxu0 0
    %10073 = vmatpush1.bf16.msra.mxu0 %v10056
    %10074 = vmatprep.subr.bf16.mxu0 0
    %10075 = vmatpush1.bf16.msra.mxu0 %v10057
    %10076 = vmatprep.subr.bf16.mxu0 0
    %10077 = vmatpush1.bf16.msra.mxu0 %v10058
    %10078 = vmatprep.subr.bf16.mxu0 0
    %10079 = vmatpush1.bf16.msra.mxu0 %v10059
    %10080 = vmatprep.subr.bf16.mxu0 0
    %10081 = vmatpush1.bf16.msra.mxu0 %v10060
    %10082 = vmatprep.subr.bf16.mxu0 0
    %10083 = vmatpush1.bf16.msra.mxu0 %v10061
    %10084 = vmatprep.subr.bf16.mxu0 0
    %10085 = vmatpush1.bf16.msra.mxu0 %v10062
    %10086 = vmatprep.subr.bf16.mxu0 0
    %10087 = vmatpush1.bf16.msra.mxu0 %v10063
    %10088 = vmatprep.subr.bf16.mxu0 0
    %10089 = vmatpush1.bf16.msra.mxu0 0
    %10090 = vmatprep.subr.bf16.mxu0 0
    %10091 = vmatpush1.bf16.msra.mxu0 0
    %10092 = vmatprep.subr.bf16.mxu0 0
    %10093 = vmatpush1.bf16.msra.mxu0 0
    %10094 = vmatprep.subr.bf16.mxu0 0
    %10095 = vmatpush1.bf16.msra.mxu0 0
    %10096 = vmatprep.subr.bf16.mxu0 0
    %10097 = vmatpush1.bf16.msra.mxu0 0
    %10098 = vmatprep.subr.bf16.mxu0 0
    %10099 = vmatpush1.bf16.msra.mxu0 0
    %10100 = vmatprep.subr.bf16.mxu0 0
    %10101 = vmatpush1.bf16.msra.mxu0 0
    %10102 = vmatprep.subr.bf16.mxu0 0
    %10103 = vmatpush1.bf16.msra.mxu0 0
    %10104 = vmatprep.mubr.bf16.mxu0 0
    %10105 = vmatmul.mubr.bf16.gmra.mrb[0].mxu0 %v9975
    %v10106 = vpop.f32.mrb[0].mxu0
    %v10107 = vadd.f32 0.0, %v10106
    %v10108 = vpop.f32.mrb[0].mxu0
    %v10109 = vpop.f32.mrb[0].mxu0
    %v10110 = vadd.f32 0.0, %v10109
    %v10111 = vpop.f32.mrb[0].mxu0
    %10112 = vmatprep.mubr.bf16.mxu0 0
    %10113 = vmatmul.mubr.bf16.gmra.mrb[0].mxu0 %v9976
    %v10114 = vpop.f32.mrb[0].mxu0
    %v10115 = vadd.f32 0.0, %v10114
    %v10116 = vpop.f32.mrb[0].mxu0
    %v10117 = vpop.f32.mrb[0].mxu0
    %v10118 = vadd.f32 0.0, %v10117
    %v10119 = vpop.f32.mrb[0].mxu0
    %10120 = vmatprep.mubr.bf16.mxu0 0
    %10121 = vmatmul.mubr.bf16.gmra.mrb[0].mxu0 %v9977
    %v10122 = vpop.f32.mrb[0].mxu0
    %v10123 = vadd.f32 0.0, %v10122
    %v10124 = vpop.f32.mrb[0].mxu0
    %v10125 = vpop.f32.mrb[0].mxu0
    %v10126 = vadd.f32 0.0, %v10125
    %v10127 = vpop.f32.mrb[0].mxu0
    %10128 = vmatprep.mubr.bf16.mxu0 0
    %10129 = vmatmul.mubr.bf16.gmra.mrb[0].mxu0 %v9978
    %v10130 = vpop.f32.mrb[0].mxu0
    %v10131 = vadd.f32 0.0, %v10130
    %v10132 = vpop.f32.mrb[0].mxu0
    %v10133 = vpop.f32.mrb[0].mxu0
    %v10134 = vadd.f32 0.0, %v10133
    %v10135 = vpop.f32.mrb[0].mxu0
    %10136 = vmatprep.mubr.bf16.mxu0 0
    %10137 = vmatmul.mubr.bf16.gmra.mrb[0].mxu0 %v9979
    %v10138 = vpop.f32.mrb[0].mxu0
    %v10139 = vadd.f32 0.0, %v10138
    %v10140 = vpop.f32.mrb[0].mxu0
    %v10141 = vpop.f32.mrb[0].mxu0
    %v10142 = vadd.f32 0.0, %v10141
    %v10143 = vpop.f32.mrb[0].mxu0
    %10144 = vmatprep.mubr.bf16.mxu0 0
    %10145 = vmatmul.mubr.bf16.gmra.mrb[0].mxu0 %v9980
    %v10146 = vpop.f32.mrb[0].mxu0
    %v10147 = vadd.f32 0.0, %v10146
    %v10148 = vpop.f32.mrb[0].mxu0
    %v10149 = vpop.f32.mrb[0].mxu0
    %v10150 = vadd.f32 0.0, %v10149
    %v10151 = vpop.f32.mrb[0].mxu0
    %10152 = vmatprep.mubr.bf16.mxu0 0
    %10153 = vmatmul.mubr.bf16.gmra.mrb[0].mxu0 %v9981
    %v10154 = vpop.f32.mrb[0].mxu0
    %v10155 = vadd.f32 0.0, %v10154
    %v10156 = vpop.f32.mrb[0].mxu0
    %v10157 = vpop.f32.mrb[0].mxu0
    %v10158 = vadd.f32 0.0, %v10157
    %v10159 = vpop.f32.mrb[0].mxu0
    %10160 = vmatprep.mubr.bf16.mxu0 0
    %10161 = vmatmul.mubr.bf16.gmra.mrb[0].mxu0 %v9982
    %v10162 = vpop.f32.mrb[0].mxu0
    %v10163 = vadd.f32 0.0, %v10162
    %v10164 = vpop.f32.mrb[0].mxu0
    %v10165 = vpop.f32.mrb[0].mxu0
    %v10166 = vadd.f32 0.0, %v10165
    %v10167 = vpop.f32.mrb[0].mxu0
    %10168 = vmatprep.mubr.bf16.mxu0 0
    %10169 = vmatmul.mubr.bf16.gmra.mrb[0].mxu0 %v9983
    %v10170 = vpop.f32.mrb[0].mxu0
    %v10171 = vadd.f32 0.0, %v10170
    %v10172 = vpop.f32.mrb[0].mxu0
    %v10173 = vpop.f32.mrb[0].mxu0
    %v10174 = vadd.f32 0.0, %v10173
    %v10175 = vpop.f32.mrb[0].mxu0
    %10176 = vmatprep.mubr.bf16.mxu0 0
    %10177 = vmatmul.mubr.bf16.gmra.mrb[0].mxu0 %v9984
    %v10178 = vpop.f32.mrb[0].mxu0
    %v10179 = vadd.f32 0.0, %v10178
    %v10180 = vpop.f32.mrb[0].mxu0
    %v10181 = vpop.f32.mrb[0].mxu0
    %v10182 = vadd.f32 0.0, %v10181
    %v10183 = vpop.f32.mrb[0].mxu0
    %10184 = vmatprep.mubr.bf16.mxu0 0
    %10185 = vmatmul.mubr.bf16.gmra.mrb[0].mxu0 %v9985
    %v10186 = vpop.f32.mrb[0].mxu0
    %v10187 = vadd.f32 0.0, %v10186
    %v10188 = vpop.f32.mrb[0].mxu0
    %v10189 = vpop.f32.mrb[0].mxu0
    %v10190 = vadd.f32 0.0, %v10189
    %v10191 = vpop.f32.mrb[0].mxu0
    %10192 = vmatprep.mubr.bf16.mxu0 0
    %10193 = vmatmul.mubr.bf16.gmra.mrb[0].mxu0 %v9986
    %v10194 = vpop.f32.mrb[0].mxu0
    %v10195 = vadd.f32 0.0, %v10194
    %v10196 = vpop.f32.mrb[0].mxu0
    %v10197 = vpop.f32.mrb[0].mxu0
    %v10198 = vadd.f32 0.0, %v10197
    %v10199 = vpop.f32.mrb[0].mxu0
    %10200 = vmatprep.mubr.bf16.mxu0 0
    %10201 = vmatmul.mubr.bf16.gmra.mrb[0].mxu0 %v9987
    %v10202 = vpop.f32.mrb[0].mxu0
    %v10203 = vadd.f32 0.0, %v10202
    %v10204 = vpop.f32.mrb[0].mxu0
    %v10205 = vpop.f32.mrb[0].mxu0
    %v10206 = vadd.f32 0.0, %v10205
    %v10207 = vpop.f32.mrb[0].mxu0
    %10208 = vmatprep.mubr.bf16.mxu0 0
    %10209 = vmatmul.mubr.bf16.gmra.mrb[0].mxu0 %v9988
    %v10210 = vpop.f32.mrb[0].mxu0
    %v10211 = vadd.f32 0.0, %v10210
    %v10212 = vpop.f32.mrb[0].mxu0
    %v10213 = vpop.f32.mrb[0].mxu0
    %v10214 = vadd.f32 0.0, %v10213
    %v10215 = vpop.f32.mrb[0].mxu0
    %10216 = vmatprep.mubr.bf16.mxu0 0
    %10217 = vmatmul.mubr.bf16.gmra.mrb[0].mxu0 %v9989
    %v10218 = vpop.f32.mrb[0].mxu0
    %v10219 = vadd.f32 0.0, %v10218
    %v10220 = vpop.f32.mrb[0].mxu0
    %v10221 = vpop.f32.mrb[0].mxu0
    %v10222 = vadd.f32 0.0, %v10221
    %v10223 = vpop.f32.mrb[0].mxu0
    %10224 = vmatprep.mubr.bf16.mxu0 0
    %10225 = vmatmul.mubr.bf16.gmra.mrb[0].mxu0 %v9990
    %v10226 = vpop.f32.mrb[0].mxu0
    %v10227 = vadd.f32 0.0, %v10226
    %v10228 = vpop.f32.mrb[0].mxu0
    %v10229 = vpop.f32.mrb[0].mxu0
    %v10230 = vadd.f32 0.0, %v10229
    %v10231 = vpop.f32.mrb[0].mxu0
    %10232 = vmatprep.mubr.bf16.mxu0 0
    %10233 = vmatmul.mubr.bf16.gmra.mrb[0].mxu0 %v9991
    %v10234 = vpop.f32.mrb[0].mxu0
    %v10235 = vadd.f32 0.0, %v10234
    %v10236 = vpop.f32.mrb[0].mxu0
    %v10237 = vpop.f32.mrb[0].mxu0
    %v10238 = vadd.f32 0.0, %v10237
    %v10239 = vpop.f32.mrb[0].mxu0
    %10240 = vmatprep.mubr.bf16.mxu0 0
    %10241 = vmatmul.mubr.bf16.gmra.mrb[0].mxu0 %v9992
    %v10242 = vpop.f32.mrb[0].mxu0
    %v10243 = vadd.f32 0.0, %v10242
    %v10244 = vpop.f32.mrb[0].mxu0
    %v10245 = vpop.f32.mrb[0].mxu0
    %v10246 = vadd.f32 0.0, %v10245
    %v10247 = vpop.f32.mrb[0].mxu0
    %10248 = vmatprep.mubr.bf16.mxu0 0
    %10249 = vmatmul.mubr.bf16.gmra.mrb[0].mxu0 %v9993
    %v10250 = vpop.f32.mrb[0].mxu0
    %v10251 = vadd.f32 0.0, %v10250
    %v10252 = vpop.f32.mrb[0].mxu0
    %v10253 = vpop.f32.mrb[0].mxu0
    %v10254 = vadd.f32 0.0, %v10253
    %v10255 = vpop.f32.mrb[0].mxu0
    %10256 = vmatprep.mubr.bf16.mxu0 0
    %10257 = vmatmul.mubr.bf16.gmra.mrb[0].mxu0 %v9994
    %v10258 = vpop.f32.mrb[0].mxu0
    %v10259 = vadd.f32 0.0, %v10258
    %v10260 = vpop.f32.mrb[0].mxu0
    %v10261 = vpop.f32.mrb[0].mxu0
    %v10262 = vadd.f32 0.0, %v10261
    %v10263 = vpop.f32.mrb[0].mxu0
    %10264 = vmatprep.mubr.bf16.mxu0 0
    %10265 = vmatmul.mubr.bf16.gmra.mrb[0].mxu0 %v9995
    %v10266 = vpop.f32.mrb[0].mxu0
    %v10267 = vadd.f32 0.0, %v10266
    %v10268 = vpop.f32.mrb[0].mxu0
    %v10269 = vpop.f32.mrb[0].mxu0
    %v10270 = vadd.f32 0.0, %v10269
    %v10271 = vpop.f32.mrb[0].mxu0
    %10272 = vmatprep.mubr.bf16.mxu0 0
    %10273 = vmatmul.mubr.bf16.gmra.mrb[0].mxu0 %v9996
    %v10274 = vpop.f32.mrb[0].mxu0
    %v10275 = vadd.f32 0.0, %v10274
    %v10276 = vpop.f32.mrb[0].mxu0
    %v10277 = vpop.f32.mrb[0].mxu0
    %v10278 = vadd.f32 0.0, %v10277
    %v10279 = vpop.f32.mrb[0].mxu0
    %10280 = vmatprep.mubr.bf16.mxu0 0
    %10281 = vmatmul.mubr.bf16.gmra.mrb[0].mxu0 %v9997
    %v10282 = vpop.f32.mrb[0].mxu0
    %v10283 = vadd.f32 0.0, %v10282
    %v10284 = vpop.f32.mrb[0].mxu0
    %v10285 = vpop.f32.mrb[0].mxu0
    %v10286 = vadd.f32 0.0, %v10285
    %v10287 = vpop.f32.mrb[0].mxu0
    %10288 = vmatprep.mubr.bf16.mxu0 0
    %10289 = vmatmul.mubr.bf16.gmra.mrb[0].mxu0 %v9998
    %v10290 = vpop.f32.mrb[0].mxu0
    %v10291 = vadd.f32 0.0, %v10290
    %v10292 = vpop.f32.mrb[0].mxu0
    %v10293 = vpop.f32.mrb[0].mxu0
    %v10294 = vadd.f32 0.0, %v10293
    %v10295 = vpop.f32.mrb[0].mxu0
    %10296 = vmatprep.mubr.bf16.mxu0 0
    %10297 = vmatmul.mubr.bf16.gmra.mrb[0].mxu0 %v9999
    %v10298 = vpop.f32.mrb[0].mxu0
    %v10299 = vadd.f32 0.0, %v10298
    %v10300 = vpop.f32.mrb[0].mxu0
    %v10301 = vpop.f32.mrb[0].mxu0
    %v10302 = vadd.f32 0.0, %v10301
    %v10303 = vpop.f32.mrb[0].mxu0
    %10304 = vmatprep.mubr.bf16.mxu0 0
    %10305 = vmatmul.mubr.bf16.gmra.mrb[0].mxu0 %v10000
    %v10306 = vpop.f32.mrb[0].mxu0
    %v10307 = vadd.f32 0.0, %v10306
    %v10308 = vpop.f32.mrb[0].mxu0
    %v10309 = vpop.f32.mrb[0].mxu0
    %v10310 = vadd.f32 0.0, %v10309
    %v10311 = vpop.f32.mrb[0].mxu0
    %10312 = vmatprep.mubr.bf16.mxu0 0
    %10313 = vmatmul.mubr.bf16.gmra.mrb[0].mxu0 %v10001
    %v10314 = vpop.f32.mrb[0].mxu0
    %v10315 = vadd.f32 0.0, %v10314
    %v10316 = vpop.f32.mrb[0].mxu0
    %v10317 = vpop.f32.mrb[0].mxu0
    %v10318 = vadd.f32 0.0, %v10317
    %v10319 = vpop.f32.mrb[0].mxu0
    %10320 = vmatprep.mubr.bf16.mxu0 0
    %10321 = vmatmul.mubr.bf16.gmra.mrb[0].mxu0 %v10002
    %v10322 = vpop.f32.mrb[0].mxu0
    %v10323 = vadd.f32 0.0, %v10322
    %v10324 = vpop.f32.mrb[0].mxu0
    %v10325 = vpop.f32.mrb[0].mxu0
    %v10326 = vadd.f32 0.0, %v10325
    %v10327 = vpop.f32.mrb[0].mxu0
    %10328 = vmatprep.mubr.bf16.mxu0 0
    %10329 = vmatmul.mubr.bf16.gmra.mrb[0].mxu0 %v10003
    %v10330 = vpop.f32.mrb[0].mxu0
    %v10331 = vadd.f32 0.0, %v10330
    %v10332 = vpop.f32.mrb[0].mxu0
    %v10333 = vpop.f32.mrb[0].mxu0
    %v10334 = vadd.f32 0.0, %v10333
    %v10335 = vpop.f32.mrb[0].mxu0
    %10336 = vmatprep.mubr.bf16.mxu0 0
    %10337 = vmatmul.mubr.bf16.gmra.mrb[0].mxu0 %v10004
    %v10338 = vpop.f32.mrb[0].mxu0
    %v10339 = vadd.f32 0.0, %v10338
    %v10340 = vpop.f32.mrb[0].mxu0
    %v10341 = vpop.f32.mrb[0].mxu0
    %v10342 = vadd.f32 0.0, %v10341
    %v10343 = vpop.f32.mrb[0].mxu0
    %10344 = vmatprep.mubr.bf16.mxu0 0
    %10345 = vmatmul.mubr.bf16.gmra.mrb[0].mxu0 %v10005
    %v10346 = vpop.f32.mrb[0].mxu0
    %v10347 = vadd.f32 0.0, %v10346
    %v10348 = vpop.f32.mrb[0].mxu0
    %v10349 = vpop.f32.mrb[0].mxu0
    %v10350 = vadd.f32 0.0, %v10349
    %v10351 = vpop.f32.mrb[0].mxu0
    %10352 = vmatprep.mubr.bf16.mxu0 0
    %10353 = vmatmul.mubr.bf16.gmra.mrb[0].mxu0 %v10006
    %v10354 = vpop.f32.mrb[0].mxu0
    %v10355 = vadd.f32 0.0, %v10354
    %v10356 = vpop.f32.mrb[0].mxu0
    %v10357 = vpop.f32.mrb[0].mxu0
    %v10358 = vadd.f32 0.0, %v10357
    %v10359 = vpop.f32.mrb[0].mxu0
    %10360 = vdwg.mxu0
    %v10361 = vadd.f32 %v9847, %v10107
    %v10362 = vadd.f32 %v9848, %v10110
    %v10363 = vadd.f32 %v9849, %v10115
    %v10364 = vadd.f32 %v9850, %v10118
    %v10365 = vadd.f32 %v9851, %v10123
    %v10366 = vadd.f32 %v9852, %v10126
    %v10367 = vadd.f32 %v9853, %v10131
    %v10368 = vadd.f32 %v9854, %v10134
    %v10369 = vadd.f32 %v9855, %v10139
    %v10370 = vadd.f32 %v9856, %v10142
    %v10371 = vadd.f32 %v9857, %v10147
    %v10372 = vadd.f32 %v9858, %v10150
    %v10373 = vadd.f32 %v9859, %v10155
    %v10374 = vadd.f32 %v9860, %v10158
    %v10375 = vadd.f32 %v9861, %v10163
    %v10376 = vadd.f32 %v9862, %v10166
    %v10377 = vadd.f32 %v9863, %v10171
    %v10378 = vadd.f32 %v9864, %v10174
    %v10379 = vadd.f32 %v9865, %v10179
    %v10380 = vadd.f32 %v9866, %v10182
    %v10381 = vadd.f32 %v9867, %v10187
    %v10382 = vadd.f32 %v9868, %v10190
    %v10383 = vadd.f32 %v9869, %v10195
    %v10384 = vadd.f32 %v9870, %v10198
    %v10385 = vadd.f32 %v9871, %v10203
    %v10386 = vadd.f32 %v9872, %v10206
    %v10387 = vadd.f32 %v9873, %v10211
    %v10388 = vadd.f32 %v9874, %v10214
    %v10389 = vadd.f32 %v9875, %v10219
    %v10390 = vadd.f32 %v9876, %v10222
    %v10391 = vadd.f32 %v9877, %v10227
    %v10392 = vadd.f32 %v9878, %v10230
    %v10393 = vadd.f32 %v9879, %v10235
    %v10394 = vadd.f32 %v9880, %v10238
    %v10395 = vadd.f32 %v9881, %v10243
    %v10396 = vadd.f32 %v9882, %v10246
    %v10397 = vadd.f32 %v9883, %v10251
    %v10398 = vadd.f32 %v9884, %v10254
    %v10399 = vadd.f32 %v9885, %v10259
    %v10400 = vadd.f32 %v9886, %v10262
    %v10401 = vadd.f32 %v9887, %v10267
    %v10402 = vadd.f32 %v9888, %v10270
    %v10403 = vadd.f32 %v9889, %v10275
    %v10404 = vadd.f32 %v9890, %v10278
    %v10405 = vadd.f32 %v9891, %v10283
    %v10406 = vadd.f32 %v9892, %v10286
    %v10407 = vadd.f32 %v9893, %v10291
    %v10408 = vadd.f32 %v9894, %v10294
    %v10409 = vadd.f32 %v9895, %v10299
    %v10410 = vadd.f32 %v9896, %v10302
    %v10411 = vadd.f32 %v9897, %v10307
    %v10412 = vadd.f32 %v9898, %v10310
    %v10413 = vadd.f32 %v9899, %v10315
    %v10414 = vadd.f32 %v9900, %v10318
    %v10415 = vadd.f32 %v9901, %v10323
    %v10416 = vadd.f32 %v9902, %v10326
    %v10417 = vadd.f32 %v9903, %v10331
    %v10418 = vadd.f32 %v9904, %v10334
    %v10419 = vadd.f32 %v9905, %v10339
    %v10420 = vadd.f32 %v9906, %v10342
    %v10421 = vadd.f32 %v9907, %v10347
    %v10422 = vadd.f32 %v9908, %v10350
    %v10423 = vadd.f32 %v9909, %v10355
    %v10424 = vadd.f32 %v9910, %v10358
    %v10425 = vld [vmem:[%s6] sm:$0x1]
    %v10427 = vlaneseq
    %v10428 = vshrl.u32 %v10427, 7
    %v10429 = vsub.s32 0, %v10428
    %v10430 = vrot.slane %v10425, %v10429
    %v10432 = vadd.f32 %v10361, %v10430
    %v10433 = vadd.f32 %v10362, %v10430
    %v10434 = vadd.f32 %v10363, %v10430
    %v10435 = vadd.f32 %v10364, %v10430
    %v10436 = vadd.f32 %v10365, %v10430
    %v10437 = vadd.f32 %v10366, %v10430
    %v10438 = vadd.f32 %v10367, %v10430
    %v10439 = vadd.f32 %v10368, %v10430
    %v10440 = vadd.f32 %v10369, %v10430
    %v10441 = vadd.f32 %v10370, %v10430
    %v10442 = vadd.f32 %v10371, %v10430
    %v10443 = vadd.f32 %v10372, %v10430
    %v10444 = vadd.f32 %v10373, %v10430
    %v10445 = vadd.f32 %v10374, %v10430
    %v10446 = vadd.f32 %v10375, %v10430
    %v10447 = vadd.f32 %v10376, %v10430
    %v10448 = vadd.f32 %v10377, %v10430
    %v10449 = vadd.f32 %v10378, %v10430
    %v10450 = vadd.f32 %v10379, %v10430
    %v10451 = vadd.f32 %v10380, %v10430
    %v10452 = vadd.f32 %v10381, %v10430
    %v10453 = vadd.f32 %v10382, %v10430
    %v10454 = vadd.f32 %v10383, %v10430
    %v10455 = vadd.f32 %v10384, %v10430
    %v10456 = vadd.f32 %v10385, %v10430
    %v10457 = vadd.f32 %v10386, %v10430
    %v10458 = vadd.f32 %v10387, %v10430
    %v10459 = vadd.f32 %v10388, %v10430
    %v10460 = vadd.f32 %v10389, %v10430
    %v10461 = vadd.f32 %v10390, %v10430
    %v10462 = vadd.f32 %v10391, %v10430
    %v10463 = vadd.f32 %v10392, %v10430
    %v10464 = vadd.f32 %v10393, %v10430
    %v10465 = vadd.f32 %v10394, %v10430
    %v10466 = vadd.f32 %v10395, %v10430
    %v10467 = vadd.f32 %v10396, %v10430
    %v10468 = vadd.f32 %v10397, %v10430
    %v10469 = vadd.f32 %v10398, %v10430
    %v10470 = vadd.f32 %v10399, %v10430
    %v10471 = vadd.f32 %v10400, %v10430
    %v10472 = vadd.f32 %v10401, %v10430
    %v10473 = vadd.f32 %v10402, %v10430
    %v10474 = vadd.f32 %v10403, %v10430
    %v10475 = vadd.f32 %v10404, %v10430
    %v10476 = vadd.f32 %v10405, %v10430
    %v10477 = vadd.f32 %v10406, %v10430
    %v10478 = vadd.f32 %v10407, %v10430
    %v10479 = vadd.f32 %v10408, %v10430
    %v10480 = vadd.f32 %v10409, %v10430
    %v10481 = vadd.f32 %v10410, %v10430
    %v10482 = vadd.f32 %v10411, %v10430
    %v10483 = vadd.f32 %v10412, %v10430
    %v10484 = vadd.f32 %v10413, %v10430
    %v10485 = vadd.f32 %v10414, %v10430
    %v10486 = vadd.f32 %v10415, %v10430
    %v10487 = vadd.f32 %v10416, %v10430
    %v10488 = vadd.f32 %v10417, %v10430
    %v10489 = vadd.f32 %v10418, %v10430
    %v10490 = vadd.f32 %v10419, %v10430
    %v10491 = vadd.f32 %v10420, %v10430
    %v10492 = vadd.f32 %v10421, %v10430
    %v10493 = vadd.f32 %v10422, %v10430
    %v10494 = vadd.f32 %v10423, %v10430
    %v10495 = vadd.f32 %v10424, %v10430
    %v10496 = vld [vmem:[%s7] sm:$0x3]
    %v10497 = vld [vmem:[%s8] sm:$0x1]
    %v10499 = vlaneseq
    %v10500 = vshrl.u32 %v10499, 7
    %v10501 = vsub.s32 0, %v10500
    %v10502 = vrot.slane %v10497, %v10501
    %v10505 = vsel %vm1135, %v10496, 0
    %10507 = vmatprep.subr.bf16.mxu0 0
    %10508 = vmatpush1.bf16.msra.mxu0 %v10505
    %10509 = vmatprep.subr.bf16.mxu0 0
    %10510 = vmatpush1.bf16.msra.mxu0 0
    %10511 = vmatprep.subr.bf16.mxu0 0
    %10512 = vmatpush1.bf16.msra.mxu0 0
    %10513 = vmatprep.subr.bf16.mxu0 0
    %10514 = vmatpush1.bf16.msra.mxu0 0
    %10515 = vmatprep.subr.bf16.mxu0 0
    %10516 = vmatpush1.bf16.msra.mxu0 0
    %10517 = vmatprep.subr.bf16.mxu0 0
    %10518 = vmatpush1.bf16.msra.mxu0 0
    %10519 = vmatprep.subr.bf16.mxu0 0
    %10520 = vmatpush1.bf16.msra.mxu0 0
    %10521 = vmatprep.subr.bf16.mxu0 0
    %10522 = vmatpush1.bf16.msra.mxu0 0
    %10523 = vmatprep.subr.bf16.mxu0 0
    %10524 = vmatpush1.bf16.msra.mxu0 0
    %10525 = vmatprep.subr.bf16.mxu0 0
    %10526 = vmatpush1.bf16.msra.mxu0 0
    %10527 = vmatprep.subr.bf16.mxu0 0
    %10528 = vmatpush1.bf16.msra.mxu0 0
    %10529 = vmatprep.subr.bf16.mxu0 0
    %10530 = vmatpush1.bf16.msra.mxu0 0
    %10531 = vmatprep.subr.bf16.mxu0 0
    %10532 = vmatpush1.bf16.msra.mxu0 0
    %10533 = vmatprep.subr.bf16.mxu0 0
    %10534 = vmatpush1.bf16.msra.mxu0 0
    %10535 = vmatprep.subr.bf16.mxu0 0
    %10536 = vmatpush1.bf16.msra.mxu0 0
    %10537 = vmatprep.subr.bf16.mxu0 0
    %10538 = vmatpush1.bf16.msra.mxu0 0
    %10539 = vmatprep.mubr.bf16.mxu0 0
    %10540 = vmatmul.mubr.bf16.gmra.mrb[0].mxu0 %v1043
    %v10541 = vpop.f32.mrb[0].mxu0
    %v10542 = vadd.f32 %v10502, %v10541
    %v10543 = vpop.f32.mrb[0].mxu0
    %v10544 = vpop.f32.mrb[0].mxu0
    %v10545 = vadd.f32 %v10502, %v10544
    %v10546 = vpop.f32.mrb[0].mxu0
    %10547 = vmatprep.mubr.bf16.mxu0 0
    %10548 = vmatmul.mubr.bf16.gmra.mrb[0].mxu0 %v1046
    %v10549 = vpop.f32.mrb[0].mxu0
    %v10550 = vadd.f32 %v10502, %v10549
    %v10551 = vpop.f32.mrb[0].mxu0
    %v10552 = vpop.f32.mrb[0].mxu0
    %v10553 = vadd.f32 %v10502, %v10552
    %v10554 = vpop.f32.mrb[0].mxu0
    %10555 = vmatprep.mubr.bf16.mxu0 0
    %10556 = vmatmul.mubr.bf16.gmra.mrb[0].mxu0 %v1049
    %v10557 = vpop.f32.mrb[0].mxu0
    %v10558 = vadd.f32 %v10502, %v10557
    %v10559 = vpop.f32.mrb[0].mxu0
    %v10560 = vpop.f32.mrb[0].mxu0
    %v10561 = vadd.f32 %v10502, %v10560
    %v10562 = vpop.f32.mrb[0].mxu0
    %10563 = vmatprep.mubr.bf16.mxu0 0
    %10564 = vmatmul.mubr.bf16.gmra.mrb[0].mxu0 %v1052
    %v10565 = vpop.f32.mrb[0].mxu0
    %v10566 = vadd.f32 %v10502, %v10565
    %v10567 = vpop.f32.mrb[0].mxu0
    %v10568 = vpop.f32.mrb[0].mxu0
    %v10569 = vadd.f32 %v10502, %v10568
    %v10570 = vpop.f32.mrb[0].mxu0
    %10571 = vmatprep.mubr.bf16.mxu0 0
    %10572 = vmatmul.mubr.bf16.gmra.mrb[0].mxu0 %v1055
    %v10573 = vpop.f32.mrb[0].mxu0
    %v10574 = vadd.f32 %v10502, %v10573
    %v10575 = vpop.f32.mrb[0].mxu0
    %v10576 = vpop.f32.mrb[0].mxu0
    %v10577 = vadd.f32 %v10502, %v10576
    %v10578 = vpop.f32.mrb[0].mxu0
    %10579 = vmatprep.mubr.bf16.mxu0 0
    %10580 = vmatmul.mubr.bf16.gmra.mrb[0].mxu0 %v1058
    %v10581 = vpop.f32.mrb[0].mxu0
    %v10582 = vadd.f32 %v10502, %v10581
    %v10583 = vpop.f32.mrb[0].mxu0
    %v10584 = vpop.f32.mrb[0].mxu0
    %v10585 = vadd.f32 %v10502, %v10584
    %v10586 = vpop.f32.mrb[0].mxu0
    %10587 = vmatprep.mubr.bf16.mxu0 0
    %10588 = vmatmul.mubr.bf16.gmra.mrb[0].mxu0 %v1061
    %v10589 = vpop.f32.mrb[0].mxu0
    %v10590 = vadd.f32 %v10502, %v10589
    %v10591 = vpop.f32.mrb[0].mxu0
    %v10592 = vpop.f32.mrb[0].mxu0
    %v10593 = vadd.f32 %v10502, %v10592
    %v10594 = vpop.f32.mrb[0].mxu0
    %10595 = vmatprep.mubr.bf16.mxu0 0
    %10596 = vmatmul.mubr.bf16.gmra.mrb[0].mxu0 %v1064
    %v10597 = vpop.f32.mrb[0].mxu0
    %v10598 = vadd.f32 %v10502, %v10597
    %v10599 = vpop.f32.mrb[0].mxu0
    %v10600 = vpop.f32.mrb[0].mxu0
    %v10601 = vadd.f32 %v10502, %v10600
    %v10602 = vpop.f32.mrb[0].mxu0
    %10603 = vmatprep.mubr.bf16.mxu0 0
    %10604 = vmatmul.mubr.bf16.gmra.mrb[0].mxu0 %v1067
    %v10605 = vpop.f32.mrb[0].mxu0
    %v10606 = vadd.f32 %v10502, %v10605
    %v10607 = vpop.f32.mrb[0].mxu0
    %v10608 = vpop.f32.mrb[0].mxu0
    %v10609 = vadd.f32 %v10502, %v10608
    %v10610 = vpop.f32.mrb[0].mxu0
    %10611 = vmatprep.mubr.bf16.mxu0 0
    %10612 = vmatmul.mubr.bf16.gmra.mrb[0].mxu0 %v1070
    %v10613 = vpop.f32.mrb[0].mxu0
    %v10614 = vadd.f32 %v10502, %v10613
    %v10615 = vpop.f32.mrb[0].mxu0
    %v10616 = vpop.f32.mrb[0].mxu0
    %v10617 = vadd.f32 %v10502, %v10616
    %v10618 = vpop.f32.mrb[0].mxu0
    %10619 = vmatprep.mubr.bf16.mxu0 0
    %10620 = vmatmul.mubr.bf16.gmra.mrb[0].mxu0 %v1073
    %v10621 = vpop.f32.mrb[0].mxu0
    %v10622 = vadd.f32 %v10502, %v10621
    %v10623 = vpop.f32.mrb[0].mxu0
    %v10624 = vpop.f32.mrb[0].mxu0
    %v10625 = vadd.f32 %v10502, %v10624
    %v10626 = vpop.f32.mrb[0].mxu0
    %10627 = vmatprep.mubr.bf16.mxu0 0
    %10628 = vmatmul.mubr.bf16.gmra.mrb[0].mxu0 %v1076
    %v10629 = vpop.f32.mrb[0].mxu0
    %v10630 = vadd.f32 %v10502, %v10629
    %v10631 = vpop.f32.mrb[0].mxu0
    %v10632 = vpop.f32.mrb[0].mxu0
    %v10633 = vadd.f32 %v10502, %v10632
    %v10634 = vpop.f32.mrb[0].mxu0
    %10635 = vmatprep.mubr.bf16.mxu0 0
    %10636 = vmatmul.mubr.bf16.gmra.mrb[0].mxu0 %v1079
    %v10637 = vpop.f32.mrb[0].mxu0
    %v10638 = vadd.f32 %v10502, %v10637
    %v10639 = vpop.f32.mrb[0].mxu0
    %v10640 = vpop.f32.mrb[0].mxu0
    %v10641 = vadd.f32 %v10502, %v10640
    %v10642 = vpop.f32.mrb[0].mxu0
    %10643 = vmatprep.mubr.bf16.mxu0 0
    %10644 = vmatmul.mubr.bf16.gmra.mrb[0].mxu0 %v1082
    %v10645 = vpop.f32.mrb[0].mxu0
    %v10646 = vadd.f32 %v10502, %v10645
    %v10647 = vpop.f32.mrb[0].mxu0
    %v10648 = vpop.f32.mrb[0].mxu0
    %v10649 = vadd.f32 %v10502, %v10648
    %v10650 = vpop.f32.mrb[0].mxu0
    %10651 = vmatprep.mubr.bf16.mxu0 0
    %10652 = vmatmul.mubr.bf16.gmra.mrb[0].mxu0 %v1085
    %v10653 = vpop.f32.mrb[0].mxu0
    %v10654 = vadd.f32 %v10502, %v10653
    %v10655 = vpop.f32.mrb[0].mxu0
    %v10656 = vpop.f32.mrb[0].mxu0
    %v10657 = vadd.f32 %v10502, %v10656
    %v10658 = vpop.f32.mrb[0].mxu0
    %10659 = vmatprep.mubr.bf16.mxu0 0
    %10660 = vmatmul.mubr.bf16.gmra.mrb[0].mxu0 %v3216
    %v10661 = vpop.f32.mrb[0].mxu0
    %v10662 = vadd.f32 %v10502, %v10661
    %v10663 = vpop.f32.mrb[0].mxu0
    %v10664 = vpop.f32.mrb[0].mxu0
    %v10665 = vadd.f32 %v10502, %v10664
    %v10666 = vpop.f32.mrb[0].mxu0
    %10667 = vmatprep.mubr.bf16.mxu0 0
    %10668 = vmatmul.mubr.bf16.gmra.mrb[0].mxu0 %v1091
    %v10669 = vpop.f32.mrb[0].mxu0
    %v10670 = vadd.f32 %v10502, %v10669
    %v10671 = vpop.f32.mrb[0].mxu0
    %v10672 = vpop.f32.mrb[0].mxu0
    %v10673 = vadd.f32 %v10502, %v10672
    %v10674 = vpop.f32.mrb[0].mxu0
    %10675 = vmatprep.mubr.bf16.mxu0 0
    %10676 = vmatmul.mubr.bf16.gmra.mrb[0].mxu0 %v1094
    %v10677 = vpop.f32.mrb[0].mxu0
    %v10678 = vadd.f32 %v10502, %v10677
    %v10679 = vpop.f32.mrb[0].mxu0
    %v10680 = vpop.f32.mrb[0].mxu0
    %v10681 = vadd.f32 %v10502, %v10680
    %v10682 = vpop.f32.mrb[0].mxu0
    %10683 = vmatprep.mubr.bf16.mxu0 0
    %10684 = vmatmul.mubr.bf16.gmra.mrb[0].mxu0 %v1097
    %v10685 = vpop.f32.mrb[0].mxu0
    %v10686 = vadd.f32 %v10502, %v10685
    %v10687 = vpop.f32.mrb[0].mxu0
    %v10688 = vpop.f32.mrb[0].mxu0
    %v10689 = vadd.f32 %v10502, %v10688
    %v10690 = vpop.f32.mrb[0].mxu0
    %10691 = vmatprep.mubr.bf16.mxu0 0
    %10692 = vmatmul.mubr.bf16.gmra.mrb[0].mxu0 %v1100
    %v10693 = vpop.f32.mrb[0].mxu0
    %v10694 = vadd.f32 %v10502, %v10693
    %v10695 = vpop.f32.mrb[0].mxu0
    %v10696 = vpop.f32.mrb[0].mxu0
    %v10697 = vadd.f32 %v10502, %v10696
    %v10698 = vpop.f32.mrb[0].mxu0
    %10699 = vmatprep.mubr.bf16.mxu0 0
    %10700 = vmatmul.mubr.bf16.gmra.mrb[0].mxu0 %v1103
    %v10701 = vpop.f32.mrb[0].mxu0
    %v10702 = vadd.f32 %v10502, %v10701
    %v10703 = vpop.f32.mrb[0].mxu0
    %v10704 = vpop.f32.mrb[0].mxu0
    %v10705 = vadd.f32 %v10502, %v10704
    %v10706 = vpop.f32.mrb[0].mxu0
    %10707 = vmatprep.mubr.bf16.mxu0 0
    %10708 = vmatmul.mubr.bf16.gmra.mrb[0].mxu0 %v1106
    %v10709 = vpop.f32.mrb[0].mxu0
    %v10710 = vadd.f32 %v10502, %v10709
    %v10711 = vpop.f32.mrb[0].mxu0
    %v10712 = vpop.f32.mrb[0].mxu0
    %v10713 = vadd.f32 %v10502, %v10712
    %v10714 = vpop.f32.mrb[0].mxu0
    %10715 = vmatprep.mubr.bf16.mxu0 0
    %10716 = vmatmul.mubr.bf16.gmra.mrb[0].mxu0 %v1109
    %v10717 = vpop.f32.mrb[0].mxu0
    %v10718 = vadd.f32 %v10502, %v10717
    %v10719 = vpop.f32.mrb[0].mxu0
    %v10720 = vpop.f32.mrb[0].mxu0
    %v10721 = vadd.f32 %v10502, %v10720
    %v10722 = vpop.f32.mrb[0].mxu0
    %10723 = vmatprep.mubr.bf16.mxu0 0
    %10724 = vmatmul.mubr.bf16.gmra.mrb[0].mxu0 %v1112
    %v10725 = vpop.f32.mrb[0].mxu0
    %v10726 = vadd.f32 %v10502, %v10725
    %v10727 = vpop.f32.mrb[0].mxu0
    %v10728 = vpop.f32.mrb[0].mxu0
    %v10729 = vadd.f32 %v10502, %v10728
    %v10730 = vpop.f32.mrb[0].mxu0
    %10731 = vmatprep.mubr.bf16.mxu0 0
    %10732 = vmatmul.mubr.bf16.gmra.mrb[0].mxu0 %v1115
    %v10733 = vpop.f32.mrb[0].mxu0
    %v10734 = vadd.f32 %v10502, %v10733
    %v10735 = vpop.f32.mrb[0].mxu0
    %v10736 = vpop.f32.mrb[0].mxu0
    %v10737 = vadd.f32 %v10502, %v10736
    %v10738 = vpop.f32.mrb[0].mxu0
    %10739 = vmatprep.mubr.bf16.mxu0 0
    %10740 = vmatmul.mubr.bf16.gmra.mrb[0].mxu0 %v1118
    %v10741 = vpop.f32.mrb[0].mxu0
    %v10742 = vadd.f32 %v10502, %v10741
    %v10743 = vpop.f32.mrb[0].mxu0
    %v10744 = vpop.f32.mrb[0].mxu0
    %v10745 = vadd.f32 %v10502, %v10744
    %v10746 = vpop.f32.mrb[0].mxu0
    %10747 = vmatprep.mubr.bf16.mxu0 0
    %10748 = vmatmul.mubr.bf16.gmra.mrb[0].mxu0 %v1121
    %v10749 = vpop.f32.mrb[0].mxu0
    %v10750 = vadd.f32 %v10502, %v10749
    %v10751 = vpop.f32.mrb[0].mxu0
    %v10752 = vpop.f32.mrb[0].mxu0
    %v10753 = vadd.f32 %v10502, %v10752
    %v10754 = vpop.f32.mrb[0].mxu0
    %10755 = vmatprep.mubr.bf16.mxu0 0
    %10756 = vmatmul.mubr.bf16.gmra.mrb[0].mxu0 %v1124
    %v10757 = vpop.f32.mrb[0].mxu0
    %v10758 = vadd.f32 %v10502, %v10757
    %v10759 = vpop.f32.mrb[0].mxu0
    %v10760 = vpop.f32.mrb[0].mxu0
    %v10761 = vadd.f32 %v10502, %v10760
    %v10762 = vpop.f32.mrb[0].mxu0
    %10763 = vmatprep.mubr.bf16.mxu0 0
    %10764 = vmatmul.mubr.bf16.gmra.mrb[0].mxu0 %v1127
    %v10765 = vpop.f32.mrb[0].mxu0
    %v10766 = vadd.f32 %v10502, %v10765
    %v10767 = vpop.f32.mrb[0].mxu0
    %v10768 = vpop.f32.mrb[0].mxu0
    %v10769 = vadd.f32 %v10502, %v10768
    %v10770 = vpop.f32.mrb[0].mxu0
    %10771 = vmatprep.mubr.bf16.mxu0 0
    %10772 = vmatmul.mubr.bf16.gmra.mrb[0].mxu0 %v1130
    %v10773 = vpop.f32.mrb[0].mxu0
    %v10774 = vadd.f32 %v10502, %v10773
    %v10775 = vpop.f32.mrb[0].mxu0
    %v10776 = vpop.f32.mrb[0].mxu0
    %v10777 = vadd.f32 %v10502, %v10776
    %v10778 = vpop.f32.mrb[0].mxu0
    %10779 = vmatprep.mubr.bf16.mxu0 0
    %10780 = vmatmul.mubr.bf16.gmra.mrb[0].mxu0 %v1133
    %v10781 = vpop.f32.mrb[0].mxu0
    %v10782 = vadd.f32 %v10502, %v10781
    %v10783 = vpop.f32.mrb[0].mxu0
    %v10784 = vpop.f32.mrb[0].mxu0
    %v10785 = vadd.f32 %v10502, %v10784
    %v10786 = vpop.f32.mrb[0].mxu0
    %10787 = vmatprep.mubr.bf16.mxu0 0
    %10788 = vmatmul.mubr.bf16.gmra.mrb[0].mxu0 %v3219
    %v10789 = vpop.f32.mrb[0].mxu0
    %v10790 = vadd.f32 %v10502, %v10789
    %v10791 = vpop.f32.mrb[0].mxu0
    %v10792 = vpop.f32.mrb[0].mxu0
    %v10793 = vadd.f32 %v10502, %v10792
    %v10794 = vpop.f32.mrb[0].mxu0
    %10795 = vdwg.mxu0
    %v10796 = vadd.f32 %v10542, %v10545
    %v10797 = vadd.f32 %v10796, %v10550
    %v10798 = vadd.f32 %v10797, %v10553
    %v10799 = vadd.f32 %v10798, %v10558
    %v10800 = vadd.f32 %v10799, %v10561
    %v10801 = vadd.f32 %v10800, %v10566
    %v10802 = vadd.f32 %v10801, %v10569
    %v10803 = vadd.f32 %v10802, %v10574
    %v10804 = vadd.f32 %v10803, %v10577
    %v10805 = vadd.f32 %v10804, %v10582
    %v10806 = vadd.f32 %v10805, %v10585
    %v10807 = vadd.f32 %v10806, %v10590
    %v10808 = vadd.f32 %v10807, %v10593
    %v10809 = vadd.f32 %v10808, %v10598
    %v10810 = vadd.f32 %v10809, %v10601
    %v10811 = vadd.f32 %v10810, %v10606
    %v10812 = vadd.f32 %v10811, %v10609
    %v10813 = vadd.f32 %v10812, %v10614
    %v10814 = vadd.f32 %v10813, %v10617
    %v10815 = vadd.f32 %v10814, %v10622
    %v10816 = vadd.f32 %v10815, %v10625
    %v10817 = vadd.f32 %v10816, %v10630
    %v10818 = vadd.f32 %v10817, %v10633
    %v10819 = vadd.f32 %v10818, %v10638
    %v10820 = vadd.f32 %v10819, %v10641
    %v10821 = vadd.f32 %v10820, %v10646
    %v10822 = vadd.f32 %v10821, %v10649
    %v10823 = vadd.f32 %v10822, %v10654
    %v10824 = vadd.f32 %v10823, %v10657
    %v10825 = vadd.f32 %v10824, %v10662
    %v10826 = vadd.f32 %v10825, %v10665
    %v10827 = vadd.f32 %v10826, %v10670
    %v10828 = vadd.f32 %v10827, %v10673
    %v10829 = vadd.f32 %v10828, %v10678
    %v10830 = vadd.f32 %v10829, %v10681
    %v10831 = vadd.f32 %v10830, %v10686
    %v10832 = vadd.f32 %v10831, %v10689
    %v10833 = vadd.f32 %v10832, %v10694
    %v10834 = vadd.f32 %v10833, %v10697
    %v10835 = vadd.f32 %v10834, %v10702
    %v10836 = vadd.f32 %v10835, %v10705
    %v10837 = vadd.f32 %v10836, %v10710
    %v10838 = vadd.f32 %v10837, %v10713
    %v10839 = vadd.f32 %v10838, %v10718
    %v10840 = vadd.f32 %v10839, %v10721
    %v10841 = vadd.f32 %v10840, %v10726
    %v10842 = vadd.f32 %v10841, %v10729
    %v10843 = vadd.f32 %v10842, %v10734
    %v10844 = vadd.f32 %v10843, %v10737
    %v10845 = vadd.f32 %v10844, %v10742
    %v10846 = vadd.f32 %v10845, %v10745
    %v10847 = vadd.f32 %v10846, %v10750
    %v10848 = vadd.f32 %v10847, %v10753
    %v10849 = vadd.f32 %v10848, %v10758
    %v10850 = vadd.f32 %v10849, %v10761
    %v10851 = vadd.f32 %v10850, %v10766
    %v10852 = vadd.f32 %v10851, %v10769
    %v10853 = vadd.f32 %v10852, %v10774
    %v10854 = vadd.f32 %v10853, %v10777
    %v10855 = vadd.f32 %v10854, %v10782
    %v10856 = vadd.f32 %v10855, %v10785
    %v10857 = vadd.f32 %v10856, %v10790
    %v10858 = vadd.f32 %v10857, %v10793
    %v10859 = vrot.slane %v10858, 4
    %v10860 = vadd.f32 %v10858, %v10859
    %v10861 = vrot.slane %v10860, 2
    %v10862 = vadd.f32 %v10860, %v10861
    %v10863 = vrot.slane %v10862, 1
    %v10864 = vadd.f32 %v10862, %v10863
    %v10865 = vmul.f32 %v10864, 0.001953125
    %v10866 = vmul.f32 %v10542, %v10542
    %v10867 = vmul.f32 %v10545, %v10545
    %v10868 = vmul.f32 %v10550, %v10550
    %v10869 = vmul.f32 %v10553, %v10553
    %v10870 = vmul.f32 %v10558, %v10558
    %v10871 = vmul.f32 %v10561, %v10561
    %v10872 = vmul.f32 %v10566, %v10566
    %v10873 = vmul.f32 %v10569, %v10569
    %v10874 = vmul.f32 %v10574, %v10574
    %v10875 = vmul.f32 %v10577, %v10577
    %v10876 = vmul.f32 %v10582, %v10582
    %v10877 = vmul.f32 %v10585, %v10585
    %v10878 = vmul.f32 %v10590, %v10590
    %v10879 = vmul.f32 %v10593, %v10593
    %v10880 = vmul.f32 %v10598, %v10598
    %v10881 = vmul.f32 %v10601, %v10601
    %v10882 = vmul.f32 %v10606, %v10606
    %v10883 = vmul.f32 %v10609, %v10609
    %v10884 = vmul.f32 %v10614, %v10614
    %v10885 = vmul.f32 %v10617, %v10617
    %v10886 = vmul.f32 %v10622, %v10622
    %v10887 = vmul.f32 %v10625, %v10625
    %v10888 = vmul.f32 %v10630, %v10630
    %v10889 = vmul.f32 %v10633, %v10633
    %v10890 = vmul.f32 %v10638, %v10638
    %v10891 = vmul.f32 %v10641, %v10641
    %v10892 = vmul.f32 %v10646, %v10646
    %v10893 = vmul.f32 %v10649, %v10649
    %v10894 = vmul.f32 %v10654, %v10654
    %v10895 = vmul.f32 %v10657, %v10657
    %v10896 = vmul.f32 %v10662, %v10662
    %v10897 = vmul.f32 %v10665, %v10665
    %v10898 = vmul.f32 %v10670, %v10670
    %v10899 = vmul.f32 %v10673, %v10673
    %v10900 = vmul.f32 %v10678, %v10678
    %v10901 = vmul.f32 %v10681, %v10681
    %v10902 = vmul.f32 %v10686, %v10686
    %v10903 = vmul.f32 %v10689, %v10689
    %v10904 = vmul.f32 %v10694, %v10694
    %v10905 = vmul.f32 %v10697, %v10697
    %v10906 = vmul.f32 %v10702, %v10702
    %v10907 = vmul.f32 %v10705, %v10705
    %v10908 = vmul.f32 %v10710, %v10710
    %v10909 = vmul.f32 %v10713, %v10713
    %v10910 = vmul.f32 %v10718, %v10718
    %v10911 = vmul.f32 %v10721, %v10721
    %v10912 = vmul.f32 %v10726, %v10726
    %v10913 = vmul.f32 %v10729, %v10729
    %v10914 = vmul.f32 %v10734, %v10734
    %v10915 = vmul.f32 %v10737, %v10737
    %v10916 = vmul.f32 %v10742, %v10742
    %v10917 = vmul.f32 %v10745, %v10745
    %v10918 = vmul.f32 %v10750, %v10750
    %v10919 = vmul.f32 %v10753, %v10753
    %v10920 = vmul.f32 %v10758, %v10758
    %v10921 = vmul.f32 %v10761, %v10761
    %v10922 = vmul.f32 %v10766, %v10766
    %v10923 = vmul.f32 %v10769, %v10769
    %v10924 = vmul.f32 %v10774, %v10774
    %v10925 = vmul.f32 %v10777, %v10777
    %v10926 = vmul.f32 %v10782, %v10782
    %v10927 = vmul.f32 %v10785, %v10785
    %v10928 = vmul.f32 %v10790, %v10790
    %v10929 = vmul.f32 %v10793, %v10793
    %v10930 = vadd.f32 %v10866, %v10867
    %v10931 = vadd.f32 %v10930, %v10868
    %v10932 = vadd.f32 %v10931, %v10869
    %v10933 = vadd.f32 %v10932, %v10870
    %v10934 = vadd.f32 %v10933, %v10871
    %v10935 = vadd.f32 %v10934, %v10872
    %v10936 = vadd.f32 %v10935, %v10873
    %v10937 = vadd.f32 %v10936, %v10874
    %v10938 = vadd.f32 %v10937, %v10875
    %v10939 = vadd.f32 %v10938, %v10876
    %v10940 = vadd.f32 %v10939, %v10877
    %v10941 = vadd.f32 %v10940, %v10878
    %v10942 = vadd.f32 %v10941, %v10879
    %v10943 = vadd.f32 %v10942, %v10880
    %v10944 = vadd.f32 %v10943, %v10881
    %v10945 = vadd.f32 %v10944, %v10882
    %v10946 = vadd.f32 %v10945, %v10883
    %v10947 = vadd.f32 %v10946, %v10884
    %v10948 = vadd.f32 %v10947, %v10885
    %v10949 = vadd.f32 %v10948, %v10886
    %v10950 = vadd.f32 %v10949, %v10887
    %v10951 = vadd.f32 %v10950, %v10888
    %v10952 = vadd.f32 %v10951, %v10889
    %v10953 = vadd.f32 %v10952, %v10890
    %v10954 = vadd.f32 %v10953, %v10891
    %v10955 = vadd.f32 %v10954, %v10892
    %v10956 = vadd.f32 %v10955, %v10893
    %v10957 = vadd.f32 %v10956, %v10894
    %v10958 = vadd.f32 %v10957, %v10895
    %v10959 = vadd.f32 %v10958, %v10896
    %v10960 = vadd.f32 %v10959, %v10897
    %v10961 = vadd.f32 %v10960, %v10898
    %v10962 = vadd.f32 %v10961, %v10899
    %v10963 = vadd.f32 %v10962, %v10900
    %v10964 = vadd.f32 %v10963, %v10901
    %v10965 = vadd.f32 %v10964, %v10902
    %v10966 = vadd.f32 %v10965, %v10903
    %v10967 = vadd.f32 %v10966, %v10904
    %v10968 = vadd.f32 %v10967, %v10905
    %v10969 = vadd.f32 %v10968, %v10906
    %v10970 = vadd.f32 %v10969, %v10907
    %v10971 = vadd.f32 %v10970, %v10908
    %v10972 = vadd.f32 %v10971, %v10909
    %v10973 = vadd.f32 %v10972, %v10910
    %v10974 = vadd.f32 %v10973, %v10911
    %v10975 = vadd.f32 %v10974, %v10912
    %v10976 = vadd.f32 %v10975, %v10913
    %v10977 = vadd.f32 %v10976, %v10914
    %v10978 = vadd.f32 %v10977, %v10915
    %v10979 = vadd.f32 %v10978, %v10916
    %v10980 = vadd.f32 %v10979, %v10917
    %v10981 = vadd.f32 %v10980, %v10918
    %v10982 = vadd.f32 %v10981, %v10919
    %v10983 = vadd.f32 %v10982, %v10920
    %v10984 = vadd.f32 %v10983, %v10921
    %v10985 = vadd.f32 %v10984, %v10922
    %v10986 = vadd.f32 %v10985, %v10923
    %v10987 = vadd.f32 %v10986, %v10924
    %v10988 = vadd.f32 %v10987, %v10925
    %v10989 = vadd.f32 %v10988, %v10926
    %v10990 = vadd.f32 %v10989, %v10927
    %v10991 = vadd.f32 %v10990, %v10928
    %v10992 = vadd.f32 %v10991, %v10929
    %v10993 = vrot.slane %v10992, 4
    %v10994 = vadd.f32 %v10992, %v10993
    %v10995 = vrot.slane %v10994, 2
    %v10996 = vadd.f32 %v10994, %v10995
    %v10997 = vrot.slane %v10996, 1
    %v10998 = vadd.f32 %v10996, %v10997
    %v10999 = vmul.f32 %v10998, 0.001953125
    %v11000 = vmul.f32 %v10865, %v10865
    %v11001 = vsub.f32 %v10999, %v11000
    %v11002 = vsub.f32 %v10542, %v10865
    %v11003 = vsub.f32 %v10545, %v10865
    %v11004 = vsub.f32 %v10550, %v10865
    %v11005 = vsub.f32 %v10553, %v10865
    %v11006 = vsub.f32 %v10558, %v10865
    %v11007 = vsub.f32 %v10561, %v10865
    %v11008 = vsub.f32 %v10566, %v10865
    %v11009 = vsub.f32 %v10569, %v10865
    %v11010 = vsub.f32 %v10574, %v10865
    %v11011 = vsub.f32 %v10577, %v10865
    %v11012 = vsub.f32 %v10582, %v10865
    %v11013 = vsub.f32 %v10585, %v10865
    %v11014 = vsub.f32 %v10590, %v10865
    %v11015 = vsub.f32 %v10593, %v10865
    %v11016 = vsub.f32 %v10598, %v10865
    %v11017 = vsub.f32 %v10601, %v10865
    %v11018 = vsub.f32 %v10606, %v10865
    %v11019 = vsub.f32 %v10609, %v10865
    %v11020 = vsub.f32 %v10614, %v10865
    %v11021 = vsub.f32 %v10617, %v10865
    %v11022 = vsub.f32 %v10622, %v10865
    %v11023 = vsub.f32 %v10625, %v10865
    %v11024 = vsub.f32 %v10630, %v10865
    %v11025 = vsub.f32 %v10633, %v10865
    %v11026 = vsub.f32 %v10638, %v10865
    %v11027 = vsub.f32 %v10641, %v10865
    %v11028 = vsub.f32 %v10646, %v10865
    %v11029 = vsub.f32 %v10649, %v10865
    %v11030 = vsub.f32 %v10654, %v10865
    %v11031 = vsub.f32 %v10657, %v10865
    %v11032 = vsub.f32 %v10662, %v10865
    %v11033 = vsub.f32 %v10665, %v10865
    %v11034 = vsub.f32 %v10670, %v10865
    %v11035 = vsub.f32 %v10673, %v10865
    %v11036 = vsub.f32 %v10678, %v10865
    %v11037 = vsub.f32 %v10681, %v10865
    %v11038 = vsub.f32 %v10686, %v10865
    %v11039 = vsub.f32 %v10689, %v10865
    %v11040 = vsub.f32 %v10694, %v10865
    %v11041 = vsub.f32 %v10697, %v10865
    %v11042 = vsub.f32 %v10702, %v10865
    %v11043 = vsub.f32 %v10705, %v10865
    %v11044 = vsub.f32 %v10710, %v10865
    %v11045 = vsub.f32 %v10713, %v10865
    %v11046 = vsub.f32 %v10718, %v10865
    %v11047 = vsub.f32 %v10721, %v10865
    %v11048 = vsub.f32 %v10726, %v10865
    %v11049 = vsub.f32 %v10729, %v10865
    %v11050 = vsub.f32 %v10734, %v10865
    %v11051 = vsub.f32 %v10737, %v10865
    %v11052 = vsub.f32 %v10742, %v10865
    %v11053 = vsub.f32 %v10745, %v10865
    %v11054 = vsub.f32 %v10750, %v10865
    %v11055 = vsub.f32 %v10753, %v10865
    %v11056 = vsub.f32 %v10758, %v10865
    %v11057 = vsub.f32 %v10761, %v10865
    %v11058 = vsub.f32 %v10766, %v10865
    %v11059 = vsub.f32 %v10769, %v10865
    %v11060 = vsub.f32 %v10774, %v10865
    %v11061 = vsub.f32 %v10777, %v10865
    %v11062 = vsub.f32 %v10782, %v10865
    %v11063 = vsub.f32 %v10785, %v10865
    %v11064 = vsub.f32 %v10790, %v10865
    %v11065 = vsub.f32 %v10793, %v10865
    %v11066 = vadd.f32 %v11001, 1e-05
    %v11067 = vrsqrt.pop %v11066
    %v11068 = vmul.f32 %v11002, %v11067
    %v11069 = vmul.f32 %v11003, %v11067
    %v11070 = vmul.f32 %v11004, %v11067
    %v11071 = vmul.f32 %v11005, %v11067
    %v11072 = vmul.f32 %v11006, %v11067
    %v11073 = vmul.f32 %v11007, %v11067
    %v11074 = vmul.f32 %v11008, %v11067
    %v11075 = vmul.f32 %v11009, %v11067
    %v11076 = vmul.f32 %v11010, %v11067
    %v11077 = vmul.f32 %v11011, %v11067
    %v11078 = vmul.f32 %v11012, %v11067
    %v11079 = vmul.f32 %v11013, %v11067
    %v11080 = vmul.f32 %v11014, %v11067
    %v11081 = vmul.f32 %v11015, %v11067
    %v11082 = vmul.f32 %v11016, %v11067
    %v11083 = vmul.f32 %v11017, %v11067
    %v11084 = vmul.f32 %v11018, %v11067
    %v11085 = vmul.f32 %v11019, %v11067
    %v11086 = vmul.f32 %v11020, %v11067
    %v11087 = vmul.f32 %v11021, %v11067
    %v11088 = vmul.f32 %v11022, %v11067
    %v11089 = vmul.f32 %v11023, %v11067
    %v11090 = vmul.f32 %v11024, %v11067
    %v11091 = vmul.f32 %v11025, %v11067
    %v11092 = vmul.f32 %v11026, %v11067
    %v11093 = vmul.f32 %v11027, %v11067
    %v11094 = vmul.f32 %v11028, %v11067
    %v11095 = vmul.f32 %v11029, %v11067
    %v11096 = vmul.f32 %v11030, %v11067
    %v11097 = vmul.f32 %v11031, %v11067
    %v11098 = vmul.f32 %v11032, %v11067
    %v11099 = vmul.f32 %v11033, %v11067
    %v11100 = vmul.f32 %v11034, %v11067
    %v11101 = vmul.f32 %v11035, %v11067
    %v11102 = vmul.f32 %v11036, %v11067
    %v11103 = vmul.f32 %v11037, %v11067
    %v11104 = vmul.f32 %v11038, %v11067
    %v11105 = vmul.f32 %v11039, %v11067
    %v11106 = vmul.f32 %v11040, %v11067
    %v11107 = vmul.f32 %v11041, %v11067
    %v11108 = vmul.f32 %v11042, %v11067
    %v11109 = vmul.f32 %v11043, %v11067
    %v11110 = vmul.f32 %v11044, %v11067
    %v11111 = vmul.f32 %v11045, %v11067
    %v11112 = vmul.f32 %v11046, %v11067
    %v11113 = vmul.f32 %v11047, %v11067
    %v11114 = vmul.f32 %v11048, %v11067
    %v11115 = vmul.f32 %v11049, %v11067
    %v11116 = vmul.f32 %v11050, %v11067
    %v11117 = vmul.f32 %v11051, %v11067
    %v11118 = vmul.f32 %v11052, %v11067
    %v11119 = vmul.f32 %v11053, %v11067
    %v11120 = vmul.f32 %v11054, %v11067
    %v11121 = vmul.f32 %v11055, %v11067
    %v11122 = vmul.f32 %v11056, %v11067
    %v11123 = vmul.f32 %v11057, %v11067
    %v11124 = vmul.f32 %v11058, %v11067
    %v11125 = vmul.f32 %v11059, %v11067
    %v11126 = vmul.f32 %v11060, %v11067
    %v11127 = vmul.f32 %v11061, %v11067
    %v11128 = vmul.f32 %v11062, %v11067
    %v11129 = vmul.f32 %v11063, %v11067
    %v11130 = vmul.f32 %v11064, %v11067
    %v11131 = vmul.f32 %v11065, %v11067
    %v11132 = vld [vmem:[%s9] sm:$0x1]
    %v11134 = vlaneseq
    %v11135 = vshrl.u32 %v11134, 7
    %v11136 = vsub.s32 0, %v11135
    %v11137 = vrot.slane %v11132, %v11136
    %v11139 = vmul.f32 %v11068, %v11137
    %v11140 = vmul.f32 %v11069, %v11137
    %v11141 = vmul.f32 %v11070, %v11137
    %v11142 = vmul.f32 %v11071, %v11137
    %v11143 = vmul.f32 %v11072, %v11137
    %v11144 = vmul.f32 %v11073, %v11137
    %v11145 = vmul.f32 %v11074, %v11137
    %v11146 = vmul.f32 %v11075, %v11137
    %v11147 = vmul.f32 %v11076, %v11137
    %v11148 = vmul.f32 %v11077, %v11137
    %v11149 = vmul.f32 %v11078, %v11137
    %v11150 = vmul.f32 %v11079, %v11137
    %v11151 = vmul.f32 %v11080, %v11137
    %v11152 = vmul.f32 %v11081, %v11137
    %v11153 = vmul.f32 %v11082, %v11137
    %v11154 = vmul.f32 %v11083, %v11137
    %v11155 = vmul.f32 %v11084, %v11137
    %v11156 = vmul.f32 %v11085, %v11137
    %v11157 = vmul.f32 %v11086, %v11137
    %v11158 = vmul.f32 %v11087, %v11137
    %v11159 = vmul.f32 %v11088, %v11137
    %v11160 = vmul.f32 %v11089, %v11137
    %v11161 = vmul.f32 %v11090, %v11137
    %v11162 = vmul.f32 %v11091, %v11137
    %v11163 = vmul.f32 %v11092, %v11137
    %v11164 = vmul.f32 %v11093, %v11137
    %v11165 = vmul.f32 %v11094, %v11137
    %v11166 = vmul.f32 %v11095, %v11137
    %v11167 = vmul.f32 %v11096, %v11137
    %v11168 = vmul.f32 %v11097, %v11137
    %v11169 = vmul.f32 %v11098, %v11137
    %v11170 = vmul.f32 %v11099, %v11137
    %v11171 = vmul.f32 %v11100, %v11137
    %v11172 = vmul.f32 %v11101, %v11137
    %v11173 = vmul.f32 %v11102, %v11137
    %v11174 = vmul.f32 %v11103, %v11137
    %v11175 = vmul.f32 %v11104, %v11137
    %v11176 = vmul.f32 %v11105, %v11137
    %v11177 = vmul.f32 %v11106, %v11137
    %v11178 = vmul.f32 %v11107, %v11137
    %v11179 = vmul.f32 %v11108, %v11137
    %v11180 = vmul.f32 %v11109, %v11137
    %v11181 = vmul.f32 %v11110, %v11137
    %v11182 = vmul.f32 %v11111, %v11137
    %v11183 = vmul.f32 %v11112, %v11137
    %v11184 = vmul.f32 %v11113, %v11137
    %v11185 = vmul.f32 %v11114, %v11137
    %v11186 = vmul.f32 %v11115, %v11137
    %v11187 = vmul.f32 %v11116, %v11137
    %v11188 = vmul.f32 %v11117, %v11137
    %v11189 = vmul.f32 %v11118, %v11137
    %v11190 = vmul.f32 %v11119, %v11137
    %v11191 = vmul.f32 %v11120, %v11137
    %v11192 = vmul.f32 %v11121, %v11137
    %v11193 = vmul.f32 %v11122, %v11137
    %v11194 = vmul.f32 %v11123, %v11137
    %v11195 = vmul.f32 %v11124, %v11137
    %v11196 = vmul.f32 %v11125, %v11137
    %v11197 = vmul.f32 %v11126, %v11137
    %v11198 = vmul.f32 %v11127, %v11137
    %v11199 = vmul.f32 %v11128, %v11137
    %v11200 = vmul.f32 %v11129, %v11137
    %v11201 = vmul.f32 %v11130, %v11137
    %v11202 = vmul.f32 %v11131, %v11137
    %v11203 = vld [vmem:[%s10] sm:$0x1]
    %v11205 = vlaneseq
    %v11206 = vshrl.u32 %v11205, 7
    %v11207 = vsub.s32 0, %v11206
    %v11208 = vrot.slane %v11203, %v11207
    %v11210 = vadd.f32 %v11139, %v11208
    %v11211 = vadd.f32 %v11140, %v11208
    %v11212 = vadd.f32 %v11141, %v11208
    %v11213 = vadd.f32 %v11142, %v11208
    %v11214 = vadd.f32 %v11143, %v11208
    %v11215 = vadd.f32 %v11144, %v11208
    %v11216 = vadd.f32 %v11145, %v11208
    %v11217 = vadd.f32 %v11146, %v11208
    %v11218 = vadd.f32 %v11147, %v11208
    %v11219 = vadd.f32 %v11148, %v11208
    %v11220 = vadd.f32 %v11149, %v11208
    %v11221 = vadd.f32 %v11150, %v11208
    %v11222 = vadd.f32 %v11151, %v11208
    %v11223 = vadd.f32 %v11152, %v11208
    %v11224 = vadd.f32 %v11153, %v11208
    %v11225 = vadd.f32 %v11154, %v11208
    %v11226 = vadd.f32 %v11155, %v11208
    %v11227 = vadd.f32 %v11156, %v11208
    %v11228 = vadd.f32 %v11157, %v11208
    %v11229 = vadd.f32 %v11158, %v11208
    %v11230 = vadd.f32 %v11159, %v11208
    %v11231 = vadd.f32 %v11160, %v11208
    %v11232 = vadd.f32 %v11161, %v11208
    %v11233 = vadd.f32 %v11162, %v11208
    %v11234 = vadd.f32 %v11163, %v11208
    %v11235 = vadd.f32 %v11164, %v11208
    %v11236 = vadd.f32 %v11165, %v11208
    %v11237 = vadd.f32 %v11166, %v11208
    %v11238 = vadd.f32 %v11167, %v11208
    %v11239 = vadd.f32 %v11168, %v11208
    %v11240 = vadd.f32 %v11169, %v11208
    %v11241 = vadd.f32 %v11170, %v11208
    %v11242 = vadd.f32 %v11171, %v11208
    %v11243 = vadd.f32 %v11172, %v11208
    %v11244 = vadd.f32 %v11173, %v11208
    %v11245 = vadd.f32 %v11174, %v11208
    %v11246 = vadd.f32 %v11175, %v11208
    %v11247 = vadd.f32 %v11176, %v11208
    %v11248 = vadd.f32 %v11177, %v11208
    %v11249 = vadd.f32 %v11178, %v11208
    %v11250 = vadd.f32 %v11179, %v11208
    %v11251 = vadd.f32 %v11180, %v11208
    %v11252 = vadd.f32 %v11181, %v11208
    %v11253 = vadd.f32 %v11182, %v11208
    %v11254 = vadd.f32 %v11183, %v11208
    %v11255 = vadd.f32 %v11184, %v11208
    %v11256 = vadd.f32 %v11185, %v11208
    %v11257 = vadd.f32 %v11186, %v11208
    %v11258 = vadd.f32 %v11187, %v11208
    %v11259 = vadd.f32 %v11188, %v11208
    %v11260 = vadd.f32 %v11189, %v11208
    %v11261 = vadd.f32 %v11190, %v11208
    %v11262 = vadd.f32 %v11191, %v11208
    %v11263 = vadd.f32 %v11192, %v11208
    %v11264 = vadd.f32 %v11193, %v11208
    %v11265 = vadd.f32 %v11194, %v11208
    %v11266 = vadd.f32 %v11195, %v11208
    %v11267 = vadd.f32 %v11196, %v11208
    %v11268 = vadd.f32 %v11197, %v11208
    %v11269 = vadd.f32 %v11198, %v11208
    %v11270 = vadd.f32 %v11199, %v11208
    %v11271 = vadd.f32 %v11200, %v11208
    %v11272 = vadd.f32 %v11201, %v11208
    %v11273 = vadd.f32 %v11202, %v11208
    %v11274 = vadd.f32 %v10432, %v11210
    %v11275 = vadd.f32 %v10433, %v11211
    %v11276 = vadd.f32 %v10434, %v11212
    %v11277 = vadd.f32 %v10435, %v11213
    %v11278 = vadd.f32 %v10436, %v11214
    %v11279 = vadd.f32 %v10437, %v11215
    %v11280 = vadd.f32 %v10438, %v11216
    %v11281 = vadd.f32 %v10439, %v11217
    %v11282 = vadd.f32 %v10440, %v11218
    %v11283 = vadd.f32 %v10441, %v11219
    %v11284 = vadd.f32 %v10442, %v11220
    %v11285 = vadd.f32 %v10443, %v11221
    %v11286 = vadd.f32 %v10444, %v11222
    %v11287 = vadd.f32 %v10445, %v11223
    %v11288 = vadd.f32 %v10446, %v11224
    %v11289 = vadd.f32 %v10447, %v11225
    %v11290 = vadd.f32 %v10448, %v11226
    %v11291 = vadd.f32 %v10449, %v11227
    %v11292 = vadd.f32 %v10450, %v11228
    %v11293 = vadd.f32 %v10451, %v11229
    %v11294 = vadd.f32 %v10452, %v11230
    %v11295 = vadd.f32 %v10453, %v11231
    %v11296 = vadd.f32 %v10454, %v11232
    %v11297 = vadd.f32 %v10455, %v11233
    %v11298 = vadd.f32 %v10456, %v11234
    %v11299 = vadd.f32 %v10457, %v11235
    %v11300 = vadd.f32 %v10458, %v11236
    %v11301 = vadd.f32 %v10459, %v11237
    %v11302 = vadd.f32 %v10460, %v11238
    %v11303 = vadd.f32 %v10461, %v11239
    %v11304 = vadd.f32 %v10462, %v11240
    %v11305 = vadd.f32 %v10463, %v11241
    %v11306 = vadd.f32 %v10464, %v11242
    %v11307 = vadd.f32 %v10465, %v11243
    %v11308 = vadd.f32 %v10466, %v11244
    %v11309 = vadd.f32 %v10467, %v11245
    %v11310 = vadd.f32 %v10468, %v11246
    %v11311 = vadd.f32 %v10469, %v11247
    %v11312 = vadd.f32 %v10470, %v11248
    %v11313 = vadd.f32 %v10471, %v11249
    %v11314 = vadd.f32 %v10472, %v11250
    %v11315 = vadd.f32 %v10473, %v11251
    %v11316 = vadd.f32 %v10474, %v11252
    %v11317 = vadd.f32 %v10475, %v11253
    %v11318 = vadd.f32 %v10476, %v11254
    %v11319 = vadd.f32 %v10477, %v11255
    %v11320 = vadd.f32 %v10478, %v11256
    %v11321 = vadd.f32 %v10479, %v11257
    %v11322 = vadd.f32 %v10480, %v11258
    %v11323 = vadd.f32 %v10481, %v11259
    %v11324 = vadd.f32 %v10482, %v11260
    %v11325 = vadd.f32 %v10483, %v11261
    %v11326 = vadd.f32 %v10484, %v11262
    %v11327 = vadd.f32 %v10485, %v11263
    %v11328 = vadd.f32 %v10486, %v11264
    %v11329 = vadd.f32 %v10487, %v11265
    %v11330 = vadd.f32 %v10488, %v11266
    %v11331 = vadd.f32 %v10489, %v11267
    %v11332 = vadd.f32 %v10490, %v11268
    %v11333 = vadd.f32 %v10491, %v11269
    %v11334 = vadd.f32 %v10492, %v11270
    %v11335 = vadd.f32 %v10493, %v11271
    %v11336 = vadd.f32 %v10494, %v11272
    %v11337 = vadd.f32 %v10495, %v11273
    %v11338 = vadd.f32 %v11274, %v11275
    %v11339 = vadd.f32 %v11338, %v11276
    %v11340 = vadd.f32 %v11339, %v11277
    %v11341 = vadd.f32 %v11340, %v11278
    %v11342 = vadd.f32 %v11341, %v11279
    %v11343 = vadd.f32 %v11342, %v11280
    %v11344 = vadd.f32 %v11343, %v11281
    %v11345 = vadd.f32 %v11344, %v11282
    %v11346 = vadd.f32 %v11345, %v11283
    %v11347 = vadd.f32 %v11346, %v11284
    %v11348 = vadd.f32 %v11347, %v11285
    %v11349 = vadd.f32 %v11348, %v11286
    %v11350 = vadd.f32 %v11349, %v11287
    %v11351 = vadd.f32 %v11350, %v11288
    %v11352 = vadd.f32 %v11351, %v11289
    %v11353 = vadd.f32 %v11352, %v11290
    %v11354 = vadd.f32 %v11353, %v11291
    %v11355 = vadd.f32 %v11354, %v11292
    %v11356 = vadd.f32 %v11355, %v11293
    %v11357 = vadd.f32 %v11356, %v11294
    %v11358 = vadd.f32 %v11357, %v11295
    %v11359 = vadd.f32 %v11358, %v11296
    %v11360 = vadd.f32 %v11359, %v11297
    %v11361 = vadd.f32 %v11360, %v11298
    %v11362 = vadd.f32 %v11361, %v11299
    %v11363 = vadd.f32 %v11362, %v11300
    %v11364 = vadd.f32 %v11363, %v11301
    %v11365 = vadd.f32 %v11364, %v11302
    %v11366 = vadd.f32 %v11365, %v11303
    %v11367 = vadd.f32 %v11366, %v11304
    %v11368 = vadd.f32 %v11367, %v11305
    %v11369 = vrot.slane %v11368, 4
    %v11370 = vadd.f32 %v11368, %v11369
    %v11371 = vrot.slane %v11370, 2
    %v11372 = vadd.f32 %v11370, %v11371
    %v11373 = vrot.slane %v11372, 1
    %v11374 = vadd.f32 %v11372, %v11373
    %v11375 = vadd.f32 %v11306, %v11307
    %v11376 = vadd.f32 %v11375, %v11308
    %v11377 = vadd.f32 %v11376, %v11309
    %v11378 = vadd.f32 %v11377, %v11310
    %v11379 = vadd.f32 %v11378, %v11311
    %v11380 = vadd.f32 %v11379, %v11312
    %v11381 = vadd.f32 %v11380, %v11313
    %v11382 = vadd.f32 %v11381, %v11314
    %v11383 = vadd.f32 %v11382, %v11315
    %v11384 = vadd.f32 %v11383, %v11316
    %v11385 = vadd.f32 %v11384, %v11317
    %v11386 = vadd.f32 %v11385, %v11318
    %v11387 = vadd.f32 %v11386, %v11319
    %v11388 = vadd.f32 %v11387, %v11320
    %v11389 = vadd.f32 %v11388, %v11321
    %v11390 = vadd.f32 %v11389, %v11322
    %v11391 = vadd.f32 %v11390, %v11323
    %v11392 = vadd.f32 %v11391, %v11324
    %v11393 = vadd.f32 %v11392, %v11325
    %v11394 = vadd.f32 %v11393, %v11326
    %v11395 = vadd.f32 %v11394, %v11327
    %v11396 = vadd.f32 %v11395, %v11328
    %v11397 = vadd.f32 %v11396, %v11329
    %v11398 = vadd.f32 %v11397, %v11330
    %v11399 = vadd.f32 %v11398, %v11331
    %v11400 = vadd.f32 %v11399, %v11332
    %v11401 = vadd.f32 %v11400, %v11333
    %v11402 = vadd.f32 %v11401, %v11334
    %v11403 = vadd.f32 %v11402, %v11335
    %v11404 = vadd.f32 %v11403, %v11336
    %v11405 = vadd.f32 %v11404, %v11337
    %v11406 = vrot.slane %v11405, 4
    %v11407 = vadd.f32 %v11405, %v11406
    %v11408 = vrot.slane %v11407, 2
    %v11409 = vadd.f32 %v11407, %v11408
    %v11410 = vrot.slane %v11409, 1
    %v11411 = vadd.f32 %v11409, %v11410
    %v11412 = vmul.f32 %v11374, 0.00390625
    %v11413 = vmul.f32 %v11411, 0.00390625
    %v11414 = vld [vmem:[%s11] sm:$0xff]
    %v11415 = vld [vmem:[%s11 + $0x8] sm:$0xff]
    %v11416 = vld [vmem:[%s11 + $0x10] sm:$0xff]
    %v11417 = vld [vmem:[%s11 + $0x18] sm:$0xff]
    %v11418 = vld [vmem:[%s11 + $0x20] sm:$0xff]
    %v11419 = vld [vmem:[%s11 + $0x28] sm:$0xff]
    %v11420 = vld [vmem:[%s11 + $0x30] sm:$0xff]
    %v11421 = vld [vmem:[%s11 + $0x38] sm:$0xff]
    %v11422 = vld [vmem:[%s11 + $0x40] sm:$0xff]
    %v11423 = vld [vmem:[%s11 + $0x48] sm:$0xff]
    %v11424 = vld [vmem:[%s11 + $0x50] sm:$0xff]
    %v11425 = vld [vmem:[%s11 + $0x58] sm:$0xff]
    %v11426 = vld [vmem:[%s11 + $0x60] sm:$0xff]
    %v11427 = vld [vmem:[%s11 + $0x68] sm:$0xff]
    %v11428 = vld [vmem:[%s11 + $0x70] sm:$0xff]
    %v11429 = vld [vmem:[%s11 + $0x78] sm:$0xff]
    %vm11432 = vcmask 1041409
    %v11433 = vsel %vm11432, %v11413, %v11412
    %11435 = vmatprep.subr.mxu0 0.0
    %11436 = vmatpush1.msra.mxu0 %v11414
    %11437 = vmatprep.subr.mxu0 0.0
    %11438 = vmatpush1.msra.mxu0 %v11415
    %11439 = vmatprep.subr.mxu0 0.0
    %11440 = vmatpush1.msra.mxu0 %v11416
    %11441 = vmatprep.subr.mxu0 0.0
    %11442 = vmatpush1.msra.mxu0 %v11417
    %11443 = vmatprep.subr.mxu0 0.0
    %11444 = vmatpush1.msra.mxu0 %v11418
    %11445 = vmatprep.subr.mxu0 0.0
    %11446 = vmatpush1.msra.mxu0 %v11419
    %11447 = vmatprep.subr.mxu0 0.0
    %11448 = vmatpush1.msra.mxu0 %v11420
    %11449 = vmatprep.subr.mxu0 0.0
    %11450 = vmatpush1.msra.mxu0 %v11421
    %11451 = vmatprep.subr.mxu0 0.0
    %11452 = vmatpush1.msra.mxu0 %v11422
    %11453 = vmatprep.subr.mxu0 0.0
    %11454 = vmatpush1.msra.mxu0 %v11423
    %11455 = vmatprep.subr.mxu0 0.0
    %11456 = vmatpush1.msra.mxu0 %v11424
    %11457 = vmatprep.subr.mxu0 0.0
    %11458 = vmatpush1.msra.mxu0 %v11425
    %11459 = vmatprep.subr.mxu0 0.0
    %11460 = vmatpush1.msra.mxu0 %v11426
    %11461 = vmatprep.subr.mxu0 0.0
    %11462 = vmatpush1.msra.mxu0 %v11427
    %11463 = vmatprep.subr.mxu0 0.0
    %11464 = vmatpush1.msra.mxu0 %v11428
    %11465 = vmatprep.subr.mxu0 0.0
    %11466 = vmatpush1.msra.mxu0 %v11429
    %11467 = vmatprep.subr.mxu0 0.0
    %11468 = vmatpush1.msra.mxu0 0.0
    %11469 = vmatprep.subr.mxu0 0.0
    %11470 = vmatpush1.msra.mxu0 0.0
    %11471 = vmatprep.subr.mxu0 0.0
    %11472 = vmatpush1.msra.mxu0 0.0
    %11473 = vmatprep.subr.mxu0 0.0
    %11474 = vmatpush1.msra.mxu0 0.0
    %11475 = vmatprep.subr.mxu0 0.0
    %11476 = vmatpush1.msra.mxu0 0.0
    %11477 = vmatprep.subr.mxu0 0.0
    %11478 = vmatpush1.msra.mxu0 0.0
    %11479 = vmatprep.subr.mxu0 0.0
    %11480 = vmatpush1.msra.mxu0 0.0
    %11481 = vmatprep.subr.mxu0 0.0
    %11482 = vmatpush1.msra.mxu0 0.0
    %11483 = vmatprep.subr.mxu0 0.0
    %11484 = vmatpush1.msra.mxu0 0.0
    %11485 = vmatprep.subr.mxu0 0.0
    %11486 = vmatpush1.msra.mxu0 0.0
    %11487 = vmatprep.subr.mxu0 0.0
    %11488 = vmatpush1.msra.mxu0 0.0
    %11489 = vmatprep.subr.mxu0 0.0
    %11490 = vmatpush1.msra.mxu0 0.0
    %11491 = vmatprep.subr.mxu0 0.0
    %11492 = vmatpush1.msra.mxu0 0.0
    %11493 = vmatprep.subr.mxu0 0.0
    %11494 = vmatpush1.msra.mxu0 0.0
    %11495 = vmatprep.subr.mxu0 0.0
    %11496 = vmatpush1.msra.mxu0 0.0
    %11497 = vmatprep.subr.mxu0 0.0
    %11498 = vmatpush1.msra.mxu0 0.0
    %11499 = vmatprep.mubr.f32.mxu0 0.0
    %11500 = vmatmul.mubr.f32.gmra.mrb[0].mxu0 %v11433
    %v11501 = vpop.f32.mrb[0].mxu0
    %v11502 = vadd.f32 0.0, %v11501
    %v11503 = vpop.f32.mrb[0].mxu0
    %11504 = vdwg.mxu0
    %v11505 = vmax.f32 %v11502, 0.0
    %v11506 = vld [vmem:[%s12] sm:$0xff]
    %v11507 = vld [vmem:[%s12 + $0x8] sm:$0xff]
    %v11508 = vld [vmem:[%s12 + $0x10] sm:$0xff]
    %v11509 = vld [vmem:[%s12 + $0x18] sm:$0xff]
    %v11510 = vld [vmem:[%s12 + $0x20] sm:$0xff]
    %v11511 = vld [vmem:[%s12 + $0x28] sm:$0xff]
    %v11512 = vld [vmem:[%s12 + $0x30] sm:$0xff]
    %v11513 = vld [vmem:[%s12 + $0x38] sm:$0xff]
    %v11514 = vld [vmem:[%s12 + $0x40] sm:$0xff]
    %v11515 = vld [vmem:[%s12 + $0x48] sm:$0xff]
    %v11516 = vld [vmem:[%s12 + $0x50] sm:$0xff]
    %v11517 = vld [vmem:[%s12 + $0x58] sm:$0xff]
    %v11518 = vld [vmem:[%s12 + $0x60] sm:$0xff]
    %v11519 = vld [vmem:[%s12 + $0x68] sm:$0xff]
    %v11520 = vld [vmem:[%s12 + $0x70] sm:$0xff]
    %v11521 = vld [vmem:[%s12 + $0x78] sm:$0xff]
    %11522 = vmatprep.subr.mxu0 0.0
    %11523 = vmatpush1.msra.mxu0 %v11506
    %11524 = vmatprep.subr.mxu0 0.0
    %11525 = vmatpush1.msra.mxu0 %v11507
    %11526 = vmatprep.subr.mxu0 0.0
    %11527 = vmatpush1.msra.mxu0 %v11508
    %11528 = vmatprep.subr.mxu0 0.0
    %11529 = vmatpush1.msra.mxu0 %v11509
    %11530 = vmatprep.subr.mxu0 0.0
    %11531 = vmatpush1.msra.mxu0 %v11510
    %11532 = vmatprep.subr.mxu0 0.0
    %11533 = vmatpush1.msra.mxu0 %v11511
    %11534 = vmatprep.subr.mxu0 0.0
    %11535 = vmatpush1.msra.mxu0 %v11512
    %11536 = vmatprep.subr.mxu0 0.0
    %11537 = vmatpush1.msra.mxu0 %v11513
    %11538 = vmatprep.subr.mxu0 0.0
    %11539 = vmatpush1.msra.mxu0 %v11514
    %11540 = vmatprep.subr.mxu0 0.0
    %11541 = vmatpush1.msra.mxu0 %v11515
    %11542 = vmatprep.subr.mxu0 0.0
    %11543 = vmatpush1.msra.mxu0 %v11516
    %11544 = vmatprep.subr.mxu0 0.0
    %11545 = vmatpush1.msra.mxu0 %v11517
    %11546 = vmatprep.subr.mxu0 0.0
    %11547 = vmatpush1.msra.mxu0 %v11518
    %11548 = vmatprep.subr.mxu0 0.0
    %11549 = vmatpush1.msra.mxu0 %v11519
    %11550 = vmatprep.subr.mxu0 0.0
    %11551 = vmatpush1.msra.mxu0 %v11520
    %11552 = vmatprep.subr.mxu0 0.0
    %11553 = vmatpush1.msra.mxu0 %v11521
    %11554 = vmatprep.subr.mxu0 0.0
    %11555 = vmatpush1.msra.mxu0 0.0
    %11556 = vmatprep.subr.mxu0 0.0
    %11557 = vmatpush1.msra.mxu0 0.0
    %11558 = vmatprep.subr.mxu0 0.0
    %11559 = vmatpush1.msra.mxu0 0.0
    %11560 = vmatprep.subr.mxu0 0.0
    %11561 = vmatpush1.msra.mxu0 0.0
    %11562 = vmatprep.subr.mxu0 0.0
    %11563 = vmatpush1.msra.mxu0 0.0
    %11564 = vmatprep.subr.mxu0 0.0
    %11565 = vmatpush1.msra.mxu0 0.0
    %11566 = vmatprep.subr.mxu0 0.0
    %11567 = vmatpush1.msra.mxu0 0.0
    %11568 = vmatprep.subr.mxu0 0.0
    %11569 = vmatpush1.msra.mxu0 0.0
    %11570 = vmatprep.subr.mxu0 0.0
    %11571 = vmatpush1.msra.mxu0 0.0
    %11572 = vmatprep.subr.mxu0 0.0
    %11573 = vmatpush1.msra.mxu0 0.0
    %11574 = vmatprep.subr.mxu0 0.0
    %11575 = vmatpush1.msra.mxu0 0.0
    %11576 = vmatprep.subr.mxu0 0.0
    %11577 = vmatpush1.msra.mxu0 0.0
    %11578 = vmatprep.subr.mxu0 0.0
    %11579 = vmatpush1.msra.mxu0 0.0
    %11580 = vmatprep.subr.mxu0 0.0
    %11581 = vmatpush1.msra.mxu0 0.0
    %11582 = vmatprep.subr.mxu0 0.0
    %11583 = vmatpush1.msra.mxu0 0.0
    %11584 = vmatprep.subr.mxu0 0.0
    %11585 = vmatpush1.msra.mxu0 0.0
    %11586 = vmatprep.mubr.f32.mxu0 0.0
    %11587 = vmatmul.mubr.f32.gmra.mrb[0].mxu0 %v11505
    %v11588 = vpop.f32.mrb[0].mxu0
    %v11589 = vadd.f32 0.0, %v11588
    %v11590 = vpop.f32.mrb[0].mxu0
    %11591 = vdwg.mxu0
    %v11592 = vxor.u32 %v11589, 2147483648
    %v11593 = vmul.f32 %v11592, 1.442695
    %v11594 = vpow.pop %v11593
    %v11595 = vadd.f32 %v11594, 1.0
    %v11596 = vrcp.pop %v11595
    %v11597 = vmul.f32 1.0, %v11596
    %v11600 = vunpack.c.l.s4 1966171168
    %v11601 = vunpack.c.0.s8 %v11600
    %v11602 = vlaneseq
    %v11603 = vshrl.u32 %v11602, 7
    %v11604 = vsub.s32 %v11601, %v11603
    %v11605 = vrot.slane %v11597, %v11604
    %v11606 = vcombine.high %v11605, %v11605
    %v11608 = vunpack.c.l.s4 1966171168
    %v11609 = vunpack.c.0.s8 %v11608
    %v11610 = vlaneseq
    %v11611 = vshrl.u32 %v11610, 7
    %v11612 = vsub.s32 %v11609, %v11611
    %v11613 = vrot.slane %v11605, %v11612
    %v11615 = vunpack.c.l.s4 1966171168
    %v11616 = vunpack.c.0.s8 %v11615
    %v11617 = vlaneseq
    %v11618 = vshrl.u32 %v11617, 7
    %v11619 = vsub.s32 %v11616, %v11618
    %v11620 = vrot.slane %v11606, %v11619
    %v11621 = vlaneseq
    %v11622 = vshrl.u32 %v11621, 7
    %v11623 = vsub.s32 0, %v11622
    %v11624 = vrot.slane %v11613, %v11623
    %v11625 = vlaneseq
    %v11626 = vshrl.u32 %v11625, 7
    %v11627 = vsub.s32 0, %v11626
    %v11628 = vrot.slane %v11620, %v11627
    %v11631 = vmul.f32 %v11274, %v11624
    %v11632 = vmul.f32 %v11275, %v11624
    %v11633 = vmul.f32 %v11276, %v11624
    %v11634 = vmul.f32 %v11277, %v11624
    %v11635 = vmul.f32 %v11278, %v11624
    %v11636 = vmul.f32 %v11279, %v11624
    %v11637 = vmul.f32 %v11280, %v11624
    %v11638 = vmul.f32 %v11281, %v11624
    %v11639 = vmul.f32 %v11282, %v11624
    %v11640 = vmul.f32 %v11283, %v11624
    %v11641 = vmul.f32 %v11284, %v11624
    %v11642 = vmul.f32 %v11285, %v11624
    %v11643 = vmul.f32 %v11286, %v11624
    %v11644 = vmul.f32 %v11287, %v11624
    %v11645 = vmul.f32 %v11288, %v11624
    %v11646 = vmul.f32 %v11289, %v11624
    %v11647 = vmul.f32 %v11290, %v11624
    %v11648 = vmul.f32 %v11291, %v11624
    %v11649 = vmul.f32 %v11292, %v11624
    %v11650 = vmul.f32 %v11293, %v11624
    %v11651 = vmul.f32 %v11294, %v11624
    %v11652 = vmul.f32 %v11295, %v11624
    %v11653 = vmul.f32 %v11296, %v11624
    %v11654 = vmul.f32 %v11297, %v11624
    %v11655 = vmul.f32 %v11298, %v11624
    %v11656 = vmul.f32 %v11299, %v11624
    %v11657 = vmul.f32 %v11300, %v11624
    %v11658 = vmul.f32 %v11301, %v11624
    %v11659 = vmul.f32 %v11302, %v11624
    %v11660 = vmul.f32 %v11303, %v11624
    %v11661 = vmul.f32 %v11304, %v11624
    %v11662 = vmul.f32 %v11305, %v11624
    %v11663 = vmul.f32 %v11306, %v11628
    %v11664 = vmul.f32 %v11307, %v11628
    %v11665 = vmul.f32 %v11308, %v11628
    %v11666 = vmul.f32 %v11309, %v11628
    %v11667 = vmul.f32 %v11310, %v11628
    %v11668 = vmul.f32 %v11311, %v11628
    %v11669 = vmul.f32 %v11312, %v11628
    %v11670 = vmul.f32 %v11313, %v11628
    %v11671 = vmul.f32 %v11314, %v11628
    %v11672 = vmul.f32 %v11315, %v11628
    %v11673 = vmul.f32 %v11316, %v11628
    %v11674 = vmul.f32 %v11317, %v11628
    %v11675 = vmul.f32 %v11318, %v11628
    %v11676 = vmul.f32 %v11319, %v11628
    %v11677 = vmul.f32 %v11320, %v11628
    %v11678 = vmul.f32 %v11321, %v11628
    %v11679 = vmul.f32 %v11322, %v11628
    %v11680 = vmul.f32 %v11323, %v11628
    %v11681 = vmul.f32 %v11324, %v11628
    %v11682 = vmul.f32 %v11325, %v11628
    %v11683 = vmul.f32 %v11326, %v11628
    %v11684 = vmul.f32 %v11327, %v11628
    %v11685 = vmul.f32 %v11328, %v11628
    %v11686 = vmul.f32 %v11329, %v11628
    %v11687 = vmul.f32 %v11330, %v11628
    %v11688 = vmul.f32 %v11331, %v11628
    %v11689 = vmul.f32 %v11332, %v11628
    %v11690 = vmul.f32 %v11333, %v11628
    %v11691 = vmul.f32 %v11334, %v11628
    %v11692 = vmul.f32 %v11335, %v11628
    %v11693 = vmul.f32 %v11336, %v11628
    %v11694 = vmul.f32 %v11337, %v11628
    %11695 = vst [vmem:[#allocation6] sm:$0xff] %v11631
    %11696 = vst [vmem:[#allocation6 + $0x8] sm:$0xff] %v11632
    %11697 = vst [vmem:[#allocation6 + $0x10] sm:$0xff] %v11633
    %11698 = vst [vmem:[#allocation6 + $0x18] sm:$0xff] %v11634
    %11699 = vst [vmem:[#allocation6 + $0x20] sm:$0xff] %v11635
    %11700 = vst [vmem:[#allocation6 + $0x28] sm:$0xff] %v11636
    %11701 = vst [vmem:[#allocation6 + $0x30] sm:$0xff] %v11637
    %11702 = vst [vmem:[#allocation6 + $0x38] sm:$0xff] %v11638
    %11703 = vst [vmem:[#allocation6 + $0x40] sm:$0xff] %v11639
    %11704 = vst [vmem:[#allocation6 + $0x48] sm:$0xff] %v11640
    %11705 = vst [vmem:[#allocation6 + $0x50] sm:$0xff] %v11641
    %11706 = vst [vmem:[#allocation6 + $0x58] sm:$0xff] %v11642
    %11707 = vst [vmem:[#allocation6 + $0x60] sm:$0xff] %v11643
    %11708 = vst [vmem:[#allocation6 + $0x68] sm:$0xff] %v11644
    %11709 = vst [vmem:[#allocation6 + $0x70] sm:$0xff] %v11645
    %11710 = vst [vmem:[#allocation6 + $0x78] sm:$0xff] %v11646
    %11711 = vst [vmem:[#allocation6 + $0x80] sm:$0xff] %v11647
    %11712 = vst [vmem:[#allocation6 + $0x88] sm:$0xff] %v11648
    %11713 = vst [vmem:[#allocation6 + $0x90] sm:$0xff] %v11649
    %11714 = vst [vmem:[#allocation6 + $0x98] sm:$0xff] %v11650
    %11715 = vst [vmem:[#allocation6 + $0xa0] sm:$0xff] %v11651
    %11716 = vst [vmem:[#allocation6 + $0xa8] sm:$0xff] %v11652
    %11717 = vst [vmem:[#allocation6 + $0xb0] sm:$0xff] %v11653
    %11718 = vst [vmem:[#allocation6 + $0xb8] sm:$0xff] %v11654
    %11719 = vst [vmem:[#allocation6 + $0xc0] sm:$0xff] %v11655
    %11720 = vst [vmem:[#allocation6 + $0xc8] sm:$0xff] %v11656
    %11721 = vst [vmem:[#allocation6 + $0xd0] sm:$0xff] %v11657
    %11722 = vst [vmem:[#allocation6 + $0xd8] sm:$0xff] %v11658
    %11723 = vst [vmem:[#allocation6 + $0xe0] sm:$0xff] %v11659
    %11724 = vst [vmem:[#allocation6 + $0xe8] sm:$0xff] %v11660
    %11725 = vst [vmem:[#allocation6 + $0xf0] sm:$0xff] %v11661
    %11726 = vst [vmem:[#allocation6 + $0xf8] sm:$0xff] %v11662
    %11727 = vst [vmem:[#allocation6 + $0x100] sm:$0xff] %v11663
    %11728 = vst [vmem:[#allocation6 + $0x108] sm:$0xff] %v11664
    %11729 = vst [vmem:[#allocation6 + $0x110] sm:$0xff] %v11665
    %11730 = vst [vmem:[#allocation6 + $0x118] sm:$0xff] %v11666
    %11731 = vst [vmem:[#allocation6 + $0x120] sm:$0xff] %v11667
    %11732 = vst [vmem:[#allocation6 + $0x128] sm:$0xff] %v11668
    %11733 = vst [vmem:[#allocation6 + $0x130] sm:$0xff] %v11669
    %11734 = vst [vmem:[#allocation6 + $0x138] sm:$0xff] %v11670
    %11735 = vst [vmem:[#allocation6 + $0x140] sm:$0xff] %v11671
    %11736 = vst [vmem:[#allocation6 + $0x148] sm:$0xff] %v11672
    %11737 = vst [vmem:[#allocation6 + $0x150] sm:$0xff] %v11673
    %11738 = vst [vmem:[#allocation6 + $0x158] sm:$0xff] %v11674
    %11739 = vst [vmem:[#allocation6 + $0x160] sm:$0xff] %v11675
    %11740 = vst [vmem:[#allocation6 + $0x168] sm:$0xff] %v11676
    %11741 = vst [vmem:[#allocation6 + $0x170] sm:$0xff] %v11677
    %11742 = vst [vmem:[#allocation6 + $0x178] sm:$0xff] %v11678
    %11743 = vst [vmem:[#allocation6 + $0x180] sm:$0xff] %v11679
    %11744 = vst [vmem:[#allocation6 + $0x188] sm:$0xff] %v11680
    %11745 = vst [vmem:[#allocation6 + $0x190] sm:$0xff] %v11681
    %11746 = vst [vmem:[#allocation6 + $0x198] sm:$0xff] %v11682
    %11747 = vst [vmem:[#allocation6 + $0x1a0] sm:$0xff] %v11683
    %11748 = vst [vmem:[#allocation6 + $0x1a8] sm:$0xff] %v11684
    %11749 = vst [vmem:[#allocation6 + $0x1b0] sm:$0xff] %v11685
    %11750 = vst [vmem:[#allocation6 + $0x1b8] sm:$0xff] %v11686
    %11751 = vst [vmem:[#allocation6 + $0x1c0] sm:$0xff] %v11687
    %11752 = vst [vmem:[#allocation6 + $0x1c8] sm:$0xff] %v11688
    %11753 = vst [vmem:[#allocation6 + $0x1d0] sm:$0xff] %v11689
    %11754 = vst [vmem:[#allocation6 + $0x1d8] sm:$0xff] %v11690
    %11755 = vst [vmem:[#allocation6 + $0x1e0] sm:$0xff] %v11691
    %11756 = vst [vmem:[#allocation6 + $0x1e8] sm:$0xff] %v11692
    %11757 = vst [vmem:[#allocation6 + $0x1f0] sm:$0xff] %v11693
    %11758 = vst [vmem:[#allocation6 + $0x1f8] sm:$0xff] %v11694
    // Predicated region
    $region58: #{tpu_custom_call.1} parent=1 // pred_check
      _
    $region59: #{tpu_custom_call.1} parent=1 // pred_check_branch
      %11760 = sbr.rel (0) target = $region61
    $region60: #{tpu_custom_call.1} parent=1 // pred_region
      %s11762 = ssub.s32 8192, 8192
      %11763 = vsyncadd [#allocation5], %s11762
      %s11764 = sshll.u32 [#allocation6], 4
      %s11765 = int_to_ptr.vmem [resolvable:$true] %s11764
      %11770 = dma.vmem_to_hbm [thread:$0]  %s11765, 8192, %s13, [#allocation5], 128, 128, 8
    $region61: #{tpu_custom_call.1} parent=1 // pred_fallthru
      _
    // Predicated region
    $region62: #{tpu_custom_call.1} parent=1 // pred_check
      _
    $region63: #{tpu_custom_call.1} parent=1 // pred_check_branch
      %11772 = sbr.rel (0) target = $region65
    $region64: #{tpu_custom_call.1} parent=1 // pred_region
      %11773 = dma.done [#allocation5], 8192
    $region65: #{tpu_custom_call.1} parent=1 // pred_fallthru
      _
    %11774 = vsyncpa [#allocation4], 1
    %11775 = vsyncpa [#allocation5], 1

</llo_original>
